<compile_context>
chip_gen: v6e
topology: v6e:2x2x1
jax: 0.10.0
libtpu: 0.0.40
codegen_flags: <defaults>
</compile_context>

<pallas_src>
import math
import functools

import jax
import jax.numpy as jnp
from jax.experimental import pallas as pl
from jax.experimental.pallas import tpu as pltpu

# ---------------- config ----------------
VOCAB = 100
MAX_POS = 16
HIDDEN = 32
NUM_HEADS = 4
HEAD_DIM = HIDDEN // NUM_HEADS
INTERMEDIATE = 64
NUM_LAYERS = 2
NUM_LABELS = 3
BATCH = 2
SEQ = 8
LN_EPS = 1e-12

# lane-dense padded sizes (last dim of every VMEM tile = 128)
LANE = 128
HP = LANE   # padded hidden
IP = LANE   # padded intermediate
VP = LANE   # padded vocab
LP = LANE   # padded num_labels


def _gelu_tanh(x):
    # TODO(synk): HF BERT's default GELU is the exact erf form; tanh approx differs ~1e-3.
    return 0.5 * x * (1.0 + jnp.tanh(0.7978845608028654 * (x + 0.044715 * x * x * x)))


# ---------------- fused Pallas kernel (entire forward pass) ----------------
def _fused_bert_kernel(ids_ref, amask_ref, wemb_ref, pos_ref, eg_ref, eb_ref,
                       aw_ref, ab_ref, lng_ref, lnb_ref,
                       w1_ref, b1_ref, w2_ref, b2_ref,
                       wp_ref, bp_ref, wc_ref, bc_ref,
                       out_ref, *, batch, seq, num_layers, num_heads):
    f32 = jnp.float32
    d = HEAD_DIM
    scale = 1.0 / math.sqrt(d)
    bs = batch * seq

    # mask of the true hidden lanes (first HIDDEN of HP); padded lanes stay exactly 0.
    lane_ids = jax.lax.broadcasted_iota(jnp.int32, (1, HP), 1)
    hmask = (lane_ids < HIDDEN).astype(f32)
    inv_h = 1.0 / HIDDEN

    def layer_norm(x, g, b):
        # LayerNorm over the true hidden lanes only (padded gamma/beta are zero).
        mu = jnp.sum(x * hmask, axis=-1, keepdims=True) * inv_h
        xc = (x - mu) * hmask
        var = jnp.sum(xc * xc, axis=-1, keepdims=True) * inv_h
        return xc * jax.lax.rsqrt(var + LN_EPS) * g + b

    # ---- embeddings: in-kernel gather via one-hot MXU matmul + (pos + type) + LN ----
    ids = ids_ref[...]                                               # [bs, 1] int32
    vcol = jax.lax.broadcasted_iota(jnp.int32, (bs, VP), 1)
    onehot = (vcol == ids).astype(f32)                               # [bs, VP]
    x = jnp.dot(onehot, wemb_ref[...], preferred_element_type=f32)   # [bs, HP]
    pos = pos_ref[...][0:seq, :]                                     # [seq, HP] (pos + type-0)
    x = x + jnp.concatenate([pos] * batch, axis=0)
    x = layer_norm(x, eg_ref[...], eb_ref[...])
    # embedding dropout: identity (eval mode)

    # additive key-side mask: 0 where attended, -10000 where padded
    add_mask = (1.0 - amask_ref[...].astype(f32)) * -10000.0         # [batch, seq]

    for l in range(num_layers):
        wq, wk, wv, wo = [aw_ref[4 * l + j] for j in range(4)]
        bq, bk, bv, bo = [ab_ref[4 * l + j] for j in range(4)]
        q = jnp.dot(x, wq, preferred_element_type=f32) + bq          # [bs, HP]
        k = jnp.dot(x, wk, preferred_element_type=f32) + bk
        v = jnp.dot(x, wv, preferred_element_type=f32) + bv

        # self-attention: all (batch, head) tiles handled in this single invocation.
        # Head merge + output projection are fused:  attn = sum_h ctx_h @ Wo[h*d:(h+1)*d, :]
        per_batch = []
        for b in range(batch):
            rows = slice(b * seq, (b + 1) * seq)
            mb = add_mask[b:b + 1, :]                                # [1, seq]
            acc = jnp.zeros((seq, HP), f32)
            for h in range(num_heads):
                lanes = slice(h * d, (h + 1) * d)
                qh, kh, vh = q[rows, lanes], k[rows, lanes], v[rows, lanes]
                s = jnp.dot(qh, kh.T, preferred_element_type=f32) * scale + mb
                s = s - jnp.max(s, axis=-1, keepdims=True)
                p = jnp.exp(s)
                p = p * pl.reciprocal(jnp.sum(p, axis=-1, keepdims=True), approx=True)
                ctx = jnp.dot(p, vh, preferred_element_type=f32)     # [seq, d]
                acc = acc + jnp.dot(ctx, wo[lanes, :], preferred_element_type=f32)
            per_batch.append(acc)
        attn_out = jnp.concatenate(per_batch, axis=0) + bo           # [bs, HP]

        x = layer_norm(attn_out + x, lng_ref[2 * l], lnb_ref[2 * l])

        # feed-forward; intermediate never leaves VMEM/vregs
        h1 = jnp.dot(x, w1_ref[l], preferred_element_type=f32) + b1_ref[l]
        h1 = _gelu_tanh(h1)
        ffn = jnp.dot(h1, w2_ref[l], preferred_element_type=f32) + b2_ref[l]
        x = layer_norm(ffn + x, lng_ref[2 * l + 1], lnb_ref[2 * l + 1])

    # BERT pooler (tanh) + classifier, computed lane-dense for all token rows;
    # the wrapper keeps only the [CLS] rows and the real label lanes.
    pooled = jnp.tanh(jnp.dot(x, wp_ref[...], preferred_element_type=f32) + bp_ref[...])
    # pooled-output dropout: identity (eval mode)
    out_ref[...] = jnp.dot(pooled, wc_ref[...], preferred_element_type=f32) + bc_ref[...]


# ---------------- wrapper: single pallas_call for the whole forward ----------------
@jax.jit
def sentence_classifier_forward(packed, input_ids, attention_mask):
    B, S = input_ids.shape
    kernel = functools.partial(_fused_bert_kernel, batch=B, seq=S,
                               num_layers=NUM_LAYERS, num_heads=NUM_HEADS)
    vmem = pl.BlockSpec(memory_space=pltpu.MemorySpace.VMEM)
    out = pl.pallas_call(
        kernel,
        out_shape=jax.ShapeDtypeStruct((B * S, LP), jnp.float32),
        in_specs=[vmem] * 18,
        out_specs=vmem,
    )(input_ids.reshape(B * S, 1).astype(jnp.int32),
      attention_mask.astype(jnp.int32),
      packed["word_emb"], packed["pos_type"], packed["emb_ln_g"], packed["emb_ln_b"],
      packed["attn_w"], packed["attn_b"], packed["ln_g"], packed["ln_b"],
      packed["w1"], packed["b1"], packed["w2"], packed["b2"],
      packed["wp"], packed["bp"], packed["wc"], packed["bc"])
    return out[::S, :NUM_LABELS]          # [CLS]-row logits, un-padded labels


# ---------------- parameter init (deterministic, synthetic) ----------------
def init_params(key):
    def nrm(k, shape):
        return jax.random.normal(k, shape, dtype=jnp.float32) * 0.02

    keys = jax.random.split(key, 8 + NUM_LAYERS)
    params = {
        "word_emb": nrm(keys[0], (VOCAB, HIDDEN)),
        "pos_emb": nrm(keys[1], (MAX_POS, HIDDEN)),
        "type_emb": nrm(keys[2], (2, HIDDEN)),
        "emb_ln_g": jnp.ones((HIDDEN,), jnp.float32),
        "emb_ln_b": jnp.zeros((HIDDEN,), jnp.float32),
        "wp": nrm(keys[3], (HIDDEN, HIDDEN)),       # pooler dense
        "bp": jnp.zeros((HIDDEN,), jnp.float32),
        "wc": nrm(keys[4], (HIDDEN, NUM_LABELS)),   # classifier
        "bc": jnp.zeros((NUM_LABELS,), jnp.float32),
        "layers": [],
    }
    for l in range(NUM_LAYERS):
        lk = jax.random.split(keys[8 + l], 6)
        params["layers"].append({
            "wq": nrm(lk[0], (HIDDEN, HIDDEN)), "bq": jnp.zeros((HIDDEN,), jnp.float32),
            "wk": nrm(lk[1], (HIDDEN, HIDDEN)), "bk": jnp.zeros((HIDDEN,), jnp.float32),
            "wv": nrm(lk[2], (HIDDEN, HIDDEN)), "bv": jnp.zeros((HIDDEN,), jnp.float32),
            "wo": nrm(lk[3], (HIDDEN, HIDDEN)), "bo": jnp.zeros((HIDDEN,), jnp.float32),
            "ln1_g": jnp.ones((HIDDEN,), jnp.float32), "ln1_b": jnp.zeros((HIDDEN,), jnp.float32),
            "w1": nrm(lk[4], (HIDDEN, INTERMEDIATE)), "b1": jnp.zeros((INTERMEDIATE,), jnp.float32),
            "w2": nrm(lk[5], (INTERMEDIATE, HIDDEN)), "b2": jnp.zeros((HIDDEN,), jnp.float32),
            "ln2_g": jnp.ones((HIDDEN,), jnp.float32), "ln2_b": jnp.zeros((HIDDEN,), jnp.float32),
        })
    return params


def _pad2(a, rows, cols):
    return jnp.pad(a, ((0, rows - a.shape[0]), (0, cols - a.shape[1])))


def _padrow(v, cols):
    return jnp.pad(v, (0, cols - v.shape[0])).reshape(1, cols)


def pack_params(p):
    """Pad every lane dim to 128 and stack per-layer weights (done once, offline)."""
    packed = {
        "word_emb": _pad2(p["word_emb"], VP, HP),
        "pos_type": _pad2(p["pos_emb"] + p["type_emb"][0][None, :], MAX_POS, HP),
        "emb_ln_g": _padrow(p["emb_ln_g"], HP),
        "emb_ln_b": _padrow(p["emb_ln_b"], HP),
        "wp": _pad2(p["wp"], HP, HP), "bp": _padrow(p["bp"], HP),
        "wc": _pad2(p["wc"], HP, LP), "bc": _padrow(p["bc"], LP),
    }
    aw, ab, lg, lb, w1, b1, w2, b2 = [], [], [], [], [], [], [], []
    for lyr in p["layers"]:
        for wn, bn in (("wq", "bq"), ("wk", "bk"), ("wv", "bv"), ("wo", "bo")):
            aw.append(_pad2(lyr[wn], HP, HP))
            ab.append(_padrow(lyr[bn], HP))
        lg.append(_padrow(lyr["ln1_g"], HP)); lg.append(_padrow(lyr["ln2_g"], HP))
        lb.append(_padrow(lyr["ln1_b"], HP)); lb.append(_padrow(lyr["ln2_b"], HP))
        w1.append(_pad2(lyr["w1"], HP, IP)); b1.append(_padrow(lyr["b1"], IP))
        w2.append(_pad2(lyr["w2"], IP, HP)); b2.append(_padrow(lyr["b2"], HP))
    packed.update(attn_w=jnp.stack(aw), attn_b=jnp.stack(ab),
                  ln_g=jnp.stack(lg), ln_b=jnp.stack(lb),
                  w1=jnp.stack(w1), b1=jnp.stack(b1),
                  w2=jnp.stack(w2), b2=jnp.stack(b2))
    return packed


# ---------------- pure-JAX reference (mirrors the PyTorch module in eval mode) ----------------
def _reference_forward(params, input_ids, attention_mask):
    B, S = input_ids.shape
    x = (params["word_emb"][input_ids] + params["pos_emb"][:S][None]
         + params["type_emb"][0][None, None])

    def ln(x, g, b):
        mu = x.mean(-1, keepdims=True)
        var = ((x - mu) ** 2).mean(-1, keepdims=True)
        return (x - mu) * jax.lax.rsqrt(var + LN_EPS) * g + b

    x = ln(x, params["emb_ln_g"], params["emb_ln_b"])
    mask = (1.0 - attention_mask.astype(jnp.float32)) * -10000.0
    for lyr in params["layers"]:
        def heads(t):
            return t.reshape(B, S, NUM_HEADS, HEAD_DIM).transpose(0, 2, 1, 3)
        q = heads(x @ lyr["wq"] + lyr["bq"])
        k = heads(x @ lyr["wk"] + lyr["bk"])
        v = heads(x @ lyr["wv"] + lyr["bv"])
        s = jnp.einsum("bhqd,bhkd->bhqk", q, k) / math.sqrt(HEAD_DIM)
        s = s + mask[:, None, None, :]
        p = jax.nn.softmax(s, axis=-1)
        ctx = jnp.einsum("bhqk,bhkd->bhqd", p, v).transpose(0, 2, 1, 3).reshape(B, S, HIDDEN)
        x = ln(ctx @ lyr["wo"] + lyr["bo"] + x, lyr["ln1_g"], lyr["ln1_b"])
        h1 = _gelu_tanh(x @ lyr["w1"] + lyr["b1"])
        x = ln(h1 @ lyr["w2"] + lyr["b2"] + x, lyr["ln2_g"], lyr["ln2_b"])
    pooled = jnp.tanh(x[:, 0, :] @ params["wp"] + params["bp"])
    return pooled @ params["wc"] + params["bc"]


if __name__ == "__main__":
    key = jax.random.PRNGKey(0)
    pkey, ikey = jax.random.split(key)
    params = init_params(pkey)
    packed = pack_params(params)

    input_ids = jax.random.randint(ikey, (BATCH, SEQ), 0, VOCAB, dtype=jnp.int32)
    attention_mask = jnp.ones((BATCH, SEQ), dtype=jnp.int32).at[1, 5:].set(0)  # pad tail of 2nd seq

    logits = sentence_classifier_forward(packed, input_ids, attention_mask)
    jax.block_until_ready(logits)

    assert logits.shape == (BATCH, NUM_LABELS)
    assert bool(jnp.all(jnp.isfinite(logits)))
    ref = _reference_forward(params, input_ids, attention_mask)
    assert bool(jnp.allclose(logits, ref, atol=1e-3, rtol=1e-2))
    print("KERNEL_OK")
</pallas_src>

<mosaic_0001>
module attributes {stable_mosaic.version = 11 : i64} {
  func.func @_fused_bert_kernel(%arg0: memref<16x1xi32, #tpu.memory_space<vmem>>, %arg1: memref<2x8xi32, #tpu.memory_space<vmem>>, %arg2: memref<128x128xf32, #tpu.memory_space<vmem>>, %arg3: memref<16x128xf32, #tpu.memory_space<vmem>>, %arg4: memref<1x128xf32, #tpu.memory_space<vmem>>, %arg5: memref<1x128xf32, #tpu.memory_space<vmem>>, %arg6: memref<8x128x128xf32, #tpu.memory_space<vmem>>, %arg7: memref<8x1x128xf32, #tpu.memory_space<vmem>>, %arg8: memref<4x1x128xf32, #tpu.memory_space<vmem>>, %arg9: memref<4x1x128xf32, #tpu.memory_space<vmem>>, %arg10: memref<2x128x128xf32, #tpu.memory_space<vmem>>, %arg11: memref<2x1x128xf32, #tpu.memory_space<vmem>>, %arg12: memref<2x128x128xf32, #tpu.memory_space<vmem>>, %arg13: memref<2x1x128xf32, #tpu.memory_space<vmem>>, %arg14: memref<128x128xf32, #tpu.memory_space<vmem>>, %arg15: memref<1x128xf32, #tpu.memory_space<vmem>>, %arg16: memref<128x128xf32, #tpu.memory_space<vmem>>, %arg17: memref<1x128xf32, #tpu.memory_space<vmem>>, %arg18: memref<16x128xf32, #tpu.memory_space<vmem>>) attributes {dimension_semantics = [], scalar_prefetch = 0 : i64, scratch_operands = 0 : i64, tpu.core_type = #tpu.core_type<tc>} {
    %0 = tpu.iota {dimensions = array<i32: 1>} : vector<1x128xi32>
    %c32_i32 = arith.constant 32 : i32
    %1 = vector.broadcast %c32_i32 : i32 to vector<1x128xi32>
    %2 = arith.cmpi slt, %0, %1 : vector<1x128xi32>
    %3 = arith.extui %2 : vector<1x128xi1> to vector<1x128xi32>
    %4 = arith.sitofp %3 : vector<1x128xi32> to vector<1x128xf32>
    %c0 = arith.constant 0 : index
    %c0_0 = arith.constant 0 : index
    %5 = vector.load %arg0[%c0, %c0_0] : memref<16x1xi32, #tpu.memory_space<vmem>>, vector<16x1xi32>
    %6 = tpu.iota {dimensions = array<i32: 1>} : vector<16x128xi32>
    %7 = vector.broadcast %5 : vector<16x1xi32> to vector<16x128xi32>
    %8 = arith.cmpi eq, %6, %7 : vector<16x128xi32>
    %9 = arith.extui %8 : vector<16x128xi1> to vector<16x128xi32>
    %10 = arith.sitofp %9 : vector<16x128xi32> to vector<16x128xf32>
    %c0_1 = arith.constant 0 : index
    %c0_2 = arith.constant 0 : index
    %11 = vector.load %arg2[%c0_1, %c0_2] : memref<128x128xf32, #tpu.memory_space<vmem>>, vector<128x128xf32>
    %cst = arith.constant dense<0.000000e+00> : vector<16x128xf32>
    %12 = tpu.matmul %10, %11, %cst {dimension_numbers = #tpu.dot_dimension_numbers<[1], [0], [0], [1], [0, 0, 1, 1], [], []>} : vector<16x128xf32>, vector<128x128xf32>, vector<16x128xf32> -> vector<16x128xf32>
    %c0_3 = arith.constant 0 : index
    %c0_4 = arith.constant 0 : index
    %13 = vector.load %arg3[%c0_3, %c0_4] : memref<16x128xf32, #tpu.memory_space<vmem>>, vector<16x128xf32>
    %14 = vector.extract_strided_slice %13 {offsets = [0, 0], sizes = [8, 128], strides = [1, 1]} : vector<16x128xf32> to vector<8x128xf32>
    %15 = tpu.concatenate %14, %14 in 0 : vector<8x128xf32>, vector<8x128xf32> -> vector<16x128xf32>
    %16 = arith.addf %12, %15 : vector<16x128xf32>
    %c0_5 = arith.constant 0 : index
    %c0_6 = arith.constant 0 : index
    %17 = vector.load %arg4[%c0_5, %c0_6] : memref<1x128xf32, #tpu.memory_space<vmem>>, vector<1x128xf32>
    %c0_7 = arith.constant 0 : index
    %c0_8 = arith.constant 0 : index
    %18 = vector.load %arg5[%c0_7, %c0_8] : memref<1x128xf32, #tpu.memory_space<vmem>>, vector<1x128xf32>
    %19 = vector.broadcast %4 : vector<1x128xf32> to vector<16x128xf32>
    %20 = arith.mulf %16, %19 : vector<16x128xf32>
    %cst_9 = arith.constant dense<0.000000e+00> : vector<16xf32>
    %21 = vector.multi_reduction <add>, %20, %cst_9 [1] : vector<16x128xf32> to vector<16xf32>
    %22 = vector.shape_cast %21 : vector<16xf32> to vector<16x1xf32>
    %cst_10 = arith.constant 3.125000e-02 : f32
    %23 = vector.broadcast %cst_10 : f32 to vector<16x1xf32>
    %24 = arith.mulf %22, %23 : vector<16x1xf32>
    %25 = vector.broadcast %24 : vector<16x1xf32> to vector<16x128xf32>
    %26 = arith.subf %16, %25 : vector<16x128xf32>
    %27 = vector.broadcast %4 : vector<1x128xf32> to vector<16x128xf32>
    %28 = arith.mulf %26, %27 : vector<16x128xf32>
    %29 = arith.mulf %28, %28 : vector<16x128xf32>
    %cst_11 = arith.constant dense<0.000000e+00> : vector<16xf32>
    %30 = vector.multi_reduction <add>, %29, %cst_11 [1] : vector<16x128xf32> to vector<16xf32>
    %31 = vector.shape_cast %30 : vector<16xf32> to vector<16x1xf32>
    %cst_12 = arith.constant 3.125000e-02 : f32
    %32 = vector.broadcast %cst_12 : f32 to vector<16x1xf32>
    %33 = arith.mulf %31, %32 : vector<16x1xf32>
    %cst_13 = arith.constant 9.99999996E-13 : f32
    %34 = vector.broadcast %cst_13 : f32 to vector<16x1xf32>
    %35 = arith.addf %33, %34 : vector<16x1xf32>
    %36 = math.rsqrt %35 : vector<16x1xf32>
    %37 = vector.broadcast %36 : vector<16x1xf32> to vector<16x128xf32>
    %38 = arith.mulf %28, %37 : vector<16x128xf32>
    %39 = vector.broadcast %17 : vector<1x128xf32> to vector<16x128xf32>
    %40 = arith.mulf %38, %39 : vector<16x128xf32>
    %41 = vector.broadcast %18 : vector<1x128xf32> to vector<16x128xf32>
    %42 = arith.addf %40, %41 : vector<16x128xf32>
    %c0_14 = arith.constant 0 : index
    %c0_15 = arith.constant 0 : index
    %43 = vector.load %arg1[%c0_14, %c0_15] : memref<2x8xi32, #tpu.memory_space<vmem>>, vector<2x8xi32>
    %44 = arith.sitofp %43 : vector<2x8xi32> to vector<2x8xf32>
    %cst_16 = arith.constant 1.000000e+00 : f32
    %45 = vector.broadcast %cst_16 : f32 to vector<2x8xf32>
    %46 = arith.subf %45, %44 : vector<2x8xf32>
    %cst_17 = arith.constant -1.000000e+04 : f32
    %47 = vector.broadcast %cst_17 : f32 to vector<2x8xf32>
    %48 = arith.mulf %46, %47 : vector<2x8xf32>
    %c0_18 = arith.constant 0 : index
    %c0_19 = arith.constant 0 : index
    %c0_20 = arith.constant 0 : index
    %49 = vector.load %arg6[%c0_18, %c0_19, %c0_20] : memref<8x128x128xf32, #tpu.memory_space<vmem>>, vector<1x128x128xf32>
    %50 = vector.shape_cast %49 : vector<1x128x128xf32> to vector<128x128xf32>
    %c1 = arith.constant 1 : index
    %c0_21 = arith.constant 0 : index
    %c0_22 = arith.constant 0 : index
    %51 = vector.load %arg6[%c1, %c0_21, %c0_22] : memref<8x128x128xf32, #tpu.memory_space<vmem>>, vector<1x128x128xf32>
    %52 = vector.shape_cast %51 : vector<1x128x128xf32> to vector<128x128xf32>
    %c2 = arith.constant 2 : index
    %c0_23 = arith.constant 0 : index
    %c0_24 = arith.constant 0 : index
    %53 = vector.load %arg6[%c2, %c0_23, %c0_24] : memref<8x128x128xf32, #tpu.memory_space<vmem>>, vector<1x128x128xf32>
    %54 = vector.shape_cast %53 : vector<1x128x128xf32> to vector<128x128xf32>
    %c3 = arith.constant 3 : index
    %c0_25 = arith.constant 0 : index
    %c0_26 = arith.constant 0 : index
    %55 = vector.load %arg6[%c3, %c0_25, %c0_26] : memref<8x128x128xf32, #tpu.memory_space<vmem>>, vector<1x128x128xf32>
    %56 = vector.shape_cast %55 : vector<1x128x128xf32> to vector<128x128xf32>
    %c0_27 = arith.constant 0 : index
    %c0_28 = arith.constant 0 : index
    %c0_29 = arith.constant 0 : index
    %57 = vector.load %arg7[%c0_27, %c0_28, %c0_29] : memref<8x1x128xf32, #tpu.memory_space<vmem>>, vector<1x1x128xf32>
    %58 = vector.shape_cast %57 : vector<1x1x128xf32> to vector<1x128xf32>
    %c1_30 = arith.constant 1 : index
    %c0_31 = arith.constant 0 : index
    %c0_32 = arith.constant 0 : index
    %59 = vector.load %arg7[%c1_30, %c0_31, %c0_32] : memref<8x1x128xf32, #tpu.memory_space<vmem>>, vector<1x1x128xf32>
    %60 = vector.shape_cast %59 : vector<1x1x128xf32> to vector<1x128xf32>
    %c2_33 = arith.constant 2 : index
    %c0_34 = arith.constant 0 : index
    %c0_35 = arith.constant 0 : index
    %61 = vector.load %arg7[%c2_33, %c0_34, %c0_35] : memref<8x1x128xf32, #tpu.memory_space<vmem>>, vector<1x1x128xf32>
    %62 = vector.shape_cast %61 : vector<1x1x128xf32> to vector<1x128xf32>
    %c3_36 = arith.constant 3 : index
    %c0_37 = arith.constant 0 : index
    %c0_38 = arith.constant 0 : index
    %63 = vector.load %arg7[%c3_36, %c0_37, %c0_38] : memref<8x1x128xf32, #tpu.memory_space<vmem>>, vector<1x1x128xf32>
    %64 = vector.shape_cast %63 : vector<1x1x128xf32> to vector<1x128xf32>
    %cst_39 = arith.constant dense<0.000000e+00> : vector<16x128xf32>
    %65 = tpu.matmul %42, %50, %cst_39 {dimension_numbers = #tpu.dot_dimension_numbers<[1], [0], [0], [1], [0, 0, 1, 1], [], []>} : vector<16x128xf32>, vector<128x128xf32>, vector<16x128xf32> -> vector<16x128xf32>
    %66 = vector.broadcast %58 : vector<1x128xf32> to vector<16x128xf32>
    %67 = arith.addf %65, %66 : vector<16x128xf32>
    %cst_40 = arith.constant dense<0.000000e+00> : vector<16x128xf32>
    %68 = tpu.matmul %42, %52, %cst_40 {dimension_numbers = #tpu.dot_dimension_numbers<[1], [0], [0], [1], [0, 0, 1, 1], [], []>} : vector<16x128xf32>, vector<128x128xf32>, vector<16x128xf32> -> vector<16x128xf32>
    %69 = vector.broadcast %60 : vector<1x128xf32> to vector<16x128xf32>
    %70 = arith.addf %68, %69 : vector<16x128xf32>
    %cst_41 = arith.constant dense<0.000000e+00> : vector<16x128xf32>
    %71 = tpu.matmul %42, %54, %cst_41 {dimension_numbers = #tpu.dot_dimension_numbers<[1], [0], [0], [1], [0, 0, 1, 1], [], []>} : vector<16x128xf32>, vector<128x128xf32>, vector<16x128xf32> -> vector<16x128xf32>
    %72 = vector.broadcast %62 : vector<1x128xf32> to vector<16x128xf32>
    %73 = arith.addf %71, %72 : vector<16x128xf32>
    %74 = vector.extract_strided_slice %48 {offsets = [0, 0], sizes = [1, 8], strides = [1, 1]} : vector<2x8xf32> to vector<1x8xf32>
    %cst_42 = arith.constant 0.000000e+00 : f32
    %75 = vector.broadcast %cst_42 : f32 to vector<8x128xf32>
    %76 = vector.extract_strided_slice %67 {offsets = [0, 0], sizes = [8, 8], strides = [1, 1]} : vector<16x128xf32> to vector<8x8xf32>
    %77 = vector.extract_strided_slice %70 {offsets = [0, 0], sizes = [8, 8], strides = [1, 1]} : vector<16x128xf32> to vector<8x8xf32>
    %78 = vector.extract_strided_slice %73 {offsets = [0, 0], sizes = [8, 8], strides = [1, 1]} : vector<16x128xf32> to vector<8x8xf32>
    %79 = tpu.transpose %77, [1, 0] : vector<8x8xf32> -> vector<8x8xf32>
    %cst_43 = arith.constant dense<0.000000e+00> : vector<8x8xf32>
    %80 = tpu.matmul %76, %79, %cst_43 {dimension_numbers = #tpu.dot_dimension_numbers<[1], [0], [0], [1], [0, 0, 1, 1], [], []>} : vector<8x8xf32>, vector<8x8xf32>, vector<8x8xf32> -> vector<8x8xf32>
    %cst_44 = arith.constant 0.353553385 : f32
    %81 = vector.broadcast %cst_44 : f32 to vector<8x8xf32>
    %82 = arith.mulf %80, %81 : vector<8x8xf32>
    %83 = vector.broadcast %74 : vector<1x8xf32> to vector<8x8xf32>
    %84 = arith.addf %82, %83 : vector<8x8xf32>
    %cst_45 = arith.constant dense<0xFF800000> : vector<8xf32>
    %85 = vector.multi_reduction <maximumf>, %84, %cst_45 [1] : vector<8x8xf32> to vector<8xf32>
    %86 = vector.shape_cast %85 : vector<8xf32> to vector<8x1xf32>
    %87 = vector.broadcast %86 : vector<8x1xf32> to vector<8x8xf32>
    %88 = arith.subf %84, %87 : vector<8x8xf32>
    %89 = math.exp %88 : vector<8x8xf32>
    %cst_46 = arith.constant dense<0.000000e+00> : vector<8xf32>
    %90 = vector.multi_reduction <add>, %89, %cst_46 [1] : vector<8x8xf32> to vector<8xf32>
    %91 = vector.shape_cast %90 : vector<8xf32> to vector<8x1xf32>
    %92 = tpu.reciprocal %91 {approx = true} : vector<8x1xf32> -> vector<8x1xf32>
    %93 = vector.broadcast %92 : vector<8x1xf32> to vector<8x8xf32>
    %94 = arith.mulf %89, %93 : vector<8x8xf32>
    %cst_47 = arith.constant dense<0.000000e+00> : vector<8x8xf32>
    %95 = tpu.matmul %94, %78, %cst_47 {dimension_numbers = #tpu.dot_dimension_numbers<[1], [0], [0], [1], [0, 0, 1, 1], [], []>} : vector<8x8xf32>, vector<8x8xf32>, vector<8x8xf32> -> vector<8x8xf32>
    %96 = vector.extract_strided_slice %56 {offsets = [0, 0], sizes = [8, 128], strides = [1, 1]} : vector<128x128xf32> to vector<8x128xf32>
    %cst_48 = arith.constant dense<0.000000e+00> : vector<8x128xf32>
    %97 = tpu.matmul %95, %96, %cst_48 {dimension_numbers = #tpu.dot_dimension_numbers<[1], [0], [0], [1], [0, 0, 1, 1], [], []>} : vector<8x8xf32>, vector<8x128xf32>, vector<8x128xf32> -> vector<8x128xf32>
    %98 = arith.addf %75, %97 : vector<8x128xf32>
    %99 = vector.extract_strided_slice %67 {offsets = [0, 8], sizes = [8, 8], strides = [1, 1]} : vector<16x128xf32> to vector<8x8xf32>
    %100 = vector.extract_strided_slice %70 {offsets = [0, 8], sizes = [8, 8], strides = [1, 1]} : vector<16x128xf32> to vector<8x8xf32>
    %101 = vector.extract_strided_slice %73 {offsets = [0, 8], sizes = [8, 8], strides = [1, 1]} : vector<16x128xf32> to vector<8x8xf32>
    %102 = tpu.transpose %100, [1, 0] : vector<8x8xf32> -> vector<8x8xf32>
    %cst_49 = arith.constant dense<0.000000e+00> : vector<8x8xf32>
    %103 = tpu.matmul %99, %102, %cst_49 {dimension_numbers = #tpu.dot_dimension_numbers<[1], [0], [0], [1], [0, 0, 1, 1], [], []>} : vector<8x8xf32>, vector<8x8xf32>, vector<8x8xf32> -> vector<8x8xf32>
    %cst_50 = arith.constant 0.353553385 : f32
    %104 = vector.broadcast %cst_50 : f32 to vector<8x8xf32>
    %105 = arith.mulf %103, %104 : vector<8x8xf32>
    %106 = vector.broadcast %74 : vector<1x8xf32> to vector<8x8xf32>
    %107 = arith.addf %105, %106 : vector<8x8xf32>
    %cst_51 = arith.constant dense<0xFF800000> : vector<8xf32>
    %108 = vector.multi_reduction <maximumf>, %107, %cst_51 [1] : vector<8x8xf32> to vector<8xf32>
    %109 = vector.shape_cast %108 : vector<8xf32> to vector<8x1xf32>
    %110 = vector.broadcast %109 : vector<8x1xf32> to vector<8x8xf32>
    %111 = arith.subf %107, %110 : vector<8x8xf32>
    %112 = math.exp %111 : vector<8x8xf32>
    %cst_52 = arith.constant dense<0.000000e+00> : vector<8xf32>
    %113 = vector.multi_reduction <add>, %112, %cst_52 [1] : vector<8x8xf32> to vector<8xf32>
    %114 = vector.shape_cast %113 : vector<8xf32> to vector<8x1xf32>
    %115 = tpu.reciprocal %114 {approx = true} : vector<8x1xf32> -> vector<8x1xf32>
    %116 = vector.broadcast %115 : vector<8x1xf32> to vector<8x8xf32>
    %117 = arith.mulf %112, %116 : vector<8x8xf32>
    %cst_53 = arith.constant dense<0.000000e+00> : vector<8x8xf32>
    %118 = tpu.matmul %117, %101, %cst_53 {dimension_numbers = #tpu.dot_dimension_numbers<[1], [0], [0], [1], [0, 0, 1, 1], [], []>} : vector<8x8xf32>, vector<8x8xf32>, vector<8x8xf32> -> vector<8x8xf32>
    %119 = vector.extract_strided_slice %56 {offsets = [8, 0], sizes = [8, 128], strides = [1, 1]} : vector<128x128xf32> to vector<8x128xf32>
    %cst_54 = arith.constant dense<0.000000e+00> : vector<8x128xf32>
    %120 = tpu.matmul %118, %119, %cst_54 {dimension_numbers = #tpu.dot_dimension_numbers<[1], [0], [0], [1], [0, 0, 1, 1], [], []>} : vector<8x8xf32>, vector<8x128xf32>, vector<8x128xf32> -> vector<8x128xf32>
    %121 = arith.addf %98, %120 : vector<8x128xf32>
    %122 = vector.extract_strided_slice %67 {offsets = [0, 16], sizes = [8, 8], strides = [1, 1]} : vector<16x128xf32> to vector<8x8xf32>
    %123 = vector.extract_strided_slice %70 {offsets = [0, 16], sizes = [8, 8], strides = [1, 1]} : vector<16x128xf32> to vector<8x8xf32>
    %124 = vector.extract_strided_slice %73 {offsets = [0, 16], sizes = [8, 8], strides = [1, 1]} : vector<16x128xf32> to vector<8x8xf32>
    %125 = tpu.transpose %123, [1, 0] : vector<8x8xf32> -> vector<8x8xf32>
    %cst_55 = arith.constant dense<0.000000e+00> : vector<8x8xf32>
    %126 = tpu.matmul %122, %125, %cst_55 {dimension_numbers = #tpu.dot_dimension_numbers<[1], [0], [0], [1], [0, 0, 1, 1], [], []>} : vector<8x8xf32>, vector<8x8xf32>, vector<8x8xf32> -> vector<8x8xf32>
    %cst_56 = arith.constant 0.353553385 : f32
    %127 = vector.broadcast %cst_56 : f32 to vector<8x8xf32>
    %128 = arith.mulf %126, %127 : vector<8x8xf32>
    %129 = vector.broadcast %74 : vector<1x8xf32> to vector<8x8xf32>
    %130 = arith.addf %128, %129 : vector<8x8xf32>
    %cst_57 = arith.constant dense<0xFF800000> : vector<8xf32>
    %131 = vector.multi_reduction <maximumf>, %130, %cst_57 [1] : vector<8x8xf32> to vector<8xf32>
    %132 = vector.shape_cast %131 : vector<8xf32> to vector<8x1xf32>
    %133 = vector.broadcast %132 : vector<8x1xf32> to vector<8x8xf32>
    %134 = arith.subf %130, %133 : vector<8x8xf32>
    %135 = math.exp %134 : vector<8x8xf32>
    %cst_58 = arith.constant dense<0.000000e+00> : vector<8xf32>
    %136 = vector.multi_reduction <add>, %135, %cst_58 [1] : vector<8x8xf32> to vector<8xf32>
    %137 = vector.shape_cast %136 : vector<8xf32> to vector<8x1xf32>
    %138 = tpu.reciprocal %137 {approx = true} : vector<8x1xf32> -> vector<8x1xf32>
    %139 = vector.broadcast %138 : vector<8x1xf32> to vector<8x8xf32>
    %140 = arith.mulf %135, %139 : vector<8x8xf32>
    %cst_59 = arith.constant dense<0.000000e+00> : vector<8x8xf32>
    %141 = tpu.matmul %140, %124, %cst_59 {dimension_numbers = #tpu.dot_dimension_numbers<[1], [0], [0], [1], [0, 0, 1, 1], [], []>} : vector<8x8xf32>, vector<8x8xf32>, vector<8x8xf32> -> vector<8x8xf32>
    %142 = vector.extract_strided_slice %56 {offsets = [16, 0], sizes = [8, 128], strides = [1, 1]} : vector<128x128xf32> to vector<8x128xf32>
    %cst_60 = arith.constant dense<0.000000e+00> : vector<8x128xf32>
    %143 = tpu.matmul %141, %142, %cst_60 {dimension_numbers = #tpu.dot_dimension_numbers<[1], [0], [0], [1], [0, 0, 1, 1], [], []>} : vector<8x8xf32>, vector<8x128xf32>, vector<8x128xf32> -> vector<8x128xf32>
    %144 = arith.addf %121, %143 : vector<8x128xf32>
    %145 = vector.extract_strided_slice %67 {offsets = [0, 24], sizes = [8, 8], strides = [1, 1]} : vector<16x128xf32> to vector<8x8xf32>
    %146 = vector.extract_strided_slice %70 {offsets = [0, 24], sizes = [8, 8], strides = [1, 1]} : vector<16x128xf32> to vector<8x8xf32>
    %147 = vector.extract_strided_slice %73 {offsets = [0, 24], sizes = [8, 8], strides = [1, 1]} : vector<16x128xf32> to vector<8x8xf32>
    %148 = tpu.transpose %146, [1, 0] : vector<8x8xf32> -> vector<8x8xf32>
    %cst_61 = arith.constant dense<0.000000e+00> : vector<8x8xf32>
    %149 = tpu.matmul %145, %148, %cst_61 {dimension_numbers = #tpu.dot_dimension_numbers<[1], [0], [0], [1], [0, 0, 1, 1], [], []>} : vector<8x8xf32>, vector<8x8xf32>, vector<8x8xf32> -> vector<8x8xf32>
    %cst_62 = arith.constant 0.353553385 : f32
    %150 = vector.broadcast %cst_62 : f32 to vector<8x8xf32>
    %151 = arith.mulf %149, %150 : vector<8x8xf32>
    %152 = vector.broadcast %74 : vector<1x8xf32> to vector<8x8xf32>
    %153 = arith.addf %151, %152 : vector<8x8xf32>
    %cst_63 = arith.constant dense<0xFF800000> : vector<8xf32>
    %154 = vector.multi_reduction <maximumf>, %153, %cst_63 [1] : vector<8x8xf32> to vector<8xf32>
    %155 = vector.shape_cast %154 : vector<8xf32> to vector<8x1xf32>
    %156 = vector.broadcast %155 : vector<8x1xf32> to vector<8x8xf32>
    %157 = arith.subf %153, %156 : vector<8x8xf32>
    %158 = math.exp %157 : vector<8x8xf32>
    %cst_64 = arith.constant dense<0.000000e+00> : vector<8xf32>
    %159 = vector.multi_reduction <add>, %158, %cst_64 [1] : vector<8x8xf32> to vector<8xf32>
    %160 = vector.shape_cast %159 : vector<8xf32> to vector<8x1xf32>
    %161 = tpu.reciprocal %160 {approx = true} : vector<8x1xf32> -> vector<8x1xf32>
    %162 = vector.broadcast %161 : vector<8x1xf32> to vector<8x8xf32>
    %163 = arith.mulf %158, %162 : vector<8x8xf32>
    %cst_65 = arith.constant dense<0.000000e+00> : vector<8x8xf32>
    %164 = tpu.matmul %163, %147, %cst_65 {dimension_numbers = #tpu.dot_dimension_numbers<[1], [0], [0], [1], [0, 0, 1, 1], [], []>} : vector<8x8xf32>, vector<8x8xf32>, vector<8x8xf32> -> vector<8x8xf32>
    %165 = vector.extract_strided_slice %56 {offsets = [24, 0], sizes = [8, 128], strides = [1, 1]} : vector<128x128xf32> to vector<8x128xf32>
    %cst_66 = arith.constant dense<0.000000e+00> : vector<8x128xf32>
    %166 = tpu.matmul %164, %165, %cst_66 {dimension_numbers = #tpu.dot_dimension_numbers<[1], [0], [0], [1], [0, 0, 1, 1], [], []>} : vector<8x8xf32>, vector<8x128xf32>, vector<8x128xf32> -> vector<8x128xf32>
    %167 = arith.addf %144, %166 : vector<8x128xf32>
    %168 = vector.extract_strided_slice %48 {offsets = [1, 0], sizes = [1, 8], strides = [1, 1]} : vector<2x8xf32> to vector<1x8xf32>
    %cst_67 = arith.constant 0.000000e+00 : f32
    %169 = vector.broadcast %cst_67 : f32 to vector<8x128xf32>
    %170 = vector.extract_strided_slice %67 {offsets = [8, 0], sizes = [8, 8], strides = [1, 1]} : vector<16x128xf32> to vector<8x8xf32>
    %171 = vector.extract_strided_slice %70 {offsets = [8, 0], sizes = [8, 8], strides = [1, 1]} : vector<16x128xf32> to vector<8x8xf32>
    %172 = vector.extract_strided_slice %73 {offsets = [8, 0], sizes = [8, 8], strides = [1, 1]} : vector<16x128xf32> to vector<8x8xf32>
    %173 = tpu.transpose %171, [1, 0] : vector<8x8xf32> -> vector<8x8xf32>
    %cst_68 = arith.constant dense<0.000000e+00> : vector<8x8xf32>
    %174 = tpu.matmul %170, %173, %cst_68 {dimension_numbers = #tpu.dot_dimension_numbers<[1], [0], [0], [1], [0, 0, 1, 1], [], []>} : vector<8x8xf32>, vector<8x8xf32>, vector<8x8xf32> -> vector<8x8xf32>
    %cst_69 = arith.constant 0.353553385 : f32
    %175 = vector.broadcast %cst_69 : f32 to vector<8x8xf32>
    %176 = arith.mulf %174, %175 : vector<8x8xf32>
    %177 = vector.broadcast %168 : vector<1x8xf32> to vector<8x8xf32>
    %178 = arith.addf %176, %177 : vector<8x8xf32>
    %cst_70 = arith.constant dense<0xFF800000> : vector<8xf32>
    %179 = vector.multi_reduction <maximumf>, %178, %cst_70 [1] : vector<8x8xf32> to vector<8xf32>
    %180 = vector.shape_cast %179 : vector<8xf32> to vector<8x1xf32>
    %181 = vector.broadcast %180 : vector<8x1xf32> to vector<8x8xf32>
    %182 = arith.subf %178, %181 : vector<8x8xf32>
    %183 = math.exp %182 : vector<8x8xf32>
    %cst_71 = arith.constant dense<0.000000e+00> : vector<8xf32>
    %184 = vector.multi_reduction <add>, %183, %cst_71 [1] : vector<8x8xf32> to vector<8xf32>
    %185 = vector.shape_cast %184 : vector<8xf32> to vector<8x1xf32>
    %186 = tpu.reciprocal %185 {approx = true} : vector<8x1xf32> -> vector<8x1xf32>
    %187 = vector.broadcast %186 : vector<8x1xf32> to vector<8x8xf32>
    %188 = arith.mulf %183, %187 : vector<8x8xf32>
    %cst_72 = arith.constant dense<0.000000e+00> : vector<8x8xf32>
    %189 = tpu.matmul %188, %172, %cst_72 {dimension_numbers = #tpu.dot_dimension_numbers<[1], [0], [0], [1], [0, 0, 1, 1], [], []>} : vector<8x8xf32>, vector<8x8xf32>, vector<8x8xf32> -> vector<8x8xf32>
    %190 = vector.extract_strided_slice %56 {offsets = [0, 0], sizes = [8, 128], strides = [1, 1]} : vector<128x128xf32> to vector<8x128xf32>
    %cst_73 = arith.constant dense<0.000000e+00> : vector<8x128xf32>
    %191 = tpu.matmul %189, %190, %cst_73 {dimension_numbers = #tpu.dot_dimension_numbers<[1], [0], [0], [1], [0, 0, 1, 1], [], []>} : vector<8x8xf32>, vector<8x128xf32>, vector<8x128xf32> -> vector<8x128xf32>
    %192 = arith.addf %169, %191 : vector<8x128xf32>
    %193 = vector.extract_strided_slice %67 {offsets = [8, 8], sizes = [8, 8], strides = [1, 1]} : vector<16x128xf32> to vector<8x8xf32>
    %194 = vector.extract_strided_slice %70 {offsets = [8, 8], sizes = [8, 8], strides = [1, 1]} : vector<16x128xf32> to vector<8x8xf32>
    %195 = vector.extract_strided_slice %73 {offsets = [8, 8], sizes = [8, 8], strides = [1, 1]} : vector<16x128xf32> to vector<8x8xf32>
    %196 = tpu.transpose %194, [1, 0] : vector<8x8xf32> -> vector<8x8xf32>
    %cst_74 = arith.constant dense<0.000000e+00> : vector<8x8xf32>
    %197 = tpu.matmul %193, %196, %cst_74 {dimension_numbers = #tpu.dot_dimension_numbers<[1], [0], [0], [1], [0, 0, 1, 1], [], []>} : vector<8x8xf32>, vector<8x8xf32>, vector<8x8xf32> -> vector<8x8xf32>
    %cst_75 = arith.constant 0.353553385 : f32
    %198 = vector.broadcast %cst_75 : f32 to vector<8x8xf32>
    %199 = arith.mulf %197, %198 : vector<8x8xf32>
    %200 = vector.broadcast %168 : vector<1x8xf32> to vector<8x8xf32>
    %201 = arith.addf %199, %200 : vector<8x8xf32>
    %cst_76 = arith.constant dense<0xFF800000> : vector<8xf32>
    %202 = vector.multi_reduction <maximumf>, %201, %cst_76 [1] : vector<8x8xf32> to vector<8xf32>
    %203 = vector.shape_cast %202 : vector<8xf32> to vector<8x1xf32>
    %204 = vector.broadcast %203 : vector<8x1xf32> to vector<8x8xf32>
    %205 = arith.subf %201, %204 : vector<8x8xf32>
    %206 = math.exp %205 : vector<8x8xf32>
    %cst_77 = arith.constant dense<0.000000e+00> : vector<8xf32>
    %207 = vector.multi_reduction <add>, %206, %cst_77 [1] : vector<8x8xf32> to vector<8xf32>
    %208 = vector.shape_cast %207 : vector<8xf32> to vector<8x1xf32>
    %209 = tpu.reciprocal %208 {approx = true} : vector<8x1xf32> -> vector<8x1xf32>
    %210 = vector.broadcast %209 : vector<8x1xf32> to vector<8x8xf32>
    %211 = arith.mulf %206, %210 : vector<8x8xf32>
    %cst_78 = arith.constant dense<0.000000e+00> : vector<8x8xf32>
    %212 = tpu.matmul %211, %195, %cst_78 {dimension_numbers = #tpu.dot_dimension_numbers<[1], [0], [0], [1], [0, 0, 1, 1], [], []>} : vector<8x8xf32>, vector<8x8xf32>, vector<8x8xf32> -> vector<8x8xf32>
    %213 = vector.extract_strided_slice %56 {offsets = [8, 0], sizes = [8, 128], strides = [1, 1]} : vector<128x128xf32> to vector<8x128xf32>
    %cst_79 = arith.constant dense<0.000000e+00> : vector<8x128xf32>
    %214 = tpu.matmul %212, %213, %cst_79 {dimension_numbers = #tpu.dot_dimension_numbers<[1], [0], [0], [1], [0, 0, 1, 1], [], []>} : vector<8x8xf32>, vector<8x128xf32>, vector<8x128xf32> -> vector<8x128xf32>
    %215 = arith.addf %192, %214 : vector<8x128xf32>
    %216 = vector.extract_strided_slice %67 {offsets = [8, 16], sizes = [8, 8], strides = [1, 1]} : vector<16x128xf32> to vector<8x8xf32>
    %217 = vector.extract_strided_slice %70 {offsets = [8, 16], sizes = [8, 8], strides = [1, 1]} : vector<16x128xf32> to vector<8x8xf32>
    %218 = vector.extract_strided_slice %73 {offsets = [8, 16], sizes = [8, 8], strides = [1, 1]} : vector<16x128xf32> to vector<8x8xf32>
    %219 = tpu.transpose %217, [1, 0] : vector<8x8xf32> -> vector<8x8xf32>
    %cst_80 = arith.constant dense<0.000000e+00> : vector<8x8xf32>
    %220 = tpu.matmul %216, %219, %cst_80 {dimension_numbers = #tpu.dot_dimension_numbers<[1], [0], [0], [1], [0, 0, 1, 1], [], []>} : vector<8x8xf32>, vector<8x8xf32>, vector<8x8xf32> -> vector<8x8xf32>
    %cst_81 = arith.constant 0.353553385 : f32
    %221 = vector.broadcast %cst_81 : f32 to vector<8x8xf32>
    %222 = arith.mulf %220, %221 : vector<8x8xf32>
    %223 = vector.broadcast %168 : vector<1x8xf32> to vector<8x8xf32>
    %224 = arith.addf %222, %223 : vector<8x8xf32>
    %cst_82 = arith.constant dense<0xFF800000> : vector<8xf32>
    %225 = vector.multi_reduction <maximumf>, %224, %cst_82 [1] : vector<8x8xf32> to vector<8xf32>
    %226 = vector.shape_cast %225 : vector<8xf32> to vector<8x1xf32>
    %227 = vector.broadcast %226 : vector<8x1xf32> to vector<8x8xf32>
    %228 = arith.subf %224, %227 : vector<8x8xf32>
    %229 = math.exp %228 : vector<8x8xf32>
    %cst_83 = arith.constant dense<0.000000e+00> : vector<8xf32>
    %230 = vector.multi_reduction <add>, %229, %cst_83 [1] : vector<8x8xf32> to vector<8xf32>
    %231 = vector.shape_cast %230 : vector<8xf32> to vector<8x1xf32>
    %232 = tpu.reciprocal %231 {approx = true} : vector<8x1xf32> -> vector<8x1xf32>
    %233 = vector.broadcast %232 : vector<8x1xf32> to vector<8x8xf32>
    %234 = arith.mulf %229, %233 : vector<8x8xf32>
    %cst_84 = arith.constant dense<0.000000e+00> : vector<8x8xf32>
    %235 = tpu.matmul %234, %218, %cst_84 {dimension_numbers = #tpu.dot_dimension_numbers<[1], [0], [0], [1], [0, 0, 1, 1], [], []>} : vector<8x8xf32>, vector<8x8xf32>, vector<8x8xf32> -> vector<8x8xf32>
    %236 = vector.extract_strided_slice %56 {offsets = [16, 0], sizes = [8, 128], strides = [1, 1]} : vector<128x128xf32> to vector<8x128xf32>
    %cst_85 = arith.constant dense<0.000000e+00> : vector<8x128xf32>
    %237 = tpu.matmul %235, %236, %cst_85 {dimension_numbers = #tpu.dot_dimension_numbers<[1], [0], [0], [1], [0, 0, 1, 1], [], []>} : vector<8x8xf32>, vector<8x128xf32>, vector<8x128xf32> -> vector<8x128xf32>
    %238 = arith.addf %215, %237 : vector<8x128xf32>
    %239 = vector.extract_strided_slice %67 {offsets = [8, 24], sizes = [8, 8], strides = [1, 1]} : vector<16x128xf32> to vector<8x8xf32>
    %240 = vector.extract_strided_slice %70 {offsets = [8, 24], sizes = [8, 8], strides = [1, 1]} : vector<16x128xf32> to vector<8x8xf32>
    %241 = vector.extract_strided_slice %73 {offsets = [8, 24], sizes = [8, 8], strides = [1, 1]} : vector<16x128xf32> to vector<8x8xf32>
    %242 = tpu.transpose %240, [1, 0] : vector<8x8xf32> -> vector<8x8xf32>
    %cst_86 = arith.constant dense<0.000000e+00> : vector<8x8xf32>
    %243 = tpu.matmul %239, %242, %cst_86 {dimension_numbers = #tpu.dot_dimension_numbers<[1], [0], [0], [1], [0, 0, 1, 1], [], []>} : vector<8x8xf32>, vector<8x8xf32>, vector<8x8xf32> -> vector<8x8xf32>
    %cst_87 = arith.constant 0.353553385 : f32
    %244 = vector.broadcast %cst_87 : f32 to vector<8x8xf32>
    %245 = arith.mulf %243, %244 : vector<8x8xf32>
    %246 = vector.broadcast %168 : vector<1x8xf32> to vector<8x8xf32>
    %247 = arith.addf %245, %246 : vector<8x8xf32>
    %cst_88 = arith.constant dense<0xFF800000> : vector<8xf32>
    %248 = vector.multi_reduction <maximumf>, %247, %cst_88 [1] : vector<8x8xf32> to vector<8xf32>
    %249 = vector.shape_cast %248 : vector<8xf32> to vector<8x1xf32>
    %250 = vector.broadcast %249 : vector<8x1xf32> to vector<8x8xf32>
    %251 = arith.subf %247, %250 : vector<8x8xf32>
    %252 = math.exp %251 : vector<8x8xf32>
    %cst_89 = arith.constant dense<0.000000e+00> : vector<8xf32>
    %253 = vector.multi_reduction <add>, %252, %cst_89 [1] : vector<8x8xf32> to vector<8xf32>
    %254 = vector.shape_cast %253 : vector<8xf32> to vector<8x1xf32>
    %255 = tpu.reciprocal %254 {approx = true} : vector<8x1xf32> -> vector<8x1xf32>
    %256 = vector.broadcast %255 : vector<8x1xf32> to vector<8x8xf32>
    %257 = arith.mulf %252, %256 : vector<8x8xf32>
    %cst_90 = arith.constant dense<0.000000e+00> : vector<8x8xf32>
    %258 = tpu.matmul %257, %241, %cst_90 {dimension_numbers = #tpu.dot_dimension_numbers<[1], [0], [0], [1], [0, 0, 1, 1], [], []>} : vector<8x8xf32>, vector<8x8xf32>, vector<8x8xf32> -> vector<8x8xf32>
    %259 = vector.extract_strided_slice %56 {offsets = [24, 0], sizes = [8, 128], strides = [1, 1]} : vector<128x128xf32> to vector<8x128xf32>
    %cst_91 = arith.constant dense<0.000000e+00> : vector<8x128xf32>
    %260 = tpu.matmul %258, %259, %cst_91 {dimension_numbers = #tpu.dot_dimension_numbers<[1], [0], [0], [1], [0, 0, 1, 1], [], []>} : vector<8x8xf32>, vector<8x128xf32>, vector<8x128xf32> -> vector<8x128xf32>
    %261 = arith.addf %238, %260 : vector<8x128xf32>
    %262 = tpu.concatenate %167, %261 in 0 : vector<8x128xf32>, vector<8x128xf32> -> vector<16x128xf32>
    %263 = vector.broadcast %64 : vector<1x128xf32> to vector<16x128xf32>
    %264 = arith.addf %262, %263 : vector<16x128xf32>
    %265 = arith.addf %264, %42 : vector<16x128xf32>
    %c0_92 = arith.constant 0 : index
    %c0_93 = arith.constant 0 : index
    %c0_94 = arith.constant 0 : index
    %266 = vector.load %arg8[%c0_92, %c0_93, %c0_94] : memref<4x1x128xf32, #tpu.memory_space<vmem>>, vector<1x1x128xf32>
    %267 = vector.shape_cast %266 : vector<1x1x128xf32> to vector<1x128xf32>
    %c0_95 = arith.constant 0 : index
    %c0_96 = arith.constant 0 : index
    %c0_97 = arith.constant 0 : index
    %268 = vector.load %arg9[%c0_95, %c0_96, %c0_97] : memref<4x1x128xf32, #tpu.memory_space<vmem>>, vector<1x1x128xf32>
    %269 = vector.shape_cast %268 : vector<1x1x128xf32> to vector<1x128xf32>
    %270 = vector.broadcast %4 : vector<1x128xf32> to vector<16x128xf32>
    %271 = arith.mulf %265, %270 : vector<16x128xf32>
    %cst_98 = arith.constant dense<0.000000e+00> : vector<16xf32>
    %272 = vector.multi_reduction <add>, %271, %cst_98 [1] : vector<16x128xf32> to vector<16xf32>
    %273 = vector.shape_cast %272 : vector<16xf32> to vector<16x1xf32>
    %cst_99 = arith.constant 3.125000e-02 : f32
    %274 = vector.broadcast %cst_99 : f32 to vector<16x1xf32>
    %275 = arith.mulf %273, %274 : vector<16x1xf32>
    %276 = vector.broadcast %275 : vector<16x1xf32> to vector<16x128xf32>
    %277 = arith.subf %265, %276 : vector<16x128xf32>
    %278 = vector.broadcast %4 : vector<1x128xf32> to vector<16x128xf32>
    %279 = arith.mulf %277, %278 : vector<16x128xf32>
    %280 = arith.mulf %279, %279 : vector<16x128xf32>
    %cst_100 = arith.constant dense<0.000000e+00> : vector<16xf32>
    %281 = vector.multi_reduction <add>, %280, %cst_100 [1] : vector<16x128xf32> to vector<16xf32>
    %282 = vector.shape_cast %281 : vector<16xf32> to vector<16x1xf32>
    %cst_101 = arith.constant 3.125000e-02 : f32
    %283 = vector.broadcast %cst_101 : f32 to vector<16x1xf32>
    %284 = arith.mulf %282, %283 : vector<16x1xf32>
    %cst_102 = arith.constant 9.99999996E-13 : f32
    %285 = vector.broadcast %cst_102 : f32 to vector<16x1xf32>
    %286 = arith.addf %284, %285 : vector<16x1xf32>
    %287 = math.rsqrt %286 : vector<16x1xf32>
    %288 = vector.broadcast %287 : vector<16x1xf32> to vector<16x128xf32>
    %289 = arith.mulf %279, %288 : vector<16x128xf32>
    %290 = vector.broadcast %267 : vector<1x128xf32> to vector<16x128xf32>
    %291 = arith.mulf %289, %290 : vector<16x128xf32>
    %292 = vector.broadcast %269 : vector<1x128xf32> to vector<16x128xf32>
    %293 = arith.addf %291, %292 : vector<16x128xf32>
    %c0_103 = arith.constant 0 : index
    %c0_104 = arith.constant 0 : index
    %c0_105 = arith.constant 0 : index
    %294 = vector.load %arg10[%c0_103, %c0_104, %c0_105] : memref<2x128x128xf32, #tpu.memory_space<vmem>>, vector<1x128x128xf32>
    %295 = vector.shape_cast %294 : vector<1x128x128xf32> to vector<128x128xf32>
    %cst_106 = arith.constant dense<0.000000e+00> : vector<16x128xf32>
    %296 = tpu.matmul %293, %295, %cst_106 {dimension_numbers = #tpu.dot_dimension_numbers<[1], [0], [0], [1], [0, 0, 1, 1], [], []>} : vector<16x128xf32>, vector<128x128xf32>, vector<16x128xf32> -> vector<16x128xf32>
    %c0_107 = arith.constant 0 : index
    %c0_108 = arith.constant 0 : index
    %c0_109 = arith.constant 0 : index
    %297 = vector.load %arg11[%c0_107, %c0_108, %c0_109] : memref<2x1x128xf32, #tpu.memory_space<vmem>>, vector<1x1x128xf32>
    %298 = vector.shape_cast %297 : vector<1x1x128xf32> to vector<1x128xf32>
    %299 = vector.broadcast %298 : vector<1x128xf32> to vector<16x128xf32>
    %300 = arith.addf %296, %299 : vector<16x128xf32>
    %cst_110 = arith.constant 5.000000e-01 : f32
    %301 = vector.broadcast %cst_110 : f32 to vector<16x128xf32>
    %302 = arith.mulf %301, %300 : vector<16x128xf32>
    %cst_111 = arith.constant 4.471500e-02 : f32
    %303 = vector.broadcast %cst_111 : f32 to vector<16x128xf32>
    %304 = arith.mulf %303, %300 : vector<16x128xf32>
    %305 = arith.mulf %304, %300 : vector<16x128xf32>
    %306 = arith.mulf %305, %300 : vector<16x128xf32>
    %307 = arith.addf %300, %306 : vector<16x128xf32>
    %cst_112 = arith.constant 0.797884583 : f32
    %308 = vector.broadcast %cst_112 : f32 to vector<16x128xf32>
    %309 = arith.mulf %308, %307 : vector<16x128xf32>
    %310 = math.tanh %309 : vector<16x128xf32>
    %cst_113 = arith.constant 1.000000e+00 : f32
    %311 = vector.broadcast %cst_113 : f32 to vector<16x128xf32>
    %312 = arith.addf %311, %310 : vector<16x128xf32>
    %313 = arith.mulf %302, %312 : vector<16x128xf32>
    %c0_114 = arith.constant 0 : index
    %c0_115 = arith.constant 0 : index
    %c0_116 = arith.constant 0 : index
    %314 = vector.load %arg12[%c0_114, %c0_115, %c0_116] : memref<2x128x128xf32, #tpu.memory_space<vmem>>, vector<1x128x128xf32>
    %315 = vector.shape_cast %314 : vector<1x128x128xf32> to vector<128x128xf32>
    %cst_117 = arith.constant dense<0.000000e+00> : vector<16x128xf32>
    %316 = tpu.matmul %313, %315, %cst_117 {dimension_numbers = #tpu.dot_dimension_numbers<[1], [0], [0], [1], [0, 0, 1, 1], [], []>} : vector<16x128xf32>, vector<128x128xf32>, vector<16x128xf32> -> vector<16x128xf32>
    %c0_118 = arith.constant 0 : index
    %c0_119 = arith.constant 0 : index
    %c0_120 = arith.constant 0 : index
    %317 = vector.load %arg13[%c0_118, %c0_119, %c0_120] : memref<2x1x128xf32, #tpu.memory_space<vmem>>, vector<1x1x128xf32>
    %318 = vector.shape_cast %317 : vector<1x1x128xf32> to vector<1x128xf32>
    %319 = vector.broadcast %318 : vector<1x128xf32> to vector<16x128xf32>
    %320 = arith.addf %316, %319 : vector<16x128xf32>
    %321 = arith.addf %320, %293 : vector<16x128xf32>
    %c1_121 = arith.constant 1 : index
    %c0_122 = arith.constant 0 : index
    %c0_123 = arith.constant 0 : index
    %322 = vector.load %arg8[%c1_121, %c0_122, %c0_123] : memref<4x1x128xf32, #tpu.memory_space<vmem>>, vector<1x1x128xf32>
    %323 = vector.shape_cast %322 : vector<1x1x128xf32> to vector<1x128xf32>
    %c1_124 = arith.constant 1 : index
    %c0_125 = arith.constant 0 : index
    %c0_126 = arith.constant 0 : index
    %324 = vector.load %arg9[%c1_124, %c0_125, %c0_126] : memref<4x1x128xf32, #tpu.memory_space<vmem>>, vector<1x1x128xf32>
    %325 = vector.shape_cast %324 : vector<1x1x128xf32> to vector<1x128xf32>
    %326 = vector.broadcast %4 : vector<1x128xf32> to vector<16x128xf32>
    %327 = arith.mulf %321, %326 : vector<16x128xf32>
    %cst_127 = arith.constant dense<0.000000e+00> : vector<16xf32>
    %328 = vector.multi_reduction <add>, %327, %cst_127 [1] : vector<16x128xf32> to vector<16xf32>
    %329 = vector.shape_cast %328 : vector<16xf32> to vector<16x1xf32>
    %cst_128 = arith.constant 3.125000e-02 : f32
    %330 = vector.broadcast %cst_128 : f32 to vector<16x1xf32>
    %331 = arith.mulf %329, %330 : vector<16x1xf32>
    %332 = vector.broadcast %331 : vector<16x1xf32> to vector<16x128xf32>
    %333 = arith.subf %321, %332 : vector<16x128xf32>
    %334 = vector.broadcast %4 : vector<1x128xf32> to vector<16x128xf32>
    %335 = arith.mulf %333, %334 : vector<16x128xf32>
    %336 = arith.mulf %335, %335 : vector<16x128xf32>
    %cst_129 = arith.constant dense<0.000000e+00> : vector<16xf32>
    %337 = vector.multi_reduction <add>, %336, %cst_129 [1] : vector<16x128xf32> to vector<16xf32>
    %338 = vector.shape_cast %337 : vector<16xf32> to vector<16x1xf32>
    %cst_130 = arith.constant 3.125000e-02 : f32
    %339 = vector.broadcast %cst_130 : f32 to vector<16x1xf32>
    %340 = arith.mulf %338, %339 : vector<16x1xf32>
    %cst_131 = arith.constant 9.99999996E-13 : f32
    %341 = vector.broadcast %cst_131 : f32 to vector<16x1xf32>
    %342 = arith.addf %340, %341 : vector<16x1xf32>
    %343 = math.rsqrt %342 : vector<16x1xf32>
    %344 = vector.broadcast %343 : vector<16x1xf32> to vector<16x128xf32>
    %345 = arith.mulf %335, %344 : vector<16x128xf32>
    %346 = vector.broadcast %323 : vector<1x128xf32> to vector<16x128xf32>
    %347 = arith.mulf %345, %346 : vector<16x128xf32>
    %348 = vector.broadcast %325 : vector<1x128xf32> to vector<16x128xf32>
    %349 = arith.addf %347, %348 : vector<16x128xf32>
    %c4 = arith.constant 4 : index
    %c0_132 = arith.constant 0 : index
    %c0_133 = arith.constant 0 : index
    %350 = vector.load %arg6[%c4, %c0_132, %c0_133] : memref<8x128x128xf32, #tpu.memory_space<vmem>>, vector<1x128x128xf32>
    %351 = vector.shape_cast %350 : vector<1x128x128xf32> to vector<128x128xf32>
    %c5 = arith.constant 5 : index
    %c0_134 = arith.constant 0 : index
    %c0_135 = arith.constant 0 : index
    %352 = vector.load %arg6[%c5, %c0_134, %c0_135] : memref<8x128x128xf32, #tpu.memory_space<vmem>>, vector<1x128x128xf32>
    %353 = vector.shape_cast %352 : vector<1x128x128xf32> to vector<128x128xf32>
    %c6 = arith.constant 6 : index
    %c0_136 = arith.constant 0 : index
    %c0_137 = arith.constant 0 : index
    %354 = vector.load %arg6[%c6, %c0_136, %c0_137] : memref<8x128x128xf32, #tpu.memory_space<vmem>>, vector<1x128x128xf32>
    %355 = vector.shape_cast %354 : vector<1x128x128xf32> to vector<128x128xf32>
    %c7 = arith.constant 7 : index
    %c0_138 = arith.constant 0 : index
    %c0_139 = arith.constant 0 : index
    %356 = vector.load %arg6[%c7, %c0_138, %c0_139] : memref<8x128x128xf32, #tpu.memory_space<vmem>>, vector<1x128x128xf32>
    %357 = vector.shape_cast %356 : vector<1x128x128xf32> to vector<128x128xf32>
    %c4_140 = arith.constant 4 : index
    %c0_141 = arith.constant 0 : index
    %c0_142 = arith.constant 0 : index
    %358 = vector.load %arg7[%c4_140, %c0_141, %c0_142] : memref<8x1x128xf32, #tpu.memory_space<vmem>>, vector<1x1x128xf32>
    %359 = vector.shape_cast %358 : vector<1x1x128xf32> to vector<1x128xf32>
    %c5_143 = arith.constant 5 : index
    %c0_144 = arith.constant 0 : index
    %c0_145 = arith.constant 0 : index
    %360 = vector.load %arg7[%c5_143, %c0_144, %c0_145] : memref<8x1x128xf32, #tpu.memory_space<vmem>>, vector<1x1x128xf32>
    %361 = vector.shape_cast %360 : vector<1x1x128xf32> to vector<1x128xf32>
    %c6_146 = arith.constant 6 : index
    %c0_147 = arith.constant 0 : index
    %c0_148 = arith.constant 0 : index
    %362 = vector.load %arg7[%c6_146, %c0_147, %c0_148] : memref<8x1x128xf32, #tpu.memory_space<vmem>>, vector<1x1x128xf32>
    %363 = vector.shape_cast %362 : vector<1x1x128xf32> to vector<1x128xf32>
    %c7_149 = arith.constant 7 : index
    %c0_150 = arith.constant 0 : index
    %c0_151 = arith.constant 0 : index
    %364 = vector.load %arg7[%c7_149, %c0_150, %c0_151] : memref<8x1x128xf32, #tpu.memory_space<vmem>>, vector<1x1x128xf32>
    %365 = vector.shape_cast %364 : vector<1x1x128xf32> to vector<1x128xf32>
    %cst_152 = arith.constant dense<0.000000e+00> : vector<16x128xf32>
    %366 = tpu.matmul %349, %351, %cst_152 {dimension_numbers = #tpu.dot_dimension_numbers<[1], [0], [0], [1], [0, 0, 1, 1], [], []>} : vector<16x128xf32>, vector<128x128xf32>, vector<16x128xf32> -> vector<16x128xf32>
    %367 = vector.broadcast %359 : vector<1x128xf32> to vector<16x128xf32>
    %368 = arith.addf %366, %367 : vector<16x128xf32>
    %cst_153 = arith.constant dense<0.000000e+00> : vector<16x128xf32>
    %369 = tpu.matmul %349, %353, %cst_153 {dimension_numbers = #tpu.dot_dimension_numbers<[1], [0], [0], [1], [0, 0, 1, 1], [], []>} : vector<16x128xf32>, vector<128x128xf32>, vector<16x128xf32> -> vector<16x128xf32>
    %370 = vector.broadcast %361 : vector<1x128xf32> to vector<16x128xf32>
    %371 = arith.addf %369, %370 : vector<16x128xf32>
    %cst_154 = arith.constant dense<0.000000e+00> : vector<16x128xf32>
    %372 = tpu.matmul %349, %355, %cst_154 {dimension_numbers = #tpu.dot_dimension_numbers<[1], [0], [0], [1], [0, 0, 1, 1], [], []>} : vector<16x128xf32>, vector<128x128xf32>, vector<16x128xf32> -> vector<16x128xf32>
    %373 = vector.broadcast %363 : vector<1x128xf32> to vector<16x128xf32>
    %374 = arith.addf %372, %373 : vector<16x128xf32>
    %375 = vector.extract_strided_slice %48 {offsets = [0, 0], sizes = [1, 8], strides = [1, 1]} : vector<2x8xf32> to vector<1x8xf32>
    %cst_155 = arith.constant 0.000000e+00 : f32
    %376 = vector.broadcast %cst_155 : f32 to vector<8x128xf32>
    %377 = vector.extract_strided_slice %368 {offsets = [0, 0], sizes = [8, 8], strides = [1, 1]} : vector<16x128xf32> to vector<8x8xf32>
    %378 = vector.extract_strided_slice %371 {offsets = [0, 0], sizes = [8, 8], strides = [1, 1]} : vector<16x128xf32> to vector<8x8xf32>
    %379 = vector.extract_strided_slice %374 {offsets = [0, 0], sizes = [8, 8], strides = [1, 1]} : vector<16x128xf32> to vector<8x8xf32>
    %380 = tpu.transpose %378, [1, 0] : vector<8x8xf32> -> vector<8x8xf32>
    %cst_156 = arith.constant dense<0.000000e+00> : vector<8x8xf32>
    %381 = tpu.matmul %377, %380, %cst_156 {dimension_numbers = #tpu.dot_dimension_numbers<[1], [0], [0], [1], [0, 0, 1, 1], [], []>} : vector<8x8xf32>, vector<8x8xf32>, vector<8x8xf32> -> vector<8x8xf32>
    %cst_157 = arith.constant 0.353553385 : f32
    %382 = vector.broadcast %cst_157 : f32 to vector<8x8xf32>
    %383 = arith.mulf %381, %382 : vector<8x8xf32>
    %384 = vector.broadcast %375 : vector<1x8xf32> to vector<8x8xf32>
    %385 = arith.addf %383, %384 : vector<8x8xf32>
    %cst_158 = arith.constant dense<0xFF800000> : vector<8xf32>
    %386 = vector.multi_reduction <maximumf>, %385, %cst_158 [1] : vector<8x8xf32> to vector<8xf32>
    %387 = vector.shape_cast %386 : vector<8xf32> to vector<8x1xf32>
    %388 = vector.broadcast %387 : vector<8x1xf32> to vector<8x8xf32>
    %389 = arith.subf %385, %388 : vector<8x8xf32>
    %390 = math.exp %389 : vector<8x8xf32>
    %cst_159 = arith.constant dense<0.000000e+00> : vector<8xf32>
    %391 = vector.multi_reduction <add>, %390, %cst_159 [1] : vector<8x8xf32> to vector<8xf32>
    %392 = vector.shape_cast %391 : vector<8xf32> to vector<8x1xf32>
    %393 = tpu.reciprocal %392 {approx = true} : vector<8x1xf32> -> vector<8x1xf32>
    %394 = vector.broadcast %393 : vector<8x1xf32> to vector<8x8xf32>
    %395 = arith.mulf %390, %394 : vector<8x8xf32>
    %cst_160 = arith.constant dense<0.000000e+00> : vector<8x8xf32>
    %396 = tpu.matmul %395, %379, %cst_160 {dimension_numbers = #tpu.dot_dimension_numbers<[1], [0], [0], [1], [0, 0, 1, 1], [], []>} : vector<8x8xf32>, vector<8x8xf32>, vector<8x8xf32> -> vector<8x8xf32>
    %397 = vector.extract_strided_slice %357 {offsets = [0, 0], sizes = [8, 128], strides = [1, 1]} : vector<128x128xf32> to vector<8x128xf32>
    %cst_161 = arith.constant dense<0.000000e+00> : vector<8x128xf32>
    %398 = tpu.matmul %396, %397, %cst_161 {dimension_numbers = #tpu.dot_dimension_numbers<[1], [0], [0], [1], [0, 0, 1, 1], [], []>} : vector<8x8xf32>, vector<8x128xf32>, vector<8x128xf32> -> vector<8x128xf32>
    %399 = arith.addf %376, %398 : vector<8x128xf32>
    %400 = vector.extract_strided_slice %368 {offsets = [0, 8], sizes = [8, 8], strides = [1, 1]} : vector<16x128xf32> to vector<8x8xf32>
    %401 = vector.extract_strided_slice %371 {offsets = [0, 8], sizes = [8, 8], strides = [1, 1]} : vector<16x128xf32> to vector<8x8xf32>
    %402 = vector.extract_strided_slice %374 {offsets = [0, 8], sizes = [8, 8], strides = [1, 1]} : vector<16x128xf32> to vector<8x8xf32>
    %403 = tpu.transpose %401, [1, 0] : vector<8x8xf32> -> vector<8x8xf32>
    %cst_162 = arith.constant dense<0.000000e+00> : vector<8x8xf32>
    %404 = tpu.matmul %400, %403, %cst_162 {dimension_numbers = #tpu.dot_dimension_numbers<[1], [0], [0], [1], [0, 0, 1, 1], [], []>} : vector<8x8xf32>, vector<8x8xf32>, vector<8x8xf32> -> vector<8x8xf32>
    %cst_163 = arith.constant 0.353553385 : f32
    %405 = vector.broadcast %cst_163 : f32 to vector<8x8xf32>
    %406 = arith.mulf %404, %405 : vector<8x8xf32>
    %407 = vector.broadcast %375 : vector<1x8xf32> to vector<8x8xf32>
    %408 = arith.addf %406, %407 : vector<8x8xf32>
    %cst_164 = arith.constant dense<0xFF800000> : vector<8xf32>
    %409 = vector.multi_reduction <maximumf>, %408, %cst_164 [1] : vector<8x8xf32> to vector<8xf32>
    %410 = vector.shape_cast %409 : vector<8xf32> to vector<8x1xf32>
    %411 = vector.broadcast %410 : vector<8x1xf32> to vector<8x8xf32>
    %412 = arith.subf %408, %411 : vector<8x8xf32>
    %413 = math.exp %412 : vector<8x8xf32>
    %cst_165 = arith.constant dense<0.000000e+00> : vector<8xf32>
    %414 = vector.multi_reduction <add>, %413, %cst_165 [1] : vector<8x8xf32> to vector<8xf32>
    %415 = vector.shape_cast %414 : vector<8xf32> to vector<8x1xf32>
    %416 = tpu.reciprocal %415 {approx = true} : vector<8x1xf32> -> vector<8x1xf32>
    %417 = vector.broadcast %416 : vector<8x1xf32> to vector<8x8xf32>
    %418 = arith.mulf %413, %417 : vector<8x8xf32>
    %cst_166 = arith.constant dense<0.000000e+00> : vector<8x8xf32>
    %419 = tpu.matmul %418, %402, %cst_166 {dimension_numbers = #tpu.dot_dimension_numbers<[1], [0], [0], [1], [0, 0, 1, 1], [], []>} : vector<8x8xf32>, vector<8x8xf32>, vector<8x8xf32> -> vector<8x8xf32>
    %420 = vector.extract_strided_slice %357 {offsets = [8, 0], sizes = [8, 128], strides = [1, 1]} : vector<128x128xf32> to vector<8x128xf32>
    %cst_167 = arith.constant dense<0.000000e+00> : vector<8x128xf32>
    %421 = tpu.matmul %419, %420, %cst_167 {dimension_numbers = #tpu.dot_dimension_numbers<[1], [0], [0], [1], [0, 0, 1, 1], [], []>} : vector<8x8xf32>, vector<8x128xf32>, vector<8x128xf32> -> vector<8x128xf32>
    %422 = arith.addf %399, %421 : vector<8x128xf32>
    %423 = vector.extract_strided_slice %368 {offsets = [0, 16], sizes = [8, 8], strides = [1, 1]} : vector<16x128xf32> to vector<8x8xf32>
    %424 = vector.extract_strided_slice %371 {offsets = [0, 16], sizes = [8, 8], strides = [1, 1]} : vector<16x128xf32> to vector<8x8xf32>
    %425 = vector.extract_strided_slice %374 {offsets = [0, 16], sizes = [8, 8], strides = [1, 1]} : vector<16x128xf32> to vector<8x8xf32>
    %426 = tpu.transpose %424, [1, 0] : vector<8x8xf32> -> vector<8x8xf32>
    %cst_168 = arith.constant dense<0.000000e+00> : vector<8x8xf32>
    %427 = tpu.matmul %423, %426, %cst_168 {dimension_numbers = #tpu.dot_dimension_numbers<[1], [0], [0], [1], [0, 0, 1, 1], [], []>} : vector<8x8xf32>, vector<8x8xf32>, vector<8x8xf32> -> vector<8x8xf32>
    %cst_169 = arith.constant 0.353553385 : f32
    %428 = vector.broadcast %cst_169 : f32 to vector<8x8xf32>
    %429 = arith.mulf %427, %428 : vector<8x8xf32>
    %430 = vector.broadcast %375 : vector<1x8xf32> to vector<8x8xf32>
    %431 = arith.addf %429, %430 : vector<8x8xf32>
    %cst_170 = arith.constant dense<0xFF800000> : vector<8xf32>
    %432 = vector.multi_reduction <maximumf>, %431, %cst_170 [1] : vector<8x8xf32> to vector<8xf32>
    %433 = vector.shape_cast %432 : vector<8xf32> to vector<8x1xf32>
    %434 = vector.broadcast %433 : vector<8x1xf32> to vector<8x8xf32>
    %435 = arith.subf %431, %434 : vector<8x8xf32>
    %436 = math.exp %435 : vector<8x8xf32>
    %cst_171 = arith.constant dense<0.000000e+00> : vector<8xf32>
    %437 = vector.multi_reduction <add>, %436, %cst_171 [1] : vector<8x8xf32> to vector<8xf32>
    %438 = vector.shape_cast %437 : vector<8xf32> to vector<8x1xf32>
    %439 = tpu.reciprocal %438 {approx = true} : vector<8x1xf32> -> vector<8x1xf32>
    %440 = vector.broadcast %439 : vector<8x1xf32> to vector<8x8xf32>
    %441 = arith.mulf %436, %440 : vector<8x8xf32>
    %cst_172 = arith.constant dense<0.000000e+00> : vector<8x8xf32>
    %442 = tpu.matmul %441, %425, %cst_172 {dimension_numbers = #tpu.dot_dimension_numbers<[1], [0], [0], [1], [0, 0, 1, 1], [], []>} : vector<8x8xf32>, vector<8x8xf32>, vector<8x8xf32> -> vector<8x8xf32>
    %443 = vector.extract_strided_slice %357 {offsets = [16, 0], sizes = [8, 128], strides = [1, 1]} : vector<128x128xf32> to vector<8x128xf32>
    %cst_173 = arith.constant dense<0.000000e+00> : vector<8x128xf32>
    %444 = tpu.matmul %442, %443, %cst_173 {dimension_numbers = #tpu.dot_dimension_numbers<[1], [0], [0], [1], [0, 0, 1, 1], [], []>} : vector<8x8xf32>, vector<8x128xf32>, vector<8x128xf32> -> vector<8x128xf32>
    %445 = arith.addf %422, %444 : vector<8x128xf32>
    %446 = vector.extract_strided_slice %368 {offsets = [0, 24], sizes = [8, 8], strides = [1, 1]} : vector<16x128xf32> to vector<8x8xf32>
    %447 = vector.extract_strided_slice %371 {offsets = [0, 24], sizes = [8, 8], strides = [1, 1]} : vector<16x128xf32> to vector<8x8xf32>
    %448 = vector.extract_strided_slice %374 {offsets = [0, 24], sizes = [8, 8], strides = [1, 1]} : vector<16x128xf32> to vector<8x8xf32>
    %449 = tpu.transpose %447, [1, 0] : vector<8x8xf32> -> vector<8x8xf32>
    %cst_174 = arith.constant dense<0.000000e+00> : vector<8x8xf32>
    %450 = tpu.matmul %446, %449, %cst_174 {dimension_numbers = #tpu.dot_dimension_numbers<[1], [0], [0], [1], [0, 0, 1, 1], [], []>} : vector<8x8xf32>, vector<8x8xf32>, vector<8x8xf32> -> vector<8x8xf32>
    %cst_175 = arith.constant 0.353553385 : f32
    %451 = vector.broadcast %cst_175 : f32 to vector<8x8xf32>
    %452 = arith.mulf %450, %451 : vector<8x8xf32>
    %453 = vector.broadcast %375 : vector<1x8xf32> to vector<8x8xf32>
    %454 = arith.addf %452, %453 : vector<8x8xf32>
    %cst_176 = arith.constant dense<0xFF800000> : vector<8xf32>
    %455 = vector.multi_reduction <maximumf>, %454, %cst_176 [1] : vector<8x8xf32> to vector<8xf32>
    %456 = vector.shape_cast %455 : vector<8xf32> to vector<8x1xf32>
    %457 = vector.broadcast %456 : vector<8x1xf32> to vector<8x8xf32>
    %458 = arith.subf %454, %457 : vector<8x8xf32>
    %459 = math.exp %458 : vector<8x8xf32>
    %cst_177 = arith.constant dense<0.000000e+00> : vector<8xf32>
    %460 = vector.multi_reduction <add>, %459, %cst_177 [1] : vector<8x8xf32> to vector<8xf32>
    %461 = vector.shape_cast %460 : vector<8xf32> to vector<8x1xf32>
    %462 = tpu.reciprocal %461 {approx = true} : vector<8x1xf32> -> vector<8x1xf32>
    %463 = vector.broadcast %462 : vector<8x1xf32> to vector<8x8xf32>
    %464 = arith.mulf %459, %463 : vector<8x8xf32>
    %cst_178 = arith.constant dense<0.000000e+00> : vector<8x8xf32>
    %465 = tpu.matmul %464, %448, %cst_178 {dimension_numbers = #tpu.dot_dimension_numbers<[1], [0], [0], [1], [0, 0, 1, 1], [], []>} : vector<8x8xf32>, vector<8x8xf32>, vector<8x8xf32> -> vector<8x8xf32>
    %466 = vector.extract_strided_slice %357 {offsets = [24, 0], sizes = [8, 128], strides = [1, 1]} : vector<128x128xf32> to vector<8x128xf32>
    %cst_179 = arith.constant dense<0.000000e+00> : vector<8x128xf32>
    %467 = tpu.matmul %465, %466, %cst_179 {dimension_numbers = #tpu.dot_dimension_numbers<[1], [0], [0], [1], [0, 0, 1, 1], [], []>} : vector<8x8xf32>, vector<8x128xf32>, vector<8x128xf32> -> vector<8x128xf32>
    %468 = arith.addf %445, %467 : vector<8x128xf32>
    %469 = vector.extract_strided_slice %48 {offsets = [1, 0], sizes = [1, 8], strides = [1, 1]} : vector<2x8xf32> to vector<1x8xf32>
    %cst_180 = arith.constant 0.000000e+00 : f32
    %470 = vector.broadcast %cst_180 : f32 to vector<8x128xf32>
    %471 = vector.extract_strided_slice %368 {offsets = [8, 0], sizes = [8, 8], strides = [1, 1]} : vector<16x128xf32> to vector<8x8xf32>
    %472 = vector.extract_strided_slice %371 {offsets = [8, 0], sizes = [8, 8], strides = [1, 1]} : vector<16x128xf32> to vector<8x8xf32>
    %473 = vector.extract_strided_slice %374 {offsets = [8, 0], sizes = [8, 8], strides = [1, 1]} : vector<16x128xf32> to vector<8x8xf32>
    %474 = tpu.transpose %472, [1, 0] : vector<8x8xf32> -> vector<8x8xf32>
    %cst_181 = arith.constant dense<0.000000e+00> : vector<8x8xf32>
    %475 = tpu.matmul %471, %474, %cst_181 {dimension_numbers = #tpu.dot_dimension_numbers<[1], [0], [0], [1], [0, 0, 1, 1], [], []>} : vector<8x8xf32>, vector<8x8xf32>, vector<8x8xf32> -> vector<8x8xf32>
    %cst_182 = arith.constant 0.353553385 : f32
    %476 = vector.broadcast %cst_182 : f32 to vector<8x8xf32>
    %477 = arith.mulf %475, %476 : vector<8x8xf32>
    %478 = vector.broadcast %469 : vector<1x8xf32> to vector<8x8xf32>
    %479 = arith.addf %477, %478 : vector<8x8xf32>
    %cst_183 = arith.constant dense<0xFF800000> : vector<8xf32>
    %480 = vector.multi_reduction <maximumf>, %479, %cst_183 [1] : vector<8x8xf32> to vector<8xf32>
    %481 = vector.shape_cast %480 : vector<8xf32> to vector<8x1xf32>
    %482 = vector.broadcast %481 : vector<8x1xf32> to vector<8x8xf32>
    %483 = arith.subf %479, %482 : vector<8x8xf32>
    %484 = math.exp %483 : vector<8x8xf32>
    %cst_184 = arith.constant dense<0.000000e+00> : vector<8xf32>
    %485 = vector.multi_reduction <add>, %484, %cst_184 [1] : vector<8x8xf32> to vector<8xf32>
    %486 = vector.shape_cast %485 : vector<8xf32> to vector<8x1xf32>
    %487 = tpu.reciprocal %486 {approx = true} : vector<8x1xf32> -> vector<8x1xf32>
    %488 = vector.broadcast %487 : vector<8x1xf32> to vector<8x8xf32>
    %489 = arith.mulf %484, %488 : vector<8x8xf32>
    %cst_185 = arith.constant dense<0.000000e+00> : vector<8x8xf32>
    %490 = tpu.matmul %489, %473, %cst_185 {dimension_numbers = #tpu.dot_dimension_numbers<[1], [0], [0], [1], [0, 0, 1, 1], [], []>} : vector<8x8xf32>, vector<8x8xf32>, vector<8x8xf32> -> vector<8x8xf32>
    %491 = vector.extract_strided_slice %357 {offsets = [0, 0], sizes = [8, 128], strides = [1, 1]} : vector<128x128xf32> to vector<8x128xf32>
    %cst_186 = arith.constant dense<0.000000e+00> : vector<8x128xf32>
    %492 = tpu.matmul %490, %491, %cst_186 {dimension_numbers = #tpu.dot_dimension_numbers<[1], [0], [0], [1], [0, 0, 1, 1], [], []>} : vector<8x8xf32>, vector<8x128xf32>, vector<8x128xf32> -> vector<8x128xf32>
    %493 = arith.addf %470, %492 : vector<8x128xf32>
    %494 = vector.extract_strided_slice %368 {offsets = [8, 8], sizes = [8, 8], strides = [1, 1]} : vector<16x128xf32> to vector<8x8xf32>
    %495 = vector.extract_strided_slice %371 {offsets = [8, 8], sizes = [8, 8], strides = [1, 1]} : vector<16x128xf32> to vector<8x8xf32>
    %496 = vector.extract_strided_slice %374 {offsets = [8, 8], sizes = [8, 8], strides = [1, 1]} : vector<16x128xf32> to vector<8x8xf32>
    %497 = tpu.transpose %495, [1, 0] : vector<8x8xf32> -> vector<8x8xf32>
    %cst_187 = arith.constant dense<0.000000e+00> : vector<8x8xf32>
    %498 = tpu.matmul %494, %497, %cst_187 {dimension_numbers = #tpu.dot_dimension_numbers<[1], [0], [0], [1], [0, 0, 1, 1], [], []>} : vector<8x8xf32>, vector<8x8xf32>, vector<8x8xf32> -> vector<8x8xf32>
    %cst_188 = arith.constant 0.353553385 : f32
    %499 = vector.broadcast %cst_188 : f32 to vector<8x8xf32>
    %500 = arith.mulf %498, %499 : vector<8x8xf32>
    %501 = vector.broadcast %469 : vector<1x8xf32> to vector<8x8xf32>
    %502 = arith.addf %500, %501 : vector<8x8xf32>
    %cst_189 = arith.constant dense<0xFF800000> : vector<8xf32>
    %503 = vector.multi_reduction <maximumf>, %502, %cst_189 [1] : vector<8x8xf32> to vector<8xf32>
    %504 = vector.shape_cast %503 : vector<8xf32> to vector<8x1xf32>
    %505 = vector.broadcast %504 : vector<8x1xf32> to vector<8x8xf32>
    %506 = arith.subf %502, %505 : vector<8x8xf32>
    %507 = math.exp %506 : vector<8x8xf32>
    %cst_190 = arith.constant dense<0.000000e+00> : vector<8xf32>
    %508 = vector.multi_reduction <add>, %507, %cst_190 [1] : vector<8x8xf32> to vector<8xf32>
    %509 = vector.shape_cast %508 : vector<8xf32> to vector<8x1xf32>
    %510 = tpu.reciprocal %509 {approx = true} : vector<8x1xf32> -> vector<8x1xf32>
    %511 = vector.broadcast %510 : vector<8x1xf32> to vector<8x8xf32>
    %512 = arith.mulf %507, %511 : vector<8x8xf32>
    %cst_191 = arith.constant dense<0.000000e+00> : vector<8x8xf32>
    %513 = tpu.matmul %512, %496, %cst_191 {dimension_numbers = #tpu.dot_dimension_numbers<[1], [0], [0], [1], [0, 0, 1, 1], [], []>} : vector<8x8xf32>, vector<8x8xf32>, vector<8x8xf32> -> vector<8x8xf32>
    %514 = vector.extract_strided_slice %357 {offsets = [8, 0], sizes = [8, 128], strides = [1, 1]} : vector<128x128xf32> to vector<8x128xf32>
    %cst_192 = arith.constant dense<0.000000e+00> : vector<8x128xf32>
    %515 = tpu.matmul %513, %514, %cst_192 {dimension_numbers = #tpu.dot_dimension_numbers<[1], [0], [0], [1], [0, 0, 1, 1], [], []>} : vector<8x8xf32>, vector<8x128xf32>, vector<8x128xf32> -> vector<8x128xf32>
    %516 = arith.addf %493, %515 : vector<8x128xf32>
    %517 = vector.extract_strided_slice %368 {offsets = [8, 16], sizes = [8, 8], strides = [1, 1]} : vector<16x128xf32> to vector<8x8xf32>
    %518 = vector.extract_strided_slice %371 {offsets = [8, 16], sizes = [8, 8], strides = [1, 1]} : vector<16x128xf32> to vector<8x8xf32>
    %519 = vector.extract_strided_slice %374 {offsets = [8, 16], sizes = [8, 8], strides = [1, 1]} : vector<16x128xf32> to vector<8x8xf32>
    %520 = tpu.transpose %518, [1, 0] : vector<8x8xf32> -> vector<8x8xf32>
    %cst_193 = arith.constant dense<0.000000e+00> : vector<8x8xf32>
    %521 = tpu.matmul %517, %520, %cst_193 {dimension_numbers = #tpu.dot_dimension_numbers<[1], [0], [0], [1], [0, 0, 1, 1], [], []>} : vector<8x8xf32>, vector<8x8xf32>, vector<8x8xf32> -> vector<8x8xf32>
    %cst_194 = arith.constant 0.353553385 : f32
    %522 = vector.broadcast %cst_194 : f32 to vector<8x8xf32>
    %523 = arith.mulf %521, %522 : vector<8x8xf32>
    %524 = vector.broadcast %469 : vector<1x8xf32> to vector<8x8xf32>
    %525 = arith.addf %523, %524 : vector<8x8xf32>
    %cst_195 = arith.constant dense<0xFF800000> : vector<8xf32>
    %526 = vector.multi_reduction <maximumf>, %525, %cst_195 [1] : vector<8x8xf32> to vector<8xf32>
    %527 = vector.shape_cast %526 : vector<8xf32> to vector<8x1xf32>
    %528 = vector.broadcast %527 : vector<8x1xf32> to vector<8x8xf32>
    %529 = arith.subf %525, %528 : vector<8x8xf32>
    %530 = math.exp %529 : vector<8x8xf32>
    %cst_196 = arith.constant dense<0.000000e+00> : vector<8xf32>
    %531 = vector.multi_reduction <add>, %530, %cst_196 [1] : vector<8x8xf32> to vector<8xf32>
    %532 = vector.shape_cast %531 : vector<8xf32> to vector<8x1xf32>
    %533 = tpu.reciprocal %532 {approx = true} : vector<8x1xf32> -> vector<8x1xf32>
    %534 = vector.broadcast %533 : vector<8x1xf32> to vector<8x8xf32>
    %535 = arith.mulf %530, %534 : vector<8x8xf32>
    %cst_197 = arith.constant dense<0.000000e+00> : vector<8x8xf32>
    %536 = tpu.matmul %535, %519, %cst_197 {dimension_numbers = #tpu.dot_dimension_numbers<[1], [0], [0], [1], [0, 0, 1, 1], [], []>} : vector<8x8xf32>, vector<8x8xf32>, vector<8x8xf32> -> vector<8x8xf32>
    %537 = vector.extract_strided_slice %357 {offsets = [16, 0], sizes = [8, 128], strides = [1, 1]} : vector<128x128xf32> to vector<8x128xf32>
    %cst_198 = arith.constant dense<0.000000e+00> : vector<8x128xf32>
    %538 = tpu.matmul %536, %537, %cst_198 {dimension_numbers = #tpu.dot_dimension_numbers<[1], [0], [0], [1], [0, 0, 1, 1], [], []>} : vector<8x8xf32>, vector<8x128xf32>, vector<8x128xf32> -> vector<8x128xf32>
    %539 = arith.addf %516, %538 : vector<8x128xf32>
    %540 = vector.extract_strided_slice %368 {offsets = [8, 24], sizes = [8, 8], strides = [1, 1]} : vector<16x128xf32> to vector<8x8xf32>
    %541 = vector.extract_strided_slice %371 {offsets = [8, 24], sizes = [8, 8], strides = [1, 1]} : vector<16x128xf32> to vector<8x8xf32>
    %542 = vector.extract_strided_slice %374 {offsets = [8, 24], sizes = [8, 8], strides = [1, 1]} : vector<16x128xf32> to vector<8x8xf32>
    %543 = tpu.transpose %541, [1, 0] : vector<8x8xf32> -> vector<8x8xf32>
    %cst_199 = arith.constant dense<0.000000e+00> : vector<8x8xf32>
    %544 = tpu.matmul %540, %543, %cst_199 {dimension_numbers = #tpu.dot_dimension_numbers<[1], [0], [0], [1], [0, 0, 1, 1], [], []>} : vector<8x8xf32>, vector<8x8xf32>, vector<8x8xf32> -> vector<8x8xf32>
    %cst_200 = arith.constant 0.353553385 : f32
    %545 = vector.broadcast %cst_200 : f32 to vector<8x8xf32>
    %546 = arith.mulf %544, %545 : vector<8x8xf32>
    %547 = vector.broadcast %469 : vector<1x8xf32> to vector<8x8xf32>
    %548 = arith.addf %546, %547 : vector<8x8xf32>
    %cst_201 = arith.constant dense<0xFF800000> : vector<8xf32>
    %549 = vector.multi_reduction <maximumf>, %548, %cst_201 [1] : vector<8x8xf32> to vector<8xf32>
    %550 = vector.shape_cast %549 : vector<8xf32> to vector<8x1xf32>
    %551 = vector.broadcast %550 : vector<8x1xf32> to vector<8x8xf32>
    %552 = arith.subf %548, %551 : vector<8x8xf32>
    %553 = math.exp %552 : vector<8x8xf32>
    %cst_202 = arith.constant dense<0.000000e+00> : vector<8xf32>
    %554 = vector.multi_reduction <add>, %553, %cst_202 [1] : vector<8x8xf32> to vector<8xf32>
    %555 = vector.shape_cast %554 : vector<8xf32> to vector<8x1xf32>
    %556 = tpu.reciprocal %555 {approx = true} : vector<8x1xf32> -> vector<8x1xf32>
    %557 = vector.broadcast %556 : vector<8x1xf32> to vector<8x8xf32>
    %558 = arith.mulf %553, %557 : vector<8x8xf32>
    %cst_203 = arith.constant dense<0.000000e+00> : vector<8x8xf32>
    %559 = tpu.matmul %558, %542, %cst_203 {dimension_numbers = #tpu.dot_dimension_numbers<[1], [0], [0], [1], [0, 0, 1, 1], [], []>} : vector<8x8xf32>, vector<8x8xf32>, vector<8x8xf32> -> vector<8x8xf32>
    %560 = vector.extract_strided_slice %357 {offsets = [24, 0], sizes = [8, 128], strides = [1, 1]} : vector<128x128xf32> to vector<8x128xf32>
    %cst_204 = arith.constant dense<0.000000e+00> : vector<8x128xf32>
    %561 = tpu.matmul %559, %560, %cst_204 {dimension_numbers = #tpu.dot_dimension_numbers<[1], [0], [0], [1], [0, 0, 1, 1], [], []>} : vector<8x8xf32>, vector<8x128xf32>, vector<8x128xf32> -> vector<8x128xf32>
    %562 = arith.addf %539, %561 : vector<8x128xf32>
    %563 = tpu.concatenate %468, %562 in 0 : vector<8x128xf32>, vector<8x128xf32> -> vector<16x128xf32>
    %564 = vector.broadcast %365 : vector<1x128xf32> to vector<16x128xf32>
    %565 = arith.addf %563, %564 : vector<16x128xf32>
    %566 = arith.addf %565, %349 : vector<16x128xf32>
    %c2_205 = arith.constant 2 : index
    %c0_206 = arith.constant 0 : index
    %c0_207 = arith.constant 0 : index
    %567 = vector.load %arg8[%c2_205, %c0_206, %c0_207] : memref<4x1x128xf32, #tpu.memory_space<vmem>>, vector<1x1x128xf32>
    %568 = vector.shape_cast %567 : vector<1x1x128xf32> to vector<1x128xf32>
    %c2_208 = arith.constant 2 : index
    %c0_209 = arith.constant 0 : index
    %c0_210 = arith.constant 0 : index
    %569 = vector.load %arg9[%c2_208, %c0_209, %c0_210] : memref<4x1x128xf32, #tpu.memory_space<vmem>>, vector<1x1x128xf32>
    %570 = vector.shape_cast %569 : vector<1x1x128xf32> to vector<1x128xf32>
    %571 = vector.broadcast %4 : vector<1x128xf32> to vector<16x128xf32>
    %572 = arith.mulf %566, %571 : vector<16x128xf32>
    %cst_211 = arith.constant dense<0.000000e+00> : vector<16xf32>
    %573 = vector.multi_reduction <add>, %572, %cst_211 [1] : vector<16x128xf32> to vector<16xf32>
    %574 = vector.shape_cast %573 : vector<16xf32> to vector<16x1xf32>
    %cst_212 = arith.constant 3.125000e-02 : f32
    %575 = vector.broadcast %cst_212 : f32 to vector<16x1xf32>
    %576 = arith.mulf %574, %575 : vector<16x1xf32>
    %577 = vector.broadcast %576 : vector<16x1xf32> to vector<16x128xf32>
    %578 = arith.subf %566, %577 : vector<16x128xf32>
    %579 = vector.broadcast %4 : vector<1x128xf32> to vector<16x128xf32>
    %580 = arith.mulf %578, %579 : vector<16x128xf32>
    %581 = arith.mulf %580, %580 : vector<16x128xf32>
    %cst_213 = arith.constant dense<0.000000e+00> : vector<16xf32>
    %582 = vector.multi_reduction <add>, %581, %cst_213 [1] : vector<16x128xf32> to vector<16xf32>
    %583 = vector.shape_cast %582 : vector<16xf32> to vector<16x1xf32>
    %cst_214 = arith.constant 3.125000e-02 : f32
    %584 = vector.broadcast %cst_214 : f32 to vector<16x1xf32>
    %585 = arith.mulf %583, %584 : vector<16x1xf32>
    %cst_215 = arith.constant 9.99999996E-13 : f32
    %586 = vector.broadcast %cst_215 : f32 to vector<16x1xf32>
    %587 = arith.addf %585, %586 : vector<16x1xf32>
    %588 = math.rsqrt %587 : vector<16x1xf32>
    %589 = vector.broadcast %588 : vector<16x1xf32> to vector<16x128xf32>
    %590 = arith.mulf %580, %589 : vector<16x128xf32>
    %591 = vector.broadcast %568 : vector<1x128xf32> to vector<16x128xf32>
    %592 = arith.mulf %590, %591 : vector<16x128xf32>
    %593 = vector.broadcast %570 : vector<1x128xf32> to vector<16x128xf32>
    %594 = arith.addf %592, %593 : vector<16x128xf32>
    %c1_216 = arith.constant 1 : index
    %c0_217 = arith.constant 0 : index
    %c0_218 = arith.constant 0 : index
    %595 = vector.load %arg10[%c1_216, %c0_217, %c0_218] : memref<2x128x128xf32, #tpu.memory_space<vmem>>, vector<1x128x128xf32>
    %596 = vector.shape_cast %595 : vector<1x128x128xf32> to vector<128x128xf32>
    %cst_219 = arith.constant dense<0.000000e+00> : vector<16x128xf32>
    %597 = tpu.matmul %594, %596, %cst_219 {dimension_numbers = #tpu.dot_dimension_numbers<[1], [0], [0], [1], [0, 0, 1, 1], [], []>} : vector<16x128xf32>, vector<128x128xf32>, vector<16x128xf32> -> vector<16x128xf32>
    %c1_220 = arith.constant 1 : index
    %c0_221 = arith.constant 0 : index
    %c0_222 = arith.constant 0 : index
    %598 = vector.load %arg11[%c1_220, %c0_221, %c0_222] : memref<2x1x128xf32, #tpu.memory_space<vmem>>, vector<1x1x128xf32>
    %599 = vector.shape_cast %598 : vector<1x1x128xf32> to vector<1x128xf32>
    %600 = vector.broadcast %599 : vector<1x128xf32> to vector<16x128xf32>
    %601 = arith.addf %597, %600 : vector<16x128xf32>
    %cst_223 = arith.constant 5.000000e-01 : f32
    %602 = vector.broadcast %cst_223 : f32 to vector<16x128xf32>
    %603 = arith.mulf %602, %601 : vector<16x128xf32>
    %cst_224 = arith.constant 4.471500e-02 : f32
    %604 = vector.broadcast %cst_224 : f32 to vector<16x128xf32>
    %605 = arith.mulf %604, %601 : vector<16x128xf32>
    %606 = arith.mulf %605, %601 : vector<16x128xf32>
    %607 = arith.mulf %606, %601 : vector<16x128xf32>
    %608 = arith.addf %601, %607 : vector<16x128xf32>
    %cst_225 = arith.constant 0.797884583 : f32
    %609 = vector.broadcast %cst_225 : f32 to vector<16x128xf32>
    %610 = arith.mulf %609, %608 : vector<16x128xf32>
    %611 = math.tanh %610 : vector<16x128xf32>
    %cst_226 = arith.constant 1.000000e+00 : f32
    %612 = vector.broadcast %cst_226 : f32 to vector<16x128xf32>
    %613 = arith.addf %612, %611 : vector<16x128xf32>
    %614 = arith.mulf %603, %613 : vector<16x128xf32>
    %c1_227 = arith.constant 1 : index
    %c0_228 = arith.constant 0 : index
    %c0_229 = arith.constant 0 : index
    %615 = vector.load %arg12[%c1_227, %c0_228, %c0_229] : memref<2x128x128xf32, #tpu.memory_space<vmem>>, vector<1x128x128xf32>
    %616 = vector.shape_cast %615 : vector<1x128x128xf32> to vector<128x128xf32>
    %cst_230 = arith.constant dense<0.000000e+00> : vector<16x128xf32>
    %617 = tpu.matmul %614, %616, %cst_230 {dimension_numbers = #tpu.dot_dimension_numbers<[1], [0], [0], [1], [0, 0, 1, 1], [], []>} : vector<16x128xf32>, vector<128x128xf32>, vector<16x128xf32> -> vector<16x128xf32>
    %c1_231 = arith.constant 1 : index
    %c0_232 = arith.constant 0 : index
    %c0_233 = arith.constant 0 : index
    %618 = vector.load %arg13[%c1_231, %c0_232, %c0_233] : memref<2x1x128xf32, #tpu.memory_space<vmem>>, vector<1x1x128xf32>
    %619 = vector.shape_cast %618 : vector<1x1x128xf32> to vector<1x128xf32>
    %620 = vector.broadcast %619 : vector<1x128xf32> to vector<16x128xf32>
    %621 = arith.addf %617, %620 : vector<16x128xf32>
    %622 = arith.addf %621, %594 : vector<16x128xf32>
    %c3_234 = arith.constant 3 : index
    %c0_235 = arith.constant 0 : index
    %c0_236 = arith.constant 0 : index
    %623 = vector.load %arg8[%c3_234, %c0_235, %c0_236] : memref<4x1x128xf32, #tpu.memory_space<vmem>>, vector<1x1x128xf32>
    %624 = vector.shape_cast %623 : vector<1x1x128xf32> to vector<1x128xf32>
    %c3_237 = arith.constant 3 : index
    %c0_238 = arith.constant 0 : index
    %c0_239 = arith.constant 0 : index
    %625 = vector.load %arg9[%c3_237, %c0_238, %c0_239] : memref<4x1x128xf32, #tpu.memory_space<vmem>>, vector<1x1x128xf32>
    %626 = vector.shape_cast %625 : vector<1x1x128xf32> to vector<1x128xf32>
    %627 = vector.broadcast %4 : vector<1x128xf32> to vector<16x128xf32>
    %628 = arith.mulf %622, %627 : vector<16x128xf32>
    %cst_240 = arith.constant dense<0.000000e+00> : vector<16xf32>
    %629 = vector.multi_reduction <add>, %628, %cst_240 [1] : vector<16x128xf32> to vector<16xf32>
    %630 = vector.shape_cast %629 : vector<16xf32> to vector<16x1xf32>
    %cst_241 = arith.constant 3.125000e-02 : f32
    %631 = vector.broadcast %cst_241 : f32 to vector<16x1xf32>
    %632 = arith.mulf %630, %631 : vector<16x1xf32>
    %633 = vector.broadcast %632 : vector<16x1xf32> to vector<16x128xf32>
    %634 = arith.subf %622, %633 : vector<16x128xf32>
    %635 = vector.broadcast %4 : vector<1x128xf32> to vector<16x128xf32>
    %636 = arith.mulf %634, %635 : vector<16x128xf32>
    %637 = arith.mulf %636, %636 : vector<16x128xf32>
    %cst_242 = arith.constant dense<0.000000e+00> : vector<16xf32>
    %638 = vector.multi_reduction <add>, %637, %cst_242 [1] : vector<16x128xf32> to vector<16xf32>
    %639 = vector.shape_cast %638 : vector<16xf32> to vector<16x1xf32>
    %cst_243 = arith.constant 3.125000e-02 : f32
    %640 = vector.broadcast %cst_243 : f32 to vector<16x1xf32>
    %641 = arith.mulf %639, %640 : vector<16x1xf32>
    %cst_244 = arith.constant 9.99999996E-13 : f32
    %642 = vector.broadcast %cst_244 : f32 to vector<16x1xf32>
    %643 = arith.addf %641, %642 : vector<16x1xf32>
    %644 = math.rsqrt %643 : vector<16x1xf32>
    %645 = vector.broadcast %644 : vector<16x1xf32> to vector<16x128xf32>
    %646 = arith.mulf %636, %645 : vector<16x128xf32>
    %647 = vector.broadcast %624 : vector<1x128xf32> to vector<16x128xf32>
    %648 = arith.mulf %646, %647 : vector<16x128xf32>
    %649 = vector.broadcast %626 : vector<1x128xf32> to vector<16x128xf32>
    %650 = arith.addf %648, %649 : vector<16x128xf32>
    %c0_245 = arith.constant 0 : index
    %c0_246 = arith.constant 0 : index
    %651 = vector.load %arg14[%c0_245, %c0_246] : memref<128x128xf32, #tpu.memory_space<vmem>>, vector<128x128xf32>
    %cst_247 = arith.constant dense<0.000000e+00> : vector<16x128xf32>
    %652 = tpu.matmul %650, %651, %cst_247 {dimension_numbers = #tpu.dot_dimension_numbers<[1], [0], [0], [1], [0, 0, 1, 1], [], []>} : vector<16x128xf32>, vector<128x128xf32>, vector<16x128xf32> -> vector<16x128xf32>
    %c0_248 = arith.constant 0 : index
    %c0_249 = arith.constant 0 : index
    %653 = vector.load %arg15[%c0_248, %c0_249] : memref<1x128xf32, #tpu.memory_space<vmem>>, vector<1x128xf32>
    %654 = vector.broadcast %653 : vector<1x128xf32> to vector<16x128xf32>
    %655 = arith.addf %652, %654 : vector<16x128xf32>
    %656 = math.tanh %655 : vector<16x128xf32>
    %c0_250 = arith.constant 0 : index
    %c0_251 = arith.constant 0 : index
    %657 = vector.load %arg16[%c0_250, %c0_251] : memref<128x128xf32, #tpu.memory_space<vmem>>, vector<128x128xf32>
    %cst_252 = arith.constant dense<0.000000e+00> : vector<16x128xf32>
    %658 = tpu.matmul %656, %657, %cst_252 {dimension_numbers = #tpu.dot_dimension_numbers<[1], [0], [0], [1], [0, 0, 1, 1], [], []>} : vector<16x128xf32>, vector<128x128xf32>, vector<16x128xf32> -> vector<16x128xf32>
    %c0_253 = arith.constant 0 : index
    %c0_254 = arith.constant 0 : index
    %659 = vector.load %arg17[%c0_253, %c0_254] : memref<1x128xf32, #tpu.memory_space<vmem>>, vector<1x128xf32>
    %660 = vector.broadcast %659 : vector<1x128xf32> to vector<16x128xf32>
    %661 = arith.addf %658, %660 : vector<16x128xf32>
    %c0_255 = arith.constant 0 : index
    %c0_256 = arith.constant 0 : index
    %662 = vector.load %arg18[%c0_255, %c0_256] : memref<16x128xf32, #tpu.memory_space<vmem>>, vector<16x128xf32>
    tpu.vector_store %arg18[%c0_255, %c0_256], %661 {strides = array<i32>} : memref<16x128xf32, #tpu.memory_space<vmem>>, vector<16x128xf32>,
    return
  }
}

</mosaic_0001>

<llo_original>
// kernel: sentence_classifier_forward.1
$region0: #{sentence_classifier_forward.1}
  #allocation0 [shape = 'u32[]', space=smem, size = 0x4, offset = 0x4, fixed_abs, tag = 'smem constant byte address 0x4 - core index']
  #allocation1 [shape = 'u32[144,128]{1,0:T(1,128)}', space=vmem, size = 0x12000, scoped, tag = 'internal scratch']
  %s0 = inlined_call_operand.vmem [shape: s32[16,1], index: 0, kind: input, shape index: {}]
  %s1 = inlined_call_operand.vmem [shape: s32[2,8], index: 1, kind: input, shape index: {}]
  %s2 = inlined_call_operand.hbm [shape: f32[128,128], index: 2, kind: input, shape index: {}]
  %s3 = inlined_call_operand.vmem [shape: f32[16,128], index: 3, kind: input, shape index: {}]
  %s4 = inlined_call_operand.hbm [shape: f32[1,128], index: 4, kind: input, shape index: {}]
  %s5 = inlined_call_operand.hbm [shape: f32[1,128], index: 5, kind: input, shape index: {}]
  %s6 = inlined_call_operand.hbm [shape: f32[8,128,128], index: 6, kind: input, shape index: {}]
  %s7 = inlined_call_operand.vmem [shape: f32[8,1,128], index: 7, kind: input, shape index: {}]
  %s8 = inlined_call_operand.vmem [shape: f32[4,1,128], index: 8, kind: input, shape index: {}]
  %s9 = inlined_call_operand.vmem [shape: f32[4,1,128], index: 9, kind: input, shape index: {}]
  %s10 = inlined_call_operand.hbm [shape: f32[2,128,128], index: 10, kind: input, shape index: {}]
  %s11 = inlined_call_operand.hbm [shape: f32[2,1,128], index: 11, kind: input, shape index: {}]
  %s12 = inlined_call_operand.hbm [shape: f32[2,128,128], index: 12, kind: input, shape index: {}]
  %s13 = inlined_call_operand.hbm [shape: f32[2,1,128], index: 13, kind: input, shape index: {}]
  %s14 = inlined_call_operand.hbm [shape: f32[128,128], index: 14, kind: input, shape index: {}]
  %s15 = inlined_call_operand.hbm [shape: f32[1,128], index: 15, kind: input, shape index: {}]
  %s16 = inlined_call_operand.hbm [shape: f32[128,128], index: 16, kind: input, shape index: {}]
  %s17 = inlined_call_operand.hbm [shape: f32[1,128], index: 17, kind: input, shape index: {}]
  %s18 = inlined_call_operand.vmem [shape: f32[16,128], index: 18, kind: output, shape index: {}]
  %s19 = sld [smem:[#allocation0]]
  $region130: #{sentence_classifier_forward.1} parent=0
    _
  %s21 = ssub.s32 1, %s19
  %s22 = scalar_select 0, %s21, %s19
  $region1: #{sentence_classifier_forward.1} parent=0
    #allocation2 [shape = 'u8[65536]{0}', space=vmem, size = 0x10000, scoped, tag = 'input window, operand 2, single buffered']
    #allocation3 [shape = 's32[1]{0}', space=sflag, size = 0x4, scoped, tag = 'scoped memory for sentence_classifier_forward.1']
    #allocation4 [shape = 'u8[512]{0}', space=vmem, size = 0x400, scoped, tag = 'input window, operand 4, single buffered']
    #allocation5 [shape = 's32[1]{0}', space=sflag, size = 0x4, scoped, tag = 'scoped memory for sentence_classifier_forward.1']
    #allocation6 [shape = 'u8[512]{0}', space=vmem, size = 0x400, scoped, tag = 'input window, operand 5, single buffered']
    #allocation7 [shape = 'u8[524288]{0}', space=vmem, size = 0x80000, scoped, tag = 'input window, operand 6, single buffered']
    #allocation8 [shape = 's32[1]{0}', space=sflag, size = 0x4, scoped, tag = 'scoped memory for sentence_classifier_forward.1']
    #allocation9 [shape = 'u8[131072]{0}', space=vmem, size = 0x20000, scoped, tag = 'input window, operand 10, single buffered']
    #allocation10 [shape = 'u8[1024]{0}', space=vmem, size = 0x400, scoped, tag = 'input window, operand 11, single buffered']
    #allocation11 [shape = 's32[1]{0}', space=sflag, size = 0x4, scoped, tag = 'scoped memory for sentence_classifier_forward.1']
    #allocation12 [shape = 'u8[131072]{0}', space=vmem, size = 0x20000, scoped, tag = 'input window, operand 12, single buffered']
    #allocation13 [shape = 'u8[1024]{0}', space=vmem, size = 0x400, scoped, tag = 'input window, operand 13, single buffered']
    #allocation14 [shape = 's32[1]{0}', space=sflag, size = 0x4, scoped, tag = 'scoped memory for sentence_classifier_forward.1']
    #allocation15 [shape = 'u8[65536]{0}', space=vmem, size = 0x10000, scoped, tag = 'input window, operand 14, single buffered']
    #allocation16 [shape = 'u8[512]{0}', space=vmem, size = 0x400, scoped, tag = 'input window, operand 15, single buffered']
    #allocation17 [shape = 's32[1]{0}', space=sflag, size = 0x4, scoped, tag = 'scoped memory for sentence_classifier_forward.1']
    #allocation18 [shape = 'u8[65536]{0}', space=vmem, size = 0x10000, scoped, tag = 'input window, operand 16, single buffered']
    #allocation19 [shape = 'u8[512]{0}', space=vmem, size = 0x400, scoped, tag = 'input window, operand 17, single buffered']
    #allocation20 [shape = 's32[1]{0}', space=sflag, size = 0x4, scoped, tag = 'scoped memory for sentence_classifier_forward.1']
    %23 = vsyncpa [#allocation3], 0
    %24 = vsyncpa [#allocation5], 0
    %25 = vsyncpa [#allocation8], 0
    %26 = vsyncpa [#allocation11], 0
    %27 = vsyncpa [#allocation14], 0
    %28 = vsyncpa [#allocation17], 0
    %29 = vsyncpa [#allocation20], 0
    // Predicated region
    $region2: #{sentence_classifier_forward.1} parent=1 // pred_check
      _
    $region3: #{sentence_classifier_forward.1} parent=1 // pred_check_branch
      %31 = sbr.rel (0) target = $region5
    $region4: #{sentence_classifier_forward.1} parent=1 // pred_region
      _
    $region5: #{sentence_classifier_forward.1} parent=1 // pred_fallthru
      _
    // Predicated region
    $region6: #{sentence_classifier_forward.1} parent=1 // pred_check
      _
    $region7: #{sentence_classifier_forward.1} parent=1 // pred_check_branch
      %33 = sbr.rel (0) target = $region9
    $region8: #{sentence_classifier_forward.1} parent=1 // pred_region
      _
    $region9: #{sentence_classifier_forward.1} parent=1 // pred_fallthru
      _
    // Predicated region
    $region10: #{sentence_classifier_forward.1} parent=1 // pred_check
      _
    $region11: #{sentence_classifier_forward.1} parent=1 // pred_check_branch
      %35 = sbr.rel (0) target = $region13
    $region12: #{sentence_classifier_forward.1} parent=1 // pred_region
      %s37 = ssub.s32 2048, 2048
      %38 = vsyncadd [#allocation3], %s37
      %s39 = sshll.u32 [#allocation2], 4
      %s40 = int_to_ptr.vmem [resolvable:$true] %s39
      %45 = dma.hbm_to_vmem [thread:$0]  %s2, 2048, %s40, [#allocation3], 128, 128, 8
    $region13: #{sentence_classifier_forward.1} parent=1 // pred_fallthru
      _
    // Predicated region
    $region14: #{sentence_classifier_forward.1} parent=1 // pred_check
      _
    $region15: #{sentence_classifier_forward.1} parent=1 // pred_check_branch
      %47 = sbr.rel (0) target = $region17
    $region16: #{sentence_classifier_forward.1} parent=1 // pred_region
      _
    $region17: #{sentence_classifier_forward.1} parent=1 // pred_fallthru
      _
    // Predicated region
    $region18: #{sentence_classifier_forward.1} parent=1 // pred_check
      _
    $region19: #{sentence_classifier_forward.1} parent=1 // pred_check_branch
      %49 = sbr.rel (0) target = $region21
    $region20: #{sentence_classifier_forward.1} parent=1 // pred_region
      %s51 = ssub.s32 16, 16
      %52 = vsyncadd [#allocation5], %s51
      %s54 = sshll.u32 [#allocation4], 4
      %s55 = int_to_ptr.vmem [resolvable:$true] %s54
      %57 = dma.hbm_to_vmem [thread:$0]  %s4, 16, %s55, [#allocation5]
    $region21: #{sentence_classifier_forward.1} parent=1 // pred_fallthru
      _
    // Predicated region
    $region22: #{sentence_classifier_forward.1} parent=1 // pred_check
      _
    $region23: #{sentence_classifier_forward.1} parent=1 // pred_check_branch
      %59 = sbr.rel (0) target = $region25
    $region24: #{sentence_classifier_forward.1} parent=1 // pred_region
      %s61 = ssub.s32 16, 16
      %62 = vsyncadd [#allocation5], %s61
      %s64 = sshll.u32 [#allocation6], 4
      %s65 = int_to_ptr.vmem [resolvable:$true] %s64
      %67 = dma.hbm_to_vmem [thread:$0]  %s5, 16, %s65, [#allocation5]
    $region25: #{sentence_classifier_forward.1} parent=1 // pred_fallthru
      _
    // Predicated region
    $region26: #{sentence_classifier_forward.1} parent=1 // pred_check
      _
    $region27: #{sentence_classifier_forward.1} parent=1 // pred_check_branch
      %69 = sbr.rel (0) target = $region29
    $region28: #{sentence_classifier_forward.1} parent=1 // pred_region
      %s71 = ssub.s32 16384, 16384
      %72 = vsyncadd [#allocation8], %s71
      %s73 = sshll.u32 [#allocation7], 4
      %s74 = int_to_ptr.vmem [resolvable:$true] %s73
      %79 = dma.hbm_to_vmem [thread:$0]  %s6, 16384, %s74, [#allocation8], 128, 128, 8
    $region29: #{sentence_classifier_forward.1} parent=1 // pred_fallthru
      _
    // Predicated region
    $region30: #{sentence_classifier_forward.1} parent=1 // pred_check
      _
    $region31: #{sentence_classifier_forward.1} parent=1 // pred_check_branch
      %81 = sbr.rel (0) target = $region33
    $region32: #{sentence_classifier_forward.1} parent=1 // pred_region
      _
    $region33: #{sentence_classifier_forward.1} parent=1 // pred_fallthru
      _
    // Predicated region
    $region34: #{sentence_classifier_forward.1} parent=1 // pred_check
      _
    $region35: #{sentence_classifier_forward.1} parent=1 // pred_check_branch
      %83 = sbr.rel (0) target = $region37
    $region36: #{sentence_classifier_forward.1} parent=1 // pred_region
      _
    $region37: #{sentence_classifier_forward.1} parent=1 // pred_fallthru
      _
    // Predicated region
    $region38: #{sentence_classifier_forward.1} parent=1 // pred_check
      _
    $region39: #{sentence_classifier_forward.1} parent=1 // pred_check_branch
      %85 = sbr.rel (0) target = $region41
    $region40: #{sentence_classifier_forward.1} parent=1 // pred_region
      _
    $region41: #{sentence_classifier_forward.1} parent=1 // pred_fallthru
      _
    // Predicated region
    $region42: #{sentence_classifier_forward.1} parent=1 // pred_check
      _
    $region43: #{sentence_classifier_forward.1} parent=1 // pred_check_branch
      %87 = sbr.rel (0) target = $region45
    $region44: #{sentence_classifier_forward.1} parent=1 // pred_region
      %s89 = ssub.s32 4096, 4096
      %90 = vsyncadd [#allocation8], %s89
      %s91 = sshll.u32 [#allocation9], 4
      %s92 = int_to_ptr.vmem [resolvable:$true] %s91
      %97 = dma.hbm_to_vmem [thread:$0]  %s10, 4096, %s92, [#allocation8], 128, 128, 8
    $region45: #{sentence_classifier_forward.1} parent=1 // pred_fallthru
      _
    // Predicated region
    $region46: #{sentence_classifier_forward.1} parent=1 // pred_check
      _
    $region47: #{sentence_classifier_forward.1} parent=1 // pred_check_branch
      %99 = sbr.rel (0) target = $region49
    $region48: #{sentence_classifier_forward.1} parent=1 // pred_region
      %s101 = ssub.s32 32, 32
      %102 = vsyncadd [#allocation11], %s101
      %s103 = sshll.u32 [#allocation10], 4
      %s104 = int_to_ptr.vmem [resolvable:$true] %s103
      %109 = dma.hbm_to_vmem [thread:$0]  %s11, 32, %s104, [#allocation11], 16, 16, 1
    $region49: #{sentence_classifier_forward.1} parent=1 // pred_fallthru
      _
    // Predicated region
    $region50: #{sentence_classifier_forward.1} parent=1 // pred_check
      _
    $region51: #{sentence_classifier_forward.1} parent=1 // pred_check_branch
      %111 = sbr.rel (0) target = $region53
    $region52: #{sentence_classifier_forward.1} parent=1 // pred_region
      %s113 = ssub.s32 4096, 4096
      %114 = vsyncadd [#allocation11], %s113
      %s115 = sshll.u32 [#allocation12], 4
      %s116 = int_to_ptr.vmem [resolvable:$true] %s115
      %121 = dma.hbm_to_vmem [thread:$0]  %s12, 4096, %s116, [#allocation11], 128, 128, 8
    $region53: #{sentence_classifier_forward.1} parent=1 // pred_fallthru
      _
    // Predicated region
    $region54: #{sentence_classifier_forward.1} parent=1 // pred_check
      _
    $region55: #{sentence_classifier_forward.1} parent=1 // pred_check_branch
      %123 = sbr.rel (0) target = $region57
    $region56: #{sentence_classifier_forward.1} parent=1 // pred_region
      %s125 = ssub.s32 32, 32
      %126 = vsyncadd [#allocation14], %s125
      %s127 = sshll.u32 [#allocation13], 4
      %s128 = int_to_ptr.vmem [resolvable:$true] %s127
      %133 = dma.hbm_to_vmem [thread:$0]  %s13, 32, %s128, [#allocation14], 16, 16, 1
    $region57: #{sentence_classifier_forward.1} parent=1 // pred_fallthru
      _
    // Predicated region
    $region58: #{sentence_classifier_forward.1} parent=1 // pred_check
      _
    $region59: #{sentence_classifier_forward.1} parent=1 // pred_check_branch
      %135 = sbr.rel (0) target = $region61
    $region60: #{sentence_classifier_forward.1} parent=1 // pred_region
      %s137 = ssub.s32 2048, 2048
      %138 = vsyncadd [#allocation14], %s137
      %s139 = sshll.u32 [#allocation15], 4
      %s140 = int_to_ptr.vmem [resolvable:$true] %s139
      %145 = dma.hbm_to_vmem [thread:$0]  %s14, 2048, %s140, [#allocation14], 128, 128, 8
    $region61: #{sentence_classifier_forward.1} parent=1 // pred_fallthru
      _
    // Predicated region
    $region62: #{sentence_classifier_forward.1} parent=1 // pred_check
      _
    $region63: #{sentence_classifier_forward.1} parent=1 // pred_check_branch
      %147 = sbr.rel (0) target = $region65
    $region64: #{sentence_classifier_forward.1} parent=1 // pred_region
      %s149 = ssub.s32 16, 16
      %150 = vsyncadd [#allocation17], %s149
      %s152 = sshll.u32 [#allocation16], 4
      %s153 = int_to_ptr.vmem [resolvable:$true] %s152
      %155 = dma.hbm_to_vmem [thread:$0]  %s15, 16, %s153, [#allocation17]
    $region65: #{sentence_classifier_forward.1} parent=1 // pred_fallthru
      _
    // Predicated region
    $region66: #{sentence_classifier_forward.1} parent=1 // pred_check
      _
    $region67: #{sentence_classifier_forward.1} parent=1 // pred_check_branch
      %157 = sbr.rel (0) target = $region69
    $region68: #{sentence_classifier_forward.1} parent=1 // pred_region
      %s159 = ssub.s32 2048, 2048
      %160 = vsyncadd [#allocation17], %s159
      %s161 = sshll.u32 [#allocation18], 4
      %s162 = int_to_ptr.vmem [resolvable:$true] %s161
      %167 = dma.hbm_to_vmem [thread:$0]  %s16, 2048, %s162, [#allocation17], 128, 128, 8
    $region69: #{sentence_classifier_forward.1} parent=1 // pred_fallthru
      _
    // Predicated region
    $region70: #{sentence_classifier_forward.1} parent=1 // pred_check
      _
    $region71: #{sentence_classifier_forward.1} parent=1 // pred_check_branch
      %169 = sbr.rel (0) target = $region73
    $region72: #{sentence_classifier_forward.1} parent=1 // pred_region
      %s171 = ssub.s32 16, 16
      %172 = vsyncadd [#allocation20], %s171
      %s174 = sshll.u32 [#allocation19], 4
      %s175 = int_to_ptr.vmem [resolvable:$true] %s174
      %177 = dma.hbm_to_vmem [thread:$0]  %s17, 16, %s175, [#allocation20]
    $region73: #{sentence_classifier_forward.1} parent=1 // pred_fallthru
      _
    // Predicated region
    $region74: #{sentence_classifier_forward.1} parent=1 // pred_check
      _
    $region75: #{sentence_classifier_forward.1} parent=1 // pred_check_branch
      %179 = sbr.rel (0) target = $region77
    $region76: #{sentence_classifier_forward.1} parent=1 // pred_region
      %180 = dma.done [#allocation3], 2048
    $region77: #{sentence_classifier_forward.1} parent=1 // pred_fallthru
      _
    // Predicated region
    $region78: #{sentence_classifier_forward.1} parent=1 // pred_check
      _
    $region79: #{sentence_classifier_forward.1} parent=1 // pred_check_branch
      %182 = sbr.rel (0) target = $region81
    $region80: #{sentence_classifier_forward.1} parent=1 // pred_region
      %183 = dma.done [#allocation5], 16
    $region81: #{sentence_classifier_forward.1} parent=1 // pred_fallthru
      _
    // Predicated region
    $region82: #{sentence_classifier_forward.1} parent=1 // pred_check
      _
    $region83: #{sentence_classifier_forward.1} parent=1 // pred_check_branch
      %185 = sbr.rel (0) target = $region85
    $region84: #{sentence_classifier_forward.1} parent=1 // pred_region
      %186 = dma.done [#allocation5], 16
    $region85: #{sentence_classifier_forward.1} parent=1 // pred_fallthru
      _
    // Predicated region
    $region86: #{sentence_classifier_forward.1} parent=1 // pred_check
      _
    $region87: #{sentence_classifier_forward.1} parent=1 // pred_check_branch
      %188 = sbr.rel (0) target = $region89
    $region88: #{sentence_classifier_forward.1} parent=1 // pred_region
      %189 = dma.done [#allocation8], 16384
    $region89: #{sentence_classifier_forward.1} parent=1 // pred_fallthru
      _
    // Predicated region
    $region90: #{sentence_classifier_forward.1} parent=1 // pred_check
      _
    $region91: #{sentence_classifier_forward.1} parent=1 // pred_check_branch
      %191 = sbr.rel (0) target = $region93
    $region92: #{sentence_classifier_forward.1} parent=1 // pred_region
      %192 = dma.done [#allocation8], 4096
    $region93: #{sentence_classifier_forward.1} parent=1 // pred_fallthru
      _
    // Predicated region
    $region94: #{sentence_classifier_forward.1} parent=1 // pred_check
      _
    $region95: #{sentence_classifier_forward.1} parent=1 // pred_check_branch
      %194 = sbr.rel (0) target = $region97
    $region96: #{sentence_classifier_forward.1} parent=1 // pred_region
      %195 = dma.done [#allocation11], 32
    $region97: #{sentence_classifier_forward.1} parent=1 // pred_fallthru
      _
    // Predicated region
    $region98: #{sentence_classifier_forward.1} parent=1 // pred_check
      _
    $region99: #{sentence_classifier_forward.1} parent=1 // pred_check_branch
      %197 = sbr.rel (0) target = $region101
    $region100: #{sentence_classifier_forward.1} parent=1 // pred_region
      %198 = dma.done [#allocation11], 4096
    $region101: #{sentence_classifier_forward.1} parent=1 // pred_fallthru
      _
    // Predicated region
    $region102: #{sentence_classifier_forward.1} parent=1 // pred_check
      _
    $region103: #{sentence_classifier_forward.1} parent=1 // pred_check_branch
      %200 = sbr.rel (0) target = $region105
    $region104: #{sentence_classifier_forward.1} parent=1 // pred_region
      %201 = dma.done [#allocation14], 32
    $region105: #{sentence_classifier_forward.1} parent=1 // pred_fallthru
      _
    // Predicated region
    $region106: #{sentence_classifier_forward.1} parent=1 // pred_check
      _
    $region107: #{sentence_classifier_forward.1} parent=1 // pred_check_branch
      %203 = sbr.rel (0) target = $region109
    $region108: #{sentence_classifier_forward.1} parent=1 // pred_region
      %204 = dma.done [#allocation14], 2048
    $region109: #{sentence_classifier_forward.1} parent=1 // pred_fallthru
      _
    // Predicated region
    $region110: #{sentence_classifier_forward.1} parent=1 // pred_check
      _
    $region111: #{sentence_classifier_forward.1} parent=1 // pred_check_branch
      %206 = sbr.rel (0) target = $region113
    $region112: #{sentence_classifier_forward.1} parent=1 // pred_region
      %207 = dma.done [#allocation17], 16
    $region113: #{sentence_classifier_forward.1} parent=1 // pred_fallthru
      _
    // Predicated region
    $region114: #{sentence_classifier_forward.1} parent=1 // pred_check
      _
    $region115: #{sentence_classifier_forward.1} parent=1 // pred_check_branch
      %209 = sbr.rel (0) target = $region117
    $region116: #{sentence_classifier_forward.1} parent=1 // pred_region
      %210 = dma.done [#allocation17], 2048
    $region117: #{sentence_classifier_forward.1} parent=1 // pred_fallthru
      _
    // Predicated region
    $region118: #{sentence_classifier_forward.1} parent=1 // pred_check
      _
    $region119: #{sentence_classifier_forward.1} parent=1 // pred_check_branch
      %212 = sbr.rel (0) target = $region121
    $region120: #{sentence_classifier_forward.1} parent=1 // pred_region
      %213 = dma.done [#allocation20], 16
    $region121: #{sentence_classifier_forward.1} parent=1 // pred_fallthru
      _
    %v214 = vlaneseq
    %v215 = vand.u32 %v214, 127
    %vm216 = vcmp.lt.s32.totalorder %v215, 32
    %v217 = vsel %vm216, 1, 0
    %v218 = vcvt.s32.f32 %v217
    %v219 = vld [vmem:[%s0] sm:$0xff]
    %v220 = vld [vmem:[%s0 + $0x8] sm:$0xff]
    %221 = vset.pattern.permute.xlu0 0
    %222 = vperm.xlu0 %221, %v219
    %v223 = vpop.permute.xlu0 %222
    %224 = vset.pattern.permute.xlu0 0
    %225 = vperm.xlu0 %224, %v220
    %v226 = vpop.permute.xlu0 %225
    %vm227 = vcmp.eq.s32.totalorder %v215, %v223
    %vm228 = vcmp.eq.s32.totalorder %v215, %v226
    %v229 = vsel %vm227, 1, 0
    %v230 = vsel %vm228, 1, 0
    %v231 = vcvt.s32.f32 %v229
    %v232 = vcvt.s32.f32 %v230
    %v233 = vld [vmem:[#allocation2] sm:$0xff]
    %v234 = vld [vmem:[#allocation2 + $0x8] sm:$0xff]
    %v235 = vld [vmem:[#allocation2 + $0x10] sm:$0xff]
    %v236 = vld [vmem:[#allocation2 + $0x18] sm:$0xff]
    %v237 = vld [vmem:[#allocation2 + $0x20] sm:$0xff]
    %v238 = vld [vmem:[#allocation2 + $0x28] sm:$0xff]
    %v239 = vld [vmem:[#allocation2 + $0x30] sm:$0xff]
    %v240 = vld [vmem:[#allocation2 + $0x38] sm:$0xff]
    %v241 = vld [vmem:[#allocation2 + $0x40] sm:$0xff]
    %v242 = vld [vmem:[#allocation2 + $0x48] sm:$0xff]
    %v243 = vld [vmem:[#allocation2 + $0x50] sm:$0xff]
    %v244 = vld [vmem:[#allocation2 + $0x58] sm:$0xff]
    %v245 = vld [vmem:[#allocation2 + $0x60] sm:$0xff]
    %v246 = vld [vmem:[#allocation2 + $0x68] sm:$0xff]
    %v247 = vld [vmem:[#allocation2 + $0x70] sm:$0xff]
    %v248 = vld [vmem:[#allocation2 + $0x78] sm:$0xff]
    %v249 = vld [vmem:[%s3] sm:$0xff]
    %250 = vmatprep.subr.mxu0 0.0
    %251 = vmatpush1.msra.mxu0 %v248
    %252 = vmatprep.subr.mxu0 0.0
    %253 = vmatpush1.msra.mxu0 %v247
    %254 = vmatprep.subr.mxu0 0.0
    %255 = vmatpush1.msra.mxu0 %v246
    %256 = vmatprep.subr.mxu0 0.0
    %257 = vmatpush1.msra.mxu0 %v245
    %258 = vmatprep.subr.mxu0 0.0
    %259 = vmatpush1.msra.mxu0 %v244
    %260 = vmatprep.subr.mxu0 0.0
    %261 = vmatpush1.msra.mxu0 %v243
    %262 = vmatprep.subr.mxu0 0.0
    %263 = vmatpush1.msra.mxu0 %v242
    %264 = vmatprep.subr.mxu0 0.0
    %265 = vmatpush1.msra.mxu0 %v241
    %266 = vmatprep.subr.mxu0 0.0
    %267 = vmatpush1.msra.mxu0 %v240
    %268 = vmatprep.subr.mxu0 0.0
    %269 = vmatpush1.msra.mxu0 %v239
    %270 = vmatprep.subr.mxu0 0.0
    %271 = vmatpush1.msra.mxu0 %v238
    %272 = vmatprep.subr.mxu0 0.0
    %273 = vmatpush1.msra.mxu0 %v237
    %274 = vmatprep.subr.mxu0 0.0
    %275 = vmatpush1.msra.mxu0 %v236
    %276 = vmatprep.subr.mxu0 0.0
    %277 = vmatpush1.msra.mxu0 %v235
    %278 = vmatprep.subr.mxu0 0.0
    %279 = vmatpush1.msra.mxu0 %v234
    %280 = vmatprep.subr.mxu0 0.0
    %281 = vmatpush1.msra.mxu0 %v233
    %282 = vmatprep.subr.mxu0 0.0
    %283 = vmatpush2.msra.mxu0 0.0
    %284 = vmatprep.subr.mxu0 0.0
    %285 = vmatpush2.msra.mxu0 0.0
    %286 = vmatprep.subr.mxu0 0.0
    %287 = vmatpush2.msra.mxu0 0.0
    %288 = vmatprep.subr.mxu0 0.0
    %289 = vmatpush2.msra.mxu0 0.0
    %290 = vmatprep.subr.mxu0 0.0
    %291 = vmatpush2.msra.mxu0 0.0
    %292 = vmatprep.subr.mxu0 0.0
    %293 = vmatpush2.msra.mxu0 0.0
    %294 = vmatprep.subr.mxu0 0.0
    %295 = vmatpush2.msra.mxu0 0.0
    %296 = vmatprep.subr.mxu0 0.0
    %297 = vmatpush2.msra.mxu0 0.0
    %298 = vmatprep.subr.mxu0 0.0
    %299 = vmatpush2.msra.mxu0 0.0
    %300 = vmatprep.subr.mxu0 0.0
    %301 = vmatpush2.msra.mxu0 0.0
    %302 = vmatprep.subr.mxu0 0.0
    %303 = vmatpush2.msra.mxu0 0.0
    %304 = vmatprep.subr.mxu0 0.0
    %305 = vmatpush2.msra.mxu0 0.0
    %306 = vmatprep.subr.mxu0 0.0
    %307 = vmatpush2.msra.mxu0 0.0
    %308 = vmatprep.subr.mxu0 0.0
    %309 = vmatpush2.msra.mxu0 0.0
    %310 = vmatprep.subr.mxu0 0.0
    %311 = vmatpush2.msra.mxu0 0.0
    %312 = vmatprep.subr.mxu0 0.0
    %313 = vmatpush2.msra.mxu0 0.0
    %314 = vmatprep.mubr.f32.mxu0 0.0
    %315 = vmatmul.mubr.f32.gmra.mxu0 %v231
    %v316 = vpop.f32.mrf.mxu0
    %v317 = vadd.f32 %v249, %v316
    %v318 = vpop.f32.mrf.mxu0
    %319 = vmatprep.mubr.f32.mxu0 0.0
    %320 = vmatmul.mubr.f32.gmra.mxu0 %v232
    %v321 = vpop.f32.mrf.mxu0
    %v322 = vadd.f32 %v249, %v321
    %v323 = vpop.f32.mrf.mxu0
    %324 = vdwg.mxu0
    %v325 = vld [vmem:[#allocation4] sm:$0x1]
    %v326 = vld [vmem:[#allocation6] sm:$0x1]
    %v327 = vmul.f32 %v317, %v218
    %v328 = vmul.f32 %v322, %v218
    %329 = vadd.xlane.f32.xlu0 %v327
    %v330 = vpop.xlane.xlu0 %329
    %331 = vadd.xlane.f32.xlu0 %v328
    %v332 = vpop.xlane.xlu0 %331
    %v333 = vmul.f32 %v330, 0.03125
    %v334 = vmul.f32 %v332, 0.03125
    %v335 = vsub.f32 %v317, %v333
    %v336 = vsub.f32 %v322, %v334
    %v337 = vmul.f32 %v335, %v218
    %v338 = vmul.f32 %v336, %v218
    %v339 = vmul.f32 %v337, %v337
    %v340 = vmul.f32 %v338, %v338
    %341 = vadd.xlane.f32.xlu0 %v339
    %v342 = vpop.xlane.xlu0 %341
    %343 = vadd.xlane.f32.xlu0 %v340
    %v344 = vpop.xlane.xlu0 %343
    %v345 = vmul.f32 %v342, 0.03125
    %v346 = vmul.f32 %v344, 0.03125
    %v347 = vadd.f32 %v345, 1e-12
    %v348 = vadd.f32 %v346, 1e-12
    %v349 = vrsqrt.pop %v347
    %v350 = vrsqrt.pop %v348
    %v351 = vmul.f32 %v337, %v349
    %v352 = vmul.f32 %v338, %v350
    %v354 = vlaneseq
    %v355 = vshrl.u32 %v354, 7
    %v356 = vsub.s32 0, %v355
    %v357 = vrot.slane %v325, %v356
    %v359 = vmul.f32 %v351, %v357
    %v360 = vmul.f32 %v352, %v357
    %v362 = vlaneseq
    %v363 = vshrl.u32 %v362, 7
    %v364 = vsub.s32 0, %v363
    %v365 = vrot.slane %v326, %v364
    %v367 = vadd.f32 %v359, %v365
    %v368 = vadd.f32 %v360, %v365
    %v369 = vld [vmem:[%s1] sm:$0x3]
    %v370 = vcvt.s32.f32 %v369
    %v371 = vsub.f32 1.0, %v370
    %v372 = vmul.f32 %v371, -10000.0
    %v373 = vld [vmem:[#allocation7] sm:$0xff]
    %v374 = vld [vmem:[#allocation7 + $0x8] sm:$0xff]
    %v375 = vld [vmem:[#allocation7 + $0x10] sm:$0xff]
    %v376 = vld [vmem:[#allocation7 + $0x18] sm:$0xff]
    %v377 = vld [vmem:[#allocation7 + $0x20] sm:$0xff]
    %v378 = vld [vmem:[#allocation7 + $0x28] sm:$0xff]
    %v379 = vld [vmem:[#allocation7 + $0x30] sm:$0xff]
    %v380 = vld [vmem:[#allocation7 + $0x38] sm:$0xff]
    %v381 = vld [vmem:[#allocation7 + $0x40] sm:$0xff]
    %v382 = vld [vmem:[#allocation7 + $0x48] sm:$0xff]
    %v383 = vld [vmem:[#allocation7 + $0x50] sm:$0xff]
    %v384 = vld [vmem:[#allocation7 + $0x58] sm:$0xff]
    %v385 = vld [vmem:[#allocation7 + $0x60] sm:$0xff]
    %v386 = vld [vmem:[#allocation7 + $0x68] sm:$0xff]
    %v387 = vld [vmem:[#allocation7 + $0x70] sm:$0xff]
    %v388 = vld [vmem:[#allocation7 + $0x78] sm:$0xff]
    %s389 = scalar_lea.vmem [#allocation7], 128
    %v390 = vld [vmem:[%s389] sm:$0xff]
    %v391 = vld [vmem:[%s389 + $0x8] sm:$0xff]
    %v392 = vld [vmem:[%s389 + $0x10] sm:$0xff]
    %v393 = vld [vmem:[%s389 + $0x18] sm:$0xff]
    %v394 = vld [vmem:[%s389 + $0x20] sm:$0xff]
    %v395 = vld [vmem:[%s389 + $0x28] sm:$0xff]
    %v396 = vld [vmem:[%s389 + $0x30] sm:$0xff]
    %v397 = vld [vmem:[%s389 + $0x38] sm:$0xff]
    %v398 = vld [vmem:[%s389 + $0x40] sm:$0xff]
    %v399 = vld [vmem:[%s389 + $0x48] sm:$0xff]
    %v400 = vld [vmem:[%s389 + $0x50] sm:$0xff]
    %v401 = vld [vmem:[%s389 + $0x58] sm:$0xff]
    %v402 = vld [vmem:[%s389 + $0x60] sm:$0xff]
    %v403 = vld [vmem:[%s389 + $0x68] sm:$0xff]
    %v404 = vld [vmem:[%s389 + $0x70] sm:$0xff]
    %v405 = vld [vmem:[%s389 + $0x78] sm:$0xff]
    %s406 = scalar_lea.vmem [#allocation7], 256
    %v407 = vld [vmem:[%s406] sm:$0xff]
    %v408 = vld [vmem:[%s406 + $0x8] sm:$0xff]
    %v409 = vld [vmem:[%s406 + $0x10] sm:$0xff]
    %v410 = vld [vmem:[%s406 + $0x18] sm:$0xff]
    %v411 = vld [vmem:[%s406 + $0x20] sm:$0xff]
    %v412 = vld [vmem:[%s406 + $0x28] sm:$0xff]
    %v413 = vld [vmem:[%s406 + $0x30] sm:$0xff]
    %v414 = vld [vmem:[%s406 + $0x38] sm:$0xff]
    %v415 = vld [vmem:[%s406 + $0x40] sm:$0xff]
    %v416 = vld [vmem:[%s406 + $0x48] sm:$0xff]
    %v417 = vld [vmem:[%s406 + $0x50] sm:$0xff]
    %v418 = vld [vmem:[%s406 + $0x58] sm:$0xff]
    %v419 = vld [vmem:[%s406 + $0x60] sm:$0xff]
    %v420 = vld [vmem:[%s406 + $0x68] sm:$0xff]
    %v421 = vld [vmem:[%s406 + $0x70] sm:$0xff]
    %v422 = vld [vmem:[%s406 + $0x78] sm:$0xff]
    %s423 = scalar_lea.vmem [#allocation7], 384
    %v424 = vld [vmem:[%s423] sm:$0xff]
    %v425 = vld [vmem:[%s423 + $0x8] sm:$0xff]
    %v426 = vld [vmem:[%s423 + $0x10] sm:$0xff]
    %v427 = vld [vmem:[%s423 + $0x18] sm:$0xff]
    %v428 = vld [vmem:[%s7] sm:$0x1]
    %s429 = scalar_lea.vmem %s7, 1
    %v430 = vld [vmem:[%s429] sm:$0x1]
    %s431 = scalar_lea.vmem %s7, 2
    %v432 = vld [vmem:[%s431] sm:$0x1]
    %s433 = scalar_lea.vmem %s7, 3
    %v434 = vld [vmem:[%s433] sm:$0x1]
    %v436 = vlaneseq
    %v437 = vshrl.u32 %v436, 7
    %v438 = vsub.s32 0, %v437
    %v439 = vrot.slane %v428, %v438
    %441 = vmatprep.subr.mxu0 0.0
    %442 = vmatpush1.msra.mxu0 %v388
    %443 = vmatprep.subr.mxu0 0.0
    %444 = vmatpush1.msra.mxu0 %v387
    %445 = vmatprep.subr.mxu0 0.0
    %446 = vmatpush1.msra.mxu0 %v386
    %447 = vmatprep.subr.mxu0 0.0
    %448 = vmatpush1.msra.mxu0 %v385
    %449 = vmatprep.subr.mxu0 0.0
    %450 = vmatpush1.msra.mxu0 %v384
    %451 = vmatprep.subr.mxu0 0.0
    %452 = vmatpush1.msra.mxu0 %v383
    %453 = vmatprep.subr.mxu0 0.0
    %454 = vmatpush1.msra.mxu0 %v382
    %455 = vmatprep.subr.mxu0 0.0
    %456 = vmatpush1.msra.mxu0 %v381
    %457 = vmatprep.subr.mxu0 0.0
    %458 = vmatpush1.msra.mxu0 %v380
    %459 = vmatprep.subr.mxu0 0.0
    %460 = vmatpush1.msra.mxu0 %v379
    %461 = vmatprep.subr.mxu0 0.0
    %462 = vmatpush1.msra.mxu0 %v378
    %463 = vmatprep.subr.mxu0 0.0
    %464 = vmatpush1.msra.mxu0 %v377
    %465 = vmatprep.subr.mxu0 0.0
    %466 = vmatpush1.msra.mxu0 %v376
    %467 = vmatprep.subr.mxu0 0.0
    %468 = vmatpush1.msra.mxu0 %v375
    %469 = vmatprep.subr.mxu0 0.0
    %470 = vmatpush1.msra.mxu0 %v374
    %471 = vmatprep.subr.mxu0 0.0
    %472 = vmatpush1.msra.mxu0 %v373
    %473 = vmatprep.subr.mxu0 0.0
    %474 = vmatpush2.msra.mxu0 0.0
    %475 = vmatprep.subr.mxu0 0.0
    %476 = vmatpush2.msra.mxu0 0.0
    %477 = vmatprep.subr.mxu0 0.0
    %478 = vmatpush2.msra.mxu0 0.0
    %479 = vmatprep.subr.mxu0 0.0
    %480 = vmatpush2.msra.mxu0 0.0
    %481 = vmatprep.subr.mxu0 0.0
    %482 = vmatpush2.msra.mxu0 0.0
    %483 = vmatprep.subr.mxu0 0.0
    %484 = vmatpush2.msra.mxu0 0.0
    %485 = vmatprep.subr.mxu0 0.0
    %486 = vmatpush2.msra.mxu0 0.0
    %487 = vmatprep.subr.mxu0 0.0
    %488 = vmatpush2.msra.mxu0 0.0
    %489 = vmatprep.subr.mxu0 0.0
    %490 = vmatpush2.msra.mxu0 0.0
    %491 = vmatprep.subr.mxu0 0.0
    %492 = vmatpush2.msra.mxu0 0.0
    %493 = vmatprep.subr.mxu0 0.0
    %494 = vmatpush2.msra.mxu0 0.0
    %495 = vmatprep.subr.mxu0 0.0
    %496 = vmatpush2.msra.mxu0 0.0
    %497 = vmatprep.subr.mxu0 0.0
    %498 = vmatpush2.msra.mxu0 0.0
    %499 = vmatprep.subr.mxu0 0.0
    %500 = vmatpush2.msra.mxu0 0.0
    %501 = vmatprep.subr.mxu0 0.0
    %502 = vmatpush2.msra.mxu0 0.0
    %503 = vmatprep.subr.mxu0 0.0
    %504 = vmatpush2.msra.mxu0 0.0
    %505 = vmatprep.mubr.f32.mxu0 0.0
    %506 = vmatmul.mubr.f32.gmra.mxu0 %v367
    %v507 = vpop.f32.mrf.mxu0
    %v508 = vadd.f32 %v439, %v507
    %v509 = vpop.f32.mrf.mxu0
    %510 = vmatprep.mubr.f32.mxu0 0.0
    %511 = vmatmul.mubr.f32.gmra.mxu0 %v368
    %v512 = vpop.f32.mrf.mxu0
    %v513 = vadd.f32 %v439, %v512
    %v514 = vpop.f32.mrf.mxu0
    %515 = vdwg.mxu0
    %v517 = vlaneseq
    %v518 = vshrl.u32 %v517, 7
    %v519 = vsub.s32 0, %v518
    %v520 = vrot.slane %v430, %v519
    %522 = vmatprep.subr.mxu0 0.0
    %523 = vmatpush1.msra.mxu0 %v405
    %524 = vmatprep.subr.mxu0 0.0
    %525 = vmatpush1.msra.mxu0 %v404
    %526 = vmatprep.subr.mxu0 0.0
    %527 = vmatpush1.msra.mxu0 %v403
    %528 = vmatprep.subr.mxu0 0.0
    %529 = vmatpush1.msra.mxu0 %v402
    %530 = vmatprep.subr.mxu0 0.0
    %531 = vmatpush1.msra.mxu0 %v401
    %532 = vmatprep.subr.mxu0 0.0
    %533 = vmatpush1.msra.mxu0 %v400
    %534 = vmatprep.subr.mxu0 0.0
    %535 = vmatpush1.msra.mxu0 %v399
    %536 = vmatprep.subr.mxu0 0.0
    %537 = vmatpush1.msra.mxu0 %v398
    %538 = vmatprep.subr.mxu0 0.0
    %539 = vmatpush1.msra.mxu0 %v397
    %540 = vmatprep.subr.mxu0 0.0
    %541 = vmatpush1.msra.mxu0 %v396
    %542 = vmatprep.subr.mxu0 0.0
    %543 = vmatpush1.msra.mxu0 %v395
    %544 = vmatprep.subr.mxu0 0.0
    %545 = vmatpush1.msra.mxu0 %v394
    %546 = vmatprep.subr.mxu0 0.0
    %547 = vmatpush1.msra.mxu0 %v393
    %548 = vmatprep.subr.mxu0 0.0
    %549 = vmatpush1.msra.mxu0 %v392
    %550 = vmatprep.subr.mxu0 0.0
    %551 = vmatpush1.msra.mxu0 %v391
    %552 = vmatprep.subr.mxu0 0.0
    %553 = vmatpush1.msra.mxu0 %v390
    %554 = vmatprep.subr.mxu0 0.0
    %555 = vmatpush2.msra.mxu0 0.0
    %556 = vmatprep.subr.mxu0 0.0
    %557 = vmatpush2.msra.mxu0 0.0
    %558 = vmatprep.subr.mxu0 0.0
    %559 = vmatpush2.msra.mxu0 0.0
    %560 = vmatprep.subr.mxu0 0.0
    %561 = vmatpush2.msra.mxu0 0.0
    %562 = vmatprep.subr.mxu0 0.0
    %563 = vmatpush2.msra.mxu0 0.0
    %564 = vmatprep.subr.mxu0 0.0
    %565 = vmatpush2.msra.mxu0 0.0
    %566 = vmatprep.subr.mxu0 0.0
    %567 = vmatpush2.msra.mxu0 0.0
    %568 = vmatprep.subr.mxu0 0.0
    %569 = vmatpush2.msra.mxu0 0.0
    %570 = vmatprep.subr.mxu0 0.0
    %571 = vmatpush2.msra.mxu0 0.0
    %572 = vmatprep.subr.mxu0 0.0
    %573 = vmatpush2.msra.mxu0 0.0
    %574 = vmatprep.subr.mxu0 0.0
    %575 = vmatpush2.msra.mxu0 0.0
    %576 = vmatprep.subr.mxu0 0.0
    %577 = vmatpush2.msra.mxu0 0.0
    %578 = vmatprep.subr.mxu0 0.0
    %579 = vmatpush2.msra.mxu0 0.0
    %580 = vmatprep.subr.mxu0 0.0
    %581 = vmatpush2.msra.mxu0 0.0
    %582 = vmatprep.subr.mxu0 0.0
    %583 = vmatpush2.msra.mxu0 0.0
    %584 = vmatprep.subr.mxu0 0.0
    %585 = vmatpush2.msra.mxu0 0.0
    %586 = vmatprep.mubr.f32.mxu0 0.0
    %587 = vmatmul.mubr.f32.gmra.mxu0 %v367
    %v588 = vpop.f32.mrf.mxu0
    %v589 = vadd.f32 %v520, %v588
    %v590 = vpop.f32.mrf.mxu0
    %591 = vmatprep.mubr.f32.mxu0 0.0
    %592 = vmatmul.mubr.f32.gmra.mxu0 %v368
    %v593 = vpop.f32.mrf.mxu0
    %v594 = vadd.f32 %v520, %v593
    %v595 = vpop.f32.mrf.mxu0
    %596 = vdwg.mxu0
    %v598 = vlaneseq
    %v599 = vshrl.u32 %v598, 7
    %v600 = vsub.s32 0, %v599
    %v601 = vrot.slane %v432, %v600
    %603 = vmatprep.subr.mxu0 0.0
    %604 = vmatpush1.msra.mxu0 %v422
    %605 = vmatprep.subr.mxu0 0.0
    %606 = vmatpush1.msra.mxu0 %v421
    %607 = vmatprep.subr.mxu0 0.0
    %608 = vmatpush1.msra.mxu0 %v420
    %609 = vmatprep.subr.mxu0 0.0
    %610 = vmatpush1.msra.mxu0 %v419
    %611 = vmatprep.subr.mxu0 0.0
    %612 = vmatpush1.msra.mxu0 %v418
    %613 = vmatprep.subr.mxu0 0.0
    %614 = vmatpush1.msra.mxu0 %v417
    %615 = vmatprep.subr.mxu0 0.0
    %616 = vmatpush1.msra.mxu0 %v416
    %617 = vmatprep.subr.mxu0 0.0
    %618 = vmatpush1.msra.mxu0 %v415
    %619 = vmatprep.subr.mxu0 0.0
    %620 = vmatpush1.msra.mxu0 %v414
    %621 = vmatprep.subr.mxu0 0.0
    %622 = vmatpush1.msra.mxu0 %v413
    %623 = vmatprep.subr.mxu0 0.0
    %624 = vmatpush1.msra.mxu0 %v412
    %625 = vmatprep.subr.mxu0 0.0
    %626 = vmatpush1.msra.mxu0 %v411
    %627 = vmatprep.subr.mxu0 0.0
    %628 = vmatpush1.msra.mxu0 %v410
    %629 = vmatprep.subr.mxu0 0.0
    %630 = vmatpush1.msra.mxu0 %v409
    %631 = vmatprep.subr.mxu0 0.0
    %632 = vmatpush1.msra.mxu0 %v408
    %633 = vmatprep.subr.mxu0 0.0
    %634 = vmatpush1.msra.mxu0 %v407
    %635 = vmatprep.subr.mxu0 0.0
    %636 = vmatpush2.msra.mxu0 0.0
    %637 = vmatprep.subr.mxu0 0.0
    %638 = vmatpush2.msra.mxu0 0.0
    %639 = vmatprep.subr.mxu0 0.0
    %640 = vmatpush2.msra.mxu0 0.0
    %641 = vmatprep.subr.mxu0 0.0
    %642 = vmatpush2.msra.mxu0 0.0
    %643 = vmatprep.subr.mxu0 0.0
    %644 = vmatpush2.msra.mxu0 0.0
    %645 = vmatprep.subr.mxu0 0.0
    %646 = vmatpush2.msra.mxu0 0.0
    %647 = vmatprep.subr.mxu0 0.0
    %648 = vmatpush2.msra.mxu0 0.0
    %649 = vmatprep.subr.mxu0 0.0
    %650 = vmatpush2.msra.mxu0 0.0
    %651 = vmatprep.subr.mxu0 0.0
    %652 = vmatpush2.msra.mxu0 0.0
    %653 = vmatprep.subr.mxu0 0.0
    %654 = vmatpush2.msra.mxu0 0.0
    %655 = vmatprep.subr.mxu0 0.0
    %656 = vmatpush2.msra.mxu0 0.0
    %657 = vmatprep.subr.mxu0 0.0
    %658 = vmatpush2.msra.mxu0 0.0
    %659 = vmatprep.subr.mxu0 0.0
    %660 = vmatpush2.msra.mxu0 0.0
    %661 = vmatprep.subr.mxu0 0.0
    %662 = vmatpush2.msra.mxu0 0.0
    %663 = vmatprep.subr.mxu0 0.0
    %664 = vmatpush2.msra.mxu0 0.0
    %665 = vmatprep.subr.mxu0 0.0
    %666 = vmatpush2.msra.mxu0 0.0
    %667 = vmatprep.mubr.f32.mxu0 0.0
    %668 = vmatmul.mubr.f32.gmra.mxu0 %v367
    %v669 = vpop.f32.mrf.mxu0
    %v670 = vadd.f32 %v601, %v669
    %v671 = vpop.f32.mrf.mxu0
    %672 = vmatprep.mubr.f32.mxu0 0.0
    %673 = vmatmul.mubr.f32.gmra.mxu0 %v368
    %v674 = vpop.f32.mrf.mxu0
    %v675 = vadd.f32 %v601, %v674
    %v676 = vpop.f32.mrf.mxu0
    %677 = vdwg.mxu0
    %vm678 = vcmask 64512
    %v680 = vsel %vm678, %v508, 0
    %v683 = vsel %vm678, %v589, 0
    %685 = vmatprep.subr.mxu0 0.0
    %686 = vmatpush1.xpose.msra.mxu0 0.0
    %687 = vmatprep.subr.mxu0 0.0
    %688 = vmatpush1.xpose.msra.mxu0 0.0
    %689 = vmatprep.subr.mxu0 0.0
    %690 = vmatpush1.xpose.msra.mxu0 0.0
    %691 = vmatprep.subr.mxu0 0.0
    %692 = vmatpush1.xpose.msra.mxu0 0.0
    %693 = vmatprep.subr.mxu0 0.0
    %694 = vmatpush1.xpose.msra.mxu0 0.0
    %695 = vmatprep.subr.mxu0 0.0
    %696 = vmatpush1.xpose.msra.mxu0 0.0
    %697 = vmatprep.subr.mxu0 0.0
    %698 = vmatpush1.xpose.msra.mxu0 0.0
    %699 = vmatprep.subr.mxu0 0.0
    %700 = vmatpush1.xpose.msra.mxu0 0.0
    %701 = vmatprep.subr.mxu0 0.0
    %702 = vmatpush1.xpose.msra.mxu0 0.0
    %703 = vmatprep.subr.mxu0 0.0
    %704 = vmatpush1.xpose.msra.mxu0 0.0
    %705 = vmatprep.subr.mxu0 0.0
    %706 = vmatpush1.xpose.msra.mxu0 0.0
    %707 = vmatprep.subr.mxu0 0.0
    %708 = vmatpush1.xpose.msra.mxu0 0.0
    %709 = vmatprep.subr.mxu0 0.0
    %710 = vmatpush1.xpose.msra.mxu0 0.0
    %711 = vmatprep.subr.mxu0 0.0
    %712 = vmatpush1.xpose.msra.mxu0 0.0
    %713 = vmatprep.subr.mxu0 0.0
    %714 = vmatpush1.xpose.msra.mxu0 0.0
    %715 = vmatprep.subr.mxu0 0.0
    %716 = vmatpush1.xpose.msra.mxu0 %v683
    %717 = vmatprep.subr.mxu0 0.0
    %718 = vmatpush2.xpose.msra.mxu0 0.0
    %719 = vmatprep.subr.mxu0 0.0
    %720 = vmatpush2.xpose.msra.mxu0 0.0
    %721 = vmatprep.subr.mxu0 0.0
    %722 = vmatpush2.xpose.msra.mxu0 0.0
    %723 = vmatprep.subr.mxu0 0.0
    %724 = vmatpush2.xpose.msra.mxu0 0.0
    %725 = vmatprep.subr.mxu0 0.0
    %726 = vmatpush2.xpose.msra.mxu0 0.0
    %727 = vmatprep.subr.mxu0 0.0
    %728 = vmatpush2.xpose.msra.mxu0 0.0
    %729 = vmatprep.subr.mxu0 0.0
    %730 = vmatpush2.xpose.msra.mxu0 0.0
    %731 = vmatprep.subr.mxu0 0.0
    %732 = vmatpush2.xpose.msra.mxu0 0.0
    %733 = vmatprep.subr.mxu0 0.0
    %734 = vmatpush2.xpose.msra.mxu0 0.0
    %735 = vmatprep.subr.mxu0 0.0
    %736 = vmatpush2.xpose.msra.mxu0 0.0
    %737 = vmatprep.subr.mxu0 0.0
    %738 = vmatpush2.xpose.msra.mxu0 0.0
    %739 = vmatprep.subr.mxu0 0.0
    %740 = vmatpush2.xpose.msra.mxu0 0.0
    %741 = vmatprep.subr.mxu0 0.0
    %742 = vmatpush2.xpose.msra.mxu0 0.0
    %743 = vmatprep.subr.mxu0 0.0
    %744 = vmatpush2.xpose.msra.mxu0 0.0
    %745 = vmatprep.subr.mxu0 0.0
    %746 = vmatpush2.xpose.msra.mxu0 0.0
    %747 = vmatprep.subr.mxu0 0.0
    %748 = vmatpush2.xpose.msra.mxu0 0.0
    %749 = vmatprep.mubr.f32.mxu0 0.0
    %750 = vmatmul.mubr.f32.gmra.mxu0 %v680
    %v751 = vpop.f32.mrf.mxu0
    %v752 = vadd.f32 0.0, %v751
    %v753 = vpop.f32.mrf.mxu0
    %754 = vdwg.mxu0
    %v755 = vmul.f32 %v752, 0.35355338
    %v756 = vlaneseq
    %v757 = vshrl.u32 %v756, 7
    %v758 = vsub.s32 0, %v757
    %v759 = vrot.slane %v372, %v758
    %v760 = vadd.f32 %v755, %v759
    %v761 = vsel %vm678, %v760, -inf
    %762 = vmax.xlane.f32.xlu0 %v761
    %v763 = vpop.xlane.xlu0 %762
    %v764 = vsub.f32 %v760, %v763
    %v765 = vmul.f32 %v764, 1.442695
    %v766 = vpow.pop %v765
    %v767 = vsel %vm678, %v766, 0.0
    %768 = vadd.xlane.f32.xlu0 %v767
    %v769 = vpop.xlane.xlu0 %768
    %v770 = vrcp.pop %v769
    %v771 = vmul.f32 %v766, %v770
    %v773 = vsel %vm678, %v771, 0
    %775 = vmatprep.subr.mxu0 0.0
    %776 = vmatpush1.msra.mxu0 0.0
    %777 = vmatprep.subr.mxu0 0.0
    %778 = vmatpush1.msra.mxu0 0.0
    %779 = vmatprep.subr.mxu0 0.0
    %780 = vmatpush1.msra.mxu0 0.0
    %781 = vmatprep.subr.mxu0 0.0
    %782 = vmatpush1.msra.mxu0 0.0
    %783 = vmatprep.subr.mxu0 0.0
    %784 = vmatpush1.msra.mxu0 0.0
    %785 = vmatprep.subr.mxu0 0.0
    %786 = vmatpush1.msra.mxu0 0.0
    %787 = vmatprep.subr.mxu0 0.0
    %788 = vmatpush1.msra.mxu0 0.0
    %789 = vmatprep.subr.mxu0 0.0
    %790 = vmatpush1.msra.mxu0 0.0
    %791 = vmatprep.subr.mxu0 0.0
    %792 = vmatpush1.msra.mxu0 0.0
    %793 = vmatprep.subr.mxu0 0.0
    %794 = vmatpush1.msra.mxu0 0.0
    %795 = vmatprep.subr.mxu0 0.0
    %796 = vmatpush1.msra.mxu0 0.0
    %797 = vmatprep.subr.mxu0 0.0
    %798 = vmatpush1.msra.mxu0 0.0
    %799 = vmatprep.subr.mxu0 0.0
    %800 = vmatpush1.msra.mxu0 0.0
    %801 = vmatprep.subr.mxu0 0.0
    %802 = vmatpush1.msra.mxu0 0.0
    %803 = vmatprep.subr.mxu0 0.0
    %804 = vmatpush1.msra.mxu0 0.0
    %805 = vmatprep.subr.mxu0 0.0
    %806 = vmatpush1.msra.mxu0 %v670
    %807 = vmatprep.subr.mxu0 0.0
    %808 = vmatpush2.msra.mxu0 0.0
    %809 = vmatprep.subr.mxu0 0.0
    %810 = vmatpush2.msra.mxu0 0.0
    %811 = vmatprep.subr.mxu0 0.0
    %812 = vmatpush2.msra.mxu0 0.0
    %813 = vmatprep.subr.mxu0 0.0
    %814 = vmatpush2.msra.mxu0 0.0
    %815 = vmatprep.subr.mxu0 0.0
    %816 = vmatpush2.msra.mxu0 0.0
    %817 = vmatprep.subr.mxu0 0.0
    %818 = vmatpush2.msra.mxu0 0.0
    %819 = vmatprep.subr.mxu0 0.0
    %820 = vmatpush2.msra.mxu0 0.0
    %821 = vmatprep.subr.mxu0 0.0
    %822 = vmatpush2.msra.mxu0 0.0
    %823 = vmatprep.subr.mxu0 0.0
    %824 = vmatpush2.msra.mxu0 0.0
    %825 = vmatprep.subr.mxu0 0.0
    %826 = vmatpush2.msra.mxu0 0.0
    %827 = vmatprep.subr.mxu0 0.0
    %828 = vmatpush2.msra.mxu0 0.0
    %829 = vmatprep.subr.mxu0 0.0
    %830 = vmatpush2.msra.mxu0 0.0
    %831 = vmatprep.subr.mxu0 0.0
    %832 = vmatpush2.msra.mxu0 0.0
    %833 = vmatprep.subr.mxu0 0.0
    %834 = vmatpush2.msra.mxu0 0.0
    %835 = vmatprep.subr.mxu0 0.0
    %836 = vmatpush2.msra.mxu0 0.0
    %837 = vmatprep.subr.mxu0 0.0
    %838 = vmatpush2.msra.mxu0 0.0
    %839 = vmatprep.mubr.f32.mxu0 0.0
    %840 = vmatmul.mubr.f32.gmra.mxu0 %v773
    %v841 = vpop.f32.mrf.mxu0
    %v842 = vadd.f32 0.0, %v841
    %v843 = vpop.f32.mrf.mxu0
    %844 = vdwg.mxu0
    %845 = vrot.lane.b32.xlu0 %v508, 120
    %v846 = vpop.permute.xlu0 %845
    %847 = vrot.lane.b32.xlu0 %v589, 120
    %v848 = vpop.permute.xlu0 %847
    %v849 = vsel %vm678, %v846, 0
    %v851 = vsel %vm678, %v848, 0
    %853 = vmatprep.subr.mxu0 0.0
    %854 = vmatpush1.xpose.msra.mxu0 0.0
    %855 = vmatprep.subr.mxu0 0.0
    %856 = vmatpush1.xpose.msra.mxu0 0.0
    %857 = vmatprep.subr.mxu0 0.0
    %858 = vmatpush1.xpose.msra.mxu0 0.0
    %859 = vmatprep.subr.mxu0 0.0
    %860 = vmatpush1.xpose.msra.mxu0 0.0
    %861 = vmatprep.subr.mxu0 0.0
    %862 = vmatpush1.xpose.msra.mxu0 0.0
    %863 = vmatprep.subr.mxu0 0.0
    %864 = vmatpush1.xpose.msra.mxu0 0.0
    %865 = vmatprep.subr.mxu0 0.0
    %866 = vmatpush1.xpose.msra.mxu0 0.0
    %867 = vmatprep.subr.mxu0 0.0
    %868 = vmatpush1.xpose.msra.mxu0 0.0
    %869 = vmatprep.subr.mxu0 0.0
    %870 = vmatpush1.xpose.msra.mxu0 0.0
    %871 = vmatprep.subr.mxu0 0.0
    %872 = vmatpush1.xpose.msra.mxu0 0.0
    %873 = vmatprep.subr.mxu0 0.0
    %874 = vmatpush1.xpose.msra.mxu0 0.0
    %875 = vmatprep.subr.mxu0 0.0
    %876 = vmatpush1.xpose.msra.mxu0 0.0
    %877 = vmatprep.subr.mxu0 0.0
    %878 = vmatpush1.xpose.msra.mxu0 0.0
    %879 = vmatprep.subr.mxu0 0.0
    %880 = vmatpush1.xpose.msra.mxu0 0.0
    %881 = vmatprep.subr.mxu0 0.0
    %882 = vmatpush1.xpose.msra.mxu0 0.0
    %883 = vmatprep.subr.mxu0 0.0
    %884 = vmatpush1.xpose.msra.mxu0 %v851
    %885 = vmatprep.subr.mxu0 0.0
    %886 = vmatpush2.xpose.msra.mxu0 0.0
    %887 = vmatprep.subr.mxu0 0.0
    %888 = vmatpush2.xpose.msra.mxu0 0.0
    %889 = vmatprep.subr.mxu0 0.0
    %890 = vmatpush2.xpose.msra.mxu0 0.0
    %891 = vmatprep.subr.mxu0 0.0
    %892 = vmatpush2.xpose.msra.mxu0 0.0
    %893 = vmatprep.subr.mxu0 0.0
    %894 = vmatpush2.xpose.msra.mxu0 0.0
    %895 = vmatprep.subr.mxu0 0.0
    %896 = vmatpush2.xpose.msra.mxu0 0.0
    %897 = vmatprep.subr.mxu0 0.0
    %898 = vmatpush2.xpose.msra.mxu0 0.0
    %899 = vmatprep.subr.mxu0 0.0
    %900 = vmatpush2.xpose.msra.mxu0 0.0
    %901 = vmatprep.subr.mxu0 0.0
    %902 = vmatpush2.xpose.msra.mxu0 0.0
    %903 = vmatprep.subr.mxu0 0.0
    %904 = vmatpush2.xpose.msra.mxu0 0.0
    %905 = vmatprep.subr.mxu0 0.0
    %906 = vmatpush2.xpose.msra.mxu0 0.0
    %907 = vmatprep.subr.mxu0 0.0
    %908 = vmatpush2.xpose.msra.mxu0 0.0
    %909 = vmatprep.subr.mxu0 0.0
    %910 = vmatpush2.xpose.msra.mxu0 0.0
    %911 = vmatprep.subr.mxu0 0.0
    %912 = vmatpush2.xpose.msra.mxu0 0.0
    %913 = vmatprep.subr.mxu0 0.0
    %914 = vmatpush2.xpose.msra.mxu0 0.0
    %915 = vmatprep.subr.mxu0 0.0
    %916 = vmatpush2.xpose.msra.mxu0 0.0
    %917 = vmatprep.mubr.f32.mxu0 0.0
    %918 = vmatmul.mubr.f32.gmra.mxu0 %v849
    %v919 = vpop.f32.mrf.mxu0
    %v920 = vadd.f32 0.0, %v919
    %v921 = vpop.f32.mrf.mxu0
    %922 = vdwg.mxu0
    %v923 = vmul.f32 %v920, 0.35355338
    %v924 = vadd.f32 %v923, %v759
    %v925 = vsel %vm678, %v924, -inf
    %926 = vmax.xlane.f32.xlu0 %v925
    %v927 = vpop.xlane.xlu0 %926
    %v928 = vsub.f32 %v924, %v927
    %v929 = vmul.f32 %v928, 1.442695
    %v930 = vpow.pop %v929
    %v931 = vsel %vm678, %v930, 0.0
    %932 = vadd.xlane.f32.xlu0 %v931
    %v933 = vpop.xlane.xlu0 %932
    %v934 = vrcp.pop %v933
    %v935 = vmul.f32 %v930, %v934
    %937 = vrot.lane.b32.xlu0 %v670, 120
    %v938 = vpop.permute.xlu0 %937
    %v941 = vsel %vm678, %v935, 0
    %943 = vmatprep.subr.mxu0 0.0
    %944 = vmatpush1.msra.mxu0 0.0
    %945 = vmatprep.subr.mxu0 0.0
    %946 = vmatpush1.msra.mxu0 0.0
    %947 = vmatprep.subr.mxu0 0.0
    %948 = vmatpush1.msra.mxu0 0.0
    %949 = vmatprep.subr.mxu0 0.0
    %950 = vmatpush1.msra.mxu0 0.0
    %951 = vmatprep.subr.mxu0 0.0
    %952 = vmatpush1.msra.mxu0 0.0
    %953 = vmatprep.subr.mxu0 0.0
    %954 = vmatpush1.msra.mxu0 0.0
    %955 = vmatprep.subr.mxu0 0.0
    %956 = vmatpush1.msra.mxu0 0.0
    %957 = vmatprep.subr.mxu0 0.0
    %958 = vmatpush1.msra.mxu0 0.0
    %959 = vmatprep.subr.mxu0 0.0
    %960 = vmatpush1.msra.mxu0 0.0
    %961 = vmatprep.subr.mxu0 0.0
    %962 = vmatpush1.msra.mxu0 0.0
    %963 = vmatprep.subr.mxu0 0.0
    %964 = vmatpush1.msra.mxu0 0.0
    %965 = vmatprep.subr.mxu0 0.0
    %966 = vmatpush1.msra.mxu0 0.0
    %967 = vmatprep.subr.mxu0 0.0
    %968 = vmatpush1.msra.mxu0 0.0
    %969 = vmatprep.subr.mxu0 0.0
    %970 = vmatpush1.msra.mxu0 0.0
    %971 = vmatprep.subr.mxu0 0.0
    %972 = vmatpush1.msra.mxu0 0.0
    %973 = vmatprep.subr.mxu0 0.0
    %974 = vmatpush1.msra.mxu0 %v938
    %975 = vmatprep.subr.mxu0 0.0
    %976 = vmatpush2.msra.mxu0 0.0
    %977 = vmatprep.subr.mxu0 0.0
    %978 = vmatpush2.msra.mxu0 0.0
    %979 = vmatprep.subr.mxu0 0.0
    %980 = vmatpush2.msra.mxu0 0.0
    %981 = vmatprep.subr.mxu0 0.0
    %982 = vmatpush2.msra.mxu0 0.0
    %983 = vmatprep.subr.mxu0 0.0
    %984 = vmatpush2.msra.mxu0 0.0
    %985 = vmatprep.subr.mxu0 0.0
    %986 = vmatpush2.msra.mxu0 0.0
    %987 = vmatprep.subr.mxu0 0.0
    %988 = vmatpush2.msra.mxu0 0.0
    %989 = vmatprep.subr.mxu0 0.0
    %990 = vmatpush2.msra.mxu0 0.0
    %991 = vmatprep.subr.mxu0 0.0
    %992 = vmatpush2.msra.mxu0 0.0
    %993 = vmatprep.subr.mxu0 0.0
    %994 = vmatpush2.msra.mxu0 0.0
    %995 = vmatprep.subr.mxu0 0.0
    %996 = vmatpush2.msra.mxu0 0.0
    %997 = vmatprep.subr.mxu0 0.0
    %998 = vmatpush2.msra.mxu0 0.0
    %999 = vmatprep.subr.mxu0 0.0
    %1000 = vmatpush2.msra.mxu0 0.0
    %1001 = vmatprep.subr.mxu0 0.0
    %1002 = vmatpush2.msra.mxu0 0.0
    %1003 = vmatprep.subr.mxu0 0.0
    %1004 = vmatpush2.msra.mxu0 0.0
    %1005 = vmatprep.subr.mxu0 0.0
    %1006 = vmatpush2.msra.mxu0 0.0
    %1007 = vmatprep.mubr.f32.mxu0 0.0
    %1008 = vmatmul.mubr.f32.gmra.mxu0 %v941
    %v1009 = vpop.f32.mrf.mxu0
    %v1010 = vadd.f32 0.0, %v1009
    %v1011 = vpop.f32.mrf.mxu0
    %1012 = vdwg.mxu0
    %v1014 = vsel %vm678, %v1010, 0
    %1016 = vmatprep.subr.mxu0 0.0
    %1017 = vmatpush1.msra.mxu0 0.0
    %1018 = vmatprep.subr.mxu0 0.0
    %1019 = vmatpush1.msra.mxu0 0.0
    %1020 = vmatprep.subr.mxu0 0.0
    %1021 = vmatpush1.msra.mxu0 0.0
    %1022 = vmatprep.subr.mxu0 0.0
    %1023 = vmatpush1.msra.mxu0 0.0
    %1024 = vmatprep.subr.mxu0 0.0
    %1025 = vmatpush1.msra.mxu0 0.0
    %1026 = vmatprep.subr.mxu0 0.0
    %1027 = vmatpush1.msra.mxu0 0.0
    %1028 = vmatprep.subr.mxu0 0.0
    %1029 = vmatpush1.msra.mxu0 0.0
    %1030 = vmatprep.subr.mxu0 0.0
    %1031 = vmatpush1.msra.mxu0 0.0
    %1032 = vmatprep.subr.mxu0 0.0
    %1033 = vmatpush1.msra.mxu0 0.0
    %1034 = vmatprep.subr.mxu0 0.0
    %1035 = vmatpush1.msra.mxu0 0.0
    %1036 = vmatprep.subr.mxu0 0.0
    %1037 = vmatpush1.msra.mxu0 0.0
    %1038 = vmatprep.subr.mxu0 0.0
    %1039 = vmatpush1.msra.mxu0 0.0
    %1040 = vmatprep.subr.mxu0 0.0
    %1041 = vmatpush1.msra.mxu0 0.0
    %1042 = vmatprep.subr.mxu0 0.0
    %1043 = vmatpush1.msra.mxu0 0.0
    %1044 = vmatprep.subr.mxu0 0.0
    %1045 = vmatpush1.msra.mxu0 0.0
    %1046 = vmatprep.subr.mxu0 0.0
    %1047 = vmatpush1.msra.mxu0 %v425
    %1048 = vmatprep.subr.mxu0 0.0
    %1049 = vmatpush2.msra.mxu0 0.0
    %1050 = vmatprep.subr.mxu0 0.0
    %1051 = vmatpush2.msra.mxu0 0.0
    %1052 = vmatprep.subr.mxu0 0.0
    %1053 = vmatpush2.msra.mxu0 0.0
    %1054 = vmatprep.subr.mxu0 0.0
    %1055 = vmatpush2.msra.mxu0 0.0
    %1056 = vmatprep.subr.mxu0 0.0
    %1057 = vmatpush2.msra.mxu0 0.0
    %1058 = vmatprep.subr.mxu0 0.0
    %1059 = vmatpush2.msra.mxu0 0.0
    %1060 = vmatprep.subr.mxu0 0.0
    %1061 = vmatpush2.msra.mxu0 0.0
    %1062 = vmatprep.subr.mxu0 0.0
    %1063 = vmatpush2.msra.mxu0 0.0
    %1064 = vmatprep.subr.mxu0 0.0
    %1065 = vmatpush2.msra.mxu0 0.0
    %1066 = vmatprep.subr.mxu0 0.0
    %1067 = vmatpush2.msra.mxu0 0.0
    %1068 = vmatprep.subr.mxu0 0.0
    %1069 = vmatpush2.msra.mxu0 0.0
    %1070 = vmatprep.subr.mxu0 0.0
    %1071 = vmatpush2.msra.mxu0 0.0
    %1072 = vmatprep.subr.mxu0 0.0
    %1073 = vmatpush2.msra.mxu0 0.0
    %1074 = vmatprep.subr.mxu0 0.0
    %1075 = vmatpush2.msra.mxu0 0.0
    %1076 = vmatprep.subr.mxu0 0.0
    %1077 = vmatpush2.msra.mxu0 0.0
    %1078 = vmatprep.subr.mxu0 0.0
    %1079 = vmatpush2.msra.mxu0 0.0
    %1080 = vmatprep.mubr.f32.mxu0 0.0
    %1081 = vmatmul.mubr.f32.gmra.mxu0 %v1014
    %v1082 = vpop.f32.mrf.mxu0
    %v1083 = vadd.f32 0.0, %v1082
    %v1084 = vpop.f32.mrf.mxu0
    %1085 = vdwg.mxu0
    %v1087 = vsel %vm678, %v842, 0
    %1089 = vmatprep.subr.mxu0 0.0
    %1090 = vmatpush1.msra.mxu0 0.0
    %1091 = vmatprep.subr.mxu0 0.0
    %1092 = vmatpush1.msra.mxu0 0.0
    %1093 = vmatprep.subr.mxu0 0.0
    %1094 = vmatpush1.msra.mxu0 0.0
    %1095 = vmatprep.subr.mxu0 0.0
    %1096 = vmatpush1.msra.mxu0 0.0
    %1097 = vmatprep.subr.mxu0 0.0
    %1098 = vmatpush1.msra.mxu0 0.0
    %1099 = vmatprep.subr.mxu0 0.0
    %1100 = vmatpush1.msra.mxu0 0.0
    %1101 = vmatprep.subr.mxu0 0.0
    %1102 = vmatpush1.msra.mxu0 0.0
    %1103 = vmatprep.subr.mxu0 0.0
    %1104 = vmatpush1.msra.mxu0 0.0
    %1105 = vmatprep.subr.mxu0 0.0
    %1106 = vmatpush1.msra.mxu0 0.0
    %1107 = vmatprep.subr.mxu0 0.0
    %1108 = vmatpush1.msra.mxu0 0.0
    %1109 = vmatprep.subr.mxu0 0.0
    %1110 = vmatpush1.msra.mxu0 0.0
    %1111 = vmatprep.subr.mxu0 0.0
    %1112 = vmatpush1.msra.mxu0 0.0
    %1113 = vmatprep.subr.mxu0 0.0
    %1114 = vmatpush1.msra.mxu0 0.0
    %1115 = vmatprep.subr.mxu0 0.0
    %1116 = vmatpush1.msra.mxu0 0.0
    %1117 = vmatprep.subr.mxu0 0.0
    %1118 = vmatpush1.msra.mxu0 0.0
    %1119 = vmatprep.subr.mxu0 0.0
    %1120 = vmatpush1.msra.mxu0 %v424
    %1121 = vmatprep.subr.mxu0 0.0
    %1122 = vmatpush2.msra.mxu0 0.0
    %1123 = vmatprep.subr.mxu0 0.0
    %1124 = vmatpush2.msra.mxu0 0.0
    %1125 = vmatprep.subr.mxu0 0.0
    %1126 = vmatpush2.msra.mxu0 0.0
    %1127 = vmatprep.subr.mxu0 0.0
    %1128 = vmatpush2.msra.mxu0 0.0
    %1129 = vmatprep.subr.mxu0 0.0
    %1130 = vmatpush2.msra.mxu0 0.0
    %1131 = vmatprep.subr.mxu0 0.0
    %1132 = vmatpush2.msra.mxu0 0.0
    %1133 = vmatprep.subr.mxu0 0.0
    %1134 = vmatpush2.msra.mxu0 0.0
    %1135 = vmatprep.subr.mxu0 0.0
    %1136 = vmatpush2.msra.mxu0 0.0
    %1137 = vmatprep.subr.mxu0 0.0
    %1138 = vmatpush2.msra.mxu0 0.0
    %1139 = vmatprep.subr.mxu0 0.0
    %1140 = vmatpush2.msra.mxu0 0.0
    %1141 = vmatprep.subr.mxu0 0.0
    %1142 = vmatpush2.msra.mxu0 0.0
    %1143 = vmatprep.subr.mxu0 0.0
    %1144 = vmatpush2.msra.mxu0 0.0
    %1145 = vmatprep.subr.mxu0 0.0
    %1146 = vmatpush2.msra.mxu0 0.0
    %1147 = vmatprep.subr.mxu0 0.0
    %1148 = vmatpush2.msra.mxu0 0.0
    %1149 = vmatprep.subr.mxu0 0.0
    %1150 = vmatpush2.msra.mxu0 0.0
    %1151 = vmatprep.subr.mxu0 0.0
    %1152 = vmatpush2.msra.mxu0 0.0
    %1153 = vmatprep.mubr.f32.mxu0 0.0
    %1154 = vmatmul.mubr.f32.gmra.mxu0 %v1087
    %v1155 = vpop.f32.mrf.mxu0
    %v1156 = vadd.f32 %v1083, %v1155
    %v1157 = vpop.f32.mrf.mxu0
    %1158 = vdwg.mxu0
    %1159 = vrot.lane.b32.xlu0 %v508, 112
    %v1160 = vpop.permute.xlu0 %1159
    %1161 = vrot.lane.b32.xlu0 %v589, 112
    %v1162 = vpop.permute.xlu0 %1161
    %v1163 = vsel %vm678, %v1160, 0
    %v1165 = vsel %vm678, %v1162, 0
    %1167 = vmatprep.subr.mxu0 0.0
    %1168 = vmatpush1.xpose.msra.mxu0 0.0
    %1169 = vmatprep.subr.mxu0 0.0
    %1170 = vmatpush1.xpose.msra.mxu0 0.0
    %1171 = vmatprep.subr.mxu0 0.0
    %1172 = vmatpush1.xpose.msra.mxu0 0.0
    %1173 = vmatprep.subr.mxu0 0.0
    %1174 = vmatpush1.xpose.msra.mxu0 0.0
    %1175 = vmatprep.subr.mxu0 0.0
    %1176 = vmatpush1.xpose.msra.mxu0 0.0
    %1177 = vmatprep.subr.mxu0 0.0
    %1178 = vmatpush1.xpose.msra.mxu0 0.0
    %1179 = vmatprep.subr.mxu0 0.0
    %1180 = vmatpush1.xpose.msra.mxu0 0.0
    %1181 = vmatprep.subr.mxu0 0.0
    %1182 = vmatpush1.xpose.msra.mxu0 0.0
    %1183 = vmatprep.subr.mxu0 0.0
    %1184 = vmatpush1.xpose.msra.mxu0 0.0
    %1185 = vmatprep.subr.mxu0 0.0
    %1186 = vmatpush1.xpose.msra.mxu0 0.0
    %1187 = vmatprep.subr.mxu0 0.0
    %1188 = vmatpush1.xpose.msra.mxu0 0.0
    %1189 = vmatprep.subr.mxu0 0.0
    %1190 = vmatpush1.xpose.msra.mxu0 0.0
    %1191 = vmatprep.subr.mxu0 0.0
    %1192 = vmatpush1.xpose.msra.mxu0 0.0
    %1193 = vmatprep.subr.mxu0 0.0
    %1194 = vmatpush1.xpose.msra.mxu0 0.0
    %1195 = vmatprep.subr.mxu0 0.0
    %1196 = vmatpush1.xpose.msra.mxu0 0.0
    %1197 = vmatprep.subr.mxu0 0.0
    %1198 = vmatpush1.xpose.msra.mxu0 %v1165
    %1199 = vmatprep.subr.mxu0 0.0
    %1200 = vmatpush2.xpose.msra.mxu0 0.0
    %1201 = vmatprep.subr.mxu0 0.0
    %1202 = vmatpush2.xpose.msra.mxu0 0.0
    %1203 = vmatprep.subr.mxu0 0.0
    %1204 = vmatpush2.xpose.msra.mxu0 0.0
    %1205 = vmatprep.subr.mxu0 0.0
    %1206 = vmatpush2.xpose.msra.mxu0 0.0
    %1207 = vmatprep.subr.mxu0 0.0
    %1208 = vmatpush2.xpose.msra.mxu0 0.0
    %1209 = vmatprep.subr.mxu0 0.0
    %1210 = vmatpush2.xpose.msra.mxu0 0.0
    %1211 = vmatprep.subr.mxu0 0.0
    %1212 = vmatpush2.xpose.msra.mxu0 0.0
    %1213 = vmatprep.subr.mxu0 0.0
    %1214 = vmatpush2.xpose.msra.mxu0 0.0
    %1215 = vmatprep.subr.mxu0 0.0
    %1216 = vmatpush2.xpose.msra.mxu0 0.0
    %1217 = vmatprep.subr.mxu0 0.0
    %1218 = vmatpush2.xpose.msra.mxu0 0.0
    %1219 = vmatprep.subr.mxu0 0.0
    %1220 = vmatpush2.xpose.msra.mxu0 0.0
    %1221 = vmatprep.subr.mxu0 0.0
    %1222 = vmatpush2.xpose.msra.mxu0 0.0
    %1223 = vmatprep.subr.mxu0 0.0
    %1224 = vmatpush2.xpose.msra.mxu0 0.0
    %1225 = vmatprep.subr.mxu0 0.0
    %1226 = vmatpush2.xpose.msra.mxu0 0.0
    %1227 = vmatprep.subr.mxu0 0.0
    %1228 = vmatpush2.xpose.msra.mxu0 0.0
    %1229 = vmatprep.subr.mxu0 0.0
    %1230 = vmatpush2.xpose.msra.mxu0 0.0
    %1231 = vmatprep.mubr.f32.mxu0 0.0
    %1232 = vmatmul.mubr.f32.gmra.mxu0 %v1163
    %v1233 = vpop.f32.mrf.mxu0
    %v1234 = vadd.f32 0.0, %v1233
    %v1235 = vpop.f32.mrf.mxu0
    %1236 = vdwg.mxu0
    %v1237 = vmul.f32 %v1234, 0.35355338
    %v1238 = vadd.f32 %v1237, %v759
    %v1239 = vsel %vm678, %v1238, -inf
    %1240 = vmax.xlane.f32.xlu0 %v1239
    %v1241 = vpop.xlane.xlu0 %1240
    %v1242 = vsub.f32 %v1238, %v1241
    %v1243 = vmul.f32 %v1242, 1.442695
    %v1244 = vpow.pop %v1243
    %v1245 = vsel %vm678, %v1244, 0.0
    %1246 = vadd.xlane.f32.xlu0 %v1245
    %v1247 = vpop.xlane.xlu0 %1246
    %v1248 = vrcp.pop %v1247
    %v1249 = vmul.f32 %v1244, %v1248
    %1250 = vrot.lane.b32.xlu0 %v670, 112
    %v1251 = vpop.permute.xlu0 %1250
    %v1254 = vsel %vm678, %v1249, 0
    %1256 = vmatprep.subr.mxu0 0.0
    %1257 = vmatpush1.msra.mxu0 0.0
    %1258 = vmatprep.subr.mxu0 0.0
    %1259 = vmatpush1.msra.mxu0 0.0
    %1260 = vmatprep.subr.mxu0 0.0
    %1261 = vmatpush1.msra.mxu0 0.0
    %1262 = vmatprep.subr.mxu0 0.0
    %1263 = vmatpush1.msra.mxu0 0.0
    %1264 = vmatprep.subr.mxu0 0.0
    %1265 = vmatpush1.msra.mxu0 0.0
    %1266 = vmatprep.subr.mxu0 0.0
    %1267 = vmatpush1.msra.mxu0 0.0
    %1268 = vmatprep.subr.mxu0 0.0
    %1269 = vmatpush1.msra.mxu0 0.0
    %1270 = vmatprep.subr.mxu0 0.0
    %1271 = vmatpush1.msra.mxu0 0.0
    %1272 = vmatprep.subr.mxu0 0.0
    %1273 = vmatpush1.msra.mxu0 0.0
    %1274 = vmatprep.subr.mxu0 0.0
    %1275 = vmatpush1.msra.mxu0 0.0
    %1276 = vmatprep.subr.mxu0 0.0
    %1277 = vmatpush1.msra.mxu0 0.0
    %1278 = vmatprep.subr.mxu0 0.0
    %1279 = vmatpush1.msra.mxu0 0.0
    %1280 = vmatprep.subr.mxu0 0.0
    %1281 = vmatpush1.msra.mxu0 0.0
    %1282 = vmatprep.subr.mxu0 0.0
    %1283 = vmatpush1.msra.mxu0 0.0
    %1284 = vmatprep.subr.mxu0 0.0
    %1285 = vmatpush1.msra.mxu0 0.0
    %1286 = vmatprep.subr.mxu0 0.0
    %1287 = vmatpush1.msra.mxu0 %v1251
    %1288 = vmatprep.subr.mxu0 0.0
    %1289 = vmatpush2.msra.mxu0 0.0
    %1290 = vmatprep.subr.mxu0 0.0
    %1291 = vmatpush2.msra.mxu0 0.0
    %1292 = vmatprep.subr.mxu0 0.0
    %1293 = vmatpush2.msra.mxu0 0.0
    %1294 = vmatprep.subr.mxu0 0.0
    %1295 = vmatpush2.msra.mxu0 0.0
    %1296 = vmatprep.subr.mxu0 0.0
    %1297 = vmatpush2.msra.mxu0 0.0
    %1298 = vmatprep.subr.mxu0 0.0
    %1299 = vmatpush2.msra.mxu0 0.0
    %1300 = vmatprep.subr.mxu0 0.0
    %1301 = vmatpush2.msra.mxu0 0.0
    %1302 = vmatprep.subr.mxu0 0.0
    %1303 = vmatpush2.msra.mxu0 0.0
    %1304 = vmatprep.subr.mxu0 0.0
    %1305 = vmatpush2.msra.mxu0 0.0
    %1306 = vmatprep.subr.mxu0 0.0
    %1307 = vmatpush2.msra.mxu0 0.0
    %1308 = vmatprep.subr.mxu0 0.0
    %1309 = vmatpush2.msra.mxu0 0.0
    %1310 = vmatprep.subr.mxu0 0.0
    %1311 = vmatpush2.msra.mxu0 0.0
    %1312 = vmatprep.subr.mxu0 0.0
    %1313 = vmatpush2.msra.mxu0 0.0
    %1314 = vmatprep.subr.mxu0 0.0
    %1315 = vmatpush2.msra.mxu0 0.0
    %1316 = vmatprep.subr.mxu0 0.0
    %1317 = vmatpush2.msra.mxu0 0.0
    %1318 = vmatprep.subr.mxu0 0.0
    %1319 = vmatpush2.msra.mxu0 0.0
    %1320 = vmatprep.mubr.f32.mxu0 0.0
    %1321 = vmatmul.mubr.f32.gmra.mxu0 %v1254
    %v1322 = vpop.f32.mrf.mxu0
    %v1323 = vadd.f32 0.0, %v1322
    %v1324 = vpop.f32.mrf.mxu0
    %1325 = vdwg.mxu0
    %v1327 = vsel %vm678, %v1323, 0
    %1329 = vmatprep.subr.mxu0 0.0
    %1330 = vmatpush1.msra.mxu0 0.0
    %1331 = vmatprep.subr.mxu0 0.0
    %1332 = vmatpush1.msra.mxu0 0.0
    %1333 = vmatprep.subr.mxu0 0.0
    %1334 = vmatpush1.msra.mxu0 0.0
    %1335 = vmatprep.subr.mxu0 0.0
    %1336 = vmatpush1.msra.mxu0 0.0
    %1337 = vmatprep.subr.mxu0 0.0
    %1338 = vmatpush1.msra.mxu0 0.0
    %1339 = vmatprep.subr.mxu0 0.0
    %1340 = vmatpush1.msra.mxu0 0.0
    %1341 = vmatprep.subr.mxu0 0.0
    %1342 = vmatpush1.msra.mxu0 0.0
    %1343 = vmatprep.subr.mxu0 0.0
    %1344 = vmatpush1.msra.mxu0 0.0
    %1345 = vmatprep.subr.mxu0 0.0
    %1346 = vmatpush1.msra.mxu0 0.0
    %1347 = vmatprep.subr.mxu0 0.0
    %1348 = vmatpush1.msra.mxu0 0.0
    %1349 = vmatprep.subr.mxu0 0.0
    %1350 = vmatpush1.msra.mxu0 0.0
    %1351 = vmatprep.subr.mxu0 0.0
    %1352 = vmatpush1.msra.mxu0 0.0
    %1353 = vmatprep.subr.mxu0 0.0
    %1354 = vmatpush1.msra.mxu0 0.0
    %1355 = vmatprep.subr.mxu0 0.0
    %1356 = vmatpush1.msra.mxu0 0.0
    %1357 = vmatprep.subr.mxu0 0.0
    %1358 = vmatpush1.msra.mxu0 0.0
    %1359 = vmatprep.subr.mxu0 0.0
    %1360 = vmatpush1.msra.mxu0 %v426
    %1361 = vmatprep.subr.mxu0 0.0
    %1362 = vmatpush2.msra.mxu0 0.0
    %1363 = vmatprep.subr.mxu0 0.0
    %1364 = vmatpush2.msra.mxu0 0.0
    %1365 = vmatprep.subr.mxu0 0.0
    %1366 = vmatpush2.msra.mxu0 0.0
    %1367 = vmatprep.subr.mxu0 0.0
    %1368 = vmatpush2.msra.mxu0 0.0
    %1369 = vmatprep.subr.mxu0 0.0
    %1370 = vmatpush2.msra.mxu0 0.0
    %1371 = vmatprep.subr.mxu0 0.0
    %1372 = vmatpush2.msra.mxu0 0.0
    %1373 = vmatprep.subr.mxu0 0.0
    %1374 = vmatpush2.msra.mxu0 0.0
    %1375 = vmatprep.subr.mxu0 0.0
    %1376 = vmatpush2.msra.mxu0 0.0
    %1377 = vmatprep.subr.mxu0 0.0
    %1378 = vmatpush2.msra.mxu0 0.0
    %1379 = vmatprep.subr.mxu0 0.0
    %1380 = vmatpush2.msra.mxu0 0.0
    %1381 = vmatprep.subr.mxu0 0.0
    %1382 = vmatpush2.msra.mxu0 0.0
    %1383 = vmatprep.subr.mxu0 0.0
    %1384 = vmatpush2.msra.mxu0 0.0
    %1385 = vmatprep.subr.mxu0 0.0
    %1386 = vmatpush2.msra.mxu0 0.0
    %1387 = vmatprep.subr.mxu0 0.0
    %1388 = vmatpush2.msra.mxu0 0.0
    %1389 = vmatprep.subr.mxu0 0.0
    %1390 = vmatpush2.msra.mxu0 0.0
    %1391 = vmatprep.subr.mxu0 0.0
    %1392 = vmatpush2.msra.mxu0 0.0
    %1393 = vmatprep.mubr.f32.mxu0 0.0
    %1394 = vmatmul.mubr.f32.gmra.mxu0 %v1327
    %v1395 = vpop.f32.mrf.mxu0
    %v1396 = vadd.f32 0.0, %v1395
    %v1397 = vpop.f32.mrf.mxu0
    %1398 = vdwg.mxu0
    %v1399 = vadd.f32 %v1156, %v1396
    %1400 = vrot.lane.b32.xlu0 %v508, 104
    %v1401 = vpop.permute.xlu0 %1400
    %1402 = vrot.lane.b32.xlu0 %v589, 104
    %v1403 = vpop.permute.xlu0 %1402
    %v1404 = vsel %vm678, %v1401, 0
    %v1406 = vsel %vm678, %v1403, 0
    %1408 = vmatprep.subr.mxu0 0.0
    %1409 = vmatpush1.xpose.msra.mxu0 0.0
    %1410 = vmatprep.subr.mxu0 0.0
    %1411 = vmatpush1.xpose.msra.mxu0 0.0
    %1412 = vmatprep.subr.mxu0 0.0
    %1413 = vmatpush1.xpose.msra.mxu0 0.0
    %1414 = vmatprep.subr.mxu0 0.0
    %1415 = vmatpush1.xpose.msra.mxu0 0.0
    %1416 = vmatprep.subr.mxu0 0.0
    %1417 = vmatpush1.xpose.msra.mxu0 0.0
    %1418 = vmatprep.subr.mxu0 0.0
    %1419 = vmatpush1.xpose.msra.mxu0 0.0
    %1420 = vmatprep.subr.mxu0 0.0
    %1421 = vmatpush1.xpose.msra.mxu0 0.0
    %1422 = vmatprep.subr.mxu0 0.0
    %1423 = vmatpush1.xpose.msra.mxu0 0.0
    %1424 = vmatprep.subr.mxu0 0.0
    %1425 = vmatpush1.xpose.msra.mxu0 0.0
    %1426 = vmatprep.subr.mxu0 0.0
    %1427 = vmatpush1.xpose.msra.mxu0 0.0
    %1428 = vmatprep.subr.mxu0 0.0
    %1429 = vmatpush1.xpose.msra.mxu0 0.0
    %1430 = vmatprep.subr.mxu0 0.0
    %1431 = vmatpush1.xpose.msra.mxu0 0.0
    %1432 = vmatprep.subr.mxu0 0.0
    %1433 = vmatpush1.xpose.msra.mxu0 0.0
    %1434 = vmatprep.subr.mxu0 0.0
    %1435 = vmatpush1.xpose.msra.mxu0 0.0
    %1436 = vmatprep.subr.mxu0 0.0
    %1437 = vmatpush1.xpose.msra.mxu0 0.0
    %1438 = vmatprep.subr.mxu0 0.0
    %1439 = vmatpush1.xpose.msra.mxu0 %v1406
    %1440 = vmatprep.subr.mxu0 0.0
    %1441 = vmatpush2.xpose.msra.mxu0 0.0
    %1442 = vmatprep.subr.mxu0 0.0
    %1443 = vmatpush2.xpose.msra.mxu0 0.0
    %1444 = vmatprep.subr.mxu0 0.0
    %1445 = vmatpush2.xpose.msra.mxu0 0.0
    %1446 = vmatprep.subr.mxu0 0.0
    %1447 = vmatpush2.xpose.msra.mxu0 0.0
    %1448 = vmatprep.subr.mxu0 0.0
    %1449 = vmatpush2.xpose.msra.mxu0 0.0
    %1450 = vmatprep.subr.mxu0 0.0
    %1451 = vmatpush2.xpose.msra.mxu0 0.0
    %1452 = vmatprep.subr.mxu0 0.0
    %1453 = vmatpush2.xpose.msra.mxu0 0.0
    %1454 = vmatprep.subr.mxu0 0.0
    %1455 = vmatpush2.xpose.msra.mxu0 0.0
    %1456 = vmatprep.subr.mxu0 0.0
    %1457 = vmatpush2.xpose.msra.mxu0 0.0
    %1458 = vmatprep.subr.mxu0 0.0
    %1459 = vmatpush2.xpose.msra.mxu0 0.0
    %1460 = vmatprep.subr.mxu0 0.0
    %1461 = vmatpush2.xpose.msra.mxu0 0.0
    %1462 = vmatprep.subr.mxu0 0.0
    %1463 = vmatpush2.xpose.msra.mxu0 0.0
    %1464 = vmatprep.subr.mxu0 0.0
    %1465 = vmatpush2.xpose.msra.mxu0 0.0
    %1466 = vmatprep.subr.mxu0 0.0
    %1467 = vmatpush2.xpose.msra.mxu0 0.0
    %1468 = vmatprep.subr.mxu0 0.0
    %1469 = vmatpush2.xpose.msra.mxu0 0.0
    %1470 = vmatprep.subr.mxu0 0.0
    %1471 = vmatpush2.xpose.msra.mxu0 0.0
    %1472 = vmatprep.mubr.f32.mxu0 0.0
    %1473 = vmatmul.mubr.f32.gmra.mxu0 %v1404
    %v1474 = vpop.f32.mrf.mxu0
    %v1475 = vadd.f32 0.0, %v1474
    %v1476 = vpop.f32.mrf.mxu0
    %1477 = vdwg.mxu0
    %v1478 = vmul.f32 %v1475, 0.35355338
    %v1479 = vadd.f32 %v1478, %v759
    %v1480 = vsel %vm678, %v1479, -inf
    %1481 = vmax.xlane.f32.xlu0 %v1480
    %v1482 = vpop.xlane.xlu0 %1481
    %v1483 = vsub.f32 %v1479, %v1482
    %v1484 = vmul.f32 %v1483, 1.442695
    %v1485 = vpow.pop %v1484
    %v1486 = vsel %vm678, %v1485, 0.0
    %1487 = vadd.xlane.f32.xlu0 %v1486
    %v1488 = vpop.xlane.xlu0 %1487
    %v1489 = vrcp.pop %v1488
    %v1490 = vmul.f32 %v1485, %v1489
    %1491 = vrot.lane.b32.xlu0 %v670, 104
    %v1492 = vpop.permute.xlu0 %1491
    %v1495 = vsel %vm678, %v1490, 0
    %1497 = vmatprep.subr.mxu0 0.0
    %1498 = vmatpush1.msra.mxu0 0.0
    %1499 = vmatprep.subr.mxu0 0.0
    %1500 = vmatpush1.msra.mxu0 0.0
    %1501 = vmatprep.subr.mxu0 0.0
    %1502 = vmatpush1.msra.mxu0 0.0
    %1503 = vmatprep.subr.mxu0 0.0
    %1504 = vmatpush1.msra.mxu0 0.0
    %1505 = vmatprep.subr.mxu0 0.0
    %1506 = vmatpush1.msra.mxu0 0.0
    %1507 = vmatprep.subr.mxu0 0.0
    %1508 = vmatpush1.msra.mxu0 0.0
    %1509 = vmatprep.subr.mxu0 0.0
    %1510 = vmatpush1.msra.mxu0 0.0
    %1511 = vmatprep.subr.mxu0 0.0
    %1512 = vmatpush1.msra.mxu0 0.0
    %1513 = vmatprep.subr.mxu0 0.0
    %1514 = vmatpush1.msra.mxu0 0.0
    %1515 = vmatprep.subr.mxu0 0.0
    %1516 = vmatpush1.msra.mxu0 0.0
    %1517 = vmatprep.subr.mxu0 0.0
    %1518 = vmatpush1.msra.mxu0 0.0
    %1519 = vmatprep.subr.mxu0 0.0
    %1520 = vmatpush1.msra.mxu0 0.0
    %1521 = vmatprep.subr.mxu0 0.0
    %1522 = vmatpush1.msra.mxu0 0.0
    %1523 = vmatprep.subr.mxu0 0.0
    %1524 = vmatpush1.msra.mxu0 0.0
    %1525 = vmatprep.subr.mxu0 0.0
    %1526 = vmatpush1.msra.mxu0 0.0
    %1527 = vmatprep.subr.mxu0 0.0
    %1528 = vmatpush1.msra.mxu0 %v1492
    %1529 = vmatprep.subr.mxu0 0.0
    %1530 = vmatpush2.msra.mxu0 0.0
    %1531 = vmatprep.subr.mxu0 0.0
    %1532 = vmatpush2.msra.mxu0 0.0
    %1533 = vmatprep.subr.mxu0 0.0
    %1534 = vmatpush2.msra.mxu0 0.0
    %1535 = vmatprep.subr.mxu0 0.0
    %1536 = vmatpush2.msra.mxu0 0.0
    %1537 = vmatprep.subr.mxu0 0.0
    %1538 = vmatpush2.msra.mxu0 0.0
    %1539 = vmatprep.subr.mxu0 0.0
    %1540 = vmatpush2.msra.mxu0 0.0
    %1541 = vmatprep.subr.mxu0 0.0
    %1542 = vmatpush2.msra.mxu0 0.0
    %1543 = vmatprep.subr.mxu0 0.0
    %1544 = vmatpush2.msra.mxu0 0.0
    %1545 = vmatprep.subr.mxu0 0.0
    %1546 = vmatpush2.msra.mxu0 0.0
    %1547 = vmatprep.subr.mxu0 0.0
    %1548 = vmatpush2.msra.mxu0 0.0
    %1549 = vmatprep.subr.mxu0 0.0
    %1550 = vmatpush2.msra.mxu0 0.0
    %1551 = vmatprep.subr.mxu0 0.0
    %1552 = vmatpush2.msra.mxu0 0.0
    %1553 = vmatprep.subr.mxu0 0.0
    %1554 = vmatpush2.msra.mxu0 0.0
    %1555 = vmatprep.subr.mxu0 0.0
    %1556 = vmatpush2.msra.mxu0 0.0
    %1557 = vmatprep.subr.mxu0 0.0
    %1558 = vmatpush2.msra.mxu0 0.0
    %1559 = vmatprep.subr.mxu0 0.0
    %1560 = vmatpush2.msra.mxu0 0.0
    %1561 = vmatprep.mubr.f32.mxu0 0.0
    %1562 = vmatmul.mubr.f32.gmra.mxu0 %v1495
    %v1563 = vpop.f32.mrf.mxu0
    %v1564 = vadd.f32 0.0, %v1563
    %v1565 = vpop.f32.mrf.mxu0
    %1566 = vdwg.mxu0
    %v1568 = vsel %vm678, %v1564, 0
    %1570 = vmatprep.subr.mxu0 0.0
    %1571 = vmatpush1.msra.mxu0 0.0
    %1572 = vmatprep.subr.mxu0 0.0
    %1573 = vmatpush1.msra.mxu0 0.0
    %1574 = vmatprep.subr.mxu0 0.0
    %1575 = vmatpush1.msra.mxu0 0.0
    %1576 = vmatprep.subr.mxu0 0.0
    %1577 = vmatpush1.msra.mxu0 0.0
    %1578 = vmatprep.subr.mxu0 0.0
    %1579 = vmatpush1.msra.mxu0 0.0
    %1580 = vmatprep.subr.mxu0 0.0
    %1581 = vmatpush1.msra.mxu0 0.0
    %1582 = vmatprep.subr.mxu0 0.0
    %1583 = vmatpush1.msra.mxu0 0.0
    %1584 = vmatprep.subr.mxu0 0.0
    %1585 = vmatpush1.msra.mxu0 0.0
    %1586 = vmatprep.subr.mxu0 0.0
    %1587 = vmatpush1.msra.mxu0 0.0
    %1588 = vmatprep.subr.mxu0 0.0
    %1589 = vmatpush1.msra.mxu0 0.0
    %1590 = vmatprep.subr.mxu0 0.0
    %1591 = vmatpush1.msra.mxu0 0.0
    %1592 = vmatprep.subr.mxu0 0.0
    %1593 = vmatpush1.msra.mxu0 0.0
    %1594 = vmatprep.subr.mxu0 0.0
    %1595 = vmatpush1.msra.mxu0 0.0
    %1596 = vmatprep.subr.mxu0 0.0
    %1597 = vmatpush1.msra.mxu0 0.0
    %1598 = vmatprep.subr.mxu0 0.0
    %1599 = vmatpush1.msra.mxu0 0.0
    %1600 = vmatprep.subr.mxu0 0.0
    %1601 = vmatpush1.msra.mxu0 %v427
    %1602 = vmatprep.subr.mxu0 0.0
    %1603 = vmatpush2.msra.mxu0 0.0
    %1604 = vmatprep.subr.mxu0 0.0
    %1605 = vmatpush2.msra.mxu0 0.0
    %1606 = vmatprep.subr.mxu0 0.0
    %1607 = vmatpush2.msra.mxu0 0.0
    %1608 = vmatprep.subr.mxu0 0.0
    %1609 = vmatpush2.msra.mxu0 0.0
    %1610 = vmatprep.subr.mxu0 0.0
    %1611 = vmatpush2.msra.mxu0 0.0
    %1612 = vmatprep.subr.mxu0 0.0
    %1613 = vmatpush2.msra.mxu0 0.0
    %1614 = vmatprep.subr.mxu0 0.0
    %1615 = vmatpush2.msra.mxu0 0.0
    %1616 = vmatprep.subr.mxu0 0.0
    %1617 = vmatpush2.msra.mxu0 0.0
    %1618 = vmatprep.subr.mxu0 0.0
    %1619 = vmatpush2.msra.mxu0 0.0
    %1620 = vmatprep.subr.mxu0 0.0
    %1621 = vmatpush2.msra.mxu0 0.0
    %1622 = vmatprep.subr.mxu0 0.0
    %1623 = vmatpush2.msra.mxu0 0.0
    %1624 = vmatprep.subr.mxu0 0.0
    %1625 = vmatpush2.msra.mxu0 0.0
    %1626 = vmatprep.subr.mxu0 0.0
    %1627 = vmatpush2.msra.mxu0 0.0
    %1628 = vmatprep.subr.mxu0 0.0
    %1629 = vmatpush2.msra.mxu0 0.0
    %1630 = vmatprep.subr.mxu0 0.0
    %1631 = vmatpush2.msra.mxu0 0.0
    %1632 = vmatprep.subr.mxu0 0.0
    %1633 = vmatpush2.msra.mxu0 0.0
    %1634 = vmatprep.mubr.f32.mxu0 0.0
    %1635 = vmatmul.mubr.f32.gmra.mxu0 %v1568
    %v1636 = vpop.f32.mrf.mxu0
    %v1637 = vadd.f32 0.0, %v1636
    %v1638 = vpop.f32.mrf.mxu0
    %1639 = vdwg.mxu0
    %v1640 = vadd.f32 %v1399, %v1637
    %v1642 = vsel %vm678, %v513, 0
    %v1645 = vsel %vm678, %v594, 0
    %1647 = vmatprep.subr.mxu0 0.0
    %1648 = vmatpush1.xpose.msra.mxu0 0.0
    %1649 = vmatprep.subr.mxu0 0.0
    %1650 = vmatpush1.xpose.msra.mxu0 0.0
    %1651 = vmatprep.subr.mxu0 0.0
    %1652 = vmatpush1.xpose.msra.mxu0 0.0
    %1653 = vmatprep.subr.mxu0 0.0
    %1654 = vmatpush1.xpose.msra.mxu0 0.0
    %1655 = vmatprep.subr.mxu0 0.0
    %1656 = vmatpush1.xpose.msra.mxu0 0.0
    %1657 = vmatprep.subr.mxu0 0.0
    %1658 = vmatpush1.xpose.msra.mxu0 0.0
    %1659 = vmatprep.subr.mxu0 0.0
    %1660 = vmatpush1.xpose.msra.mxu0 0.0
    %1661 = vmatprep.subr.mxu0 0.0
    %1662 = vmatpush1.xpose.msra.mxu0 0.0
    %1663 = vmatprep.subr.mxu0 0.0
    %1664 = vmatpush1.xpose.msra.mxu0 0.0
    %1665 = vmatprep.subr.mxu0 0.0
    %1666 = vmatpush1.xpose.msra.mxu0 0.0
    %1667 = vmatprep.subr.mxu0 0.0
    %1668 = vmatpush1.xpose.msra.mxu0 0.0
    %1669 = vmatprep.subr.mxu0 0.0
    %1670 = vmatpush1.xpose.msra.mxu0 0.0
    %1671 = vmatprep.subr.mxu0 0.0
    %1672 = vmatpush1.xpose.msra.mxu0 0.0
    %1673 = vmatprep.subr.mxu0 0.0
    %1674 = vmatpush1.xpose.msra.mxu0 0.0
    %1675 = vmatprep.subr.mxu0 0.0
    %1676 = vmatpush1.xpose.msra.mxu0 0.0
    %1677 = vmatprep.subr.mxu0 0.0
    %1678 = vmatpush1.xpose.msra.mxu0 %v1645
    %1679 = vmatprep.subr.mxu0 0.0
    %1680 = vmatpush2.xpose.msra.mxu0 0.0
    %1681 = vmatprep.subr.mxu0 0.0
    %1682 = vmatpush2.xpose.msra.mxu0 0.0
    %1683 = vmatprep.subr.mxu0 0.0
    %1684 = vmatpush2.xpose.msra.mxu0 0.0
    %1685 = vmatprep.subr.mxu0 0.0
    %1686 = vmatpush2.xpose.msra.mxu0 0.0
    %1687 = vmatprep.subr.mxu0 0.0
    %1688 = vmatpush2.xpose.msra.mxu0 0.0
    %1689 = vmatprep.subr.mxu0 0.0
    %1690 = vmatpush2.xpose.msra.mxu0 0.0
    %1691 = vmatprep.subr.mxu0 0.0
    %1692 = vmatpush2.xpose.msra.mxu0 0.0
    %1693 = vmatprep.subr.mxu0 0.0
    %1694 = vmatpush2.xpose.msra.mxu0 0.0
    %1695 = vmatprep.subr.mxu0 0.0
    %1696 = vmatpush2.xpose.msra.mxu0 0.0
    %1697 = vmatprep.subr.mxu0 0.0
    %1698 = vmatpush2.xpose.msra.mxu0 0.0
    %1699 = vmatprep.subr.mxu0 0.0
    %1700 = vmatpush2.xpose.msra.mxu0 0.0
    %1701 = vmatprep.subr.mxu0 0.0
    %1702 = vmatpush2.xpose.msra.mxu0 0.0
    %1703 = vmatprep.subr.mxu0 0.0
    %1704 = vmatpush2.xpose.msra.mxu0 0.0
    %1705 = vmatprep.subr.mxu0 0.0
    %1706 = vmatpush2.xpose.msra.mxu0 0.0
    %1707 = vmatprep.subr.mxu0 0.0
    %1708 = vmatpush2.xpose.msra.mxu0 0.0
    %1709 = vmatprep.subr.mxu0 0.0
    %1710 = vmatpush2.xpose.msra.mxu0 0.0
    %1711 = vmatprep.mubr.f32.mxu0 0.0
    %1712 = vmatmul.mubr.f32.gmra.mxu0 %v1642
    %v1713 = vpop.f32.mrf.mxu0
    %v1714 = vadd.f32 0.0, %v1713
    %v1715 = vpop.f32.mrf.mxu0
    %1716 = vdwg.mxu0
    %v1717 = vmul.f32 %v1714, 0.35355338
    %v1718 = vlaneseq
    %v1719 = vshrl.u32 %v1718, 7
    %v1720 = vsub.s32 1, %v1719
    %v1721 = vrot.slane %v372, %v1720
    %v1722 = vadd.f32 %v1717, %v1721
    %v1723 = vsel %vm678, %v1722, -inf
    %1724 = vmax.xlane.f32.xlu0 %v1723
    %v1725 = vpop.xlane.xlu0 %1724
    %v1726 = vsub.f32 %v1722, %v1725
    %v1727 = vmul.f32 %v1726, 1.442695
    %v1728 = vpow.pop %v1727
    %v1729 = vsel %vm678, %v1728, 0.0
    %1730 = vadd.xlane.f32.xlu0 %v1729
    %v1731 = vpop.xlane.xlu0 %1730
    %v1732 = vrcp.pop %v1731
    %v1733 = vmul.f32 %v1728, %v1732
    %v1735 = vsel %vm678, %v1733, 0
    %1737 = vmatprep.subr.mxu0 0.0
    %1738 = vmatpush1.msra.mxu0 0.0
    %1739 = vmatprep.subr.mxu0 0.0
    %1740 = vmatpush1.msra.mxu0 0.0
    %1741 = vmatprep.subr.mxu0 0.0
    %1742 = vmatpush1.msra.mxu0 0.0
    %1743 = vmatprep.subr.mxu0 0.0
    %1744 = vmatpush1.msra.mxu0 0.0
    %1745 = vmatprep.subr.mxu0 0.0
    %1746 = vmatpush1.msra.mxu0 0.0
    %1747 = vmatprep.subr.mxu0 0.0
    %1748 = vmatpush1.msra.mxu0 0.0
    %1749 = vmatprep.subr.mxu0 0.0
    %1750 = vmatpush1.msra.mxu0 0.0
    %1751 = vmatprep.subr.mxu0 0.0
    %1752 = vmatpush1.msra.mxu0 0.0
    %1753 = vmatprep.subr.mxu0 0.0
    %1754 = vmatpush1.msra.mxu0 0.0
    %1755 = vmatprep.subr.mxu0 0.0
    %1756 = vmatpush1.msra.mxu0 0.0
    %1757 = vmatprep.subr.mxu0 0.0
    %1758 = vmatpush1.msra.mxu0 0.0
    %1759 = vmatprep.subr.mxu0 0.0
    %1760 = vmatpush1.msra.mxu0 0.0
    %1761 = vmatprep.subr.mxu0 0.0
    %1762 = vmatpush1.msra.mxu0 0.0
    %1763 = vmatprep.subr.mxu0 0.0
    %1764 = vmatpush1.msra.mxu0 0.0
    %1765 = vmatprep.subr.mxu0 0.0
    %1766 = vmatpush1.msra.mxu0 0.0
    %1767 = vmatprep.subr.mxu0 0.0
    %1768 = vmatpush1.msra.mxu0 %v675
    %1769 = vmatprep.subr.mxu0 0.0
    %1770 = vmatpush2.msra.mxu0 0.0
    %1771 = vmatprep.subr.mxu0 0.0
    %1772 = vmatpush2.msra.mxu0 0.0
    %1773 = vmatprep.subr.mxu0 0.0
    %1774 = vmatpush2.msra.mxu0 0.0
    %1775 = vmatprep.subr.mxu0 0.0
    %1776 = vmatpush2.msra.mxu0 0.0
    %1777 = vmatprep.subr.mxu0 0.0
    %1778 = vmatpush2.msra.mxu0 0.0
    %1779 = vmatprep.subr.mxu0 0.0
    %1780 = vmatpush2.msra.mxu0 0.0
    %1781 = vmatprep.subr.mxu0 0.0
    %1782 = vmatpush2.msra.mxu0 0.0
    %1783 = vmatprep.subr.mxu0 0.0
    %1784 = vmatpush2.msra.mxu0 0.0
    %1785 = vmatprep.subr.mxu0 0.0
    %1786 = vmatpush2.msra.mxu0 0.0
    %1787 = vmatprep.subr.mxu0 0.0
    %1788 = vmatpush2.msra.mxu0 0.0
    %1789 = vmatprep.subr.mxu0 0.0
    %1790 = vmatpush2.msra.mxu0 0.0
    %1791 = vmatprep.subr.mxu0 0.0
    %1792 = vmatpush2.msra.mxu0 0.0
    %1793 = vmatprep.subr.mxu0 0.0
    %1794 = vmatpush2.msra.mxu0 0.0
    %1795 = vmatprep.subr.mxu0 0.0
    %1796 = vmatpush2.msra.mxu0 0.0
    %1797 = vmatprep.subr.mxu0 0.0
    %1798 = vmatpush2.msra.mxu0 0.0
    %1799 = vmatprep.subr.mxu0 0.0
    %1800 = vmatpush2.msra.mxu0 0.0
    %1801 = vmatprep.mubr.f32.mxu0 0.0
    %1802 = vmatmul.mubr.f32.gmra.mxu0 %v1735
    %v1803 = vpop.f32.mrf.mxu0
    %v1804 = vadd.f32 0.0, %v1803
    %v1805 = vpop.f32.mrf.mxu0
    %1806 = vdwg.mxu0
    %1807 = vrot.lane.b32.xlu0 %v513, 120
    %v1808 = vpop.permute.xlu0 %1807
    %1809 = vrot.lane.b32.xlu0 %v594, 120
    %v1810 = vpop.permute.xlu0 %1809
    %v1811 = vsel %vm678, %v1808, 0
    %v1813 = vsel %vm678, %v1810, 0
    %1815 = vmatprep.subr.mxu0 0.0
    %1816 = vmatpush1.xpose.msra.mxu0 0.0
    %1817 = vmatprep.subr.mxu0 0.0
    %1818 = vmatpush1.xpose.msra.mxu0 0.0
    %1819 = vmatprep.subr.mxu0 0.0
    %1820 = vmatpush1.xpose.msra.mxu0 0.0
    %1821 = vmatprep.subr.mxu0 0.0
    %1822 = vmatpush1.xpose.msra.mxu0 0.0
    %1823 = vmatprep.subr.mxu0 0.0
    %1824 = vmatpush1.xpose.msra.mxu0 0.0
    %1825 = vmatprep.subr.mxu0 0.0
    %1826 = vmatpush1.xpose.msra.mxu0 0.0
    %1827 = vmatprep.subr.mxu0 0.0
    %1828 = vmatpush1.xpose.msra.mxu0 0.0
    %1829 = vmatprep.subr.mxu0 0.0
    %1830 = vmatpush1.xpose.msra.mxu0 0.0
    %1831 = vmatprep.subr.mxu0 0.0
    %1832 = vmatpush1.xpose.msra.mxu0 0.0
    %1833 = vmatprep.subr.mxu0 0.0
    %1834 = vmatpush1.xpose.msra.mxu0 0.0
    %1835 = vmatprep.subr.mxu0 0.0
    %1836 = vmatpush1.xpose.msra.mxu0 0.0
    %1837 = vmatprep.subr.mxu0 0.0
    %1838 = vmatpush1.xpose.msra.mxu0 0.0
    %1839 = vmatprep.subr.mxu0 0.0
    %1840 = vmatpush1.xpose.msra.mxu0 0.0
    %1841 = vmatprep.subr.mxu0 0.0
    %1842 = vmatpush1.xpose.msra.mxu0 0.0
    %1843 = vmatprep.subr.mxu0 0.0
    %1844 = vmatpush1.xpose.msra.mxu0 0.0
    %1845 = vmatprep.subr.mxu0 0.0
    %1846 = vmatpush1.xpose.msra.mxu0 %v1813
    %1847 = vmatprep.subr.mxu0 0.0
    %1848 = vmatpush2.xpose.msra.mxu0 0.0
    %1849 = vmatprep.subr.mxu0 0.0
    %1850 = vmatpush2.xpose.msra.mxu0 0.0
    %1851 = vmatprep.subr.mxu0 0.0
    %1852 = vmatpush2.xpose.msra.mxu0 0.0
    %1853 = vmatprep.subr.mxu0 0.0
    %1854 = vmatpush2.xpose.msra.mxu0 0.0
    %1855 = vmatprep.subr.mxu0 0.0
    %1856 = vmatpush2.xpose.msra.mxu0 0.0
    %1857 = vmatprep.subr.mxu0 0.0
    %1858 = vmatpush2.xpose.msra.mxu0 0.0
    %1859 = vmatprep.subr.mxu0 0.0
    %1860 = vmatpush2.xpose.msra.mxu0 0.0
    %1861 = vmatprep.subr.mxu0 0.0
    %1862 = vmatpush2.xpose.msra.mxu0 0.0
    %1863 = vmatprep.subr.mxu0 0.0
    %1864 = vmatpush2.xpose.msra.mxu0 0.0
    %1865 = vmatprep.subr.mxu0 0.0
    %1866 = vmatpush2.xpose.msra.mxu0 0.0
    %1867 = vmatprep.subr.mxu0 0.0
    %1868 = vmatpush2.xpose.msra.mxu0 0.0
    %1869 = vmatprep.subr.mxu0 0.0
    %1870 = vmatpush2.xpose.msra.mxu0 0.0
    %1871 = vmatprep.subr.mxu0 0.0
    %1872 = vmatpush2.xpose.msra.mxu0 0.0
    %1873 = vmatprep.subr.mxu0 0.0
    %1874 = vmatpush2.xpose.msra.mxu0 0.0
    %1875 = vmatprep.subr.mxu0 0.0
    %1876 = vmatpush2.xpose.msra.mxu0 0.0
    %1877 = vmatprep.subr.mxu0 0.0
    %1878 = vmatpush2.xpose.msra.mxu0 0.0
    %1879 = vmatprep.mubr.f32.mxu0 0.0
    %1880 = vmatmul.mubr.f32.gmra.mxu0 %v1811
    %v1881 = vpop.f32.mrf.mxu0
    %v1882 = vadd.f32 0.0, %v1881
    %v1883 = vpop.f32.mrf.mxu0
    %1884 = vdwg.mxu0
    %v1885 = vmul.f32 %v1882, 0.35355338
    %v1886 = vadd.f32 %v1885, %v1721
    %v1887 = vsel %vm678, %v1886, -inf
    %1888 = vmax.xlane.f32.xlu0 %v1887
    %v1889 = vpop.xlane.xlu0 %1888
    %v1890 = vsub.f32 %v1886, %v1889
    %v1891 = vmul.f32 %v1890, 1.442695
    %v1892 = vpow.pop %v1891
    %v1893 = vsel %vm678, %v1892, 0.0
    %1894 = vadd.xlane.f32.xlu0 %v1893
    %v1895 = vpop.xlane.xlu0 %1894
    %v1896 = vrcp.pop %v1895
    %v1897 = vmul.f32 %v1892, %v1896
    %1899 = vrot.lane.b32.xlu0 %v675, 120
    %v1900 = vpop.permute.xlu0 %1899
    %v1903 = vsel %vm678, %v1897, 0
    %1905 = vmatprep.subr.mxu0 0.0
    %1906 = vmatpush1.msra.mxu0 0.0
    %1907 = vmatprep.subr.mxu0 0.0
    %1908 = vmatpush1.msra.mxu0 0.0
    %1909 = vmatprep.subr.mxu0 0.0
    %1910 = vmatpush1.msra.mxu0 0.0
    %1911 = vmatprep.subr.mxu0 0.0
    %1912 = vmatpush1.msra.mxu0 0.0
    %1913 = vmatprep.subr.mxu0 0.0
    %1914 = vmatpush1.msra.mxu0 0.0
    %1915 = vmatprep.subr.mxu0 0.0
    %1916 = vmatpush1.msra.mxu0 0.0
    %1917 = vmatprep.subr.mxu0 0.0
    %1918 = vmatpush1.msra.mxu0 0.0
    %1919 = vmatprep.subr.mxu0 0.0
    %1920 = vmatpush1.msra.mxu0 0.0
    %1921 = vmatprep.subr.mxu0 0.0
    %1922 = vmatpush1.msra.mxu0 0.0
    %1923 = vmatprep.subr.mxu0 0.0
    %1924 = vmatpush1.msra.mxu0 0.0
    %1925 = vmatprep.subr.mxu0 0.0
    %1926 = vmatpush1.msra.mxu0 0.0
    %1927 = vmatprep.subr.mxu0 0.0
    %1928 = vmatpush1.msra.mxu0 0.0
    %1929 = vmatprep.subr.mxu0 0.0
    %1930 = vmatpush1.msra.mxu0 0.0
    %1931 = vmatprep.subr.mxu0 0.0
    %1932 = vmatpush1.msra.mxu0 0.0
    %1933 = vmatprep.subr.mxu0 0.0
    %1934 = vmatpush1.msra.mxu0 0.0
    %1935 = vmatprep.subr.mxu0 0.0
    %1936 = vmatpush1.msra.mxu0 %v1900
    %1937 = vmatprep.subr.mxu0 0.0
    %1938 = vmatpush2.msra.mxu0 0.0
    %1939 = vmatprep.subr.mxu0 0.0
    %1940 = vmatpush2.msra.mxu0 0.0
    %1941 = vmatprep.subr.mxu0 0.0
    %1942 = vmatpush2.msra.mxu0 0.0
    %1943 = vmatprep.subr.mxu0 0.0
    %1944 = vmatpush2.msra.mxu0 0.0
    %1945 = vmatprep.subr.mxu0 0.0
    %1946 = vmatpush2.msra.mxu0 0.0
    %1947 = vmatprep.subr.mxu0 0.0
    %1948 = vmatpush2.msra.mxu0 0.0
    %1949 = vmatprep.subr.mxu0 0.0
    %1950 = vmatpush2.msra.mxu0 0.0
    %1951 = vmatprep.subr.mxu0 0.0
    %1952 = vmatpush2.msra.mxu0 0.0
    %1953 = vmatprep.subr.mxu0 0.0
    %1954 = vmatpush2.msra.mxu0 0.0
    %1955 = vmatprep.subr.mxu0 0.0
    %1956 = vmatpush2.msra.mxu0 0.0
    %1957 = vmatprep.subr.mxu0 0.0
    %1958 = vmatpush2.msra.mxu0 0.0
    %1959 = vmatprep.subr.mxu0 0.0
    %1960 = vmatpush2.msra.mxu0 0.0
    %1961 = vmatprep.subr.mxu0 0.0
    %1962 = vmatpush2.msra.mxu0 0.0
    %1963 = vmatprep.subr.mxu0 0.0
    %1964 = vmatpush2.msra.mxu0 0.0
    %1965 = vmatprep.subr.mxu0 0.0
    %1966 = vmatpush2.msra.mxu0 0.0
    %1967 = vmatprep.subr.mxu0 0.0
    %1968 = vmatpush2.msra.mxu0 0.0
    %1969 = vmatprep.mubr.f32.mxu0 0.0
    %1970 = vmatmul.mubr.f32.gmra.mxu0 %v1903
    %v1971 = vpop.f32.mrf.mxu0
    %v1972 = vadd.f32 0.0, %v1971
    %v1973 = vpop.f32.mrf.mxu0
    %1974 = vdwg.mxu0
    %v1976 = vsel %vm678, %v1972, 0
    %1978 = vmatprep.subr.mxu0 0.0
    %1979 = vmatpush1.msra.mxu0 0.0
    %1980 = vmatprep.subr.mxu0 0.0
    %1981 = vmatpush1.msra.mxu0 0.0
    %1982 = vmatprep.subr.mxu0 0.0
    %1983 = vmatpush1.msra.mxu0 0.0
    %1984 = vmatprep.subr.mxu0 0.0
    %1985 = vmatpush1.msra.mxu0 0.0
    %1986 = vmatprep.subr.mxu0 0.0
    %1987 = vmatpush1.msra.mxu0 0.0
    %1988 = vmatprep.subr.mxu0 0.0
    %1989 = vmatpush1.msra.mxu0 0.0
    %1990 = vmatprep.subr.mxu0 0.0
    %1991 = vmatpush1.msra.mxu0 0.0
    %1992 = vmatprep.subr.mxu0 0.0
    %1993 = vmatpush1.msra.mxu0 0.0
    %1994 = vmatprep.subr.mxu0 0.0
    %1995 = vmatpush1.msra.mxu0 0.0
    %1996 = vmatprep.subr.mxu0 0.0
    %1997 = vmatpush1.msra.mxu0 0.0
    %1998 = vmatprep.subr.mxu0 0.0
    %1999 = vmatpush1.msra.mxu0 0.0
    %2000 = vmatprep.subr.mxu0 0.0
    %2001 = vmatpush1.msra.mxu0 0.0
    %2002 = vmatprep.subr.mxu0 0.0
    %2003 = vmatpush1.msra.mxu0 0.0
    %2004 = vmatprep.subr.mxu0 0.0
    %2005 = vmatpush1.msra.mxu0 0.0
    %2006 = vmatprep.subr.mxu0 0.0
    %2007 = vmatpush1.msra.mxu0 0.0
    %2008 = vmatprep.subr.mxu0 0.0
    %2009 = vmatpush1.msra.mxu0 %v425
    %2010 = vmatprep.subr.mxu0 0.0
    %2011 = vmatpush2.msra.mxu0 0.0
    %2012 = vmatprep.subr.mxu0 0.0
    %2013 = vmatpush2.msra.mxu0 0.0
    %2014 = vmatprep.subr.mxu0 0.0
    %2015 = vmatpush2.msra.mxu0 0.0
    %2016 = vmatprep.subr.mxu0 0.0
    %2017 = vmatpush2.msra.mxu0 0.0
    %2018 = vmatprep.subr.mxu0 0.0
    %2019 = vmatpush2.msra.mxu0 0.0
    %2020 = vmatprep.subr.mxu0 0.0
    %2021 = vmatpush2.msra.mxu0 0.0
    %2022 = vmatprep.subr.mxu0 0.0
    %2023 = vmatpush2.msra.mxu0 0.0
    %2024 = vmatprep.subr.mxu0 0.0
    %2025 = vmatpush2.msra.mxu0 0.0
    %2026 = vmatprep.subr.mxu0 0.0
    %2027 = vmatpush2.msra.mxu0 0.0
    %2028 = vmatprep.subr.mxu0 0.0
    %2029 = vmatpush2.msra.mxu0 0.0
    %2030 = vmatprep.subr.mxu0 0.0
    %2031 = vmatpush2.msra.mxu0 0.0
    %2032 = vmatprep.subr.mxu0 0.0
    %2033 = vmatpush2.msra.mxu0 0.0
    %2034 = vmatprep.subr.mxu0 0.0
    %2035 = vmatpush2.msra.mxu0 0.0
    %2036 = vmatprep.subr.mxu0 0.0
    %2037 = vmatpush2.msra.mxu0 0.0
    %2038 = vmatprep.subr.mxu0 0.0
    %2039 = vmatpush2.msra.mxu0 0.0
    %2040 = vmatprep.subr.mxu0 0.0
    %2041 = vmatpush2.msra.mxu0 0.0
    %2042 = vmatprep.mubr.f32.mxu0 0.0
    %2043 = vmatmul.mubr.f32.gmra.mxu0 %v1976
    %v2044 = vpop.f32.mrf.mxu0
    %v2045 = vadd.f32 0.0, %v2044
    %v2046 = vpop.f32.mrf.mxu0
    %2047 = vdwg.mxu0
    %v2049 = vsel %vm678, %v1804, 0
    %2051 = vmatprep.subr.mxu0 0.0
    %2052 = vmatpush1.msra.mxu0 0.0
    %2053 = vmatprep.subr.mxu0 0.0
    %2054 = vmatpush1.msra.mxu0 0.0
    %2055 = vmatprep.subr.mxu0 0.0
    %2056 = vmatpush1.msra.mxu0 0.0
    %2057 = vmatprep.subr.mxu0 0.0
    %2058 = vmatpush1.msra.mxu0 0.0
    %2059 = vmatprep.subr.mxu0 0.0
    %2060 = vmatpush1.msra.mxu0 0.0
    %2061 = vmatprep.subr.mxu0 0.0
    %2062 = vmatpush1.msra.mxu0 0.0
    %2063 = vmatprep.subr.mxu0 0.0
    %2064 = vmatpush1.msra.mxu0 0.0
    %2065 = vmatprep.subr.mxu0 0.0
    %2066 = vmatpush1.msra.mxu0 0.0
    %2067 = vmatprep.subr.mxu0 0.0
    %2068 = vmatpush1.msra.mxu0 0.0
    %2069 = vmatprep.subr.mxu0 0.0
    %2070 = vmatpush1.msra.mxu0 0.0
    %2071 = vmatprep.subr.mxu0 0.0
    %2072 = vmatpush1.msra.mxu0 0.0
    %2073 = vmatprep.subr.mxu0 0.0
    %2074 = vmatpush1.msra.mxu0 0.0
    %2075 = vmatprep.subr.mxu0 0.0
    %2076 = vmatpush1.msra.mxu0 0.0
    %2077 = vmatprep.subr.mxu0 0.0
    %2078 = vmatpush1.msra.mxu0 0.0
    %2079 = vmatprep.subr.mxu0 0.0
    %2080 = vmatpush1.msra.mxu0 0.0
    %2081 = vmatprep.subr.mxu0 0.0
    %2082 = vmatpush1.msra.mxu0 %v424
    %2083 = vmatprep.subr.mxu0 0.0
    %2084 = vmatpush2.msra.mxu0 0.0
    %2085 = vmatprep.subr.mxu0 0.0
    %2086 = vmatpush2.msra.mxu0 0.0
    %2087 = vmatprep.subr.mxu0 0.0
    %2088 = vmatpush2.msra.mxu0 0.0
    %2089 = vmatprep.subr.mxu0 0.0
    %2090 = vmatpush2.msra.mxu0 0.0
    %2091 = vmatprep.subr.mxu0 0.0
    %2092 = vmatpush2.msra.mxu0 0.0
    %2093 = vmatprep.subr.mxu0 0.0
    %2094 = vmatpush2.msra.mxu0 0.0
    %2095 = vmatprep.subr.mxu0 0.0
    %2096 = vmatpush2.msra.mxu0 0.0
    %2097 = vmatprep.subr.mxu0 0.0
    %2098 = vmatpush2.msra.mxu0 0.0
    %2099 = vmatprep.subr.mxu0 0.0
    %2100 = vmatpush2.msra.mxu0 0.0
    %2101 = vmatprep.subr.mxu0 0.0
    %2102 = vmatpush2.msra.mxu0 0.0
    %2103 = vmatprep.subr.mxu0 0.0
    %2104 = vmatpush2.msra.mxu0 0.0
    %2105 = vmatprep.subr.mxu0 0.0
    %2106 = vmatpush2.msra.mxu0 0.0
    %2107 = vmatprep.subr.mxu0 0.0
    %2108 = vmatpush2.msra.mxu0 0.0
    %2109 = vmatprep.subr.mxu0 0.0
    %2110 = vmatpush2.msra.mxu0 0.0
    %2111 = vmatprep.subr.mxu0 0.0
    %2112 = vmatpush2.msra.mxu0 0.0
    %2113 = vmatprep.subr.mxu0 0.0
    %2114 = vmatpush2.msra.mxu0 0.0
    %2115 = vmatprep.mubr.f32.mxu0 0.0
    %2116 = vmatmul.mubr.f32.gmra.mxu0 %v2049
    %v2117 = vpop.f32.mrf.mxu0
    %v2118 = vadd.f32 %v2045, %v2117
    %v2119 = vpop.f32.mrf.mxu0
    %2120 = vdwg.mxu0
    %2121 = vrot.lane.b32.xlu0 %v513, 112
    %v2122 = vpop.permute.xlu0 %2121
    %2123 = vrot.lane.b32.xlu0 %v594, 112
    %v2124 = vpop.permute.xlu0 %2123
    %v2125 = vsel %vm678, %v2122, 0
    %v2127 = vsel %vm678, %v2124, 0
    %2129 = vmatprep.subr.mxu0 0.0
    %2130 = vmatpush1.xpose.msra.mxu0 0.0
    %2131 = vmatprep.subr.mxu0 0.0
    %2132 = vmatpush1.xpose.msra.mxu0 0.0
    %2133 = vmatprep.subr.mxu0 0.0
    %2134 = vmatpush1.xpose.msra.mxu0 0.0
    %2135 = vmatprep.subr.mxu0 0.0
    %2136 = vmatpush1.xpose.msra.mxu0 0.0
    %2137 = vmatprep.subr.mxu0 0.0
    %2138 = vmatpush1.xpose.msra.mxu0 0.0
    %2139 = vmatprep.subr.mxu0 0.0
    %2140 = vmatpush1.xpose.msra.mxu0 0.0
    %2141 = vmatprep.subr.mxu0 0.0
    %2142 = vmatpush1.xpose.msra.mxu0 0.0
    %2143 = vmatprep.subr.mxu0 0.0
    %2144 = vmatpush1.xpose.msra.mxu0 0.0
    %2145 = vmatprep.subr.mxu0 0.0
    %2146 = vmatpush1.xpose.msra.mxu0 0.0
    %2147 = vmatprep.subr.mxu0 0.0
    %2148 = vmatpush1.xpose.msra.mxu0 0.0
    %2149 = vmatprep.subr.mxu0 0.0
    %2150 = vmatpush1.xpose.msra.mxu0 0.0
    %2151 = vmatprep.subr.mxu0 0.0
    %2152 = vmatpush1.xpose.msra.mxu0 0.0
    %2153 = vmatprep.subr.mxu0 0.0
    %2154 = vmatpush1.xpose.msra.mxu0 0.0
    %2155 = vmatprep.subr.mxu0 0.0
    %2156 = vmatpush1.xpose.msra.mxu0 0.0
    %2157 = vmatprep.subr.mxu0 0.0
    %2158 = vmatpush1.xpose.msra.mxu0 0.0
    %2159 = vmatprep.subr.mxu0 0.0
    %2160 = vmatpush1.xpose.msra.mxu0 %v2127
    %2161 = vmatprep.subr.mxu0 0.0
    %2162 = vmatpush2.xpose.msra.mxu0 0.0
    %2163 = vmatprep.subr.mxu0 0.0
    %2164 = vmatpush2.xpose.msra.mxu0 0.0
    %2165 = vmatprep.subr.mxu0 0.0
    %2166 = vmatpush2.xpose.msra.mxu0 0.0
    %2167 = vmatprep.subr.mxu0 0.0
    %2168 = vmatpush2.xpose.msra.mxu0 0.0
    %2169 = vmatprep.subr.mxu0 0.0
    %2170 = vmatpush2.xpose.msra.mxu0 0.0
    %2171 = vmatprep.subr.mxu0 0.0
    %2172 = vmatpush2.xpose.msra.mxu0 0.0
    %2173 = vmatprep.subr.mxu0 0.0
    %2174 = vmatpush2.xpose.msra.mxu0 0.0
    %2175 = vmatprep.subr.mxu0 0.0
    %2176 = vmatpush2.xpose.msra.mxu0 0.0
    %2177 = vmatprep.subr.mxu0 0.0
    %2178 = vmatpush2.xpose.msra.mxu0 0.0
    %2179 = vmatprep.subr.mxu0 0.0
    %2180 = vmatpush2.xpose.msra.mxu0 0.0
    %2181 = vmatprep.subr.mxu0 0.0
    %2182 = vmatpush2.xpose.msra.mxu0 0.0
    %2183 = vmatprep.subr.mxu0 0.0
    %2184 = vmatpush2.xpose.msra.mxu0 0.0
    %2185 = vmatprep.subr.mxu0 0.0
    %2186 = vmatpush2.xpose.msra.mxu0 0.0
    %2187 = vmatprep.subr.mxu0 0.0
    %2188 = vmatpush2.xpose.msra.mxu0 0.0
    %2189 = vmatprep.subr.mxu0 0.0
    %2190 = vmatpush2.xpose.msra.mxu0 0.0
    %2191 = vmatprep.subr.mxu0 0.0
    %2192 = vmatpush2.xpose.msra.mxu0 0.0
    %2193 = vmatprep.mubr.f32.mxu0 0.0
    %2194 = vmatmul.mubr.f32.gmra.mxu0 %v2125
    %v2195 = vpop.f32.mrf.mxu0
    %v2196 = vadd.f32 0.0, %v2195
    %v2197 = vpop.f32.mrf.mxu0
    %2198 = vdwg.mxu0
    %v2199 = vmul.f32 %v2196, 0.35355338
    %v2200 = vadd.f32 %v2199, %v1721
    %v2201 = vsel %vm678, %v2200, -inf
    %2202 = vmax.xlane.f32.xlu0 %v2201
    %v2203 = vpop.xlane.xlu0 %2202
    %v2204 = vsub.f32 %v2200, %v2203
    %v2205 = vmul.f32 %v2204, 1.442695
    %v2206 = vpow.pop %v2205
    %v2207 = vsel %vm678, %v2206, 0.0
    %2208 = vadd.xlane.f32.xlu0 %v2207
    %v2209 = vpop.xlane.xlu0 %2208
    %v2210 = vrcp.pop %v2209
    %v2211 = vmul.f32 %v2206, %v2210
    %2212 = vrot.lane.b32.xlu0 %v675, 112
    %v2213 = vpop.permute.xlu0 %2212
    %v2216 = vsel %vm678, %v2211, 0
    %2218 = vmatprep.subr.mxu0 0.0
    %2219 = vmatpush1.msra.mxu0 0.0
    %2220 = vmatprep.subr.mxu0 0.0
    %2221 = vmatpush1.msra.mxu0 0.0
    %2222 = vmatprep.subr.mxu0 0.0
    %2223 = vmatpush1.msra.mxu0 0.0
    %2224 = vmatprep.subr.mxu0 0.0
    %2225 = vmatpush1.msra.mxu0 0.0
    %2226 = vmatprep.subr.mxu0 0.0
    %2227 = vmatpush1.msra.mxu0 0.0
    %2228 = vmatprep.subr.mxu0 0.0
    %2229 = vmatpush1.msra.mxu0 0.0
    %2230 = vmatprep.subr.mxu0 0.0
    %2231 = vmatpush1.msra.mxu0 0.0
    %2232 = vmatprep.subr.mxu0 0.0
    %2233 = vmatpush1.msra.mxu0 0.0
    %2234 = vmatprep.subr.mxu0 0.0
    %2235 = vmatpush1.msra.mxu0 0.0
    %2236 = vmatprep.subr.mxu0 0.0
    %2237 = vmatpush1.msra.mxu0 0.0
    %2238 = vmatprep.subr.mxu0 0.0
    %2239 = vmatpush1.msra.mxu0 0.0
    %2240 = vmatprep.subr.mxu0 0.0
    %2241 = vmatpush1.msra.mxu0 0.0
    %2242 = vmatprep.subr.mxu0 0.0
    %2243 = vmatpush1.msra.mxu0 0.0
    %2244 = vmatprep.subr.mxu0 0.0
    %2245 = vmatpush1.msra.mxu0 0.0
    %2246 = vmatprep.subr.mxu0 0.0
    %2247 = vmatpush1.msra.mxu0 0.0
    %2248 = vmatprep.subr.mxu0 0.0
    %2249 = vmatpush1.msra.mxu0 %v2213
    %2250 = vmatprep.subr.mxu0 0.0
    %2251 = vmatpush2.msra.mxu0 0.0
    %2252 = vmatprep.subr.mxu0 0.0
    %2253 = vmatpush2.msra.mxu0 0.0
    %2254 = vmatprep.subr.mxu0 0.0
    %2255 = vmatpush2.msra.mxu0 0.0
    %2256 = vmatprep.subr.mxu0 0.0
    %2257 = vmatpush2.msra.mxu0 0.0
    %2258 = vmatprep.subr.mxu0 0.0
    %2259 = vmatpush2.msra.mxu0 0.0
    %2260 = vmatprep.subr.mxu0 0.0
    %2261 = vmatpush2.msra.mxu0 0.0
    %2262 = vmatprep.subr.mxu0 0.0
    %2263 = vmatpush2.msra.mxu0 0.0
    %2264 = vmatprep.subr.mxu0 0.0
    %2265 = vmatpush2.msra.mxu0 0.0
    %2266 = vmatprep.subr.mxu0 0.0
    %2267 = vmatpush2.msra.mxu0 0.0
    %2268 = vmatprep.subr.mxu0 0.0
    %2269 = vmatpush2.msra.mxu0 0.0
    %2270 = vmatprep.subr.mxu0 0.0
    %2271 = vmatpush2.msra.mxu0 0.0
    %2272 = vmatprep.subr.mxu0 0.0
    %2273 = vmatpush2.msra.mxu0 0.0
    %2274 = vmatprep.subr.mxu0 0.0
    %2275 = vmatpush2.msra.mxu0 0.0
    %2276 = vmatprep.subr.mxu0 0.0
    %2277 = vmatpush2.msra.mxu0 0.0
    %2278 = vmatprep.subr.mxu0 0.0
    %2279 = vmatpush2.msra.mxu0 0.0
    %2280 = vmatprep.subr.mxu0 0.0
    %2281 = vmatpush2.msra.mxu0 0.0
    %2282 = vmatprep.mubr.f32.mxu0 0.0
    %2283 = vmatmul.mubr.f32.gmra.mxu0 %v2216
    %v2284 = vpop.f32.mrf.mxu0
    %v2285 = vadd.f32 0.0, %v2284
    %v2286 = vpop.f32.mrf.mxu0
    %2287 = vdwg.mxu0
    %v2289 = vsel %vm678, %v2285, 0
    %2291 = vmatprep.subr.mxu0 0.0
    %2292 = vmatpush1.msra.mxu0 0.0
    %2293 = vmatprep.subr.mxu0 0.0
    %2294 = vmatpush1.msra.mxu0 0.0
    %2295 = vmatprep.subr.mxu0 0.0
    %2296 = vmatpush1.msra.mxu0 0.0
    %2297 = vmatprep.subr.mxu0 0.0
    %2298 = vmatpush1.msra.mxu0 0.0
    %2299 = vmatprep.subr.mxu0 0.0
    %2300 = vmatpush1.msra.mxu0 0.0
    %2301 = vmatprep.subr.mxu0 0.0
    %2302 = vmatpush1.msra.mxu0 0.0
    %2303 = vmatprep.subr.mxu0 0.0
    %2304 = vmatpush1.msra.mxu0 0.0
    %2305 = vmatprep.subr.mxu0 0.0
    %2306 = vmatpush1.msra.mxu0 0.0
    %2307 = vmatprep.subr.mxu0 0.0
    %2308 = vmatpush1.msra.mxu0 0.0
    %2309 = vmatprep.subr.mxu0 0.0
    %2310 = vmatpush1.msra.mxu0 0.0
    %2311 = vmatprep.subr.mxu0 0.0
    %2312 = vmatpush1.msra.mxu0 0.0
    %2313 = vmatprep.subr.mxu0 0.0
    %2314 = vmatpush1.msra.mxu0 0.0
    %2315 = vmatprep.subr.mxu0 0.0
    %2316 = vmatpush1.msra.mxu0 0.0
    %2317 = vmatprep.subr.mxu0 0.0
    %2318 = vmatpush1.msra.mxu0 0.0
    %2319 = vmatprep.subr.mxu0 0.0
    %2320 = vmatpush1.msra.mxu0 0.0
    %2321 = vmatprep.subr.mxu0 0.0
    %2322 = vmatpush1.msra.mxu0 %v426
    %2323 = vmatprep.subr.mxu0 0.0
    %2324 = vmatpush2.msra.mxu0 0.0
    %2325 = vmatprep.subr.mxu0 0.0
    %2326 = vmatpush2.msra.mxu0 0.0
    %2327 = vmatprep.subr.mxu0 0.0
    %2328 = vmatpush2.msra.mxu0 0.0
    %2329 = vmatprep.subr.mxu0 0.0
    %2330 = vmatpush2.msra.mxu0 0.0
    %2331 = vmatprep.subr.mxu0 0.0
    %2332 = vmatpush2.msra.mxu0 0.0
    %2333 = vmatprep.subr.mxu0 0.0
    %2334 = vmatpush2.msra.mxu0 0.0
    %2335 = vmatprep.subr.mxu0 0.0
    %2336 = vmatpush2.msra.mxu0 0.0
    %2337 = vmatprep.subr.mxu0 0.0
    %2338 = vmatpush2.msra.mxu0 0.0
    %2339 = vmatprep.subr.mxu0 0.0
    %2340 = vmatpush2.msra.mxu0 0.0
    %2341 = vmatprep.subr.mxu0 0.0
    %2342 = vmatpush2.msra.mxu0 0.0
    %2343 = vmatprep.subr.mxu0 0.0
    %2344 = vmatpush2.msra.mxu0 0.0
    %2345 = vmatprep.subr.mxu0 0.0
    %2346 = vmatpush2.msra.mxu0 0.0
    %2347 = vmatprep.subr.mxu0 0.0
    %2348 = vmatpush2.msra.mxu0 0.0
    %2349 = vmatprep.subr.mxu0 0.0
    %2350 = vmatpush2.msra.mxu0 0.0
    %2351 = vmatprep.subr.mxu0 0.0
    %2352 = vmatpush2.msra.mxu0 0.0
    %2353 = vmatprep.subr.mxu0 0.0
    %2354 = vmatpush2.msra.mxu0 0.0
    %2355 = vmatprep.mubr.f32.mxu0 0.0
    %2356 = vmatmul.mubr.f32.gmra.mxu0 %v2289
    %v2357 = vpop.f32.mrf.mxu0
    %v2358 = vadd.f32 0.0, %v2357
    %v2359 = vpop.f32.mrf.mxu0
    %2360 = vdwg.mxu0
    %v2361 = vadd.f32 %v2118, %v2358
    %2362 = vrot.lane.b32.xlu0 %v513, 104
    %v2363 = vpop.permute.xlu0 %2362
    %2364 = vrot.lane.b32.xlu0 %v594, 104
    %v2365 = vpop.permute.xlu0 %2364
    %v2366 = vsel %vm678, %v2363, 0
    %v2368 = vsel %vm678, %v2365, 0
    %2370 = vmatprep.subr.mxu0 0.0
    %2371 = vmatpush1.xpose.msra.mxu0 0.0
    %2372 = vmatprep.subr.mxu0 0.0
    %2373 = vmatpush1.xpose.msra.mxu0 0.0
    %2374 = vmatprep.subr.mxu0 0.0
    %2375 = vmatpush1.xpose.msra.mxu0 0.0
    %2376 = vmatprep.subr.mxu0 0.0
    %2377 = vmatpush1.xpose.msra.mxu0 0.0
    %2378 = vmatprep.subr.mxu0 0.0
    %2379 = vmatpush1.xpose.msra.mxu0 0.0
    %2380 = vmatprep.subr.mxu0 0.0
    %2381 = vmatpush1.xpose.msra.mxu0 0.0
    %2382 = vmatprep.subr.mxu0 0.0
    %2383 = vmatpush1.xpose.msra.mxu0 0.0
    %2384 = vmatprep.subr.mxu0 0.0
    %2385 = vmatpush1.xpose.msra.mxu0 0.0
    %2386 = vmatprep.subr.mxu0 0.0
    %2387 = vmatpush1.xpose.msra.mxu0 0.0
    %2388 = vmatprep.subr.mxu0 0.0
    %2389 = vmatpush1.xpose.msra.mxu0 0.0
    %2390 = vmatprep.subr.mxu0 0.0
    %2391 = vmatpush1.xpose.msra.mxu0 0.0
    %2392 = vmatprep.subr.mxu0 0.0
    %2393 = vmatpush1.xpose.msra.mxu0 0.0
    %2394 = vmatprep.subr.mxu0 0.0
    %2395 = vmatpush1.xpose.msra.mxu0 0.0
    %2396 = vmatprep.subr.mxu0 0.0
    %2397 = vmatpush1.xpose.msra.mxu0 0.0
    %2398 = vmatprep.subr.mxu0 0.0
    %2399 = vmatpush1.xpose.msra.mxu0 0.0
    %2400 = vmatprep.subr.mxu0 0.0
    %2401 = vmatpush1.xpose.msra.mxu0 %v2368
    %2402 = vmatprep.subr.mxu0 0.0
    %2403 = vmatpush2.xpose.msra.mxu0 0.0
    %2404 = vmatprep.subr.mxu0 0.0
    %2405 = vmatpush2.xpose.msra.mxu0 0.0
    %2406 = vmatprep.subr.mxu0 0.0
    %2407 = vmatpush2.xpose.msra.mxu0 0.0
    %2408 = vmatprep.subr.mxu0 0.0
    %2409 = vmatpush2.xpose.msra.mxu0 0.0
    %2410 = vmatprep.subr.mxu0 0.0
    %2411 = vmatpush2.xpose.msra.mxu0 0.0
    %2412 = vmatprep.subr.mxu0 0.0
    %2413 = vmatpush2.xpose.msra.mxu0 0.0
    %2414 = vmatprep.subr.mxu0 0.0
    %2415 = vmatpush2.xpose.msra.mxu0 0.0
    %2416 = vmatprep.subr.mxu0 0.0
    %2417 = vmatpush2.xpose.msra.mxu0 0.0
    %2418 = vmatprep.subr.mxu0 0.0
    %2419 = vmatpush2.xpose.msra.mxu0 0.0
    %2420 = vmatprep.subr.mxu0 0.0
    %2421 = vmatpush2.xpose.msra.mxu0 0.0
    %2422 = vmatprep.subr.mxu0 0.0
    %2423 = vmatpush2.xpose.msra.mxu0 0.0
    %2424 = vmatprep.subr.mxu0 0.0
    %2425 = vmatpush2.xpose.msra.mxu0 0.0
    %2426 = vmatprep.subr.mxu0 0.0
    %2427 = vmatpush2.xpose.msra.mxu0 0.0
    %2428 = vmatprep.subr.mxu0 0.0
    %2429 = vmatpush2.xpose.msra.mxu0 0.0
    %2430 = vmatprep.subr.mxu0 0.0
    %2431 = vmatpush2.xpose.msra.mxu0 0.0
    %2432 = vmatprep.subr.mxu0 0.0
    %2433 = vmatpush2.xpose.msra.mxu0 0.0
    %2434 = vmatprep.mubr.f32.mxu0 0.0
    %2435 = vmatmul.mubr.f32.gmra.mxu0 %v2366
    %v2436 = vpop.f32.mrf.mxu0
    %v2437 = vadd.f32 0.0, %v2436
    %v2438 = vpop.f32.mrf.mxu0
    %2439 = vdwg.mxu0
    %v2440 = vmul.f32 %v2437, 0.35355338
    %v2441 = vadd.f32 %v2440, %v1721
    %v2442 = vsel %vm678, %v2441, -inf
    %2443 = vmax.xlane.f32.xlu0 %v2442
    %v2444 = vpop.xlane.xlu0 %2443
    %v2445 = vsub.f32 %v2441, %v2444
    %v2446 = vmul.f32 %v2445, 1.442695
    %v2447 = vpow.pop %v2446
    %v2448 = vsel %vm678, %v2447, 0.0
    %2449 = vadd.xlane.f32.xlu0 %v2448
    %v2450 = vpop.xlane.xlu0 %2449
    %v2451 = vrcp.pop %v2450
    %v2452 = vmul.f32 %v2447, %v2451
    %2453 = vrot.lane.b32.xlu0 %v675, 104
    %v2454 = vpop.permute.xlu0 %2453
    %v2457 = vsel %vm678, %v2452, 0
    %2459 = vmatprep.subr.mxu0 0.0
    %2460 = vmatpush1.msra.mxu0 0.0
    %2461 = vmatprep.subr.mxu0 0.0
    %2462 = vmatpush1.msra.mxu0 0.0
    %2463 = vmatprep.subr.mxu0 0.0
    %2464 = vmatpush1.msra.mxu0 0.0
    %2465 = vmatprep.subr.mxu0 0.0
    %2466 = vmatpush1.msra.mxu0 0.0
    %2467 = vmatprep.subr.mxu0 0.0
    %2468 = vmatpush1.msra.mxu0 0.0
    %2469 = vmatprep.subr.mxu0 0.0
    %2470 = vmatpush1.msra.mxu0 0.0
    %2471 = vmatprep.subr.mxu0 0.0
    %2472 = vmatpush1.msra.mxu0 0.0
    %2473 = vmatprep.subr.mxu0 0.0
    %2474 = vmatpush1.msra.mxu0 0.0
    %2475 = vmatprep.subr.mxu0 0.0
    %2476 = vmatpush1.msra.mxu0 0.0
    %2477 = vmatprep.subr.mxu0 0.0
    %2478 = vmatpush1.msra.mxu0 0.0
    %2479 = vmatprep.subr.mxu0 0.0
    %2480 = vmatpush1.msra.mxu0 0.0
    %2481 = vmatprep.subr.mxu0 0.0
    %2482 = vmatpush1.msra.mxu0 0.0
    %2483 = vmatprep.subr.mxu0 0.0
    %2484 = vmatpush1.msra.mxu0 0.0
    %2485 = vmatprep.subr.mxu0 0.0
    %2486 = vmatpush1.msra.mxu0 0.0
    %2487 = vmatprep.subr.mxu0 0.0
    %2488 = vmatpush1.msra.mxu0 0.0
    %2489 = vmatprep.subr.mxu0 0.0
    %2490 = vmatpush1.msra.mxu0 %v2454
    %2491 = vmatprep.subr.mxu0 0.0
    %2492 = vmatpush2.msra.mxu0 0.0
    %2493 = vmatprep.subr.mxu0 0.0
    %2494 = vmatpush2.msra.mxu0 0.0
    %2495 = vmatprep.subr.mxu0 0.0
    %2496 = vmatpush2.msra.mxu0 0.0
    %2497 = vmatprep.subr.mxu0 0.0
    %2498 = vmatpush2.msra.mxu0 0.0
    %2499 = vmatprep.subr.mxu0 0.0
    %2500 = vmatpush2.msra.mxu0 0.0
    %2501 = vmatprep.subr.mxu0 0.0
    %2502 = vmatpush2.msra.mxu0 0.0
    %2503 = vmatprep.subr.mxu0 0.0
    %2504 = vmatpush2.msra.mxu0 0.0
    %2505 = vmatprep.subr.mxu0 0.0
    %2506 = vmatpush2.msra.mxu0 0.0
    %2507 = vmatprep.subr.mxu0 0.0
    %2508 = vmatpush2.msra.mxu0 0.0
    %2509 = vmatprep.subr.mxu0 0.0
    %2510 = vmatpush2.msra.mxu0 0.0
    %2511 = vmatprep.subr.mxu0 0.0
    %2512 = vmatpush2.msra.mxu0 0.0
    %2513 = vmatprep.subr.mxu0 0.0
    %2514 = vmatpush2.msra.mxu0 0.0
    %2515 = vmatprep.subr.mxu0 0.0
    %2516 = vmatpush2.msra.mxu0 0.0
    %2517 = vmatprep.subr.mxu0 0.0
    %2518 = vmatpush2.msra.mxu0 0.0
    %2519 = vmatprep.subr.mxu0 0.0
    %2520 = vmatpush2.msra.mxu0 0.0
    %2521 = vmatprep.subr.mxu0 0.0
    %2522 = vmatpush2.msra.mxu0 0.0
    %2523 = vmatprep.mubr.f32.mxu0 0.0
    %2524 = vmatmul.mubr.f32.gmra.mxu0 %v2457
    %v2525 = vpop.f32.mrf.mxu0
    %v2526 = vadd.f32 0.0, %v2525
    %v2527 = vpop.f32.mrf.mxu0
    %2528 = vdwg.mxu0
    %v2530 = vsel %vm678, %v2526, 0
    %2532 = vmatprep.subr.mxu0 0.0
    %2533 = vmatpush1.msra.mxu0 0.0
    %2534 = vmatprep.subr.mxu0 0.0
    %2535 = vmatpush1.msra.mxu0 0.0
    %2536 = vmatprep.subr.mxu0 0.0
    %2537 = vmatpush1.msra.mxu0 0.0
    %2538 = vmatprep.subr.mxu0 0.0
    %2539 = vmatpush1.msra.mxu0 0.0
    %2540 = vmatprep.subr.mxu0 0.0
    %2541 = vmatpush1.msra.mxu0 0.0
    %2542 = vmatprep.subr.mxu0 0.0
    %2543 = vmatpush1.msra.mxu0 0.0
    %2544 = vmatprep.subr.mxu0 0.0
    %2545 = vmatpush1.msra.mxu0 0.0
    %2546 = vmatprep.subr.mxu0 0.0
    %2547 = vmatpush1.msra.mxu0 0.0
    %2548 = vmatprep.subr.mxu0 0.0
    %2549 = vmatpush1.msra.mxu0 0.0
    %2550 = vmatprep.subr.mxu0 0.0
    %2551 = vmatpush1.msra.mxu0 0.0
    %2552 = vmatprep.subr.mxu0 0.0
    %2553 = vmatpush1.msra.mxu0 0.0
    %2554 = vmatprep.subr.mxu0 0.0
    %2555 = vmatpush1.msra.mxu0 0.0
    %2556 = vmatprep.subr.mxu0 0.0
    %2557 = vmatpush1.msra.mxu0 0.0
    %2558 = vmatprep.subr.mxu0 0.0
    %2559 = vmatpush1.msra.mxu0 0.0
    %2560 = vmatprep.subr.mxu0 0.0
    %2561 = vmatpush1.msra.mxu0 0.0
    %2562 = vmatprep.subr.mxu0 0.0
    %2563 = vmatpush1.msra.mxu0 %v427
    %2564 = vmatprep.subr.mxu0 0.0
    %2565 = vmatpush2.msra.mxu0 0.0
    %2566 = vmatprep.subr.mxu0 0.0
    %2567 = vmatpush2.msra.mxu0 0.0
    %2568 = vmatprep.subr.mxu0 0.0
    %2569 = vmatpush2.msra.mxu0 0.0
    %2570 = vmatprep.subr.mxu0 0.0
    %2571 = vmatpush2.msra.mxu0 0.0
    %2572 = vmatprep.subr.mxu0 0.0
    %2573 = vmatpush2.msra.mxu0 0.0
    %2574 = vmatprep.subr.mxu0 0.0
    %2575 = vmatpush2.msra.mxu0 0.0
    %2576 = vmatprep.subr.mxu0 0.0
    %2577 = vmatpush2.msra.mxu0 0.0
    %2578 = vmatprep.subr.mxu0 0.0
    %2579 = vmatpush2.msra.mxu0 0.0
    %2580 = vmatprep.subr.mxu0 0.0
    %2581 = vmatpush2.msra.mxu0 0.0
    %2582 = vmatprep.subr.mxu0 0.0
    %2583 = vmatpush2.msra.mxu0 0.0
    %2584 = vmatprep.subr.mxu0 0.0
    %2585 = vmatpush2.msra.mxu0 0.0
    %2586 = vmatprep.subr.mxu0 0.0
    %2587 = vmatpush2.msra.mxu0 0.0
    %2588 = vmatprep.subr.mxu0 0.0
    %2589 = vmatpush2.msra.mxu0 0.0
    %2590 = vmatprep.subr.mxu0 0.0
    %2591 = vmatpush2.msra.mxu0 0.0
    %2592 = vmatprep.subr.mxu0 0.0
    %2593 = vmatpush2.msra.mxu0 0.0
    %2594 = vmatprep.subr.mxu0 0.0
    %2595 = vmatpush2.msra.mxu0 0.0
    %2596 = vmatprep.mubr.f32.mxu0 0.0
    %2597 = vmatmul.mubr.f32.gmra.mxu0 %v2530
    %v2598 = vpop.f32.mrf.mxu0
    %v2599 = vadd.f32 0.0, %v2598
    %v2600 = vpop.f32.mrf.mxu0
    %2601 = vdwg.mxu0
    %v2602 = vadd.f32 %v2361, %v2599
    %v2604 = vlaneseq
    %v2605 = vshrl.u32 %v2604, 7
    %v2606 = vsub.s32 0, %v2605
    %v2607 = vrot.slane %v434, %v2606
    %v2609 = vadd.f32 %v1640, %v2607
    %v2610 = vadd.f32 %v2602, %v2607
    %v2611 = vadd.f32 %v2609, %v367
    %v2612 = vadd.f32 %v2610, %v368
    %v2613 = vld [vmem:[%s8] sm:$0x1]
    %v2614 = vld [vmem:[%s9] sm:$0x1]
    %v2615 = vmul.f32 %v2611, %v218
    %v2616 = vmul.f32 %v2612, %v218
    %2617 = vadd.xlane.f32.xlu0 %v2615
    %v2618 = vpop.xlane.xlu0 %2617
    %2619 = vadd.xlane.f32.xlu0 %v2616
    %v2620 = vpop.xlane.xlu0 %2619
    %v2621 = vmul.f32 %v2618, 0.03125
    %v2622 = vmul.f32 %v2620, 0.03125
    %v2623 = vsub.f32 %v2611, %v2621
    %v2624 = vsub.f32 %v2612, %v2622
    %v2625 = vmul.f32 %v2623, %v218
    %v2626 = vmul.f32 %v2624, %v218
    %v2627 = vmul.f32 %v2625, %v2625
    %v2628 = vmul.f32 %v2626, %v2626
    %2629 = vadd.xlane.f32.xlu0 %v2627
    %v2630 = vpop.xlane.xlu0 %2629
    %2631 = vadd.xlane.f32.xlu0 %v2628
    %v2632 = vpop.xlane.xlu0 %2631
    %v2633 = vmul.f32 %v2630, 0.03125
    %v2634 = vmul.f32 %v2632, 0.03125
    %v2635 = vadd.f32 %v2633, 1e-12
    %v2636 = vadd.f32 %v2634, 1e-12
    %v2637 = vrsqrt.pop %v2635
    %v2638 = vrsqrt.pop %v2636
    %v2639 = vmul.f32 %v2625, %v2637
    %v2640 = vmul.f32 %v2626, %v2638
    %v2642 = vlaneseq
    %v2643 = vshrl.u32 %v2642, 7
    %v2644 = vsub.s32 0, %v2643
    %v2645 = vrot.slane %v2613, %v2644
    %v2647 = vmul.f32 %v2639, %v2645
    %v2648 = vmul.f32 %v2640, %v2645
    %v2650 = vlaneseq
    %v2651 = vshrl.u32 %v2650, 7
    %v2652 = vsub.s32 0, %v2651
    %v2653 = vrot.slane %v2614, %v2652
    %v2655 = vadd.f32 %v2647, %v2653
    %v2656 = vadd.f32 %v2648, %v2653
    %v2657 = vld [vmem:[#allocation9] sm:$0xff]
    %v2658 = vld [vmem:[#allocation9 + $0x8] sm:$0xff]
    %v2659 = vld [vmem:[#allocation9 + $0x10] sm:$0xff]
    %v2660 = vld [vmem:[#allocation9 + $0x18] sm:$0xff]
    %v2661 = vld [vmem:[#allocation9 + $0x20] sm:$0xff]
    %v2662 = vld [vmem:[#allocation9 + $0x28] sm:$0xff]
    %v2663 = vld [vmem:[#allocation9 + $0x30] sm:$0xff]
    %v2664 = vld [vmem:[#allocation9 + $0x38] sm:$0xff]
    %v2665 = vld [vmem:[#allocation9 + $0x40] sm:$0xff]
    %v2666 = vld [vmem:[#allocation9 + $0x48] sm:$0xff]
    %v2667 = vld [vmem:[#allocation9 + $0x50] sm:$0xff]
    %v2668 = vld [vmem:[#allocation9 + $0x58] sm:$0xff]
    %v2669 = vld [vmem:[#allocation9 + $0x60] sm:$0xff]
    %v2670 = vld [vmem:[#allocation9 + $0x68] sm:$0xff]
    %v2671 = vld [vmem:[#allocation9 + $0x70] sm:$0xff]
    %v2672 = vld [vmem:[#allocation9 + $0x78] sm:$0xff]
    %v2673 = vld [vmem:[#allocation10] sm:$0x1]
    %v2675 = vlaneseq
    %v2676 = vshrl.u32 %v2675, 7
    %v2677 = vsub.s32 0, %v2676
    %v2678 = vrot.slane %v2673, %v2677
    %2680 = vmatprep.subr.mxu0 0.0
    %2681 = vmatpush1.msra.mxu0 %v2672
    %2682 = vmatprep.subr.mxu0 0.0
    %2683 = vmatpush1.msra.mxu0 %v2671
    %2684 = vmatprep.subr.mxu0 0.0
    %2685 = vmatpush1.msra.mxu0 %v2670
    %2686 = vmatprep.subr.mxu0 0.0
    %2687 = vmatpush1.msra.mxu0 %v2669
    %2688 = vmatprep.subr.mxu0 0.0
    %2689 = vmatpush1.msra.mxu0 %v2668
    %2690 = vmatprep.subr.mxu0 0.0
    %2691 = vmatpush1.msra.mxu0 %v2667
    %2692 = vmatprep.subr.mxu0 0.0
    %2693 = vmatpush1.msra.mxu0 %v2666
    %2694 = vmatprep.subr.mxu0 0.0
    %2695 = vmatpush1.msra.mxu0 %v2665
    %2696 = vmatprep.subr.mxu0 0.0
    %2697 = vmatpush1.msra.mxu0 %v2664
    %2698 = vmatprep.subr.mxu0 0.0
    %2699 = vmatpush1.msra.mxu0 %v2663
    %2700 = vmatprep.subr.mxu0 0.0
    %2701 = vmatpush1.msra.mxu0 %v2662
    %2702 = vmatprep.subr.mxu0 0.0
    %2703 = vmatpush1.msra.mxu0 %v2661
    %2704 = vmatprep.subr.mxu0 0.0
    %2705 = vmatpush1.msra.mxu0 %v2660
    %2706 = vmatprep.subr.mxu0 0.0
    %2707 = vmatpush1.msra.mxu0 %v2659
    %2708 = vmatprep.subr.mxu0 0.0
    %2709 = vmatpush1.msra.mxu0 %v2658
    %2710 = vmatprep.subr.mxu0 0.0
    %2711 = vmatpush1.msra.mxu0 %v2657
    %2712 = vmatprep.subr.mxu0 0.0
    %2713 = vmatpush2.msra.mxu0 0.0
    %2714 = vmatprep.subr.mxu0 0.0
    %2715 = vmatpush2.msra.mxu0 0.0
    %2716 = vmatprep.subr.mxu0 0.0
    %2717 = vmatpush2.msra.mxu0 0.0
    %2718 = vmatprep.subr.mxu0 0.0
    %2719 = vmatpush2.msra.mxu0 0.0
    %2720 = vmatprep.subr.mxu0 0.0
    %2721 = vmatpush2.msra.mxu0 0.0
    %2722 = vmatprep.subr.mxu0 0.0
    %2723 = vmatpush2.msra.mxu0 0.0
    %2724 = vmatprep.subr.mxu0 0.0
    %2725 = vmatpush2.msra.mxu0 0.0
    %2726 = vmatprep.subr.mxu0 0.0
    %2727 = vmatpush2.msra.mxu0 0.0
    %2728 = vmatprep.subr.mxu0 0.0
    %2729 = vmatpush2.msra.mxu0 0.0
    %2730 = vmatprep.subr.mxu0 0.0
    %2731 = vmatpush2.msra.mxu0 0.0
    %2732 = vmatprep.subr.mxu0 0.0
    %2733 = vmatpush2.msra.mxu0 0.0
    %2734 = vmatprep.subr.mxu0 0.0
    %2735 = vmatpush2.msra.mxu0 0.0
    %2736 = vmatprep.subr.mxu0 0.0
    %2737 = vmatpush2.msra.mxu0 0.0
    %2738 = vmatprep.subr.mxu0 0.0
    %2739 = vmatpush2.msra.mxu0 0.0
    %2740 = vmatprep.subr.mxu0 0.0
    %2741 = vmatpush2.msra.mxu0 0.0
    %2742 = vmatprep.subr.mxu0 0.0
    %2743 = vmatpush2.msra.mxu0 0.0
    %2744 = vmatprep.mubr.f32.mxu0 0.0
    %2745 = vmatmul.mubr.f32.gmra.mxu0 %v2655
    %v2746 = vpop.f32.mrf.mxu0
    %v2747 = vadd.f32 %v2678, %v2746
    %v2748 = vpop.f32.mrf.mxu0
    %2749 = vmatprep.mubr.f32.mxu0 0.0
    %2750 = vmatmul.mubr.f32.gmra.mxu0 %v2656
    %v2751 = vpop.f32.mrf.mxu0
    %v2752 = vadd.f32 %v2678, %v2751
    %v2753 = vpop.f32.mrf.mxu0
    %2754 = vdwg.mxu0
    %v2755 = vmul.f32 %v2747, 0.5
    %v2756 = vmul.f32 %v2752, 0.5
    %v2757 = vmul.f32 %v2747, 0.044715
    %v2758 = vmul.f32 %v2752, 0.044715
    %v2759 = vmul.f32 %v2757, %v2747
    %v2760 = vmul.f32 %v2758, %v2752
    %v2761 = vmul.f32 %v2759, %v2747
    %v2762 = vmul.f32 %v2760, %v2752
    %v2763 = vadd.f32 %v2747, %v2761
    %v2764 = vadd.f32 %v2752, %v2762
    %v2765 = vmul.f32 %v2763, 0.7978846
    %v2766 = vmul.f32 %v2764, 0.7978846
    %v2767 = vtanh.pop %v2765
    %v2768 = vtanh.pop %v2766
    %v2769 = vadd.f32 %v2767, 1.0
    %v2770 = vadd.f32 %v2768, 1.0
    %v2771 = vmul.f32 %v2755, %v2769
    %v2772 = vmul.f32 %v2756, %v2770
    %v2773 = vld [vmem:[#allocation12] sm:$0xff]
    %v2774 = vld [vmem:[#allocation12 + $0x8] sm:$0xff]
    %v2775 = vld [vmem:[#allocation12 + $0x10] sm:$0xff]
    %v2776 = vld [vmem:[#allocation12 + $0x18] sm:$0xff]
    %v2777 = vld [vmem:[#allocation12 + $0x20] sm:$0xff]
    %v2778 = vld [vmem:[#allocation12 + $0x28] sm:$0xff]
    %v2779 = vld [vmem:[#allocation12 + $0x30] sm:$0xff]
    %v2780 = vld [vmem:[#allocation12 + $0x38] sm:$0xff]
    %v2781 = vld [vmem:[#allocation12 + $0x40] sm:$0xff]
    %v2782 = vld [vmem:[#allocation12 + $0x48] sm:$0xff]
    %v2783 = vld [vmem:[#allocation12 + $0x50] sm:$0xff]
    %v2784 = vld [vmem:[#allocation12 + $0x58] sm:$0xff]
    %v2785 = vld [vmem:[#allocation12 + $0x60] sm:$0xff]
    %v2786 = vld [vmem:[#allocation12 + $0x68] sm:$0xff]
    %v2787 = vld [vmem:[#allocation12 + $0x70] sm:$0xff]
    %v2788 = vld [vmem:[#allocation12 + $0x78] sm:$0xff]
    %v2789 = vld [vmem:[#allocation13] sm:$0x1]
    %v2791 = vlaneseq
    %v2792 = vshrl.u32 %v2791, 7
    %v2793 = vsub.s32 0, %v2792
    %v2794 = vrot.slane %v2789, %v2793
    %2796 = vmatprep.subr.mxu0 0.0
    %2797 = vmatpush1.msra.mxu0 %v2788
    %2798 = vmatprep.subr.mxu0 0.0
    %2799 = vmatpush1.msra.mxu0 %v2787
    %2800 = vmatprep.subr.mxu0 0.0
    %2801 = vmatpush1.msra.mxu0 %v2786
    %2802 = vmatprep.subr.mxu0 0.0
    %2803 = vmatpush1.msra.mxu0 %v2785
    %2804 = vmatprep.subr.mxu0 0.0
    %2805 = vmatpush1.msra.mxu0 %v2784
    %2806 = vmatprep.subr.mxu0 0.0
    %2807 = vmatpush1.msra.mxu0 %v2783
    %2808 = vmatprep.subr.mxu0 0.0
    %2809 = vmatpush1.msra.mxu0 %v2782
    %2810 = vmatprep.subr.mxu0 0.0
    %2811 = vmatpush1.msra.mxu0 %v2781
    %2812 = vmatprep.subr.mxu0 0.0
    %2813 = vmatpush1.msra.mxu0 %v2780
    %2814 = vmatprep.subr.mxu0 0.0
    %2815 = vmatpush1.msra.mxu0 %v2779
    %2816 = vmatprep.subr.mxu0 0.0
    %2817 = vmatpush1.msra.mxu0 %v2778
    %2818 = vmatprep.subr.mxu0 0.0
    %2819 = vmatpush1.msra.mxu0 %v2777
    %2820 = vmatprep.subr.mxu0 0.0
    %2821 = vmatpush1.msra.mxu0 %v2776
    %2822 = vmatprep.subr.mxu0 0.0
    %2823 = vmatpush1.msra.mxu0 %v2775
    %2824 = vmatprep.subr.mxu0 0.0
    %2825 = vmatpush1.msra.mxu0 %v2774
    %2826 = vmatprep.subr.mxu0 0.0
    %2827 = vmatpush1.msra.mxu0 %v2773
    %2828 = vmatprep.subr.mxu0 0.0
    %2829 = vmatpush2.msra.mxu0 0.0
    %2830 = vmatprep.subr.mxu0 0.0
    %2831 = vmatpush2.msra.mxu0 0.0
    %2832 = vmatprep.subr.mxu0 0.0
    %2833 = vmatpush2.msra.mxu0 0.0
    %2834 = vmatprep.subr.mxu0 0.0
    %2835 = vmatpush2.msra.mxu0 0.0
    %2836 = vmatprep.subr.mxu0 0.0
    %2837 = vmatpush2.msra.mxu0 0.0
    %2838 = vmatprep.subr.mxu0 0.0
    %2839 = vmatpush2.msra.mxu0 0.0
    %2840 = vmatprep.subr.mxu0 0.0
    %2841 = vmatpush2.msra.mxu0 0.0
    %2842 = vmatprep.subr.mxu0 0.0
    %2843 = vmatpush2.msra.mxu0 0.0
    %2844 = vmatprep.subr.mxu0 0.0
    %2845 = vmatpush2.msra.mxu0 0.0
    %2846 = vmatprep.subr.mxu0 0.0
    %2847 = vmatpush2.msra.mxu0 0.0
    %2848 = vmatprep.subr.mxu0 0.0
    %2849 = vmatpush2.msra.mxu0 0.0
    %2850 = vmatprep.subr.mxu0 0.0
    %2851 = vmatpush2.msra.mxu0 0.0
    %2852 = vmatprep.subr.mxu0 0.0
    %2853 = vmatpush2.msra.mxu0 0.0
    %2854 = vmatprep.subr.mxu0 0.0
    %2855 = vmatpush2.msra.mxu0 0.0
    %2856 = vmatprep.subr.mxu0 0.0
    %2857 = vmatpush2.msra.mxu0 0.0
    %2858 = vmatprep.subr.mxu0 0.0
    %2859 = vmatpush2.msra.mxu0 0.0
    %2860 = vmatprep.mubr.f32.mxu0 0.0
    %2861 = vmatmul.mubr.f32.gmra.mxu0 %v2771
    %v2862 = vpop.f32.mrf.mxu0
    %v2863 = vadd.f32 %v2794, %v2862
    %v2864 = vpop.f32.mrf.mxu0
    %2865 = vmatprep.mubr.f32.mxu0 0.0
    %2866 = vmatmul.mubr.f32.gmra.mxu0 %v2772
    %v2867 = vpop.f32.mrf.mxu0
    %v2868 = vadd.f32 %v2794, %v2867
    %v2869 = vpop.f32.mrf.mxu0
    %2870 = vdwg.mxu0
    %v2871 = vadd.f32 %v2863, %v2655
    %v2872 = vadd.f32 %v2868, %v2656
    %s2873 = scalar_lea.vmem %s8, 1
    %v2874 = vld [vmem:[%s2873] sm:$0x1]
    %s2875 = scalar_lea.vmem %s9, 1
    %v2876 = vld [vmem:[%s2875] sm:$0x1]
    %v2877 = vmul.f32 %v2871, %v218
    %v2878 = vmul.f32 %v2872, %v218
    %2879 = vadd.xlane.f32.xlu0 %v2877
    %v2880 = vpop.xlane.xlu0 %2879
    %2881 = vadd.xlane.f32.xlu0 %v2878
    %v2882 = vpop.xlane.xlu0 %2881
    %v2883 = vmul.f32 %v2880, 0.03125
    %v2884 = vmul.f32 %v2882, 0.03125
    %v2885 = vsub.f32 %v2871, %v2883
    %v2886 = vsub.f32 %v2872, %v2884
    %v2887 = vmul.f32 %v2885, %v218
    %v2888 = vmul.f32 %v2886, %v218
    %v2889 = vmul.f32 %v2887, %v2887
    %v2890 = vmul.f32 %v2888, %v2888
    %2891 = vadd.xlane.f32.xlu0 %v2889
    %v2892 = vpop.xlane.xlu0 %2891
    %2893 = vadd.xlane.f32.xlu0 %v2890
    %v2894 = vpop.xlane.xlu0 %2893
    %v2895 = vmul.f32 %v2892, 0.03125
    %v2896 = vmul.f32 %v2894, 0.03125
    %v2897 = vadd.f32 %v2895, 1e-12
    %v2898 = vadd.f32 %v2896, 1e-12
    %v2899 = vrsqrt.pop %v2897
    %v2900 = vrsqrt.pop %v2898
    %v2901 = vmul.f32 %v2887, %v2899
    %v2902 = vmul.f32 %v2888, %v2900
    %v2904 = vlaneseq
    %v2905 = vshrl.u32 %v2904, 7
    %v2906 = vsub.s32 0, %v2905
    %v2907 = vrot.slane %v2874, %v2906
    %v2909 = vmul.f32 %v2901, %v2907
    %v2910 = vmul.f32 %v2902, %v2907
    %v2912 = vlaneseq
    %v2913 = vshrl.u32 %v2912, 7
    %v2914 = vsub.s32 0, %v2913
    %v2915 = vrot.slane %v2876, %v2914
    %v2917 = vadd.f32 %v2909, %v2915
    %v2918 = vadd.f32 %v2910, %v2915
    %s2919 = scalar_lea.vmem [#allocation7], 512
    %v2920 = vld [vmem:[%s2919] sm:$0xff]
    %v2921 = vld [vmem:[%s2919 + $0x8] sm:$0xff]
    %v2922 = vld [vmem:[%s2919 + $0x10] sm:$0xff]
    %v2923 = vld [vmem:[%s2919 + $0x18] sm:$0xff]
    %v2924 = vld [vmem:[%s2919 + $0x20] sm:$0xff]
    %v2925 = vld [vmem:[%s2919 + $0x28] sm:$0xff]
    %v2926 = vld [vmem:[%s2919 + $0x30] sm:$0xff]
    %v2927 = vld [vmem:[%s2919 + $0x38] sm:$0xff]
    %v2928 = vld [vmem:[%s2919 + $0x40] sm:$0xff]
    %v2929 = vld [vmem:[%s2919 + $0x48] sm:$0xff]
    %v2930 = vld [vmem:[%s2919 + $0x50] sm:$0xff]
    %v2931 = vld [vmem:[%s2919 + $0x58] sm:$0xff]
    %v2932 = vld [vmem:[%s2919 + $0x60] sm:$0xff]
    %v2933 = vld [vmem:[%s2919 + $0x68] sm:$0xff]
    %v2934 = vld [vmem:[%s2919 + $0x70] sm:$0xff]
    %v2935 = vld [vmem:[%s2919 + $0x78] sm:$0xff]
    %s2936 = scalar_lea.vmem [#allocation7], 640
    %v2937 = vld [vmem:[%s2936] sm:$0xff]
    %v2938 = vld [vmem:[%s2936 + $0x8] sm:$0xff]
    %v2939 = vld [vmem:[%s2936 + $0x10] sm:$0xff]
    %v2940 = vld [vmem:[%s2936 + $0x18] sm:$0xff]
    %v2941 = vld [vmem:[%s2936 + $0x20] sm:$0xff]
    %v2942 = vld [vmem:[%s2936 + $0x28] sm:$0xff]
    %v2943 = vld [vmem:[%s2936 + $0x30] sm:$0xff]
    %v2944 = vld [vmem:[%s2936 + $0x38] sm:$0xff]
    %v2945 = vld [vmem:[%s2936 + $0x40] sm:$0xff]
    %v2946 = vld [vmem:[%s2936 + $0x48] sm:$0xff]
    %v2947 = vld [vmem:[%s2936 + $0x50] sm:$0xff]
    %v2948 = vld [vmem:[%s2936 + $0x58] sm:$0xff]
    %v2949 = vld [vmem:[%s2936 + $0x60] sm:$0xff]
    %v2950 = vld [vmem:[%s2936 + $0x68] sm:$0xff]
    %v2951 = vld [vmem:[%s2936 + $0x70] sm:$0xff]
    %v2952 = vld [vmem:[%s2936 + $0x78] sm:$0xff]
    %s2953 = scalar_lea.vmem [#allocation7], 768
    %v2954 = vld [vmem:[%s2953] sm:$0xff]
    %v2955 = vld [vmem:[%s2953 + $0x8] sm:$0xff]
    %v2956 = vld [vmem:[%s2953 + $0x10] sm:$0xff]
    %v2957 = vld [vmem:[%s2953 + $0x18] sm:$0xff]
    %v2958 = vld [vmem:[%s2953 + $0x20] sm:$0xff]
    %v2959 = vld [vmem:[%s2953 + $0x28] sm:$0xff]
    %v2960 = vld [vmem:[%s2953 + $0x30] sm:$0xff]
    %v2961 = vld [vmem:[%s2953 + $0x38] sm:$0xff]
    %v2962 = vld [vmem:[%s2953 + $0x40] sm:$0xff]
    %v2963 = vld [vmem:[%s2953 + $0x48] sm:$0xff]
    %v2964 = vld [vmem:[%s2953 + $0x50] sm:$0xff]
    %v2965 = vld [vmem:[%s2953 + $0x58] sm:$0xff]
    %v2966 = vld [vmem:[%s2953 + $0x60] sm:$0xff]
    %v2967 = vld [vmem:[%s2953 + $0x68] sm:$0xff]
    %v2968 = vld [vmem:[%s2953 + $0x70] sm:$0xff]
    %v2969 = vld [vmem:[%s2953 + $0x78] sm:$0xff]
    %s2970 = scalar_lea.vmem [#allocation7], 896
    %v2971 = vld [vmem:[%s2970] sm:$0xff]
    %v2972 = vld [vmem:[%s2970 + $0x8] sm:$0xff]
    %v2973 = vld [vmem:[%s2970 + $0x10] sm:$0xff]
    %v2974 = vld [vmem:[%s2970 + $0x18] sm:$0xff]
    %s2975 = scalar_lea.vmem %s7, 4
    %v2976 = vld [vmem:[%s2975] sm:$0x1]
    %s2977 = scalar_lea.vmem %s7, 5
    %v2978 = vld [vmem:[%s2977] sm:$0x1]
    %s2979 = scalar_lea.vmem %s7, 6
    %v2980 = vld [vmem:[%s2979] sm:$0x1]
    %s2981 = scalar_lea.vmem %s7, 7
    %v2982 = vld [vmem:[%s2981] sm:$0x1]
    %v2984 = vlaneseq
    %v2985 = vshrl.u32 %v2984, 7
    %v2986 = vsub.s32 0, %v2985
    %v2987 = vrot.slane %v2976, %v2986
    %2989 = vmatprep.subr.mxu0 0.0
    %2990 = vmatpush1.msra.mxu0 %v2935
    %2991 = vmatprep.subr.mxu0 0.0
    %2992 = vmatpush1.msra.mxu0 %v2934
    %2993 = vmatprep.subr.mxu0 0.0
    %2994 = vmatpush1.msra.mxu0 %v2933
    %2995 = vmatprep.subr.mxu0 0.0
    %2996 = vmatpush1.msra.mxu0 %v2932
    %2997 = vmatprep.subr.mxu0 0.0
    %2998 = vmatpush1.msra.mxu0 %v2931
    %2999 = vmatprep.subr.mxu0 0.0
    %3000 = vmatpush1.msra.mxu0 %v2930
    %3001 = vmatprep.subr.mxu0 0.0
    %3002 = vmatpush1.msra.mxu0 %v2929
    %3003 = vmatprep.subr.mxu0 0.0
    %3004 = vmatpush1.msra.mxu0 %v2928
    %3005 = vmatprep.subr.mxu0 0.0
    %3006 = vmatpush1.msra.mxu0 %v2927
    %3007 = vmatprep.subr.mxu0 0.0
    %3008 = vmatpush1.msra.mxu0 %v2926
    %3009 = vmatprep.subr.mxu0 0.0
    %3010 = vmatpush1.msra.mxu0 %v2925
    %3011 = vmatprep.subr.mxu0 0.0
    %3012 = vmatpush1.msra.mxu0 %v2924
    %3013 = vmatprep.subr.mxu0 0.0
    %3014 = vmatpush1.msra.mxu0 %v2923
    %3015 = vmatprep.subr.mxu0 0.0
    %3016 = vmatpush1.msra.mxu0 %v2922
    %3017 = vmatprep.subr.mxu0 0.0
    %3018 = vmatpush1.msra.mxu0 %v2921
    %3019 = vmatprep.subr.mxu0 0.0
    %3020 = vmatpush1.msra.mxu0 %v2920
    %3021 = vmatprep.subr.mxu0 0.0
    %3022 = vmatpush2.msra.mxu0 0.0
    %3023 = vmatprep.subr.mxu0 0.0
    %3024 = vmatpush2.msra.mxu0 0.0
    %3025 = vmatprep.subr.mxu0 0.0
    %3026 = vmatpush2.msra.mxu0 0.0
    %3027 = vmatprep.subr.mxu0 0.0
    %3028 = vmatpush2.msra.mxu0 0.0
    %3029 = vmatprep.subr.mxu0 0.0
    %3030 = vmatpush2.msra.mxu0 0.0
    %3031 = vmatprep.subr.mxu0 0.0
    %3032 = vmatpush2.msra.mxu0 0.0
    %3033 = vmatprep.subr.mxu0 0.0
    %3034 = vmatpush2.msra.mxu0 0.0
    %3035 = vmatprep.subr.mxu0 0.0
    %3036 = vmatpush2.msra.mxu0 0.0
    %3037 = vmatprep.subr.mxu0 0.0
    %3038 = vmatpush2.msra.mxu0 0.0
    %3039 = vmatprep.subr.mxu0 0.0
    %3040 = vmatpush2.msra.mxu0 0.0
    %3041 = vmatprep.subr.mxu0 0.0
    %3042 = vmatpush2.msra.mxu0 0.0
    %3043 = vmatprep.subr.mxu0 0.0
    %3044 = vmatpush2.msra.mxu0 0.0
    %3045 = vmatprep.subr.mxu0 0.0
    %3046 = vmatpush2.msra.mxu0 0.0
    %3047 = vmatprep.subr.mxu0 0.0
    %3048 = vmatpush2.msra.mxu0 0.0
    %3049 = vmatprep.subr.mxu0 0.0
    %3050 = vmatpush2.msra.mxu0 0.0
    %3051 = vmatprep.subr.mxu0 0.0
    %3052 = vmatpush2.msra.mxu0 0.0
    %3053 = vmatprep.mubr.f32.mxu0 0.0
    %3054 = vmatmul.mubr.f32.gmra.mxu0 %v2917
    %v3055 = vpop.f32.mrf.mxu0
    %v3056 = vadd.f32 %v2987, %v3055
    %v3057 = vpop.f32.mrf.mxu0
    %3058 = vmatprep.mubr.f32.mxu0 0.0
    %3059 = vmatmul.mubr.f32.gmra.mxu0 %v2918
    %v3060 = vpop.f32.mrf.mxu0
    %v3061 = vadd.f32 %v2987, %v3060
    %v3062 = vpop.f32.mrf.mxu0
    %3063 = vdwg.mxu0
    %v3065 = vlaneseq
    %v3066 = vshrl.u32 %v3065, 7
    %v3067 = vsub.s32 0, %v3066
    %v3068 = vrot.slane %v2978, %v3067
    %3070 = vmatprep.subr.mxu0 0.0
    %3071 = vmatpush1.msra.mxu0 %v2952
    %3072 = vmatprep.subr.mxu0 0.0
    %3073 = vmatpush1.msra.mxu0 %v2951
    %3074 = vmatprep.subr.mxu0 0.0
    %3075 = vmatpush1.msra.mxu0 %v2950
    %3076 = vmatprep.subr.mxu0 0.0
    %3077 = vmatpush1.msra.mxu0 %v2949
    %3078 = vmatprep.subr.mxu0 0.0
    %3079 = vmatpush1.msra.mxu0 %v2948
    %3080 = vmatprep.subr.mxu0 0.0
    %3081 = vmatpush1.msra.mxu0 %v2947
    %3082 = vmatprep.subr.mxu0 0.0
    %3083 = vmatpush1.msra.mxu0 %v2946
    %3084 = vmatprep.subr.mxu0 0.0
    %3085 = vmatpush1.msra.mxu0 %v2945
    %3086 = vmatprep.subr.mxu0 0.0
    %3087 = vmatpush1.msra.mxu0 %v2944
    %3088 = vmatprep.subr.mxu0 0.0
    %3089 = vmatpush1.msra.mxu0 %v2943
    %3090 = vmatprep.subr.mxu0 0.0
    %3091 = vmatpush1.msra.mxu0 %v2942
    %3092 = vmatprep.subr.mxu0 0.0
    %3093 = vmatpush1.msra.mxu0 %v2941
    %3094 = vmatprep.subr.mxu0 0.0
    %3095 = vmatpush1.msra.mxu0 %v2940
    %3096 = vmatprep.subr.mxu0 0.0
    %3097 = vmatpush1.msra.mxu0 %v2939
    %3098 = vmatprep.subr.mxu0 0.0
    %3099 = vmatpush1.msra.mxu0 %v2938
    %3100 = vmatprep.subr.mxu0 0.0
    %3101 = vmatpush1.msra.mxu0 %v2937
    %3102 = vmatprep.subr.mxu0 0.0
    %3103 = vmatpush2.msra.mxu0 0.0
    %3104 = vmatprep.subr.mxu0 0.0
    %3105 = vmatpush2.msra.mxu0 0.0
    %3106 = vmatprep.subr.mxu0 0.0
    %3107 = vmatpush2.msra.mxu0 0.0
    %3108 = vmatprep.subr.mxu0 0.0
    %3109 = vmatpush2.msra.mxu0 0.0
    %3110 = vmatprep.subr.mxu0 0.0
    %3111 = vmatpush2.msra.mxu0 0.0
    %3112 = vmatprep.subr.mxu0 0.0
    %3113 = vmatpush2.msra.mxu0 0.0
    %3114 = vmatprep.subr.mxu0 0.0
    %3115 = vmatpush2.msra.mxu0 0.0
    %3116 = vmatprep.subr.mxu0 0.0
    %3117 = vmatpush2.msra.mxu0 0.0
    %3118 = vmatprep.subr.mxu0 0.0
    %3119 = vmatpush2.msra.mxu0 0.0
    %3120 = vmatprep.subr.mxu0 0.0
    %3121 = vmatpush2.msra.mxu0 0.0
    %3122 = vmatprep.subr.mxu0 0.0
    %3123 = vmatpush2.msra.mxu0 0.0
    %3124 = vmatprep.subr.mxu0 0.0
    %3125 = vmatpush2.msra.mxu0 0.0
    %3126 = vmatprep.subr.mxu0 0.0
    %3127 = vmatpush2.msra.mxu0 0.0
    %3128 = vmatprep.subr.mxu0 0.0
    %3129 = vmatpush2.msra.mxu0 0.0
    %3130 = vmatprep.subr.mxu0 0.0
    %3131 = vmatpush2.msra.mxu0 0.0
    %3132 = vmatprep.subr.mxu0 0.0
    %3133 = vmatpush2.msra.mxu0 0.0
    %3134 = vmatprep.mubr.f32.mxu0 0.0
    %3135 = vmatmul.mubr.f32.gmra.mxu0 %v2917
    %v3136 = vpop.f32.mrf.mxu0
    %v3137 = vadd.f32 %v3068, %v3136
    %v3138 = vpop.f32.mrf.mxu0
    %3139 = vmatprep.mubr.f32.mxu0 0.0
    %3140 = vmatmul.mubr.f32.gmra.mxu0 %v2918
    %v3141 = vpop.f32.mrf.mxu0
    %v3142 = vadd.f32 %v3068, %v3141
    %v3143 = vpop.f32.mrf.mxu0
    %3144 = vdwg.mxu0
    %v3146 = vlaneseq
    %v3147 = vshrl.u32 %v3146, 7
    %v3148 = vsub.s32 0, %v3147
    %v3149 = vrot.slane %v2980, %v3148
    %3151 = vmatprep.subr.mxu0 0.0
    %3152 = vmatpush1.msra.mxu0 %v2969
    %3153 = vmatprep.subr.mxu0 0.0
    %3154 = vmatpush1.msra.mxu0 %v2968
    %3155 = vmatprep.subr.mxu0 0.0
    %3156 = vmatpush1.msra.mxu0 %v2967
    %3157 = vmatprep.subr.mxu0 0.0
    %3158 = vmatpush1.msra.mxu0 %v2966
    %3159 = vmatprep.subr.mxu0 0.0
    %3160 = vmatpush1.msra.mxu0 %v2965
    %3161 = vmatprep.subr.mxu0 0.0
    %3162 = vmatpush1.msra.mxu0 %v2964
    %3163 = vmatprep.subr.mxu0 0.0
    %3164 = vmatpush1.msra.mxu0 %v2963
    %3165 = vmatprep.subr.mxu0 0.0
    %3166 = vmatpush1.msra.mxu0 %v2962
    %3167 = vmatprep.subr.mxu0 0.0
    %3168 = vmatpush1.msra.mxu0 %v2961
    %3169 = vmatprep.subr.mxu0 0.0
    %3170 = vmatpush1.msra.mxu0 %v2960
    %3171 = vmatprep.subr.mxu0 0.0
    %3172 = vmatpush1.msra.mxu0 %v2959
    %3173 = vmatprep.subr.mxu0 0.0
    %3174 = vmatpush1.msra.mxu0 %v2958
    %3175 = vmatprep.subr.mxu0 0.0
    %3176 = vmatpush1.msra.mxu0 %v2957
    %3177 = vmatprep.subr.mxu0 0.0
    %3178 = vmatpush1.msra.mxu0 %v2956
    %3179 = vmatprep.subr.mxu0 0.0
    %3180 = vmatpush1.msra.mxu0 %v2955
    %3181 = vmatprep.subr.mxu0 0.0
    %3182 = vmatpush1.msra.mxu0 %v2954
    %3183 = vmatprep.subr.mxu0 0.0
    %3184 = vmatpush2.msra.mxu0 0.0
    %3185 = vmatprep.subr.mxu0 0.0
    %3186 = vmatpush2.msra.mxu0 0.0
    %3187 = vmatprep.subr.mxu0 0.0
    %3188 = vmatpush2.msra.mxu0 0.0
    %3189 = vmatprep.subr.mxu0 0.0
    %3190 = vmatpush2.msra.mxu0 0.0
    %3191 = vmatprep.subr.mxu0 0.0
    %3192 = vmatpush2.msra.mxu0 0.0
    %3193 = vmatprep.subr.mxu0 0.0
    %3194 = vmatpush2.msra.mxu0 0.0
    %3195 = vmatprep.subr.mxu0 0.0
    %3196 = vmatpush2.msra.mxu0 0.0
    %3197 = vmatprep.subr.mxu0 0.0
    %3198 = vmatpush2.msra.mxu0 0.0
    %3199 = vmatprep.subr.mxu0 0.0
    %3200 = vmatpush2.msra.mxu0 0.0
    %3201 = vmatprep.subr.mxu0 0.0
    %3202 = vmatpush2.msra.mxu0 0.0
    %3203 = vmatprep.subr.mxu0 0.0
    %3204 = vmatpush2.msra.mxu0 0.0
    %3205 = vmatprep.subr.mxu0 0.0
    %3206 = vmatpush2.msra.mxu0 0.0
    %3207 = vmatprep.subr.mxu0 0.0
    %3208 = vmatpush2.msra.mxu0 0.0
    %3209 = vmatprep.subr.mxu0 0.0
    %3210 = vmatpush2.msra.mxu0 0.0
    %3211 = vmatprep.subr.mxu0 0.0
    %3212 = vmatpush2.msra.mxu0 0.0
    %3213 = vmatprep.subr.mxu0 0.0
    %3214 = vmatpush2.msra.mxu0 0.0
    %3215 = vmatprep.mubr.f32.mxu0 0.0
    %3216 = vmatmul.mubr.f32.gmra.mxu0 %v2917
    %v3217 = vpop.f32.mrf.mxu0
    %v3218 = vadd.f32 %v3149, %v3217
    %v3219 = vpop.f32.mrf.mxu0
    %3220 = vmatprep.mubr.f32.mxu0 0.0
    %3221 = vmatmul.mubr.f32.gmra.mxu0 %v2918
    %v3222 = vpop.f32.mrf.mxu0
    %v3223 = vadd.f32 %v3149, %v3222
    %v3224 = vpop.f32.mrf.mxu0
    %3225 = vdwg.mxu0
    %v3227 = vsel %vm678, %v3056, 0
    %v3230 = vsel %vm678, %v3137, 0
    %3232 = vmatprep.subr.mxu0 0.0
    %3233 = vmatpush1.xpose.msra.mxu0 0.0
    %3234 = vmatprep.subr.mxu0 0.0
    %3235 = vmatpush1.xpose.msra.mxu0 0.0
    %3236 = vmatprep.subr.mxu0 0.0
    %3237 = vmatpush1.xpose.msra.mxu0 0.0
    %3238 = vmatprep.subr.mxu0 0.0
    %3239 = vmatpush1.xpose.msra.mxu0 0.0
    %3240 = vmatprep.subr.mxu0 0.0
    %3241 = vmatpush1.xpose.msra.mxu0 0.0
    %3242 = vmatprep.subr.mxu0 0.0
    %3243 = vmatpush1.xpose.msra.mxu0 0.0
    %3244 = vmatprep.subr.mxu0 0.0
    %3245 = vmatpush1.xpose.msra.mxu0 0.0
    %3246 = vmatprep.subr.mxu0 0.0
    %3247 = vmatpush1.xpose.msra.mxu0 0.0
    %3248 = vmatprep.subr.mxu0 0.0
    %3249 = vmatpush1.xpose.msra.mxu0 0.0
    %3250 = vmatprep.subr.mxu0 0.0
    %3251 = vmatpush1.xpose.msra.mxu0 0.0
    %3252 = vmatprep.subr.mxu0 0.0
    %3253 = vmatpush1.xpose.msra.mxu0 0.0
    %3254 = vmatprep.subr.mxu0 0.0
    %3255 = vmatpush1.xpose.msra.mxu0 0.0
    %3256 = vmatprep.subr.mxu0 0.0
    %3257 = vmatpush1.xpose.msra.mxu0 0.0
    %3258 = vmatprep.subr.mxu0 0.0
    %3259 = vmatpush1.xpose.msra.mxu0 0.0
    %3260 = vmatprep.subr.mxu0 0.0
    %3261 = vmatpush1.xpose.msra.mxu0 0.0
    %3262 = vmatprep.subr.mxu0 0.0
    %3263 = vmatpush1.xpose.msra.mxu0 %v3230
    %3264 = vmatprep.subr.mxu0 0.0
    %3265 = vmatpush2.xpose.msra.mxu0 0.0
    %3266 = vmatprep.subr.mxu0 0.0
    %3267 = vmatpush2.xpose.msra.mxu0 0.0
    %3268 = vmatprep.subr.mxu0 0.0
    %3269 = vmatpush2.xpose.msra.mxu0 0.0
    %3270 = vmatprep.subr.mxu0 0.0
    %3271 = vmatpush2.xpose.msra.mxu0 0.0
    %3272 = vmatprep.subr.mxu0 0.0
    %3273 = vmatpush2.xpose.msra.mxu0 0.0
    %3274 = vmatprep.subr.mxu0 0.0
    %3275 = vmatpush2.xpose.msra.mxu0 0.0
    %3276 = vmatprep.subr.mxu0 0.0
    %3277 = vmatpush2.xpose.msra.mxu0 0.0
    %3278 = vmatprep.subr.mxu0 0.0
    %3279 = vmatpush2.xpose.msra.mxu0 0.0
    %3280 = vmatprep.subr.mxu0 0.0
    %3281 = vmatpush2.xpose.msra.mxu0 0.0
    %3282 = vmatprep.subr.mxu0 0.0
    %3283 = vmatpush2.xpose.msra.mxu0 0.0
    %3284 = vmatprep.subr.mxu0 0.0
    %3285 = vmatpush2.xpose.msra.mxu0 0.0
    %3286 = vmatprep.subr.mxu0 0.0
    %3287 = vmatpush2.xpose.msra.mxu0 0.0
    %3288 = vmatprep.subr.mxu0 0.0
    %3289 = vmatpush2.xpose.msra.mxu0 0.0
    %3290 = vmatprep.subr.mxu0 0.0
    %3291 = vmatpush2.xpose.msra.mxu0 0.0
    %3292 = vmatprep.subr.mxu0 0.0
    %3293 = vmatpush2.xpose.msra.mxu0 0.0
    %3294 = vmatprep.subr.mxu0 0.0
    %3295 = vmatpush2.xpose.msra.mxu0 0.0
    %3296 = vmatprep.mubr.f32.mxu0 0.0
    %3297 = vmatmul.mubr.f32.gmra.mxu0 %v3227
    %v3298 = vpop.f32.mrf.mxu0
    %v3299 = vadd.f32 0.0, %v3298
    %v3300 = vpop.f32.mrf.mxu0
    %3301 = vdwg.mxu0
    %v3302 = vmul.f32 %v3299, 0.35355338
    %v3303 = vadd.f32 %v3302, %v759
    %v3304 = vsel %vm678, %v3303, -inf
    %3305 = vmax.xlane.f32.xlu0 %v3304
    %v3306 = vpop.xlane.xlu0 %3305
    %v3307 = vsub.f32 %v3303, %v3306
    %v3308 = vmul.f32 %v3307, 1.442695
    %v3309 = vpow.pop %v3308
    %v3310 = vsel %vm678, %v3309, 0.0
    %3311 = vadd.xlane.f32.xlu0 %v3310
    %v3312 = vpop.xlane.xlu0 %3311
    %v3313 = vrcp.pop %v3312
    %v3314 = vmul.f32 %v3309, %v3313
    %v3316 = vsel %vm678, %v3314, 0
    %3318 = vmatprep.subr.mxu0 0.0
    %3319 = vmatpush1.msra.mxu0 0.0
    %3320 = vmatprep.subr.mxu0 0.0
    %3321 = vmatpush1.msra.mxu0 0.0
    %3322 = vmatprep.subr.mxu0 0.0
    %3323 = vmatpush1.msra.mxu0 0.0
    %3324 = vmatprep.subr.mxu0 0.0
    %3325 = vmatpush1.msra.mxu0 0.0
    %3326 = vmatprep.subr.mxu0 0.0
    %3327 = vmatpush1.msra.mxu0 0.0
    %3328 = vmatprep.subr.mxu0 0.0
    %3329 = vmatpush1.msra.mxu0 0.0
    %3330 = vmatprep.subr.mxu0 0.0
    %3331 = vmatpush1.msra.mxu0 0.0
    %3332 = vmatprep.subr.mxu0 0.0
    %3333 = vmatpush1.msra.mxu0 0.0
    %3334 = vmatprep.subr.mxu0 0.0
    %3335 = vmatpush1.msra.mxu0 0.0
    %3336 = vmatprep.subr.mxu0 0.0
    %3337 = vmatpush1.msra.mxu0 0.0
    %3338 = vmatprep.subr.mxu0 0.0
    %3339 = vmatpush1.msra.mxu0 0.0
    %3340 = vmatprep.subr.mxu0 0.0
    %3341 = vmatpush1.msra.mxu0 0.0
    %3342 = vmatprep.subr.mxu0 0.0
    %3343 = vmatpush1.msra.mxu0 0.0
    %3344 = vmatprep.subr.mxu0 0.0
    %3345 = vmatpush1.msra.mxu0 0.0
    %3346 = vmatprep.subr.mxu0 0.0
    %3347 = vmatpush1.msra.mxu0 0.0
    %3348 = vmatprep.subr.mxu0 0.0
    %3349 = vmatpush1.msra.mxu0 %v3218
    %3350 = vmatprep.subr.mxu0 0.0
    %3351 = vmatpush2.msra.mxu0 0.0
    %3352 = vmatprep.subr.mxu0 0.0
    %3353 = vmatpush2.msra.mxu0 0.0
    %3354 = vmatprep.subr.mxu0 0.0
    %3355 = vmatpush2.msra.mxu0 0.0
    %3356 = vmatprep.subr.mxu0 0.0
    %3357 = vmatpush2.msra.mxu0 0.0
    %3358 = vmatprep.subr.mxu0 0.0
    %3359 = vmatpush2.msra.mxu0 0.0
    %3360 = vmatprep.subr.mxu0 0.0
    %3361 = vmatpush2.msra.mxu0 0.0
    %3362 = vmatprep.subr.mxu0 0.0
    %3363 = vmatpush2.msra.mxu0 0.0
    %3364 = vmatprep.subr.mxu0 0.0
    %3365 = vmatpush2.msra.mxu0 0.0
    %3366 = vmatprep.subr.mxu0 0.0
    %3367 = vmatpush2.msra.mxu0 0.0
    %3368 = vmatprep.subr.mxu0 0.0
    %3369 = vmatpush2.msra.mxu0 0.0
    %3370 = vmatprep.subr.mxu0 0.0
    %3371 = vmatpush2.msra.mxu0 0.0
    %3372 = vmatprep.subr.mxu0 0.0
    %3373 = vmatpush2.msra.mxu0 0.0
    %3374 = vmatprep.subr.mxu0 0.0
    %3375 = vmatpush2.msra.mxu0 0.0
    %3376 = vmatprep.subr.mxu0 0.0
    %3377 = vmatpush2.msra.mxu0 0.0
    %3378 = vmatprep.subr.mxu0 0.0
    %3379 = vmatpush2.msra.mxu0 0.0
    %3380 = vmatprep.subr.mxu0 0.0
    %3381 = vmatpush2.msra.mxu0 0.0
    %3382 = vmatprep.mubr.f32.mxu0 0.0
    %3383 = vmatmul.mubr.f32.gmra.mxu0 %v3316
    %v3384 = vpop.f32.mrf.mxu0
    %v3385 = vadd.f32 0.0, %v3384
    %v3386 = vpop.f32.mrf.mxu0
    %3387 = vdwg.mxu0
    %3388 = vrot.lane.b32.xlu0 %v3056, 120
    %v3389 = vpop.permute.xlu0 %3388
    %3390 = vrot.lane.b32.xlu0 %v3137, 120
    %v3391 = vpop.permute.xlu0 %3390
    %v3392 = vsel %vm678, %v3389, 0
    %v3394 = vsel %vm678, %v3391, 0
    %3396 = vmatprep.subr.mxu0 0.0
    %3397 = vmatpush1.xpose.msra.mxu0 0.0
    %3398 = vmatprep.subr.mxu0 0.0
    %3399 = vmatpush1.xpose.msra.mxu0 0.0
    %3400 = vmatprep.subr.mxu0 0.0
    %3401 = vmatpush1.xpose.msra.mxu0 0.0
    %3402 = vmatprep.subr.mxu0 0.0
    %3403 = vmatpush1.xpose.msra.mxu0 0.0
    %3404 = vmatprep.subr.mxu0 0.0
    %3405 = vmatpush1.xpose.msra.mxu0 0.0
    %3406 = vmatprep.subr.mxu0 0.0
    %3407 = vmatpush1.xpose.msra.mxu0 0.0
    %3408 = vmatprep.subr.mxu0 0.0
    %3409 = vmatpush1.xpose.msra.mxu0 0.0
    %3410 = vmatprep.subr.mxu0 0.0
    %3411 = vmatpush1.xpose.msra.mxu0 0.0
    %3412 = vmatprep.subr.mxu0 0.0
    %3413 = vmatpush1.xpose.msra.mxu0 0.0
    %3414 = vmatprep.subr.mxu0 0.0
    %3415 = vmatpush1.xpose.msra.mxu0 0.0
    %3416 = vmatprep.subr.mxu0 0.0
    %3417 = vmatpush1.xpose.msra.mxu0 0.0
    %3418 = vmatprep.subr.mxu0 0.0
    %3419 = vmatpush1.xpose.msra.mxu0 0.0
    %3420 = vmatprep.subr.mxu0 0.0
    %3421 = vmatpush1.xpose.msra.mxu0 0.0
    %3422 = vmatprep.subr.mxu0 0.0
    %3423 = vmatpush1.xpose.msra.mxu0 0.0
    %3424 = vmatprep.subr.mxu0 0.0
    %3425 = vmatpush1.xpose.msra.mxu0 0.0
    %3426 = vmatprep.subr.mxu0 0.0
    %3427 = vmatpush1.xpose.msra.mxu0 %v3394
    %3428 = vmatprep.subr.mxu0 0.0
    %3429 = vmatpush2.xpose.msra.mxu0 0.0
    %3430 = vmatprep.subr.mxu0 0.0
    %3431 = vmatpush2.xpose.msra.mxu0 0.0
    %3432 = vmatprep.subr.mxu0 0.0
    %3433 = vmatpush2.xpose.msra.mxu0 0.0
    %3434 = vmatprep.subr.mxu0 0.0
    %3435 = vmatpush2.xpose.msra.mxu0 0.0
    %3436 = vmatprep.subr.mxu0 0.0
    %3437 = vmatpush2.xpose.msra.mxu0 0.0
    %3438 = vmatprep.subr.mxu0 0.0
    %3439 = vmatpush2.xpose.msra.mxu0 0.0
    %3440 = vmatprep.subr.mxu0 0.0
    %3441 = vmatpush2.xpose.msra.mxu0 0.0
    %3442 = vmatprep.subr.mxu0 0.0
    %3443 = vmatpush2.xpose.msra.mxu0 0.0
    %3444 = vmatprep.subr.mxu0 0.0
    %3445 = vmatpush2.xpose.msra.mxu0 0.0
    %3446 = vmatprep.subr.mxu0 0.0
    %3447 = vmatpush2.xpose.msra.mxu0 0.0
    %3448 = vmatprep.subr.mxu0 0.0
    %3449 = vmatpush2.xpose.msra.mxu0 0.0
    %3450 = vmatprep.subr.mxu0 0.0
    %3451 = vmatpush2.xpose.msra.mxu0 0.0
    %3452 = vmatprep.subr.mxu0 0.0
    %3453 = vmatpush2.xpose.msra.mxu0 0.0
    %3454 = vmatprep.subr.mxu0 0.0
    %3455 = vmatpush2.xpose.msra.mxu0 0.0
    %3456 = vmatprep.subr.mxu0 0.0
    %3457 = vmatpush2.xpose.msra.mxu0 0.0
    %3458 = vmatprep.subr.mxu0 0.0
    %3459 = vmatpush2.xpose.msra.mxu0 0.0
    %3460 = vmatprep.mubr.f32.mxu0 0.0
    %3461 = vmatmul.mubr.f32.gmra.mxu0 %v3392
    %v3462 = vpop.f32.mrf.mxu0
    %v3463 = vadd.f32 0.0, %v3462
    %v3464 = vpop.f32.mrf.mxu0
    %3465 = vdwg.mxu0
    %v3466 = vmul.f32 %v3463, 0.35355338
    %v3467 = vadd.f32 %v3466, %v759
    %v3468 = vsel %vm678, %v3467, -inf
    %3469 = vmax.xlane.f32.xlu0 %v3468
    %v3470 = vpop.xlane.xlu0 %3469
    %v3471 = vsub.f32 %v3467, %v3470
    %v3472 = vmul.f32 %v3471, 1.442695
    %v3473 = vpow.pop %v3472
    %v3474 = vsel %vm678, %v3473, 0.0
    %3475 = vadd.xlane.f32.xlu0 %v3474
    %v3476 = vpop.xlane.xlu0 %3475
    %v3477 = vrcp.pop %v3476
    %v3478 = vmul.f32 %v3473, %v3477
    %3480 = vrot.lane.b32.xlu0 %v3218, 120
    %v3481 = vpop.permute.xlu0 %3480
    %v3484 = vsel %vm678, %v3478, 0
    %3486 = vmatprep.subr.mxu0 0.0
    %3487 = vmatpush1.msra.mxu0 0.0
    %3488 = vmatprep.subr.mxu0 0.0
    %3489 = vmatpush1.msra.mxu0 0.0
    %3490 = vmatprep.subr.mxu0 0.0
    %3491 = vmatpush1.msra.mxu0 0.0
    %3492 = vmatprep.subr.mxu0 0.0
    %3493 = vmatpush1.msra.mxu0 0.0
    %3494 = vmatprep.subr.mxu0 0.0
    %3495 = vmatpush1.msra.mxu0 0.0
    %3496 = vmatprep.subr.mxu0 0.0
    %3497 = vmatpush1.msra.mxu0 0.0
    %3498 = vmatprep.subr.mxu0 0.0
    %3499 = vmatpush1.msra.mxu0 0.0
    %3500 = vmatprep.subr.mxu0 0.0
    %3501 = vmatpush1.msra.mxu0 0.0
    %3502 = vmatprep.subr.mxu0 0.0
    %3503 = vmatpush1.msra.mxu0 0.0
    %3504 = vmatprep.subr.mxu0 0.0
    %3505 = vmatpush1.msra.mxu0 0.0
    %3506 = vmatprep.subr.mxu0 0.0
    %3507 = vmatpush1.msra.mxu0 0.0
    %3508 = vmatprep.subr.mxu0 0.0
    %3509 = vmatpush1.msra.mxu0 0.0
    %3510 = vmatprep.subr.mxu0 0.0
    %3511 = vmatpush1.msra.mxu0 0.0
    %3512 = vmatprep.subr.mxu0 0.0
    %3513 = vmatpush1.msra.mxu0 0.0
    %3514 = vmatprep.subr.mxu0 0.0
    %3515 = vmatpush1.msra.mxu0 0.0
    %3516 = vmatprep.subr.mxu0 0.0
    %3517 = vmatpush1.msra.mxu0 %v3481
    %3518 = vmatprep.subr.mxu0 0.0
    %3519 = vmatpush2.msra.mxu0 0.0
    %3520 = vmatprep.subr.mxu0 0.0
    %3521 = vmatpush2.msra.mxu0 0.0
    %3522 = vmatprep.subr.mxu0 0.0
    %3523 = vmatpush2.msra.mxu0 0.0
    %3524 = vmatprep.subr.mxu0 0.0
    %3525 = vmatpush2.msra.mxu0 0.0
    %3526 = vmatprep.subr.mxu0 0.0
    %3527 = vmatpush2.msra.mxu0 0.0
    %3528 = vmatprep.subr.mxu0 0.0
    %3529 = vmatpush2.msra.mxu0 0.0
    %3530 = vmatprep.subr.mxu0 0.0
    %3531 = vmatpush2.msra.mxu0 0.0
    %3532 = vmatprep.subr.mxu0 0.0
    %3533 = vmatpush2.msra.mxu0 0.0
    %3534 = vmatprep.subr.mxu0 0.0
    %3535 = vmatpush2.msra.mxu0 0.0
    %3536 = vmatprep.subr.mxu0 0.0
    %3537 = vmatpush2.msra.mxu0 0.0
    %3538 = vmatprep.subr.mxu0 0.0
    %3539 = vmatpush2.msra.mxu0 0.0
    %3540 = vmatprep.subr.mxu0 0.0
    %3541 = vmatpush2.msra.mxu0 0.0
    %3542 = vmatprep.subr.mxu0 0.0
    %3543 = vmatpush2.msra.mxu0 0.0
    %3544 = vmatprep.subr.mxu0 0.0
    %3545 = vmatpush2.msra.mxu0 0.0
    %3546 = vmatprep.subr.mxu0 0.0
    %3547 = vmatpush2.msra.mxu0 0.0
    %3548 = vmatprep.subr.mxu0 0.0
    %3549 = vmatpush2.msra.mxu0 0.0
    %3550 = vmatprep.mubr.f32.mxu0 0.0
    %3551 = vmatmul.mubr.f32.gmra.mxu0 %v3484
    %v3552 = vpop.f32.mrf.mxu0
    %v3553 = vadd.f32 0.0, %v3552
    %v3554 = vpop.f32.mrf.mxu0
    %3555 = vdwg.mxu0
    %v3557 = vsel %vm678, %v3553, 0
    %3559 = vmatprep.subr.mxu0 0.0
    %3560 = vmatpush1.msra.mxu0 0.0
    %3561 = vmatprep.subr.mxu0 0.0
    %3562 = vmatpush1.msra.mxu0 0.0
    %3563 = vmatprep.subr.mxu0 0.0
    %3564 = vmatpush1.msra.mxu0 0.0
    %3565 = vmatprep.subr.mxu0 0.0
    %3566 = vmatpush1.msra.mxu0 0.0
    %3567 = vmatprep.subr.mxu0 0.0
    %3568 = vmatpush1.msra.mxu0 0.0
    %3569 = vmatprep.subr.mxu0 0.0
    %3570 = vmatpush1.msra.mxu0 0.0
    %3571 = vmatprep.subr.mxu0 0.0
    %3572 = vmatpush1.msra.mxu0 0.0
    %3573 = vmatprep.subr.mxu0 0.0
    %3574 = vmatpush1.msra.mxu0 0.0
    %3575 = vmatprep.subr.mxu0 0.0
    %3576 = vmatpush1.msra.mxu0 0.0
    %3577 = vmatprep.subr.mxu0 0.0
    %3578 = vmatpush1.msra.mxu0 0.0
    %3579 = vmatprep.subr.mxu0 0.0
    %3580 = vmatpush1.msra.mxu0 0.0
    %3581 = vmatprep.subr.mxu0 0.0
    %3582 = vmatpush1.msra.mxu0 0.0
    %3583 = vmatprep.subr.mxu0 0.0
    %3584 = vmatpush1.msra.mxu0 0.0
    %3585 = vmatprep.subr.mxu0 0.0
    %3586 = vmatpush1.msra.mxu0 0.0
    %3587 = vmatprep.subr.mxu0 0.0
    %3588 = vmatpush1.msra.mxu0 0.0
    %3589 = vmatprep.subr.mxu0 0.0
    %3590 = vmatpush1.msra.mxu0 %v2972
    %3591 = vmatprep.subr.mxu0 0.0
    %3592 = vmatpush2.msra.mxu0 0.0
    %3593 = vmatprep.subr.mxu0 0.0
    %3594 = vmatpush2.msra.mxu0 0.0
    %3595 = vmatprep.subr.mxu0 0.0
    %3596 = vmatpush2.msra.mxu0 0.0
    %3597 = vmatprep.subr.mxu0 0.0
    %3598 = vmatpush2.msra.mxu0 0.0
    %3599 = vmatprep.subr.mxu0 0.0
    %3600 = vmatpush2.msra.mxu0 0.0
    %3601 = vmatprep.subr.mxu0 0.0
    %3602 = vmatpush2.msra.mxu0 0.0
    %3603 = vmatprep.subr.mxu0 0.0
    %3604 = vmatpush2.msra.mxu0 0.0
    %3605 = vmatprep.subr.mxu0 0.0
    %3606 = vmatpush2.msra.mxu0 0.0
    %3607 = vmatprep.subr.mxu0 0.0
    %3608 = vmatpush2.msra.mxu0 0.0
    %3609 = vmatprep.subr.mxu0 0.0
    %3610 = vmatpush2.msra.mxu0 0.0
    %3611 = vmatprep.subr.mxu0 0.0
    %3612 = vmatpush2.msra.mxu0 0.0
    %3613 = vmatprep.subr.mxu0 0.0
    %3614 = vmatpush2.msra.mxu0 0.0
    %3615 = vmatprep.subr.mxu0 0.0
    %3616 = vmatpush2.msra.mxu0 0.0
    %3617 = vmatprep.subr.mxu0 0.0
    %3618 = vmatpush2.msra.mxu0 0.0
    %3619 = vmatprep.subr.mxu0 0.0
    %3620 = vmatpush2.msra.mxu0 0.0
    %3621 = vmatprep.subr.mxu0 0.0
    %3622 = vmatpush2.msra.mxu0 0.0
    %3623 = vmatprep.mubr.f32.mxu0 0.0
    %3624 = vmatmul.mubr.f32.gmra.mxu0 %v3557
    %v3625 = vpop.f32.mrf.mxu0
    %v3626 = vadd.f32 0.0, %v3625
    %v3627 = vpop.f32.mrf.mxu0
    %3628 = vdwg.mxu0
    %v3630 = vsel %vm678, %v3385, 0
    %3632 = vmatprep.subr.mxu0 0.0
    %3633 = vmatpush1.msra.mxu0 0.0
    %3634 = vmatprep.subr.mxu0 0.0
    %3635 = vmatpush1.msra.mxu0 0.0
    %3636 = vmatprep.subr.mxu0 0.0
    %3637 = vmatpush1.msra.mxu0 0.0
    %3638 = vmatprep.subr.mxu0 0.0
    %3639 = vmatpush1.msra.mxu0 0.0
    %3640 = vmatprep.subr.mxu0 0.0
    %3641 = vmatpush1.msra.mxu0 0.0
    %3642 = vmatprep.subr.mxu0 0.0
    %3643 = vmatpush1.msra.mxu0 0.0
    %3644 = vmatprep.subr.mxu0 0.0
    %3645 = vmatpush1.msra.mxu0 0.0
    %3646 = vmatprep.subr.mxu0 0.0
    %3647 = vmatpush1.msra.mxu0 0.0
    %3648 = vmatprep.subr.mxu0 0.0
    %3649 = vmatpush1.msra.mxu0 0.0
    %3650 = vmatprep.subr.mxu0 0.0
    %3651 = vmatpush1.msra.mxu0 0.0
    %3652 = vmatprep.subr.mxu0 0.0
    %3653 = vmatpush1.msra.mxu0 0.0
    %3654 = vmatprep.subr.mxu0 0.0
    %3655 = vmatpush1.msra.mxu0 0.0
    %3656 = vmatprep.subr.mxu0 0.0
    %3657 = vmatpush1.msra.mxu0 0.0
    %3658 = vmatprep.subr.mxu0 0.0
    %3659 = vmatpush1.msra.mxu0 0.0
    %3660 = vmatprep.subr.mxu0 0.0
    %3661 = vmatpush1.msra.mxu0 0.0
    %3662 = vmatprep.subr.mxu0 0.0
    %3663 = vmatpush1.msra.mxu0 %v2971
    %3664 = vmatprep.subr.mxu0 0.0
    %3665 = vmatpush2.msra.mxu0 0.0
    %3666 = vmatprep.subr.mxu0 0.0
    %3667 = vmatpush2.msra.mxu0 0.0
    %3668 = vmatprep.subr.mxu0 0.0
    %3669 = vmatpush2.msra.mxu0 0.0
    %3670 = vmatprep.subr.mxu0 0.0
    %3671 = vmatpush2.msra.mxu0 0.0
    %3672 = vmatprep.subr.mxu0 0.0
    %3673 = vmatpush2.msra.mxu0 0.0
    %3674 = vmatprep.subr.mxu0 0.0
    %3675 = vmatpush2.msra.mxu0 0.0
    %3676 = vmatprep.subr.mxu0 0.0
    %3677 = vmatpush2.msra.mxu0 0.0
    %3678 = vmatprep.subr.mxu0 0.0
    %3679 = vmatpush2.msra.mxu0 0.0
    %3680 = vmatprep.subr.mxu0 0.0
    %3681 = vmatpush2.msra.mxu0 0.0
    %3682 = vmatprep.subr.mxu0 0.0
    %3683 = vmatpush2.msra.mxu0 0.0
    %3684 = vmatprep.subr.mxu0 0.0
    %3685 = vmatpush2.msra.mxu0 0.0
    %3686 = vmatprep.subr.mxu0 0.0
    %3687 = vmatpush2.msra.mxu0 0.0
    %3688 = vmatprep.subr.mxu0 0.0
    %3689 = vmatpush2.msra.mxu0 0.0
    %3690 = vmatprep.subr.mxu0 0.0
    %3691 = vmatpush2.msra.mxu0 0.0
    %3692 = vmatprep.subr.mxu0 0.0
    %3693 = vmatpush2.msra.mxu0 0.0
    %3694 = vmatprep.subr.mxu0 0.0
    %3695 = vmatpush2.msra.mxu0 0.0
    %3696 = vmatprep.mubr.f32.mxu0 0.0
    %3697 = vmatmul.mubr.f32.gmra.mxu0 %v3630
    %v3698 = vpop.f32.mrf.mxu0
    %v3699 = vadd.f32 %v3626, %v3698
    %v3700 = vpop.f32.mrf.mxu0
    %3701 = vdwg.mxu0
    %3702 = vrot.lane.b32.xlu0 %v3056, 112
    %v3703 = vpop.permute.xlu0 %3702
    %3704 = vrot.lane.b32.xlu0 %v3137, 112
    %v3705 = vpop.permute.xlu0 %3704
    %v3706 = vsel %vm678, %v3703, 0
    %v3708 = vsel %vm678, %v3705, 0
    %3710 = vmatprep.subr.mxu0 0.0
    %3711 = vmatpush1.xpose.msra.mxu0 0.0
    %3712 = vmatprep.subr.mxu0 0.0
    %3713 = vmatpush1.xpose.msra.mxu0 0.0
    %3714 = vmatprep.subr.mxu0 0.0
    %3715 = vmatpush1.xpose.msra.mxu0 0.0
    %3716 = vmatprep.subr.mxu0 0.0
    %3717 = vmatpush1.xpose.msra.mxu0 0.0
    %3718 = vmatprep.subr.mxu0 0.0
    %3719 = vmatpush1.xpose.msra.mxu0 0.0
    %3720 = vmatprep.subr.mxu0 0.0
    %3721 = vmatpush1.xpose.msra.mxu0 0.0
    %3722 = vmatprep.subr.mxu0 0.0
    %3723 = vmatpush1.xpose.msra.mxu0 0.0
    %3724 = vmatprep.subr.mxu0 0.0
    %3725 = vmatpush1.xpose.msra.mxu0 0.0
    %3726 = vmatprep.subr.mxu0 0.0
    %3727 = vmatpush1.xpose.msra.mxu0 0.0
    %3728 = vmatprep.subr.mxu0 0.0
    %3729 = vmatpush1.xpose.msra.mxu0 0.0
    %3730 = vmatprep.subr.mxu0 0.0
    %3731 = vmatpush1.xpose.msra.mxu0 0.0
    %3732 = vmatprep.subr.mxu0 0.0
    %3733 = vmatpush1.xpose.msra.mxu0 0.0
    %3734 = vmatprep.subr.mxu0 0.0
    %3735 = vmatpush1.xpose.msra.mxu0 0.0
    %3736 = vmatprep.subr.mxu0 0.0
    %3737 = vmatpush1.xpose.msra.mxu0 0.0
    %3738 = vmatprep.subr.mxu0 0.0
    %3739 = vmatpush1.xpose.msra.mxu0 0.0
    %3740 = vmatprep.subr.mxu0 0.0
    %3741 = vmatpush1.xpose.msra.mxu0 %v3708
    %3742 = vmatprep.subr.mxu0 0.0
    %3743 = vmatpush2.xpose.msra.mxu0 0.0
    %3744 = vmatprep.subr.mxu0 0.0
    %3745 = vmatpush2.xpose.msra.mxu0 0.0
    %3746 = vmatprep.subr.mxu0 0.0
    %3747 = vmatpush2.xpose.msra.mxu0 0.0
    %3748 = vmatprep.subr.mxu0 0.0
    %3749 = vmatpush2.xpose.msra.mxu0 0.0
    %3750 = vmatprep.subr.mxu0 0.0
    %3751 = vmatpush2.xpose.msra.mxu0 0.0
    %3752 = vmatprep.subr.mxu0 0.0
    %3753 = vmatpush2.xpose.msra.mxu0 0.0
    %3754 = vmatprep.subr.mxu0 0.0
    %3755 = vmatpush2.xpose.msra.mxu0 0.0
    %3756 = vmatprep.subr.mxu0 0.0
    %3757 = vmatpush2.xpose.msra.mxu0 0.0
    %3758 = vmatprep.subr.mxu0 0.0
    %3759 = vmatpush2.xpose.msra.mxu0 0.0
    %3760 = vmatprep.subr.mxu0 0.0
    %3761 = vmatpush2.xpose.msra.mxu0 0.0
    %3762 = vmatprep.subr.mxu0 0.0
    %3763 = vmatpush2.xpose.msra.mxu0 0.0
    %3764 = vmatprep.subr.mxu0 0.0
    %3765 = vmatpush2.xpose.msra.mxu0 0.0
    %3766 = vmatprep.subr.mxu0 0.0
    %3767 = vmatpush2.xpose.msra.mxu0 0.0
    %3768 = vmatprep.subr.mxu0 0.0
    %3769 = vmatpush2.xpose.msra.mxu0 0.0
    %3770 = vmatprep.subr.mxu0 0.0
    %3771 = vmatpush2.xpose.msra.mxu0 0.0
    %3772 = vmatprep.subr.mxu0 0.0
    %3773 = vmatpush2.xpose.msra.mxu0 0.0
    %3774 = vmatprep.mubr.f32.mxu0 0.0
    %3775 = vmatmul.mubr.f32.gmra.mxu0 %v3706
    %v3776 = vpop.f32.mrf.mxu0
    %v3777 = vadd.f32 0.0, %v3776
    %v3778 = vpop.f32.mrf.mxu0
    %3779 = vdwg.mxu0
    %v3780 = vmul.f32 %v3777, 0.35355338
    %v3781 = vadd.f32 %v3780, %v759
    %v3782 = vsel %vm678, %v3781, -inf
    %3783 = vmax.xlane.f32.xlu0 %v3782
    %v3784 = vpop.xlane.xlu0 %3783
    %v3785 = vsub.f32 %v3781, %v3784
    %v3786 = vmul.f32 %v3785, 1.442695
    %v3787 = vpow.pop %v3786
    %v3788 = vsel %vm678, %v3787, 0.0
    %3789 = vadd.xlane.f32.xlu0 %v3788
    %v3790 = vpop.xlane.xlu0 %3789
    %v3791 = vrcp.pop %v3790
    %v3792 = vmul.f32 %v3787, %v3791
    %3793 = vrot.lane.b32.xlu0 %v3218, 112
    %v3794 = vpop.permute.xlu0 %3793
    %v3797 = vsel %vm678, %v3792, 0
    %3799 = vmatprep.subr.mxu0 0.0
    %3800 = vmatpush1.msra.mxu0 0.0
    %3801 = vmatprep.subr.mxu0 0.0
    %3802 = vmatpush1.msra.mxu0 0.0
    %3803 = vmatprep.subr.mxu0 0.0
    %3804 = vmatpush1.msra.mxu0 0.0
    %3805 = vmatprep.subr.mxu0 0.0
    %3806 = vmatpush1.msra.mxu0 0.0
    %3807 = vmatprep.subr.mxu0 0.0
    %3808 = vmatpush1.msra.mxu0 0.0
    %3809 = vmatprep.subr.mxu0 0.0
    %3810 = vmatpush1.msra.mxu0 0.0
    %3811 = vmatprep.subr.mxu0 0.0
    %3812 = vmatpush1.msra.mxu0 0.0
    %3813 = vmatprep.subr.mxu0 0.0
    %3814 = vmatpush1.msra.mxu0 0.0
    %3815 = vmatprep.subr.mxu0 0.0
    %3816 = vmatpush1.msra.mxu0 0.0
    %3817 = vmatprep.subr.mxu0 0.0
    %3818 = vmatpush1.msra.mxu0 0.0
    %3819 = vmatprep.subr.mxu0 0.0
    %3820 = vmatpush1.msra.mxu0 0.0
    %3821 = vmatprep.subr.mxu0 0.0
    %3822 = vmatpush1.msra.mxu0 0.0
    %3823 = vmatprep.subr.mxu0 0.0
    %3824 = vmatpush1.msra.mxu0 0.0
    %3825 = vmatprep.subr.mxu0 0.0
    %3826 = vmatpush1.msra.mxu0 0.0
    %3827 = vmatprep.subr.mxu0 0.0
    %3828 = vmatpush1.msra.mxu0 0.0
    %3829 = vmatprep.subr.mxu0 0.0
    %3830 = vmatpush1.msra.mxu0 %v3794
    %3831 = vmatprep.subr.mxu0 0.0
    %3832 = vmatpush2.msra.mxu0 0.0
    %3833 = vmatprep.subr.mxu0 0.0
    %3834 = vmatpush2.msra.mxu0 0.0
    %3835 = vmatprep.subr.mxu0 0.0
    %3836 = vmatpush2.msra.mxu0 0.0
    %3837 = vmatprep.subr.mxu0 0.0
    %3838 = vmatpush2.msra.mxu0 0.0
    %3839 = vmatprep.subr.mxu0 0.0
    %3840 = vmatpush2.msra.mxu0 0.0
    %3841 = vmatprep.subr.mxu0 0.0
    %3842 = vmatpush2.msra.mxu0 0.0
    %3843 = vmatprep.subr.mxu0 0.0
    %3844 = vmatpush2.msra.mxu0 0.0
    %3845 = vmatprep.subr.mxu0 0.0
    %3846 = vmatpush2.msra.mxu0 0.0
    %3847 = vmatprep.subr.mxu0 0.0
    %3848 = vmatpush2.msra.mxu0 0.0
    %3849 = vmatprep.subr.mxu0 0.0
    %3850 = vmatpush2.msra.mxu0 0.0
    %3851 = vmatprep.subr.mxu0 0.0
    %3852 = vmatpush2.msra.mxu0 0.0
    %3853 = vmatprep.subr.mxu0 0.0
    %3854 = vmatpush2.msra.mxu0 0.0
    %3855 = vmatprep.subr.mxu0 0.0
    %3856 = vmatpush2.msra.mxu0 0.0
    %3857 = vmatprep.subr.mxu0 0.0
    %3858 = vmatpush2.msra.mxu0 0.0
    %3859 = vmatprep.subr.mxu0 0.0
    %3860 = vmatpush2.msra.mxu0 0.0
    %3861 = vmatprep.subr.mxu0 0.0
    %3862 = vmatpush2.msra.mxu0 0.0
    %3863 = vmatprep.mubr.f32.mxu0 0.0
    %3864 = vmatmul.mubr.f32.gmra.mxu0 %v3797
    %v3865 = vpop.f32.mrf.mxu0
    %v3866 = vadd.f32 0.0, %v3865
    %v3867 = vpop.f32.mrf.mxu0
    %3868 = vdwg.mxu0
    %v3870 = vsel %vm678, %v3866, 0
    %3872 = vmatprep.subr.mxu0 0.0
    %3873 = vmatpush1.msra.mxu0 0.0
    %3874 = vmatprep.subr.mxu0 0.0
    %3875 = vmatpush1.msra.mxu0 0.0
    %3876 = vmatprep.subr.mxu0 0.0
    %3877 = vmatpush1.msra.mxu0 0.0
    %3878 = vmatprep.subr.mxu0 0.0
    %3879 = vmatpush1.msra.mxu0 0.0
    %3880 = vmatprep.subr.mxu0 0.0
    %3881 = vmatpush1.msra.mxu0 0.0
    %3882 = vmatprep.subr.mxu0 0.0
    %3883 = vmatpush1.msra.mxu0 0.0
    %3884 = vmatprep.subr.mxu0 0.0
    %3885 = vmatpush1.msra.mxu0 0.0
    %3886 = vmatprep.subr.mxu0 0.0
    %3887 = vmatpush1.msra.mxu0 0.0
    %3888 = vmatprep.subr.mxu0 0.0
    %3889 = vmatpush1.msra.mxu0 0.0
    %3890 = vmatprep.subr.mxu0 0.0
    %3891 = vmatpush1.msra.mxu0 0.0
    %3892 = vmatprep.subr.mxu0 0.0
    %3893 = vmatpush1.msra.mxu0 0.0
    %3894 = vmatprep.subr.mxu0 0.0
    %3895 = vmatpush1.msra.mxu0 0.0
    %3896 = vmatprep.subr.mxu0 0.0
    %3897 = vmatpush1.msra.mxu0 0.0
    %3898 = vmatprep.subr.mxu0 0.0
    %3899 = vmatpush1.msra.mxu0 0.0
    %3900 = vmatprep.subr.mxu0 0.0
    %3901 = vmatpush1.msra.mxu0 0.0
    %3902 = vmatprep.subr.mxu0 0.0
    %3903 = vmatpush1.msra.mxu0 %v2973
    %3904 = vmatprep.subr.mxu0 0.0
    %3905 = vmatpush2.msra.mxu0 0.0
    %3906 = vmatprep.subr.mxu0 0.0
    %3907 = vmatpush2.msra.mxu0 0.0
    %3908 = vmatprep.subr.mxu0 0.0
    %3909 = vmatpush2.msra.mxu0 0.0
    %3910 = vmatprep.subr.mxu0 0.0
    %3911 = vmatpush2.msra.mxu0 0.0
    %3912 = vmatprep.subr.mxu0 0.0
    %3913 = vmatpush2.msra.mxu0 0.0
    %3914 = vmatprep.subr.mxu0 0.0
    %3915 = vmatpush2.msra.mxu0 0.0
    %3916 = vmatprep.subr.mxu0 0.0
    %3917 = vmatpush2.msra.mxu0 0.0
    %3918 = vmatprep.subr.mxu0 0.0
    %3919 = vmatpush2.msra.mxu0 0.0
    %3920 = vmatprep.subr.mxu0 0.0
    %3921 = vmatpush2.msra.mxu0 0.0
    %3922 = vmatprep.subr.mxu0 0.0
    %3923 = vmatpush2.msra.mxu0 0.0
    %3924 = vmatprep.subr.mxu0 0.0
    %3925 = vmatpush2.msra.mxu0 0.0
    %3926 = vmatprep.subr.mxu0 0.0
    %3927 = vmatpush2.msra.mxu0 0.0
    %3928 = vmatprep.subr.mxu0 0.0
    %3929 = vmatpush2.msra.mxu0 0.0
    %3930 = vmatprep.subr.mxu0 0.0
    %3931 = vmatpush2.msra.mxu0 0.0
    %3932 = vmatprep.subr.mxu0 0.0
    %3933 = vmatpush2.msra.mxu0 0.0
    %3934 = vmatprep.subr.mxu0 0.0
    %3935 = vmatpush2.msra.mxu0 0.0
    %3936 = vmatprep.mubr.f32.mxu0 0.0
    %3937 = vmatmul.mubr.f32.gmra.mxu0 %v3870
    %v3938 = vpop.f32.mrf.mxu0
    %v3939 = vadd.f32 0.0, %v3938
    %v3940 = vpop.f32.mrf.mxu0
    %3941 = vdwg.mxu0
    %v3942 = vadd.f32 %v3699, %v3939
    %3943 = vrot.lane.b32.xlu0 %v3056, 104
    %v3944 = vpop.permute.xlu0 %3943
    %3945 = vrot.lane.b32.xlu0 %v3137, 104
    %v3946 = vpop.permute.xlu0 %3945
    %v3947 = vsel %vm678, %v3944, 0
    %v3949 = vsel %vm678, %v3946, 0
    %3951 = vmatprep.subr.mxu0 0.0
    %3952 = vmatpush1.xpose.msra.mxu0 0.0
    %3953 = vmatprep.subr.mxu0 0.0
    %3954 = vmatpush1.xpose.msra.mxu0 0.0
    %3955 = vmatprep.subr.mxu0 0.0
    %3956 = vmatpush1.xpose.msra.mxu0 0.0
    %3957 = vmatprep.subr.mxu0 0.0
    %3958 = vmatpush1.xpose.msra.mxu0 0.0
    %3959 = vmatprep.subr.mxu0 0.0
    %3960 = vmatpush1.xpose.msra.mxu0 0.0
    %3961 = vmatprep.subr.mxu0 0.0
    %3962 = vmatpush1.xpose.msra.mxu0 0.0
    %3963 = vmatprep.subr.mxu0 0.0
    %3964 = vmatpush1.xpose.msra.mxu0 0.0
    %3965 = vmatprep.subr.mxu0 0.0
    %3966 = vmatpush1.xpose.msra.mxu0 0.0
    %3967 = vmatprep.subr.mxu0 0.0
    %3968 = vmatpush1.xpose.msra.mxu0 0.0
    %3969 = vmatprep.subr.mxu0 0.0
    %3970 = vmatpush1.xpose.msra.mxu0 0.0
    %3971 = vmatprep.subr.mxu0 0.0
    %3972 = vmatpush1.xpose.msra.mxu0 0.0
    %3973 = vmatprep.subr.mxu0 0.0
    %3974 = vmatpush1.xpose.msra.mxu0 0.0
    %3975 = vmatprep.subr.mxu0 0.0
    %3976 = vmatpush1.xpose.msra.mxu0 0.0
    %3977 = vmatprep.subr.mxu0 0.0
    %3978 = vmatpush1.xpose.msra.mxu0 0.0
    %3979 = vmatprep.subr.mxu0 0.0
    %3980 = vmatpush1.xpose.msra.mxu0 0.0
    %3981 = vmatprep.subr.mxu0 0.0
    %3982 = vmatpush1.xpose.msra.mxu0 %v3949
    %3983 = vmatprep.subr.mxu0 0.0
    %3984 = vmatpush2.xpose.msra.mxu0 0.0
    %3985 = vmatprep.subr.mxu0 0.0
    %3986 = vmatpush2.xpose.msra.mxu0 0.0
    %3987 = vmatprep.subr.mxu0 0.0
    %3988 = vmatpush2.xpose.msra.mxu0 0.0
    %3989 = vmatprep.subr.mxu0 0.0
    %3990 = vmatpush2.xpose.msra.mxu0 0.0
    %3991 = vmatprep.subr.mxu0 0.0
    %3992 = vmatpush2.xpose.msra.mxu0 0.0
    %3993 = vmatprep.subr.mxu0 0.0
    %3994 = vmatpush2.xpose.msra.mxu0 0.0
    %3995 = vmatprep.subr.mxu0 0.0
    %3996 = vmatpush2.xpose.msra.mxu0 0.0
    %3997 = vmatprep.subr.mxu0 0.0
    %3998 = vmatpush2.xpose.msra.mxu0 0.0
    %3999 = vmatprep.subr.mxu0 0.0
    %4000 = vmatpush2.xpose.msra.mxu0 0.0
    %4001 = vmatprep.subr.mxu0 0.0
    %4002 = vmatpush2.xpose.msra.mxu0 0.0
    %4003 = vmatprep.subr.mxu0 0.0
    %4004 = vmatpush2.xpose.msra.mxu0 0.0
    %4005 = vmatprep.subr.mxu0 0.0
    %4006 = vmatpush2.xpose.msra.mxu0 0.0
    %4007 = vmatprep.subr.mxu0 0.0
    %4008 = vmatpush2.xpose.msra.mxu0 0.0
    %4009 = vmatprep.subr.mxu0 0.0
    %4010 = vmatpush2.xpose.msra.mxu0 0.0
    %4011 = vmatprep.subr.mxu0 0.0
    %4012 = vmatpush2.xpose.msra.mxu0 0.0
    %4013 = vmatprep.subr.mxu0 0.0
    %4014 = vmatpush2.xpose.msra.mxu0 0.0
    %4015 = vmatprep.mubr.f32.mxu0 0.0
    %4016 = vmatmul.mubr.f32.gmra.mxu0 %v3947
    %v4017 = vpop.f32.mrf.mxu0
    %v4018 = vadd.f32 0.0, %v4017
    %v4019 = vpop.f32.mrf.mxu0
    %4020 = vdwg.mxu0
    %v4021 = vmul.f32 %v4018, 0.35355338
    %v4022 = vadd.f32 %v4021, %v759
    %v4023 = vsel %vm678, %v4022, -inf
    %4024 = vmax.xlane.f32.xlu0 %v4023
    %v4025 = vpop.xlane.xlu0 %4024
    %v4026 = vsub.f32 %v4022, %v4025
    %v4027 = vmul.f32 %v4026, 1.442695
    %v4028 = vpow.pop %v4027
    %v4029 = vsel %vm678, %v4028, 0.0
    %4030 = vadd.xlane.f32.xlu0 %v4029
    %v4031 = vpop.xlane.xlu0 %4030
    %v4032 = vrcp.pop %v4031
    %v4033 = vmul.f32 %v4028, %v4032
    %4034 = vrot.lane.b32.xlu0 %v3218, 104
    %v4035 = vpop.permute.xlu0 %4034
    %v4038 = vsel %vm678, %v4033, 0
    %4040 = vmatprep.subr.mxu0 0.0
    %4041 = vmatpush1.msra.mxu0 0.0
    %4042 = vmatprep.subr.mxu0 0.0
    %4043 = vmatpush1.msra.mxu0 0.0
    %4044 = vmatprep.subr.mxu0 0.0
    %4045 = vmatpush1.msra.mxu0 0.0
    %4046 = vmatprep.subr.mxu0 0.0
    %4047 = vmatpush1.msra.mxu0 0.0
    %4048 = vmatprep.subr.mxu0 0.0
    %4049 = vmatpush1.msra.mxu0 0.0
    %4050 = vmatprep.subr.mxu0 0.0
    %4051 = vmatpush1.msra.mxu0 0.0
    %4052 = vmatprep.subr.mxu0 0.0
    %4053 = vmatpush1.msra.mxu0 0.0
    %4054 = vmatprep.subr.mxu0 0.0
    %4055 = vmatpush1.msra.mxu0 0.0
    %4056 = vmatprep.subr.mxu0 0.0
    %4057 = vmatpush1.msra.mxu0 0.0
    %4058 = vmatprep.subr.mxu0 0.0
    %4059 = vmatpush1.msra.mxu0 0.0
    %4060 = vmatprep.subr.mxu0 0.0
    %4061 = vmatpush1.msra.mxu0 0.0
    %4062 = vmatprep.subr.mxu0 0.0
    %4063 = vmatpush1.msra.mxu0 0.0
    %4064 = vmatprep.subr.mxu0 0.0
    %4065 = vmatpush1.msra.mxu0 0.0
    %4066 = vmatprep.subr.mxu0 0.0
    %4067 = vmatpush1.msra.mxu0 0.0
    %4068 = vmatprep.subr.mxu0 0.0
    %4069 = vmatpush1.msra.mxu0 0.0
    %4070 = vmatprep.subr.mxu0 0.0
    %4071 = vmatpush1.msra.mxu0 %v4035
    %4072 = vmatprep.subr.mxu0 0.0
    %4073 = vmatpush2.msra.mxu0 0.0
    %4074 = vmatprep.subr.mxu0 0.0
    %4075 = vmatpush2.msra.mxu0 0.0
    %4076 = vmatprep.subr.mxu0 0.0
    %4077 = vmatpush2.msra.mxu0 0.0
    %4078 = vmatprep.subr.mxu0 0.0
    %4079 = vmatpush2.msra.mxu0 0.0
    %4080 = vmatprep.subr.mxu0 0.0
    %4081 = vmatpush2.msra.mxu0 0.0
    %4082 = vmatprep.subr.mxu0 0.0
    %4083 = vmatpush2.msra.mxu0 0.0
    %4084 = vmatprep.subr.mxu0 0.0
    %4085 = vmatpush2.msra.mxu0 0.0
    %4086 = vmatprep.subr.mxu0 0.0
    %4087 = vmatpush2.msra.mxu0 0.0
    %4088 = vmatprep.subr.mxu0 0.0
    %4089 = vmatpush2.msra.mxu0 0.0
    %4090 = vmatprep.subr.mxu0 0.0
    %4091 = vmatpush2.msra.mxu0 0.0
    %4092 = vmatprep.subr.mxu0 0.0
    %4093 = vmatpush2.msra.mxu0 0.0
    %4094 = vmatprep.subr.mxu0 0.0
    %4095 = vmatpush2.msra.mxu0 0.0
    %4096 = vmatprep.subr.mxu0 0.0
    %4097 = vmatpush2.msra.mxu0 0.0
    %4098 = vmatprep.subr.mxu0 0.0
    %4099 = vmatpush2.msra.mxu0 0.0
    %4100 = vmatprep.subr.mxu0 0.0
    %4101 = vmatpush2.msra.mxu0 0.0
    %4102 = vmatprep.subr.mxu0 0.0
    %4103 = vmatpush2.msra.mxu0 0.0
    %4104 = vmatprep.mubr.f32.mxu0 0.0
    %4105 = vmatmul.mubr.f32.gmra.mxu0 %v4038
    %v4106 = vpop.f32.mrf.mxu0
    %v4107 = vadd.f32 0.0, %v4106
    %v4108 = vpop.f32.mrf.mxu0
    %4109 = vdwg.mxu0
    %v4111 = vsel %vm678, %v4107, 0
    %4113 = vmatprep.subr.mxu0 0.0
    %4114 = vmatpush1.msra.mxu0 0.0
    %4115 = vmatprep.subr.mxu0 0.0
    %4116 = vmatpush1.msra.mxu0 0.0
    %4117 = vmatprep.subr.mxu0 0.0
    %4118 = vmatpush1.msra.mxu0 0.0
    %4119 = vmatprep.subr.mxu0 0.0
    %4120 = vmatpush1.msra.mxu0 0.0
    %4121 = vmatprep.subr.mxu0 0.0
    %4122 = vmatpush1.msra.mxu0 0.0
    %4123 = vmatprep.subr.mxu0 0.0
    %4124 = vmatpush1.msra.mxu0 0.0
    %4125 = vmatprep.subr.mxu0 0.0
    %4126 = vmatpush1.msra.mxu0 0.0
    %4127 = vmatprep.subr.mxu0 0.0
    %4128 = vmatpush1.msra.mxu0 0.0
    %4129 = vmatprep.subr.mxu0 0.0
    %4130 = vmatpush1.msra.mxu0 0.0
    %4131 = vmatprep.subr.mxu0 0.0
    %4132 = vmatpush1.msra.mxu0 0.0
    %4133 = vmatprep.subr.mxu0 0.0
    %4134 = vmatpush1.msra.mxu0 0.0
    %4135 = vmatprep.subr.mxu0 0.0
    %4136 = vmatpush1.msra.mxu0 0.0
    %4137 = vmatprep.subr.mxu0 0.0
    %4138 = vmatpush1.msra.mxu0 0.0
    %4139 = vmatprep.subr.mxu0 0.0
    %4140 = vmatpush1.msra.mxu0 0.0
    %4141 = vmatprep.subr.mxu0 0.0
    %4142 = vmatpush1.msra.mxu0 0.0
    %4143 = vmatprep.subr.mxu0 0.0
    %4144 = vmatpush1.msra.mxu0 %v2974
    %4145 = vmatprep.subr.mxu0 0.0
    %4146 = vmatpush2.msra.mxu0 0.0
    %4147 = vmatprep.subr.mxu0 0.0
    %4148 = vmatpush2.msra.mxu0 0.0
    %4149 = vmatprep.subr.mxu0 0.0
    %4150 = vmatpush2.msra.mxu0 0.0
    %4151 = vmatprep.subr.mxu0 0.0
    %4152 = vmatpush2.msra.mxu0 0.0
    %4153 = vmatprep.subr.mxu0 0.0
    %4154 = vmatpush2.msra.mxu0 0.0
    %4155 = vmatprep.subr.mxu0 0.0
    %4156 = vmatpush2.msra.mxu0 0.0
    %4157 = vmatprep.subr.mxu0 0.0
    %4158 = vmatpush2.msra.mxu0 0.0
    %4159 = vmatprep.subr.mxu0 0.0
    %4160 = vmatpush2.msra.mxu0 0.0
    %4161 = vmatprep.subr.mxu0 0.0
    %4162 = vmatpush2.msra.mxu0 0.0
    %4163 = vmatprep.subr.mxu0 0.0
    %4164 = vmatpush2.msra.mxu0 0.0
    %4165 = vmatprep.subr.mxu0 0.0
    %4166 = vmatpush2.msra.mxu0 0.0
    %4167 = vmatprep.subr.mxu0 0.0
    %4168 = vmatpush2.msra.mxu0 0.0
    %4169 = vmatprep.subr.mxu0 0.0
    %4170 = vmatpush2.msra.mxu0 0.0
    %4171 = vmatprep.subr.mxu0 0.0
    %4172 = vmatpush2.msra.mxu0 0.0
    %4173 = vmatprep.subr.mxu0 0.0
    %4174 = vmatpush2.msra.mxu0 0.0
    %4175 = vmatprep.subr.mxu0 0.0
    %4176 = vmatpush2.msra.mxu0 0.0
    %4177 = vmatprep.mubr.f32.mxu0 0.0
    %4178 = vmatmul.mubr.f32.gmra.mxu0 %v4111
    %v4179 = vpop.f32.mrf.mxu0
    %v4180 = vadd.f32 0.0, %v4179
    %v4181 = vpop.f32.mrf.mxu0
    %4182 = vdwg.mxu0
    %v4183 = vadd.f32 %v3942, %v4180
    %v4185 = vsel %vm678, %v3061, 0
    %v4188 = vsel %vm678, %v3142, 0
    %4190 = vmatprep.subr.mxu0 0.0
    %4191 = vmatpush1.xpose.msra.mxu0 0.0
    %4192 = vmatprep.subr.mxu0 0.0
    %4193 = vmatpush1.xpose.msra.mxu0 0.0
    %4194 = vmatprep.subr.mxu0 0.0
    %4195 = vmatpush1.xpose.msra.mxu0 0.0
    %4196 = vmatprep.subr.mxu0 0.0
    %4197 = vmatpush1.xpose.msra.mxu0 0.0
    %4198 = vmatprep.subr.mxu0 0.0
    %4199 = vmatpush1.xpose.msra.mxu0 0.0
    %4200 = vmatprep.subr.mxu0 0.0
    %4201 = vmatpush1.xpose.msra.mxu0 0.0
    %4202 = vmatprep.subr.mxu0 0.0
    %4203 = vmatpush1.xpose.msra.mxu0 0.0
    %4204 = vmatprep.subr.mxu0 0.0
    %4205 = vmatpush1.xpose.msra.mxu0 0.0
    %4206 = vmatprep.subr.mxu0 0.0
    %4207 = vmatpush1.xpose.msra.mxu0 0.0
    %4208 = vmatprep.subr.mxu0 0.0
    %4209 = vmatpush1.xpose.msra.mxu0 0.0
    %4210 = vmatprep.subr.mxu0 0.0
    %4211 = vmatpush1.xpose.msra.mxu0 0.0
    %4212 = vmatprep.subr.mxu0 0.0
    %4213 = vmatpush1.xpose.msra.mxu0 0.0
    %4214 = vmatprep.subr.mxu0 0.0
    %4215 = vmatpush1.xpose.msra.mxu0 0.0
    %4216 = vmatprep.subr.mxu0 0.0
    %4217 = vmatpush1.xpose.msra.mxu0 0.0
    %4218 = vmatprep.subr.mxu0 0.0
    %4219 = vmatpush1.xpose.msra.mxu0 0.0
    %4220 = vmatprep.subr.mxu0 0.0
    %4221 = vmatpush1.xpose.msra.mxu0 %v4188
    %4222 = vmatprep.subr.mxu0 0.0
    %4223 = vmatpush2.xpose.msra.mxu0 0.0
    %4224 = vmatprep.subr.mxu0 0.0
    %4225 = vmatpush2.xpose.msra.mxu0 0.0
    %4226 = vmatprep.subr.mxu0 0.0
    %4227 = vmatpush2.xpose.msra.mxu0 0.0
    %4228 = vmatprep.subr.mxu0 0.0
    %4229 = vmatpush2.xpose.msra.mxu0 0.0
    %4230 = vmatprep.subr.mxu0 0.0
    %4231 = vmatpush2.xpose.msra.mxu0 0.0
    %4232 = vmatprep.subr.mxu0 0.0
    %4233 = vmatpush2.xpose.msra.mxu0 0.0
    %4234 = vmatprep.subr.mxu0 0.0
    %4235 = vmatpush2.xpose.msra.mxu0 0.0
    %4236 = vmatprep.subr.mxu0 0.0
    %4237 = vmatpush2.xpose.msra.mxu0 0.0
    %4238 = vmatprep.subr.mxu0 0.0
    %4239 = vmatpush2.xpose.msra.mxu0 0.0
    %4240 = vmatprep.subr.mxu0 0.0
    %4241 = vmatpush2.xpose.msra.mxu0 0.0
    %4242 = vmatprep.subr.mxu0 0.0
    %4243 = vmatpush2.xpose.msra.mxu0 0.0
    %4244 = vmatprep.subr.mxu0 0.0
    %4245 = vmatpush2.xpose.msra.mxu0 0.0
    %4246 = vmatprep.subr.mxu0 0.0
    %4247 = vmatpush2.xpose.msra.mxu0 0.0
    %4248 = vmatprep.subr.mxu0 0.0
    %4249 = vmatpush2.xpose.msra.mxu0 0.0
    %4250 = vmatprep.subr.mxu0 0.0
    %4251 = vmatpush2.xpose.msra.mxu0 0.0
    %4252 = vmatprep.subr.mxu0 0.0
    %4253 = vmatpush2.xpose.msra.mxu0 0.0
    %4254 = vmatprep.mubr.f32.mxu0 0.0
    %4255 = vmatmul.mubr.f32.gmra.mxu0 %v4185
    %v4256 = vpop.f32.mrf.mxu0
    %v4257 = vadd.f32 0.0, %v4256
    %v4258 = vpop.f32.mrf.mxu0
    %4259 = vdwg.mxu0
    %v4260 = vmul.f32 %v4257, 0.35355338
    %v4261 = vadd.f32 %v4260, %v1721
    %v4262 = vsel %vm678, %v4261, -inf
    %4263 = vmax.xlane.f32.xlu0 %v4262
    %v4264 = vpop.xlane.xlu0 %4263
    %v4265 = vsub.f32 %v4261, %v4264
    %v4266 = vmul.f32 %v4265, 1.442695
    %v4267 = vpow.pop %v4266
    %v4268 = vsel %vm678, %v4267, 0.0
    %4269 = vadd.xlane.f32.xlu0 %v4268
    %v4270 = vpop.xlane.xlu0 %4269
    %v4271 = vrcp.pop %v4270
    %v4272 = vmul.f32 %v4267, %v4271
    %v4274 = vsel %vm678, %v4272, 0
    %4276 = vmatprep.subr.mxu0 0.0
    %4277 = vmatpush1.msra.mxu0 0.0
    %4278 = vmatprep.subr.mxu0 0.0
    %4279 = vmatpush1.msra.mxu0 0.0
    %4280 = vmatprep.subr.mxu0 0.0
    %4281 = vmatpush1.msra.mxu0 0.0
    %4282 = vmatprep.subr.mxu0 0.0
    %4283 = vmatpush1.msra.mxu0 0.0
    %4284 = vmatprep.subr.mxu0 0.0
    %4285 = vmatpush1.msra.mxu0 0.0
    %4286 = vmatprep.subr.mxu0 0.0
    %4287 = vmatpush1.msra.mxu0 0.0
    %4288 = vmatprep.subr.mxu0 0.0
    %4289 = vmatpush1.msra.mxu0 0.0
    %4290 = vmatprep.subr.mxu0 0.0
    %4291 = vmatpush1.msra.mxu0 0.0
    %4292 = vmatprep.subr.mxu0 0.0
    %4293 = vmatpush1.msra.mxu0 0.0
    %4294 = vmatprep.subr.mxu0 0.0
    %4295 = vmatpush1.msra.mxu0 0.0
    %4296 = vmatprep.subr.mxu0 0.0
    %4297 = vmatpush1.msra.mxu0 0.0
    %4298 = vmatprep.subr.mxu0 0.0
    %4299 = vmatpush1.msra.mxu0 0.0
    %4300 = vmatprep.subr.mxu0 0.0
    %4301 = vmatpush1.msra.mxu0 0.0
    %4302 = vmatprep.subr.mxu0 0.0
    %4303 = vmatpush1.msra.mxu0 0.0
    %4304 = vmatprep.subr.mxu0 0.0
    %4305 = vmatpush1.msra.mxu0 0.0
    %4306 = vmatprep.subr.mxu0 0.0
    %4307 = vmatpush1.msra.mxu0 %v3223
    %4308 = vmatprep.subr.mxu0 0.0
    %4309 = vmatpush2.msra.mxu0 0.0
    %4310 = vmatprep.subr.mxu0 0.0
    %4311 = vmatpush2.msra.mxu0 0.0
    %4312 = vmatprep.subr.mxu0 0.0
    %4313 = vmatpush2.msra.mxu0 0.0
    %4314 = vmatprep.subr.mxu0 0.0
    %4315 = vmatpush2.msra.mxu0 0.0
    %4316 = vmatprep.subr.mxu0 0.0
    %4317 = vmatpush2.msra.mxu0 0.0
    %4318 = vmatprep.subr.mxu0 0.0
    %4319 = vmatpush2.msra.mxu0 0.0
    %4320 = vmatprep.subr.mxu0 0.0
    %4321 = vmatpush2.msra.mxu0 0.0
    %4322 = vmatprep.subr.mxu0 0.0
    %4323 = vmatpush2.msra.mxu0 0.0
    %4324 = vmatprep.subr.mxu0 0.0
    %4325 = vmatpush2.msra.mxu0 0.0
    %4326 = vmatprep.subr.mxu0 0.0
    %4327 = vmatpush2.msra.mxu0 0.0
    %4328 = vmatprep.subr.mxu0 0.0
    %4329 = vmatpush2.msra.mxu0 0.0
    %4330 = vmatprep.subr.mxu0 0.0
    %4331 = vmatpush2.msra.mxu0 0.0
    %4332 = vmatprep.subr.mxu0 0.0
    %4333 = vmatpush2.msra.mxu0 0.0
    %4334 = vmatprep.subr.mxu0 0.0
    %4335 = vmatpush2.msra.mxu0 0.0
    %4336 = vmatprep.subr.mxu0 0.0
    %4337 = vmatpush2.msra.mxu0 0.0
    %4338 = vmatprep.subr.mxu0 0.0
    %4339 = vmatpush2.msra.mxu0 0.0
    %4340 = vmatprep.mubr.f32.mxu0 0.0
    %4341 = vmatmul.mubr.f32.gmra.mxu0 %v4274
    %v4342 = vpop.f32.mrf.mxu0
    %v4343 = vadd.f32 0.0, %v4342
    %v4344 = vpop.f32.mrf.mxu0
    %4345 = vdwg.mxu0
    %4346 = vrot.lane.b32.xlu0 %v3061, 120
    %v4347 = vpop.permute.xlu0 %4346
    %4348 = vrot.lane.b32.xlu0 %v3142, 120
    %v4349 = vpop.permute.xlu0 %4348
    %v4350 = vsel %vm678, %v4347, 0
    %v4352 = vsel %vm678, %v4349, 0
    %4354 = vmatprep.subr.mxu0 0.0
    %4355 = vmatpush1.xpose.msra.mxu0 0.0
    %4356 = vmatprep.subr.mxu0 0.0
    %4357 = vmatpush1.xpose.msra.mxu0 0.0
    %4358 = vmatprep.subr.mxu0 0.0
    %4359 = vmatpush1.xpose.msra.mxu0 0.0
    %4360 = vmatprep.subr.mxu0 0.0
    %4361 = vmatpush1.xpose.msra.mxu0 0.0
    %4362 = vmatprep.subr.mxu0 0.0
    %4363 = vmatpush1.xpose.msra.mxu0 0.0
    %4364 = vmatprep.subr.mxu0 0.0
    %4365 = vmatpush1.xpose.msra.mxu0 0.0
    %4366 = vmatprep.subr.mxu0 0.0
    %4367 = vmatpush1.xpose.msra.mxu0 0.0
    %4368 = vmatprep.subr.mxu0 0.0
    %4369 = vmatpush1.xpose.msra.mxu0 0.0
    %4370 = vmatprep.subr.mxu0 0.0
    %4371 = vmatpush1.xpose.msra.mxu0 0.0
    %4372 = vmatprep.subr.mxu0 0.0
    %4373 = vmatpush1.xpose.msra.mxu0 0.0
    %4374 = vmatprep.subr.mxu0 0.0
    %4375 = vmatpush1.xpose.msra.mxu0 0.0
    %4376 = vmatprep.subr.mxu0 0.0
    %4377 = vmatpush1.xpose.msra.mxu0 0.0
    %4378 = vmatprep.subr.mxu0 0.0
    %4379 = vmatpush1.xpose.msra.mxu0 0.0
    %4380 = vmatprep.subr.mxu0 0.0
    %4381 = vmatpush1.xpose.msra.mxu0 0.0
    %4382 = vmatprep.subr.mxu0 0.0
    %4383 = vmatpush1.xpose.msra.mxu0 0.0
    %4384 = vmatprep.subr.mxu0 0.0
    %4385 = vmatpush1.xpose.msra.mxu0 %v4352
    %4386 = vmatprep.subr.mxu0 0.0
    %4387 = vmatpush2.xpose.msra.mxu0 0.0
    %4388 = vmatprep.subr.mxu0 0.0
    %4389 = vmatpush2.xpose.msra.mxu0 0.0
    %4390 = vmatprep.subr.mxu0 0.0
    %4391 = vmatpush2.xpose.msra.mxu0 0.0
    %4392 = vmatprep.subr.mxu0 0.0
    %4393 = vmatpush2.xpose.msra.mxu0 0.0
    %4394 = vmatprep.subr.mxu0 0.0
    %4395 = vmatpush2.xpose.msra.mxu0 0.0
    %4396 = vmatprep.subr.mxu0 0.0
    %4397 = vmatpush2.xpose.msra.mxu0 0.0
    %4398 = vmatprep.subr.mxu0 0.0
    %4399 = vmatpush2.xpose.msra.mxu0 0.0
    %4400 = vmatprep.subr.mxu0 0.0
    %4401 = vmatpush2.xpose.msra.mxu0 0.0
    %4402 = vmatprep.subr.mxu0 0.0
    %4403 = vmatpush2.xpose.msra.mxu0 0.0
    %4404 = vmatprep.subr.mxu0 0.0
    %4405 = vmatpush2.xpose.msra.mxu0 0.0
    %4406 = vmatprep.subr.mxu0 0.0
    %4407 = vmatpush2.xpose.msra.mxu0 0.0
    %4408 = vmatprep.subr.mxu0 0.0
    %4409 = vmatpush2.xpose.msra.mxu0 0.0
    %4410 = vmatprep.subr.mxu0 0.0
    %4411 = vmatpush2.xpose.msra.mxu0 0.0
    %4412 = vmatprep.subr.mxu0 0.0
    %4413 = vmatpush2.xpose.msra.mxu0 0.0
    %4414 = vmatprep.subr.mxu0 0.0
    %4415 = vmatpush2.xpose.msra.mxu0 0.0
    %4416 = vmatprep.subr.mxu0 0.0
    %4417 = vmatpush2.xpose.msra.mxu0 0.0
    %4418 = vmatprep.mubr.f32.mxu0 0.0
    %4419 = vmatmul.mubr.f32.gmra.mxu0 %v4350
    %v4420 = vpop.f32.mrf.mxu0
    %v4421 = vadd.f32 0.0, %v4420
    %v4422 = vpop.f32.mrf.mxu0
    %4423 = vdwg.mxu0
    %v4424 = vmul.f32 %v4421, 0.35355338
    %v4425 = vadd.f32 %v4424, %v1721
    %v4426 = vsel %vm678, %v4425, -inf
    %4427 = vmax.xlane.f32.xlu0 %v4426
    %v4428 = vpop.xlane.xlu0 %4427
    %v4429 = vsub.f32 %v4425, %v4428
    %v4430 = vmul.f32 %v4429, 1.442695
    %v4431 = vpow.pop %v4430
    %v4432 = vsel %vm678, %v4431, 0.0
    %4433 = vadd.xlane.f32.xlu0 %v4432
    %v4434 = vpop.xlane.xlu0 %4433
    %v4435 = vrcp.pop %v4434
    %v4436 = vmul.f32 %v4431, %v4435
    %4438 = vrot.lane.b32.xlu0 %v3223, 120
    %v4439 = vpop.permute.xlu0 %4438
    %v4442 = vsel %vm678, %v4436, 0
    %4444 = vmatprep.subr.mxu0 0.0
    %4445 = vmatpush1.msra.mxu0 0.0
    %4446 = vmatprep.subr.mxu0 0.0
    %4447 = vmatpush1.msra.mxu0 0.0
    %4448 = vmatprep.subr.mxu0 0.0
    %4449 = vmatpush1.msra.mxu0 0.0
    %4450 = vmatprep.subr.mxu0 0.0
    %4451 = vmatpush1.msra.mxu0 0.0
    %4452 = vmatprep.subr.mxu0 0.0
    %4453 = vmatpush1.msra.mxu0 0.0
    %4454 = vmatprep.subr.mxu0 0.0
    %4455 = vmatpush1.msra.mxu0 0.0
    %4456 = vmatprep.subr.mxu0 0.0
    %4457 = vmatpush1.msra.mxu0 0.0
    %4458 = vmatprep.subr.mxu0 0.0
    %4459 = vmatpush1.msra.mxu0 0.0
    %4460 = vmatprep.subr.mxu0 0.0
    %4461 = vmatpush1.msra.mxu0 0.0
    %4462 = vmatprep.subr.mxu0 0.0
    %4463 = vmatpush1.msra.mxu0 0.0
    %4464 = vmatprep.subr.mxu0 0.0
    %4465 = vmatpush1.msra.mxu0 0.0
    %4466 = vmatprep.subr.mxu0 0.0
    %4467 = vmatpush1.msra.mxu0 0.0
    %4468 = vmatprep.subr.mxu0 0.0
    %4469 = vmatpush1.msra.mxu0 0.0
    %4470 = vmatprep.subr.mxu0 0.0
    %4471 = vmatpush1.msra.mxu0 0.0
    %4472 = vmatprep.subr.mxu0 0.0
    %4473 = vmatpush1.msra.mxu0 0.0
    %4474 = vmatprep.subr.mxu0 0.0
    %4475 = vmatpush1.msra.mxu0 %v4439
    %4476 = vmatprep.subr.mxu0 0.0
    %4477 = vmatpush2.msra.mxu0 0.0
    %4478 = vmatprep.subr.mxu0 0.0
    %4479 = vmatpush2.msra.mxu0 0.0
    %4480 = vmatprep.subr.mxu0 0.0
    %4481 = vmatpush2.msra.mxu0 0.0
    %4482 = vmatprep.subr.mxu0 0.0
    %4483 = vmatpush2.msra.mxu0 0.0
    %4484 = vmatprep.subr.mxu0 0.0
    %4485 = vmatpush2.msra.mxu0 0.0
    %4486 = vmatprep.subr.mxu0 0.0
    %4487 = vmatpush2.msra.mxu0 0.0
    %4488 = vmatprep.subr.mxu0 0.0
    %4489 = vmatpush2.msra.mxu0 0.0
    %4490 = vmatprep.subr.mxu0 0.0
    %4491 = vmatpush2.msra.mxu0 0.0
    %4492 = vmatprep.subr.mxu0 0.0
    %4493 = vmatpush2.msra.mxu0 0.0
    %4494 = vmatprep.subr.mxu0 0.0
    %4495 = vmatpush2.msra.mxu0 0.0
    %4496 = vmatprep.subr.mxu0 0.0
    %4497 = vmatpush2.msra.mxu0 0.0
    %4498 = vmatprep.subr.mxu0 0.0
    %4499 = vmatpush2.msra.mxu0 0.0
    %4500 = vmatprep.subr.mxu0 0.0
    %4501 = vmatpush2.msra.mxu0 0.0
    %4502 = vmatprep.subr.mxu0 0.0
    %4503 = vmatpush2.msra.mxu0 0.0
    %4504 = vmatprep.subr.mxu0 0.0
    %4505 = vmatpush2.msra.mxu0 0.0
    %4506 = vmatprep.subr.mxu0 0.0
    %4507 = vmatpush2.msra.mxu0 0.0
    %4508 = vmatprep.mubr.f32.mxu0 0.0
    %4509 = vmatmul.mubr.f32.gmra.mxu0 %v4442
    %v4510 = vpop.f32.mrf.mxu0
    %v4511 = vadd.f32 0.0, %v4510
    %v4512 = vpop.f32.mrf.mxu0
    %4513 = vdwg.mxu0
    %v4515 = vsel %vm678, %v4511, 0
    %4517 = vmatprep.subr.mxu0 0.0
    %4518 = vmatpush1.msra.mxu0 0.0
    %4519 = vmatprep.subr.mxu0 0.0
    %4520 = vmatpush1.msra.mxu0 0.0
    %4521 = vmatprep.subr.mxu0 0.0
    %4522 = vmatpush1.msra.mxu0 0.0
    %4523 = vmatprep.subr.mxu0 0.0
    %4524 = vmatpush1.msra.mxu0 0.0
    %4525 = vmatprep.subr.mxu0 0.0
    %4526 = vmatpush1.msra.mxu0 0.0
    %4527 = vmatprep.subr.mxu0 0.0
    %4528 = vmatpush1.msra.mxu0 0.0
    %4529 = vmatprep.subr.mxu0 0.0
    %4530 = vmatpush1.msra.mxu0 0.0
    %4531 = vmatprep.subr.mxu0 0.0
    %4532 = vmatpush1.msra.mxu0 0.0
    %4533 = vmatprep.subr.mxu0 0.0
    %4534 = vmatpush1.msra.mxu0 0.0
    %4535 = vmatprep.subr.mxu0 0.0
    %4536 = vmatpush1.msra.mxu0 0.0
    %4537 = vmatprep.subr.mxu0 0.0
    %4538 = vmatpush1.msra.mxu0 0.0
    %4539 = vmatprep.subr.mxu0 0.0
    %4540 = vmatpush1.msra.mxu0 0.0
    %4541 = vmatprep.subr.mxu0 0.0
    %4542 = vmatpush1.msra.mxu0 0.0
    %4543 = vmatprep.subr.mxu0 0.0
    %4544 = vmatpush1.msra.mxu0 0.0
    %4545 = vmatprep.subr.mxu0 0.0
    %4546 = vmatpush1.msra.mxu0 0.0
    %4547 = vmatprep.subr.mxu0 0.0
    %4548 = vmatpush1.msra.mxu0 %v2972
    %4549 = vmatprep.subr.mxu0 0.0
    %4550 = vmatpush2.msra.mxu0 0.0
    %4551 = vmatprep.subr.mxu0 0.0
    %4552 = vmatpush2.msra.mxu0 0.0
    %4553 = vmatprep.subr.mxu0 0.0
    %4554 = vmatpush2.msra.mxu0 0.0
    %4555 = vmatprep.subr.mxu0 0.0
    %4556 = vmatpush2.msra.mxu0 0.0
    %4557 = vmatprep.subr.mxu0 0.0
    %4558 = vmatpush2.msra.mxu0 0.0
    %4559 = vmatprep.subr.mxu0 0.0
    %4560 = vmatpush2.msra.mxu0 0.0
    %4561 = vmatprep.subr.mxu0 0.0
    %4562 = vmatpush2.msra.mxu0 0.0
    %4563 = vmatprep.subr.mxu0 0.0
    %4564 = vmatpush2.msra.mxu0 0.0
    %4565 = vmatprep.subr.mxu0 0.0
    %4566 = vmatpush2.msra.mxu0 0.0
    %4567 = vmatprep.subr.mxu0 0.0
    %4568 = vmatpush2.msra.mxu0 0.0
    %4569 = vmatprep.subr.mxu0 0.0
    %4570 = vmatpush2.msra.mxu0 0.0
    %4571 = vmatprep.subr.mxu0 0.0
    %4572 = vmatpush2.msra.mxu0 0.0
    %4573 = vmatprep.subr.mxu0 0.0
    %4574 = vmatpush2.msra.mxu0 0.0
    %4575 = vmatprep.subr.mxu0 0.0
    %4576 = vmatpush2.msra.mxu0 0.0
    %4577 = vmatprep.subr.mxu0 0.0
    %4578 = vmatpush2.msra.mxu0 0.0
    %4579 = vmatprep.subr.mxu0 0.0
    %4580 = vmatpush2.msra.mxu0 0.0
    %4581 = vmatprep.mubr.f32.mxu0 0.0
    %4582 = vmatmul.mubr.f32.gmra.mxu0 %v4515
    %v4583 = vpop.f32.mrf.mxu0
    %v4584 = vadd.f32 0.0, %v4583
    %v4585 = vpop.f32.mrf.mxu0
    %4586 = vdwg.mxu0
    %v4588 = vsel %vm678, %v4343, 0
    %4590 = vmatprep.subr.mxu0 0.0
    %4591 = vmatpush1.msra.mxu0 0.0
    %4592 = vmatprep.subr.mxu0 0.0
    %4593 = vmatpush1.msra.mxu0 0.0
    %4594 = vmatprep.subr.mxu0 0.0
    %4595 = vmatpush1.msra.mxu0 0.0
    %4596 = vmatprep.subr.mxu0 0.0
    %4597 = vmatpush1.msra.mxu0 0.0
    %4598 = vmatprep.subr.mxu0 0.0
    %4599 = vmatpush1.msra.mxu0 0.0
    %4600 = vmatprep.subr.mxu0 0.0
    %4601 = vmatpush1.msra.mxu0 0.0
    %4602 = vmatprep.subr.mxu0 0.0
    %4603 = vmatpush1.msra.mxu0 0.0
    %4604 = vmatprep.subr.mxu0 0.0
    %4605 = vmatpush1.msra.mxu0 0.0
    %4606 = vmatprep.subr.mxu0 0.0
    %4607 = vmatpush1.msra.mxu0 0.0
    %4608 = vmatprep.subr.mxu0 0.0
    %4609 = vmatpush1.msra.mxu0 0.0
    %4610 = vmatprep.subr.mxu0 0.0
    %4611 = vmatpush1.msra.mxu0 0.0
    %4612 = vmatprep.subr.mxu0 0.0
    %4613 = vmatpush1.msra.mxu0 0.0
    %4614 = vmatprep.subr.mxu0 0.0
    %4615 = vmatpush1.msra.mxu0 0.0
    %4616 = vmatprep.subr.mxu0 0.0
    %4617 = vmatpush1.msra.mxu0 0.0
    %4618 = vmatprep.subr.mxu0 0.0
    %4619 = vmatpush1.msra.mxu0 0.0
    %4620 = vmatprep.subr.mxu0 0.0
    %4621 = vmatpush1.msra.mxu0 %v2971
    %4622 = vmatprep.subr.mxu0 0.0
    %4623 = vmatpush2.msra.mxu0 0.0
    %4624 = vmatprep.subr.mxu0 0.0
    %4625 = vmatpush2.msra.mxu0 0.0
    %4626 = vmatprep.subr.mxu0 0.0
    %4627 = vmatpush2.msra.mxu0 0.0
    %4628 = vmatprep.subr.mxu0 0.0
    %4629 = vmatpush2.msra.mxu0 0.0
    %4630 = vmatprep.subr.mxu0 0.0
    %4631 = vmatpush2.msra.mxu0 0.0
    %4632 = vmatprep.subr.mxu0 0.0
    %4633 = vmatpush2.msra.mxu0 0.0
    %4634 = vmatprep.subr.mxu0 0.0
    %4635 = vmatpush2.msra.mxu0 0.0
    %4636 = vmatprep.subr.mxu0 0.0
    %4637 = vmatpush2.msra.mxu0 0.0
    %4638 = vmatprep.subr.mxu0 0.0
    %4639 = vmatpush2.msra.mxu0 0.0
    %4640 = vmatprep.subr.mxu0 0.0
    %4641 = vmatpush2.msra.mxu0 0.0
    %4642 = vmatprep.subr.mxu0 0.0
    %4643 = vmatpush2.msra.mxu0 0.0
    %4644 = vmatprep.subr.mxu0 0.0
    %4645 = vmatpush2.msra.mxu0 0.0
    %4646 = vmatprep.subr.mxu0 0.0
    %4647 = vmatpush2.msra.mxu0 0.0
    %4648 = vmatprep.subr.mxu0 0.0
    %4649 = vmatpush2.msra.mxu0 0.0
    %4650 = vmatprep.subr.mxu0 0.0
    %4651 = vmatpush2.msra.mxu0 0.0
    %4652 = vmatprep.subr.mxu0 0.0
    %4653 = vmatpush2.msra.mxu0 0.0
    %4654 = vmatprep.mubr.f32.mxu0 0.0
    %4655 = vmatmul.mubr.f32.gmra.mxu0 %v4588
    %v4656 = vpop.f32.mrf.mxu0
    %v4657 = vadd.f32 %v4584, %v4656
    %v4658 = vpop.f32.mrf.mxu0
    %4659 = vdwg.mxu0
    %4660 = vrot.lane.b32.xlu0 %v3061, 112
    %v4661 = vpop.permute.xlu0 %4660
    %4662 = vrot.lane.b32.xlu0 %v3142, 112
    %v4663 = vpop.permute.xlu0 %4662
    %v4664 = vsel %vm678, %v4661, 0
    %v4666 = vsel %vm678, %v4663, 0
    %4668 = vmatprep.subr.mxu0 0.0
    %4669 = vmatpush1.xpose.msra.mxu0 0.0
    %4670 = vmatprep.subr.mxu0 0.0
    %4671 = vmatpush1.xpose.msra.mxu0 0.0
    %4672 = vmatprep.subr.mxu0 0.0
    %4673 = vmatpush1.xpose.msra.mxu0 0.0
    %4674 = vmatprep.subr.mxu0 0.0
    %4675 = vmatpush1.xpose.msra.mxu0 0.0
    %4676 = vmatprep.subr.mxu0 0.0
    %4677 = vmatpush1.xpose.msra.mxu0 0.0
    %4678 = vmatprep.subr.mxu0 0.0
    %4679 = vmatpush1.xpose.msra.mxu0 0.0
    %4680 = vmatprep.subr.mxu0 0.0
    %4681 = vmatpush1.xpose.msra.mxu0 0.0
    %4682 = vmatprep.subr.mxu0 0.0
    %4683 = vmatpush1.xpose.msra.mxu0 0.0
    %4684 = vmatprep.subr.mxu0 0.0
    %4685 = vmatpush1.xpose.msra.mxu0 0.0
    %4686 = vmatprep.subr.mxu0 0.0
    %4687 = vmatpush1.xpose.msra.mxu0 0.0
    %4688 = vmatprep.subr.mxu0 0.0
    %4689 = vmatpush1.xpose.msra.mxu0 0.0
    %4690 = vmatprep.subr.mxu0 0.0
    %4691 = vmatpush1.xpose.msra.mxu0 0.0
    %4692 = vmatprep.subr.mxu0 0.0
    %4693 = vmatpush1.xpose.msra.mxu0 0.0
    %4694 = vmatprep.subr.mxu0 0.0
    %4695 = vmatpush1.xpose.msra.mxu0 0.0
    %4696 = vmatprep.subr.mxu0 0.0
    %4697 = vmatpush1.xpose.msra.mxu0 0.0
    %4698 = vmatprep.subr.mxu0 0.0
    %4699 = vmatpush1.xpose.msra.mxu0 %v4666
    %4700 = vmatprep.subr.mxu0 0.0
    %4701 = vmatpush2.xpose.msra.mxu0 0.0
    %4702 = vmatprep.subr.mxu0 0.0
    %4703 = vmatpush2.xpose.msra.mxu0 0.0
    %4704 = vmatprep.subr.mxu0 0.0
    %4705 = vmatpush2.xpose.msra.mxu0 0.0
    %4706 = vmatprep.subr.mxu0 0.0
    %4707 = vmatpush2.xpose.msra.mxu0 0.0
    %4708 = vmatprep.subr.mxu0 0.0
    %4709 = vmatpush2.xpose.msra.mxu0 0.0
    %4710 = vmatprep.subr.mxu0 0.0
    %4711 = vmatpush2.xpose.msra.mxu0 0.0
    %4712 = vmatprep.subr.mxu0 0.0
    %4713 = vmatpush2.xpose.msra.mxu0 0.0
    %4714 = vmatprep.subr.mxu0 0.0
    %4715 = vmatpush2.xpose.msra.mxu0 0.0
    %4716 = vmatprep.subr.mxu0 0.0
    %4717 = vmatpush2.xpose.msra.mxu0 0.0
    %4718 = vmatprep.subr.mxu0 0.0
    %4719 = vmatpush2.xpose.msra.mxu0 0.0
    %4720 = vmatprep.subr.mxu0 0.0
    %4721 = vmatpush2.xpose.msra.mxu0 0.0
    %4722 = vmatprep.subr.mxu0 0.0
    %4723 = vmatpush2.xpose.msra.mxu0 0.0
    %4724 = vmatprep.subr.mxu0 0.0
    %4725 = vmatpush2.xpose.msra.mxu0 0.0
    %4726 = vmatprep.subr.mxu0 0.0
    %4727 = vmatpush2.xpose.msra.mxu0 0.0
    %4728 = vmatprep.subr.mxu0 0.0
    %4729 = vmatpush2.xpose.msra.mxu0 0.0
    %4730 = vmatprep.subr.mxu0 0.0
    %4731 = vmatpush2.xpose.msra.mxu0 0.0
    %4732 = vmatprep.mubr.f32.mxu0 0.0
    %4733 = vmatmul.mubr.f32.gmra.mxu0 %v4664
    %v4734 = vpop.f32.mrf.mxu0
    %v4735 = vadd.f32 0.0, %v4734
    %v4736 = vpop.f32.mrf.mxu0
    %4737 = vdwg.mxu0
    %v4738 = vmul.f32 %v4735, 0.35355338
    %v4739 = vadd.f32 %v4738, %v1721
    %v4740 = vsel %vm678, %v4739, -inf
    %4741 = vmax.xlane.f32.xlu0 %v4740
    %v4742 = vpop.xlane.xlu0 %4741
    %v4743 = vsub.f32 %v4739, %v4742
    %v4744 = vmul.f32 %v4743, 1.442695
    %v4745 = vpow.pop %v4744
    %v4746 = vsel %vm678, %v4745, 0.0
    %4747 = vadd.xlane.f32.xlu0 %v4746
    %v4748 = vpop.xlane.xlu0 %4747
    %v4749 = vrcp.pop %v4748
    %v4750 = vmul.f32 %v4745, %v4749
    %4751 = vrot.lane.b32.xlu0 %v3223, 112
    %v4752 = vpop.permute.xlu0 %4751
    %v4755 = vsel %vm678, %v4750, 0
    %4757 = vmatprep.subr.mxu0 0.0
    %4758 = vmatpush1.msra.mxu0 0.0
    %4759 = vmatprep.subr.mxu0 0.0
    %4760 = vmatpush1.msra.mxu0 0.0
    %4761 = vmatprep.subr.mxu0 0.0
    %4762 = vmatpush1.msra.mxu0 0.0
    %4763 = vmatprep.subr.mxu0 0.0
    %4764 = vmatpush1.msra.mxu0 0.0
    %4765 = vmatprep.subr.mxu0 0.0
    %4766 = vmatpush1.msra.mxu0 0.0
    %4767 = vmatprep.subr.mxu0 0.0
    %4768 = vmatpush1.msra.mxu0 0.0
    %4769 = vmatprep.subr.mxu0 0.0
    %4770 = vmatpush1.msra.mxu0 0.0
    %4771 = vmatprep.subr.mxu0 0.0
    %4772 = vmatpush1.msra.mxu0 0.0
    %4773 = vmatprep.subr.mxu0 0.0
    %4774 = vmatpush1.msra.mxu0 0.0
    %4775 = vmatprep.subr.mxu0 0.0
    %4776 = vmatpush1.msra.mxu0 0.0
    %4777 = vmatprep.subr.mxu0 0.0
    %4778 = vmatpush1.msra.mxu0 0.0
    %4779 = vmatprep.subr.mxu0 0.0
    %4780 = vmatpush1.msra.mxu0 0.0
    %4781 = vmatprep.subr.mxu0 0.0
    %4782 = vmatpush1.msra.mxu0 0.0
    %4783 = vmatprep.subr.mxu0 0.0
    %4784 = vmatpush1.msra.mxu0 0.0
    %4785 = vmatprep.subr.mxu0 0.0
    %4786 = vmatpush1.msra.mxu0 0.0
    %4787 = vmatprep.subr.mxu0 0.0
    %4788 = vmatpush1.msra.mxu0 %v4752
    %4789 = vmatprep.subr.mxu0 0.0
    %4790 = vmatpush2.msra.mxu0 0.0
    %4791 = vmatprep.subr.mxu0 0.0
    %4792 = vmatpush2.msra.mxu0 0.0
    %4793 = vmatprep.subr.mxu0 0.0
    %4794 = vmatpush2.msra.mxu0 0.0
    %4795 = vmatprep.subr.mxu0 0.0
    %4796 = vmatpush2.msra.mxu0 0.0
    %4797 = vmatprep.subr.mxu0 0.0
    %4798 = vmatpush2.msra.mxu0 0.0
    %4799 = vmatprep.subr.mxu0 0.0
    %4800 = vmatpush2.msra.mxu0 0.0
    %4801 = vmatprep.subr.mxu0 0.0
    %4802 = vmatpush2.msra.mxu0 0.0
    %4803 = vmatprep.subr.mxu0 0.0
    %4804 = vmatpush2.msra.mxu0 0.0
    %4805 = vmatprep.subr.mxu0 0.0
    %4806 = vmatpush2.msra.mxu0 0.0
    %4807 = vmatprep.subr.mxu0 0.0
    %4808 = vmatpush2.msra.mxu0 0.0
    %4809 = vmatprep.subr.mxu0 0.0
    %4810 = vmatpush2.msra.mxu0 0.0
    %4811 = vmatprep.subr.mxu0 0.0
    %4812 = vmatpush2.msra.mxu0 0.0
    %4813 = vmatprep.subr.mxu0 0.0
    %4814 = vmatpush2.msra.mxu0 0.0
    %4815 = vmatprep.subr.mxu0 0.0
    %4816 = vmatpush2.msra.mxu0 0.0
    %4817 = vmatprep.subr.mxu0 0.0
    %4818 = vmatpush2.msra.mxu0 0.0
    %4819 = vmatprep.subr.mxu0 0.0
    %4820 = vmatpush2.msra.mxu0 0.0
    %4821 = vmatprep.mubr.f32.mxu0 0.0
    %4822 = vmatmul.mubr.f32.gmra.mxu0 %v4755
    %v4823 = vpop.f32.mrf.mxu0
    %v4824 = vadd.f32 0.0, %v4823
    %v4825 = vpop.f32.mrf.mxu0
    %4826 = vdwg.mxu0
    %v4828 = vsel %vm678, %v4824, 0
    %4830 = vmatprep.subr.mxu0 0.0
    %4831 = vmatpush1.msra.mxu0 0.0
    %4832 = vmatprep.subr.mxu0 0.0
    %4833 = vmatpush1.msra.mxu0 0.0
    %4834 = vmatprep.subr.mxu0 0.0
    %4835 = vmatpush1.msra.mxu0 0.0
    %4836 = vmatprep.subr.mxu0 0.0
    %4837 = vmatpush1.msra.mxu0 0.0
    %4838 = vmatprep.subr.mxu0 0.0
    %4839 = vmatpush1.msra.mxu0 0.0
    %4840 = vmatprep.subr.mxu0 0.0
    %4841 = vmatpush1.msra.mxu0 0.0
    %4842 = vmatprep.subr.mxu0 0.0
    %4843 = vmatpush1.msra.mxu0 0.0
    %4844 = vmatprep.subr.mxu0 0.0
    %4845 = vmatpush1.msra.mxu0 0.0
    %4846 = vmatprep.subr.mxu0 0.0
    %4847 = vmatpush1.msra.mxu0 0.0
    %4848 = vmatprep.subr.mxu0 0.0
    %4849 = vmatpush1.msra.mxu0 0.0
    %4850 = vmatprep.subr.mxu0 0.0
    %4851 = vmatpush1.msra.mxu0 0.0
    %4852 = vmatprep.subr.mxu0 0.0
    %4853 = vmatpush1.msra.mxu0 0.0
    %4854 = vmatprep.subr.mxu0 0.0
    %4855 = vmatpush1.msra.mxu0 0.0
    %4856 = vmatprep.subr.mxu0 0.0
    %4857 = vmatpush1.msra.mxu0 0.0
    %4858 = vmatprep.subr.mxu0 0.0
    %4859 = vmatpush1.msra.mxu0 0.0
    %4860 = vmatprep.subr.mxu0 0.0
    %4861 = vmatpush1.msra.mxu0 %v2973
    %4862 = vmatprep.subr.mxu0 0.0
    %4863 = vmatpush2.msra.mxu0 0.0
    %4864 = vmatprep.subr.mxu0 0.0
    %4865 = vmatpush2.msra.mxu0 0.0
    %4866 = vmatprep.subr.mxu0 0.0
    %4867 = vmatpush2.msra.mxu0 0.0
    %4868 = vmatprep.subr.mxu0 0.0
    %4869 = vmatpush2.msra.mxu0 0.0
    %4870 = vmatprep.subr.mxu0 0.0
    %4871 = vmatpush2.msra.mxu0 0.0
    %4872 = vmatprep.subr.mxu0 0.0
    %4873 = vmatpush2.msra.mxu0 0.0
    %4874 = vmatprep.subr.mxu0 0.0
    %4875 = vmatpush2.msra.mxu0 0.0
    %4876 = vmatprep.subr.mxu0 0.0
    %4877 = vmatpush2.msra.mxu0 0.0
    %4878 = vmatprep.subr.mxu0 0.0
    %4879 = vmatpush2.msra.mxu0 0.0
    %4880 = vmatprep.subr.mxu0 0.0
    %4881 = vmatpush2.msra.mxu0 0.0
    %4882 = vmatprep.subr.mxu0 0.0
    %4883 = vmatpush2.msra.mxu0 0.0
    %4884 = vmatprep.subr.mxu0 0.0
    %4885 = vmatpush2.msra.mxu0 0.0
    %4886 = vmatprep.subr.mxu0 0.0
    %4887 = vmatpush2.msra.mxu0 0.0
    %4888 = vmatprep.subr.mxu0 0.0
    %4889 = vmatpush2.msra.mxu0 0.0
    %4890 = vmatprep.subr.mxu0 0.0
    %4891 = vmatpush2.msra.mxu0 0.0
    %4892 = vmatprep.subr.mxu0 0.0
    %4893 = vmatpush2.msra.mxu0 0.0
    %4894 = vmatprep.mubr.f32.mxu0 0.0
    %4895 = vmatmul.mubr.f32.gmra.mxu0 %v4828
    %v4896 = vpop.f32.mrf.mxu0
    %v4897 = vadd.f32 0.0, %v4896
    %v4898 = vpop.f32.mrf.mxu0
    %4899 = vdwg.mxu0
    %v4900 = vadd.f32 %v4657, %v4897
    %4901 = vrot.lane.b32.xlu0 %v3061, 104
    %v4902 = vpop.permute.xlu0 %4901
    %4903 = vrot.lane.b32.xlu0 %v3142, 104
    %v4904 = vpop.permute.xlu0 %4903
    %v4905 = vsel %vm678, %v4902, 0
    %v4907 = vsel %vm678, %v4904, 0
    %4909 = vmatprep.subr.mxu0 0.0
    %4910 = vmatpush1.xpose.msra.mxu0 0.0
    %4911 = vmatprep.subr.mxu0 0.0
    %4912 = vmatpush1.xpose.msra.mxu0 0.0
    %4913 = vmatprep.subr.mxu0 0.0
    %4914 = vmatpush1.xpose.msra.mxu0 0.0
    %4915 = vmatprep.subr.mxu0 0.0
    %4916 = vmatpush1.xpose.msra.mxu0 0.0
    %4917 = vmatprep.subr.mxu0 0.0
    %4918 = vmatpush1.xpose.msra.mxu0 0.0
    %4919 = vmatprep.subr.mxu0 0.0
    %4920 = vmatpush1.xpose.msra.mxu0 0.0
    %4921 = vmatprep.subr.mxu0 0.0
    %4922 = vmatpush1.xpose.msra.mxu0 0.0
    %4923 = vmatprep.subr.mxu0 0.0
    %4924 = vmatpush1.xpose.msra.mxu0 0.0
    %4925 = vmatprep.subr.mxu0 0.0
    %4926 = vmatpush1.xpose.msra.mxu0 0.0
    %4927 = vmatprep.subr.mxu0 0.0
    %4928 = vmatpush1.xpose.msra.mxu0 0.0
    %4929 = vmatprep.subr.mxu0 0.0
    %4930 = vmatpush1.xpose.msra.mxu0 0.0
    %4931 = vmatprep.subr.mxu0 0.0
    %4932 = vmatpush1.xpose.msra.mxu0 0.0
    %4933 = vmatprep.subr.mxu0 0.0
    %4934 = vmatpush1.xpose.msra.mxu0 0.0
    %4935 = vmatprep.subr.mxu0 0.0
    %4936 = vmatpush1.xpose.msra.mxu0 0.0
    %4937 = vmatprep.subr.mxu0 0.0
    %4938 = vmatpush1.xpose.msra.mxu0 0.0
    %4939 = vmatprep.subr.mxu0 0.0
    %4940 = vmatpush1.xpose.msra.mxu0 %v4907
    %4941 = vmatprep.subr.mxu0 0.0
    %4942 = vmatpush2.xpose.msra.mxu0 0.0
    %4943 = vmatprep.subr.mxu0 0.0
    %4944 = vmatpush2.xpose.msra.mxu0 0.0
    %4945 = vmatprep.subr.mxu0 0.0
    %4946 = vmatpush2.xpose.msra.mxu0 0.0
    %4947 = vmatprep.subr.mxu0 0.0
    %4948 = vmatpush2.xpose.msra.mxu0 0.0
    %4949 = vmatprep.subr.mxu0 0.0
    %4950 = vmatpush2.xpose.msra.mxu0 0.0
    %4951 = vmatprep.subr.mxu0 0.0
    %4952 = vmatpush2.xpose.msra.mxu0 0.0
    %4953 = vmatprep.subr.mxu0 0.0
    %4954 = vmatpush2.xpose.msra.mxu0 0.0
    %4955 = vmatprep.subr.mxu0 0.0
    %4956 = vmatpush2.xpose.msra.mxu0 0.0
    %4957 = vmatprep.subr.mxu0 0.0
    %4958 = vmatpush2.xpose.msra.mxu0 0.0
    %4959 = vmatprep.subr.mxu0 0.0
    %4960 = vmatpush2.xpose.msra.mxu0 0.0
    %4961 = vmatprep.subr.mxu0 0.0
    %4962 = vmatpush2.xpose.msra.mxu0 0.0
    %4963 = vmatprep.subr.mxu0 0.0
    %4964 = vmatpush2.xpose.msra.mxu0 0.0
    %4965 = vmatprep.subr.mxu0 0.0
    %4966 = vmatpush2.xpose.msra.mxu0 0.0
    %4967 = vmatprep.subr.mxu0 0.0
    %4968 = vmatpush2.xpose.msra.mxu0 0.0
    %4969 = vmatprep.subr.mxu0 0.0
    %4970 = vmatpush2.xpose.msra.mxu0 0.0
    %4971 = vmatprep.subr.mxu0 0.0
    %4972 = vmatpush2.xpose.msra.mxu0 0.0
    %4973 = vmatprep.mubr.f32.mxu0 0.0
    %4974 = vmatmul.mubr.f32.gmra.mxu0 %v4905
    %v4975 = vpop.f32.mrf.mxu0
    %v4976 = vadd.f32 0.0, %v4975
    %v4977 = vpop.f32.mrf.mxu0
    %4978 = vdwg.mxu0
    %v4979 = vmul.f32 %v4976, 0.35355338
    %v4980 = vadd.f32 %v4979, %v1721
    %v4981 = vsel %vm678, %v4980, -inf
    %4982 = vmax.xlane.f32.xlu0 %v4981
    %v4983 = vpop.xlane.xlu0 %4982
    %v4984 = vsub.f32 %v4980, %v4983
    %v4985 = vmul.f32 %v4984, 1.442695
    %v4986 = vpow.pop %v4985
    %v4987 = vsel %vm678, %v4986, 0.0
    %4988 = vadd.xlane.f32.xlu0 %v4987
    %v4989 = vpop.xlane.xlu0 %4988
    %v4990 = vrcp.pop %v4989
    %v4991 = vmul.f32 %v4986, %v4990
    %4992 = vrot.lane.b32.xlu0 %v3223, 104
    %v4993 = vpop.permute.xlu0 %4992
    %v4996 = vsel %vm678, %v4991, 0
    %4998 = vmatprep.subr.mxu0 0.0
    %4999 = vmatpush1.msra.mxu0 0.0
    %5000 = vmatprep.subr.mxu0 0.0
    %5001 = vmatpush1.msra.mxu0 0.0
    %5002 = vmatprep.subr.mxu0 0.0
    %5003 = vmatpush1.msra.mxu0 0.0
    %5004 = vmatprep.subr.mxu0 0.0
    %5005 = vmatpush1.msra.mxu0 0.0
    %5006 = vmatprep.subr.mxu0 0.0
    %5007 = vmatpush1.msra.mxu0 0.0
    %5008 = vmatprep.subr.mxu0 0.0
    %5009 = vmatpush1.msra.mxu0 0.0
    %5010 = vmatprep.subr.mxu0 0.0
    %5011 = vmatpush1.msra.mxu0 0.0
    %5012 = vmatprep.subr.mxu0 0.0
    %5013 = vmatpush1.msra.mxu0 0.0
    %5014 = vmatprep.subr.mxu0 0.0
    %5015 = vmatpush1.msra.mxu0 0.0
    %5016 = vmatprep.subr.mxu0 0.0
    %5017 = vmatpush1.msra.mxu0 0.0
    %5018 = vmatprep.subr.mxu0 0.0
    %5019 = vmatpush1.msra.mxu0 0.0
    %5020 = vmatprep.subr.mxu0 0.0
    %5021 = vmatpush1.msra.mxu0 0.0
    %5022 = vmatprep.subr.mxu0 0.0
    %5023 = vmatpush1.msra.mxu0 0.0
    %5024 = vmatprep.subr.mxu0 0.0
    %5025 = vmatpush1.msra.mxu0 0.0
    %5026 = vmatprep.subr.mxu0 0.0
    %5027 = vmatpush1.msra.mxu0 0.0
    %5028 = vmatprep.subr.mxu0 0.0
    %5029 = vmatpush1.msra.mxu0 %v4993
    %5030 = vmatprep.subr.mxu0 0.0
    %5031 = vmatpush2.msra.mxu0 0.0
    %5032 = vmatprep.subr.mxu0 0.0
    %5033 = vmatpush2.msra.mxu0 0.0
    %5034 = vmatprep.subr.mxu0 0.0
    %5035 = vmatpush2.msra.mxu0 0.0
    %5036 = vmatprep.subr.mxu0 0.0
    %5037 = vmatpush2.msra.mxu0 0.0
    %5038 = vmatprep.subr.mxu0 0.0
    %5039 = vmatpush2.msra.mxu0 0.0
    %5040 = vmatprep.subr.mxu0 0.0
    %5041 = vmatpush2.msra.mxu0 0.0
    %5042 = vmatprep.subr.mxu0 0.0
    %5043 = vmatpush2.msra.mxu0 0.0
    %5044 = vmatprep.subr.mxu0 0.0
    %5045 = vmatpush2.msra.mxu0 0.0
    %5046 = vmatprep.subr.mxu0 0.0
    %5047 = vmatpush2.msra.mxu0 0.0
    %5048 = vmatprep.subr.mxu0 0.0
    %5049 = vmatpush2.msra.mxu0 0.0
    %5050 = vmatprep.subr.mxu0 0.0
    %5051 = vmatpush2.msra.mxu0 0.0
    %5052 = vmatprep.subr.mxu0 0.0
    %5053 = vmatpush2.msra.mxu0 0.0
    %5054 = vmatprep.subr.mxu0 0.0
    %5055 = vmatpush2.msra.mxu0 0.0
    %5056 = vmatprep.subr.mxu0 0.0
    %5057 = vmatpush2.msra.mxu0 0.0
    %5058 = vmatprep.subr.mxu0 0.0
    %5059 = vmatpush2.msra.mxu0 0.0
    %5060 = vmatprep.subr.mxu0 0.0
    %5061 = vmatpush2.msra.mxu0 0.0
    %5062 = vmatprep.mubr.f32.mxu0 0.0
    %5063 = vmatmul.mubr.f32.gmra.mxu0 %v4996
    %v5064 = vpop.f32.mrf.mxu0
    %v5065 = vadd.f32 0.0, %v5064
    %v5066 = vpop.f32.mrf.mxu0
    %5067 = vdwg.mxu0
    %v5069 = vsel %vm678, %v5065, 0
    %5071 = vmatprep.subr.mxu0 0.0
    %5072 = vmatpush1.msra.mxu0 0.0
    %5073 = vmatprep.subr.mxu0 0.0
    %5074 = vmatpush1.msra.mxu0 0.0
    %5075 = vmatprep.subr.mxu0 0.0
    %5076 = vmatpush1.msra.mxu0 0.0
    %5077 = vmatprep.subr.mxu0 0.0
    %5078 = vmatpush1.msra.mxu0 0.0
    %5079 = vmatprep.subr.mxu0 0.0
    %5080 = vmatpush1.msra.mxu0 0.0
    %5081 = vmatprep.subr.mxu0 0.0
    %5082 = vmatpush1.msra.mxu0 0.0
    %5083 = vmatprep.subr.mxu0 0.0
    %5084 = vmatpush1.msra.mxu0 0.0
    %5085 = vmatprep.subr.mxu0 0.0
    %5086 = vmatpush1.msra.mxu0 0.0
    %5087 = vmatprep.subr.mxu0 0.0
    %5088 = vmatpush1.msra.mxu0 0.0
    %5089 = vmatprep.subr.mxu0 0.0
    %5090 = vmatpush1.msra.mxu0 0.0
    %5091 = vmatprep.subr.mxu0 0.0
    %5092 = vmatpush1.msra.mxu0 0.0
    %5093 = vmatprep.subr.mxu0 0.0
    %5094 = vmatpush1.msra.mxu0 0.0
    %5095 = vmatprep.subr.mxu0 0.0
    %5096 = vmatpush1.msra.mxu0 0.0
    %5097 = vmatprep.subr.mxu0 0.0
    %5098 = vmatpush1.msra.mxu0 0.0
    %5099 = vmatprep.subr.mxu0 0.0
    %5100 = vmatpush1.msra.mxu0 0.0
    %5101 = vmatprep.subr.mxu0 0.0
    %5102 = vmatpush1.msra.mxu0 %v2974
    %5103 = vmatprep.subr.mxu0 0.0
    %5104 = vmatpush2.msra.mxu0 0.0
    %5105 = vmatprep.subr.mxu0 0.0
    %5106 = vmatpush2.msra.mxu0 0.0
    %5107 = vmatprep.subr.mxu0 0.0
    %5108 = vmatpush2.msra.mxu0 0.0
    %5109 = vmatprep.subr.mxu0 0.0
    %5110 = vmatpush2.msra.mxu0 0.0
    %5111 = vmatprep.subr.mxu0 0.0
    %5112 = vmatpush2.msra.mxu0 0.0
    %5113 = vmatprep.subr.mxu0 0.0
    %5114 = vmatpush2.msra.mxu0 0.0
    %5115 = vmatprep.subr.mxu0 0.0
    %5116 = vmatpush2.msra.mxu0 0.0
    %5117 = vmatprep.subr.mxu0 0.0
    %5118 = vmatpush2.msra.mxu0 0.0
    %5119 = vmatprep.subr.mxu0 0.0
    %5120 = vmatpush2.msra.mxu0 0.0
    %5121 = vmatprep.subr.mxu0 0.0
    %5122 = vmatpush2.msra.mxu0 0.0
    %5123 = vmatprep.subr.mxu0 0.0
    %5124 = vmatpush2.msra.mxu0 0.0
    %5125 = vmatprep.subr.mxu0 0.0
    %5126 = vmatpush2.msra.mxu0 0.0
    %5127 = vmatprep.subr.mxu0 0.0
    %5128 = vmatpush2.msra.mxu0 0.0
    %5129 = vmatprep.subr.mxu0 0.0
    %5130 = vmatpush2.msra.mxu0 0.0
    %5131 = vmatprep.subr.mxu0 0.0
    %5132 = vmatpush2.msra.mxu0 0.0
    %5133 = vmatprep.subr.mxu0 0.0
    %5134 = vmatpush2.msra.mxu0 0.0
    %5135 = vmatprep.mubr.f32.mxu0 0.0
    %5136 = vmatmul.mubr.f32.gmra.mxu0 %v5069
    %v5137 = vpop.f32.mrf.mxu0
    %v5138 = vadd.f32 0.0, %v5137
    %v5139 = vpop.f32.mrf.mxu0
    %5140 = vdwg.mxu0
    %v5141 = vadd.f32 %v4900, %v5138
    %v5143 = vlaneseq
    %v5144 = vshrl.u32 %v5143, 7
    %v5145 = vsub.s32 0, %v5144
    %v5146 = vrot.slane %v2982, %v5145
    %v5148 = vadd.f32 %v4183, %v5146
    %v5149 = vadd.f32 %v5141, %v5146
    %v5150 = vadd.f32 %v5148, %v2917
    %v5151 = vadd.f32 %v5149, %v2918
    %s5152 = scalar_lea.vmem %s8, 2
    %v5153 = vld [vmem:[%s5152] sm:$0x1]
    %s5154 = scalar_lea.vmem %s9, 2
    %v5155 = vld [vmem:[%s5154] sm:$0x1]
    %v5156 = vmul.f32 %v5150, %v218
    %v5157 = vmul.f32 %v5151, %v218
    %5158 = vadd.xlane.f32.xlu0 %v5156
    %v5159 = vpop.xlane.xlu0 %5158
    %5160 = vadd.xlane.f32.xlu0 %v5157
    %v5161 = vpop.xlane.xlu0 %5160
    %v5162 = vmul.f32 %v5159, 0.03125
    %v5163 = vmul.f32 %v5161, 0.03125
    %v5164 = vsub.f32 %v5150, %v5162
    %v5165 = vsub.f32 %v5151, %v5163
    %v5166 = vmul.f32 %v5164, %v218
    %v5167 = vmul.f32 %v5165, %v218
    %v5168 = vmul.f32 %v5166, %v5166
    %v5169 = vmul.f32 %v5167, %v5167
    %5170 = vadd.xlane.f32.xlu0 %v5168
    %v5171 = vpop.xlane.xlu0 %5170
    %5172 = vadd.xlane.f32.xlu0 %v5169
    %v5173 = vpop.xlane.xlu0 %5172
    %v5174 = vmul.f32 %v5171, 0.03125
    %v5175 = vmul.f32 %v5173, 0.03125
    %v5176 = vadd.f32 %v5174, 1e-12
    %v5177 = vadd.f32 %v5175, 1e-12
    %v5178 = vrsqrt.pop %v5176
    %v5179 = vrsqrt.pop %v5177
    %v5180 = vmul.f32 %v5166, %v5178
    %v5181 = vmul.f32 %v5167, %v5179
    %v5183 = vlaneseq
    %v5184 = vshrl.u32 %v5183, 7
    %v5185 = vsub.s32 0, %v5184
    %v5186 = vrot.slane %v5153, %v5185
    %v5188 = vmul.f32 %v5180, %v5186
    %v5189 = vmul.f32 %v5181, %v5186
    %v5191 = vlaneseq
    %v5192 = vshrl.u32 %v5191, 7
    %v5193 = vsub.s32 0, %v5192
    %v5194 = vrot.slane %v5155, %v5193
    %v5196 = vadd.f32 %v5188, %v5194
    %v5197 = vadd.f32 %v5189, %v5194
    %s5198 = scalar_lea.vmem [#allocation9], 128
    %v5199 = vld [vmem:[%s5198] sm:$0xff]
    %v5200 = vld [vmem:[%s5198 + $0x8] sm:$0xff]
    %v5201 = vld [vmem:[%s5198 + $0x10] sm:$0xff]
    %v5202 = vld [vmem:[%s5198 + $0x18] sm:$0xff]
    %v5203 = vld [vmem:[%s5198 + $0x20] sm:$0xff]
    %v5204 = vld [vmem:[%s5198 + $0x28] sm:$0xff]
    %v5205 = vld [vmem:[%s5198 + $0x30] sm:$0xff]
    %v5206 = vld [vmem:[%s5198 + $0x38] sm:$0xff]
    %v5207 = vld [vmem:[%s5198 + $0x40] sm:$0xff]
    %v5208 = vld [vmem:[%s5198 + $0x48] sm:$0xff]
    %v5209 = vld [vmem:[%s5198 + $0x50] sm:$0xff]
    %v5210 = vld [vmem:[%s5198 + $0x58] sm:$0xff]
    %v5211 = vld [vmem:[%s5198 + $0x60] sm:$0xff]
    %v5212 = vld [vmem:[%s5198 + $0x68] sm:$0xff]
    %v5213 = vld [vmem:[%s5198 + $0x70] sm:$0xff]
    %v5214 = vld [vmem:[%s5198 + $0x78] sm:$0xff]
    %s5215 = scalar_lea.vmem [#allocation10], 1
    %v5216 = vld [vmem:[%s5215] sm:$0x1]
    %v5218 = vlaneseq
    %v5219 = vshrl.u32 %v5218, 7
    %v5220 = vsub.s32 0, %v5219
    %v5221 = vrot.slane %v5216, %v5220
    %5223 = vmatprep.subr.mxu0 0.0
    %5224 = vmatpush1.msra.mxu0 %v5214
    %5225 = vmatprep.subr.mxu0 0.0
    %5226 = vmatpush1.msra.mxu0 %v5213
    %5227 = vmatprep.subr.mxu0 0.0
    %5228 = vmatpush1.msra.mxu0 %v5212
    %5229 = vmatprep.subr.mxu0 0.0
    %5230 = vmatpush1.msra.mxu0 %v5211
    %5231 = vmatprep.subr.mxu0 0.0
    %5232 = vmatpush1.msra.mxu0 %v5210
    %5233 = vmatprep.subr.mxu0 0.0
    %5234 = vmatpush1.msra.mxu0 %v5209
    %5235 = vmatprep.subr.mxu0 0.0
    %5236 = vmatpush1.msra.mxu0 %v5208
    %5237 = vmatprep.subr.mxu0 0.0
    %5238 = vmatpush1.msra.mxu0 %v5207
    %5239 = vmatprep.subr.mxu0 0.0
    %5240 = vmatpush1.msra.mxu0 %v5206
    %5241 = vmatprep.subr.mxu0 0.0
    %5242 = vmatpush1.msra.mxu0 %v5205
    %5243 = vmatprep.subr.mxu0 0.0
    %5244 = vmatpush1.msra.mxu0 %v5204
    %5245 = vmatprep.subr.mxu0 0.0
    %5246 = vmatpush1.msra.mxu0 %v5203
    %5247 = vmatprep.subr.mxu0 0.0
    %5248 = vmatpush1.msra.mxu0 %v5202
    %5249 = vmatprep.subr.mxu0 0.0
    %5250 = vmatpush1.msra.mxu0 %v5201
    %5251 = vmatprep.subr.mxu0 0.0
    %5252 = vmatpush1.msra.mxu0 %v5200
    %5253 = vmatprep.subr.mxu0 0.0
    %5254 = vmatpush1.msra.mxu0 %v5199
    %5255 = vmatprep.subr.mxu0 0.0
    %5256 = vmatpush2.msra.mxu0 0.0
    %5257 = vmatprep.subr.mxu0 0.0
    %5258 = vmatpush2.msra.mxu0 0.0
    %5259 = vmatprep.subr.mxu0 0.0
    %5260 = vmatpush2.msra.mxu0 0.0
    %5261 = vmatprep.subr.mxu0 0.0
    %5262 = vmatpush2.msra.mxu0 0.0
    %5263 = vmatprep.subr.mxu0 0.0
    %5264 = vmatpush2.msra.mxu0 0.0
    %5265 = vmatprep.subr.mxu0 0.0
    %5266 = vmatpush2.msra.mxu0 0.0
    %5267 = vmatprep.subr.mxu0 0.0
    %5268 = vmatpush2.msra.mxu0 0.0
    %5269 = vmatprep.subr.mxu0 0.0
    %5270 = vmatpush2.msra.mxu0 0.0
    %5271 = vmatprep.subr.mxu0 0.0
    %5272 = vmatpush2.msra.mxu0 0.0
    %5273 = vmatprep.subr.mxu0 0.0
    %5274 = vmatpush2.msra.mxu0 0.0
    %5275 = vmatprep.subr.mxu0 0.0
    %5276 = vmatpush2.msra.mxu0 0.0
    %5277 = vmatprep.subr.mxu0 0.0
    %5278 = vmatpush2.msra.mxu0 0.0
    %5279 = vmatprep.subr.mxu0 0.0
    %5280 = vmatpush2.msra.mxu0 0.0
    %5281 = vmatprep.subr.mxu0 0.0
    %5282 = vmatpush2.msra.mxu0 0.0
    %5283 = vmatprep.subr.mxu0 0.0
    %5284 = vmatpush2.msra.mxu0 0.0
    %5285 = vmatprep.subr.mxu0 0.0
    %5286 = vmatpush2.msra.mxu0 0.0
    %5287 = vmatprep.mubr.f32.mxu0 0.0
    %5288 = vmatmul.mubr.f32.gmra.mxu0 %v5196
    %v5289 = vpop.f32.mrf.mxu0
    %v5290 = vadd.f32 %v5221, %v5289
    %v5291 = vpop.f32.mrf.mxu0
    %5292 = vmatprep.mubr.f32.mxu0 0.0
    %5293 = vmatmul.mubr.f32.gmra.mxu0 %v5197
    %v5294 = vpop.f32.mrf.mxu0
    %v5295 = vadd.f32 %v5221, %v5294
    %v5296 = vpop.f32.mrf.mxu0
    %5297 = vdwg.mxu0
    %v5298 = vmul.f32 %v5290, 0.5
    %v5299 = vmul.f32 %v5295, 0.5
    %v5300 = vmul.f32 %v5290, 0.044715
    %v5301 = vmul.f32 %v5295, 0.044715
    %v5302 = vmul.f32 %v5300, %v5290
    %v5303 = vmul.f32 %v5301, %v5295
    %v5304 = vmul.f32 %v5302, %v5290
    %v5305 = vmul.f32 %v5303, %v5295
    %v5306 = vadd.f32 %v5290, %v5304
    %v5307 = vadd.f32 %v5295, %v5305
    %v5308 = vmul.f32 %v5306, 0.7978846
    %v5309 = vmul.f32 %v5307, 0.7978846
    %v5310 = vtanh.pop %v5308
    %v5311 = vtanh.pop %v5309
    %v5312 = vadd.f32 %v5310, 1.0
    %v5313 = vadd.f32 %v5311, 1.0
    %v5314 = vmul.f32 %v5298, %v5312
    %v5315 = vmul.f32 %v5299, %v5313
    %s5316 = scalar_lea.vmem [#allocation12], 128
    %v5317 = vld [vmem:[%s5316] sm:$0xff]
    %v5318 = vld [vmem:[%s5316 + $0x8] sm:$0xff]
    %v5319 = vld [vmem:[%s5316 + $0x10] sm:$0xff]
    %v5320 = vld [vmem:[%s5316 + $0x18] sm:$0xff]
    %v5321 = vld [vmem:[%s5316 + $0x20] sm:$0xff]
    %v5322 = vld [vmem:[%s5316 + $0x28] sm:$0xff]
    %v5323 = vld [vmem:[%s5316 + $0x30] sm:$0xff]
    %v5324 = vld [vmem:[%s5316 + $0x38] sm:$0xff]
    %v5325 = vld [vmem:[%s5316 + $0x40] sm:$0xff]
    %v5326 = vld [vmem:[%s5316 + $0x48] sm:$0xff]
    %v5327 = vld [vmem:[%s5316 + $0x50] sm:$0xff]
    %v5328 = vld [vmem:[%s5316 + $0x58] sm:$0xff]
    %v5329 = vld [vmem:[%s5316 + $0x60] sm:$0xff]
    %v5330 = vld [vmem:[%s5316 + $0x68] sm:$0xff]
    %v5331 = vld [vmem:[%s5316 + $0x70] sm:$0xff]
    %v5332 = vld [vmem:[%s5316 + $0x78] sm:$0xff]
    %s5333 = scalar_lea.vmem [#allocation13], 1
    %v5334 = vld [vmem:[%s5333] sm:$0x1]
    %v5336 = vlaneseq
    %v5337 = vshrl.u32 %v5336, 7
    %v5338 = vsub.s32 0, %v5337
    %v5339 = vrot.slane %v5334, %v5338
    %5341 = vmatprep.subr.mxu0 0.0
    %5342 = vmatpush1.msra.mxu0 %v5332
    %5343 = vmatprep.subr.mxu0 0.0
    %5344 = vmatpush1.msra.mxu0 %v5331
    %5345 = vmatprep.subr.mxu0 0.0
    %5346 = vmatpush1.msra.mxu0 %v5330
    %5347 = vmatprep.subr.mxu0 0.0
    %5348 = vmatpush1.msra.mxu0 %v5329
    %5349 = vmatprep.subr.mxu0 0.0
    %5350 = vmatpush1.msra.mxu0 %v5328
    %5351 = vmatprep.subr.mxu0 0.0
    %5352 = vmatpush1.msra.mxu0 %v5327
    %5353 = vmatprep.subr.mxu0 0.0
    %5354 = vmatpush1.msra.mxu0 %v5326
    %5355 = vmatprep.subr.mxu0 0.0
    %5356 = vmatpush1.msra.mxu0 %v5325
    %5357 = vmatprep.subr.mxu0 0.0
    %5358 = vmatpush1.msra.mxu0 %v5324
    %5359 = vmatprep.subr.mxu0 0.0
    %5360 = vmatpush1.msra.mxu0 %v5323
    %5361 = vmatprep.subr.mxu0 0.0
    %5362 = vmatpush1.msra.mxu0 %v5322
    %5363 = vmatprep.subr.mxu0 0.0
    %5364 = vmatpush1.msra.mxu0 %v5321
    %5365 = vmatprep.subr.mxu0 0.0
    %5366 = vmatpush1.msra.mxu0 %v5320
    %5367 = vmatprep.subr.mxu0 0.0
    %5368 = vmatpush1.msra.mxu0 %v5319
    %5369 = vmatprep.subr.mxu0 0.0
    %5370 = vmatpush1.msra.mxu0 %v5318
    %5371 = vmatprep.subr.mxu0 0.0
    %5372 = vmatpush1.msra.mxu0 %v5317
    %5373 = vmatprep.subr.mxu0 0.0
    %5374 = vmatpush2.msra.mxu0 0.0
    %5375 = vmatprep.subr.mxu0 0.0
    %5376 = vmatpush2.msra.mxu0 0.0
    %5377 = vmatprep.subr.mxu0 0.0
    %5378 = vmatpush2.msra.mxu0 0.0
    %5379 = vmatprep.subr.mxu0 0.0
    %5380 = vmatpush2.msra.mxu0 0.0
    %5381 = vmatprep.subr.mxu0 0.0
    %5382 = vmatpush2.msra.mxu0 0.0
    %5383 = vmatprep.subr.mxu0 0.0
    %5384 = vmatpush2.msra.mxu0 0.0
    %5385 = vmatprep.subr.mxu0 0.0
    %5386 = vmatpush2.msra.mxu0 0.0
    %5387 = vmatprep.subr.mxu0 0.0
    %5388 = vmatpush2.msra.mxu0 0.0
    %5389 = vmatprep.subr.mxu0 0.0
    %5390 = vmatpush2.msra.mxu0 0.0
    %5391 = vmatprep.subr.mxu0 0.0
    %5392 = vmatpush2.msra.mxu0 0.0
    %5393 = vmatprep.subr.mxu0 0.0
    %5394 = vmatpush2.msra.mxu0 0.0
    %5395 = vmatprep.subr.mxu0 0.0
    %5396 = vmatpush2.msra.mxu0 0.0
    %5397 = vmatprep.subr.mxu0 0.0
    %5398 = vmatpush2.msra.mxu0 0.0
    %5399 = vmatprep.subr.mxu0 0.0
    %5400 = vmatpush2.msra.mxu0 0.0
    %5401 = vmatprep.subr.mxu0 0.0
    %5402 = vmatpush2.msra.mxu0 0.0
    %5403 = vmatprep.subr.mxu0 0.0
    %5404 = vmatpush2.msra.mxu0 0.0
    %5405 = vmatprep.mubr.f32.mxu0 0.0
    %5406 = vmatmul.mubr.f32.gmra.mxu0 %v5314
    %v5407 = vpop.f32.mrf.mxu0
    %v5408 = vadd.f32 %v5339, %v5407
    %v5409 = vpop.f32.mrf.mxu0
    %5410 = vmatprep.mubr.f32.mxu0 0.0
    %5411 = vmatmul.mubr.f32.gmra.mxu0 %v5315
    %v5412 = vpop.f32.mrf.mxu0
    %v5413 = vadd.f32 %v5339, %v5412
    %v5414 = vpop.f32.mrf.mxu0
    %5415 = vdwg.mxu0
    %v5416 = vadd.f32 %v5408, %v5196
    %v5417 = vadd.f32 %v5413, %v5197
    %s5418 = scalar_lea.vmem %s8, 3
    %v5419 = vld [vmem:[%s5418] sm:$0x1]
    %s5420 = scalar_lea.vmem %s9, 3
    %v5421 = vld [vmem:[%s5420] sm:$0x1]
    %v5422 = vmul.f32 %v5416, %v218
    %v5423 = vmul.f32 %v5417, %v218
    %5424 = vadd.xlane.f32.xlu0 %v5422
    %v5425 = vpop.xlane.xlu0 %5424
    %5426 = vadd.xlane.f32.xlu0 %v5423
    %v5427 = vpop.xlane.xlu0 %5426
    %v5428 = vmul.f32 %v5425, 0.03125
    %v5429 = vmul.f32 %v5427, 0.03125
    %v5430 = vsub.f32 %v5416, %v5428
    %v5431 = vsub.f32 %v5417, %v5429
    %v5432 = vmul.f32 %v5430, %v218
    %v5433 = vmul.f32 %v5431, %v218
    %v5434 = vmul.f32 %v5432, %v5432
    %v5435 = vmul.f32 %v5433, %v5433
    %5436 = vadd.xlane.f32.xlu0 %v5434
    %v5437 = vpop.xlane.xlu0 %5436
    %5438 = vadd.xlane.f32.xlu0 %v5435
    %v5439 = vpop.xlane.xlu0 %5438
    %v5440 = vmul.f32 %v5437, 0.03125
    %v5441 = vmul.f32 %v5439, 0.03125
    %v5442 = vadd.f32 %v5440, 1e-12
    %v5443 = vadd.f32 %v5441, 1e-12
    %v5444 = vrsqrt.pop %v5442
    %v5445 = vrsqrt.pop %v5443
    %v5446 = vmul.f32 %v5432, %v5444
    %v5447 = vmul.f32 %v5433, %v5445
    %v5449 = vlaneseq
    %v5450 = vshrl.u32 %v5449, 7
    %v5451 = vsub.s32 0, %v5450
    %v5452 = vrot.slane %v5419, %v5451
    %v5454 = vmul.f32 %v5446, %v5452
    %v5455 = vmul.f32 %v5447, %v5452
    %v5457 = vlaneseq
    %v5458 = vshrl.u32 %v5457, 7
    %v5459 = vsub.s32 0, %v5458
    %v5460 = vrot.slane %v5421, %v5459
    %v5462 = vadd.f32 %v5454, %v5460
    %v5463 = vadd.f32 %v5455, %v5460
    %v5464 = vld [vmem:[#allocation15] sm:$0xff]
    %v5465 = vld [vmem:[#allocation15 + $0x8] sm:$0xff]
    %v5466 = vld [vmem:[#allocation15 + $0x10] sm:$0xff]
    %v5467 = vld [vmem:[#allocation15 + $0x18] sm:$0xff]
    %v5468 = vld [vmem:[#allocation15 + $0x20] sm:$0xff]
    %v5469 = vld [vmem:[#allocation15 + $0x28] sm:$0xff]
    %v5470 = vld [vmem:[#allocation15 + $0x30] sm:$0xff]
    %v5471 = vld [vmem:[#allocation15 + $0x38] sm:$0xff]
    %v5472 = vld [vmem:[#allocation15 + $0x40] sm:$0xff]
    %v5473 = vld [vmem:[#allocation15 + $0x48] sm:$0xff]
    %v5474 = vld [vmem:[#allocation15 + $0x50] sm:$0xff]
    %v5475 = vld [vmem:[#allocation15 + $0x58] sm:$0xff]
    %v5476 = vld [vmem:[#allocation15 + $0x60] sm:$0xff]
    %v5477 = vld [vmem:[#allocation15 + $0x68] sm:$0xff]
    %v5478 = vld [vmem:[#allocation15 + $0x70] sm:$0xff]
    %v5479 = vld [vmem:[#allocation15 + $0x78] sm:$0xff]
    %v5480 = vld [vmem:[#allocation16] sm:$0x1]
    %v5482 = vlaneseq
    %v5483 = vshrl.u32 %v5482, 7
    %v5484 = vsub.s32 0, %v5483
    %v5485 = vrot.slane %v5480, %v5484
    %5487 = vmatprep.subr.mxu0 0.0
    %5488 = vmatpush1.msra.mxu0 %v5479
    %5489 = vmatprep.subr.mxu0 0.0
    %5490 = vmatpush1.msra.mxu0 %v5478
    %5491 = vmatprep.subr.mxu0 0.0
    %5492 = vmatpush1.msra.mxu0 %v5477
    %5493 = vmatprep.subr.mxu0 0.0
    %5494 = vmatpush1.msra.mxu0 %v5476
    %5495 = vmatprep.subr.mxu0 0.0
    %5496 = vmatpush1.msra.mxu0 %v5475
    %5497 = vmatprep.subr.mxu0 0.0
    %5498 = vmatpush1.msra.mxu0 %v5474
    %5499 = vmatprep.subr.mxu0 0.0
    %5500 = vmatpush1.msra.mxu0 %v5473
    %5501 = vmatprep.subr.mxu0 0.0
    %5502 = vmatpush1.msra.mxu0 %v5472
    %5503 = vmatprep.subr.mxu0 0.0
    %5504 = vmatpush1.msra.mxu0 %v5471
    %5505 = vmatprep.subr.mxu0 0.0
    %5506 = vmatpush1.msra.mxu0 %v5470
    %5507 = vmatprep.subr.mxu0 0.0
    %5508 = vmatpush1.msra.mxu0 %v5469
    %5509 = vmatprep.subr.mxu0 0.0
    %5510 = vmatpush1.msra.mxu0 %v5468
    %5511 = vmatprep.subr.mxu0 0.0
    %5512 = vmatpush1.msra.mxu0 %v5467
    %5513 = vmatprep.subr.mxu0 0.0
    %5514 = vmatpush1.msra.mxu0 %v5466
    %5515 = vmatprep.subr.mxu0 0.0
    %5516 = vmatpush1.msra.mxu0 %v5465
    %5517 = vmatprep.subr.mxu0 0.0
    %5518 = vmatpush1.msra.mxu0 %v5464
    %5519 = vmatprep.subr.mxu0 0.0
    %5520 = vmatpush2.msra.mxu0 0.0
    %5521 = vmatprep.subr.mxu0 0.0
    %5522 = vmatpush2.msra.mxu0 0.0
    %5523 = vmatprep.subr.mxu0 0.0
    %5524 = vmatpush2.msra.mxu0 0.0
    %5525 = vmatprep.subr.mxu0 0.0
    %5526 = vmatpush2.msra.mxu0 0.0
    %5527 = vmatprep.subr.mxu0 0.0
    %5528 = vmatpush2.msra.mxu0 0.0
    %5529 = vmatprep.subr.mxu0 0.0
    %5530 = vmatpush2.msra.mxu0 0.0
    %5531 = vmatprep.subr.mxu0 0.0
    %5532 = vmatpush2.msra.mxu0 0.0
    %5533 = vmatprep.subr.mxu0 0.0
    %5534 = vmatpush2.msra.mxu0 0.0
    %5535 = vmatprep.subr.mxu0 0.0
    %5536 = vmatpush2.msra.mxu0 0.0
    %5537 = vmatprep.subr.mxu0 0.0
    %5538 = vmatpush2.msra.mxu0 0.0
    %5539 = vmatprep.subr.mxu0 0.0
    %5540 = vmatpush2.msra.mxu0 0.0
    %5541 = vmatprep.subr.mxu0 0.0
    %5542 = vmatpush2.msra.mxu0 0.0
    %5543 = vmatprep.subr.mxu0 0.0
    %5544 = vmatpush2.msra.mxu0 0.0
    %5545 = vmatprep.subr.mxu0 0.0
    %5546 = vmatpush2.msra.mxu0 0.0
    %5547 = vmatprep.subr.mxu0 0.0
    %5548 = vmatpush2.msra.mxu0 0.0
    %5549 = vmatprep.subr.mxu0 0.0
    %5550 = vmatpush2.msra.mxu0 0.0
    %5551 = vmatprep.mubr.f32.mxu0 0.0
    %5552 = vmatmul.mubr.f32.gmra.mxu0 %v5462
    %v5553 = vpop.f32.mrf.mxu0
    %v5554 = vadd.f32 %v5485, %v5553
    %v5555 = vpop.f32.mrf.mxu0
    %5556 = vmatprep.mubr.f32.mxu0 0.0
    %5557 = vmatmul.mubr.f32.gmra.mxu0 %v5463
    %v5558 = vpop.f32.mrf.mxu0
    %v5559 = vadd.f32 %v5485, %v5558
    %v5560 = vpop.f32.mrf.mxu0
    %5561 = vdwg.mxu0
    %v5562 = vtanh.pop %v5554
    %v5563 = vtanh.pop %v5559
    %v5564 = vld [vmem:[#allocation18] sm:$0xff]
    %v5565 = vld [vmem:[#allocation18 + $0x8] sm:$0xff]
    %v5566 = vld [vmem:[#allocation18 + $0x10] sm:$0xff]
    %v5567 = vld [vmem:[#allocation18 + $0x18] sm:$0xff]
    %v5568 = vld [vmem:[#allocation18 + $0x20] sm:$0xff]
    %v5569 = vld [vmem:[#allocation18 + $0x28] sm:$0xff]
    %v5570 = vld [vmem:[#allocation18 + $0x30] sm:$0xff]
    %v5571 = vld [vmem:[#allocation18 + $0x38] sm:$0xff]
    %v5572 = vld [vmem:[#allocation18 + $0x40] sm:$0xff]
    %v5573 = vld [vmem:[#allocation18 + $0x48] sm:$0xff]
    %v5574 = vld [vmem:[#allocation18 + $0x50] sm:$0xff]
    %v5575 = vld [vmem:[#allocation18 + $0x58] sm:$0xff]
    %v5576 = vld [vmem:[#allocation18 + $0x60] sm:$0xff]
    %v5577 = vld [vmem:[#allocation18 + $0x68] sm:$0xff]
    %v5578 = vld [vmem:[#allocation18 + $0x70] sm:$0xff]
    %v5579 = vld [vmem:[#allocation18 + $0x78] sm:$0xff]
    %v5580 = vld [vmem:[#allocation19] sm:$0x1]
    %v5582 = vlaneseq
    %v5583 = vshrl.u32 %v5582, 7
    %v5584 = vsub.s32 0, %v5583
    %v5585 = vrot.slane %v5580, %v5584
    %5587 = vmatprep.subr.mxu0 0.0
    %5588 = vmatpush1.msra.mxu0 %v5579
    %5589 = vmatprep.subr.mxu0 0.0
    %5590 = vmatpush1.msra.mxu0 %v5578
    %5591 = vmatprep.subr.mxu0 0.0
    %5592 = vmatpush1.msra.mxu0 %v5577
    %5593 = vmatprep.subr.mxu0 0.0
    %5594 = vmatpush1.msra.mxu0 %v5576
    %5595 = vmatprep.subr.mxu0 0.0
    %5596 = vmatpush1.msra.mxu0 %v5575
    %5597 = vmatprep.subr.mxu0 0.0
    %5598 = vmatpush1.msra.mxu0 %v5574
    %5599 = vmatprep.subr.mxu0 0.0
    %5600 = vmatpush1.msra.mxu0 %v5573
    %5601 = vmatprep.subr.mxu0 0.0
    %5602 = vmatpush1.msra.mxu0 %v5572
    %5603 = vmatprep.subr.mxu0 0.0
    %5604 = vmatpush1.msra.mxu0 %v5571
    %5605 = vmatprep.subr.mxu0 0.0
    %5606 = vmatpush1.msra.mxu0 %v5570
    %5607 = vmatprep.subr.mxu0 0.0
    %5608 = vmatpush1.msra.mxu0 %v5569
    %5609 = vmatprep.subr.mxu0 0.0
    %5610 = vmatpush1.msra.mxu0 %v5568
    %5611 = vmatprep.subr.mxu0 0.0
    %5612 = vmatpush1.msra.mxu0 %v5567
    %5613 = vmatprep.subr.mxu0 0.0
    %5614 = vmatpush1.msra.mxu0 %v5566
    %5615 = vmatprep.subr.mxu0 0.0
    %5616 = vmatpush1.msra.mxu0 %v5565
    %5617 = vmatprep.subr.mxu0 0.0
    %5618 = vmatpush1.msra.mxu0 %v5564
    %5619 = vmatprep.subr.mxu0 0.0
    %5620 = vmatpush2.msra.mxu0 0.0
    %5621 = vmatprep.subr.mxu0 0.0
    %5622 = vmatpush2.msra.mxu0 0.0
    %5623 = vmatprep.subr.mxu0 0.0
    %5624 = vmatpush2.msra.mxu0 0.0
    %5625 = vmatprep.subr.mxu0 0.0
    %5626 = vmatpush2.msra.mxu0 0.0
    %5627 = vmatprep.subr.mxu0 0.0
    %5628 = vmatpush2.msra.mxu0 0.0
    %5629 = vmatprep.subr.mxu0 0.0
    %5630 = vmatpush2.msra.mxu0 0.0
    %5631 = vmatprep.subr.mxu0 0.0
    %5632 = vmatpush2.msra.mxu0 0.0
    %5633 = vmatprep.subr.mxu0 0.0
    %5634 = vmatpush2.msra.mxu0 0.0
    %5635 = vmatprep.subr.mxu0 0.0
    %5636 = vmatpush2.msra.mxu0 0.0
    %5637 = vmatprep.subr.mxu0 0.0
    %5638 = vmatpush2.msra.mxu0 0.0
    %5639 = vmatprep.subr.mxu0 0.0
    %5640 = vmatpush2.msra.mxu0 0.0
    %5641 = vmatprep.subr.mxu0 0.0
    %5642 = vmatpush2.msra.mxu0 0.0
    %5643 = vmatprep.subr.mxu0 0.0
    %5644 = vmatpush2.msra.mxu0 0.0
    %5645 = vmatprep.subr.mxu0 0.0
    %5646 = vmatpush2.msra.mxu0 0.0
    %5647 = vmatprep.subr.mxu0 0.0
    %5648 = vmatpush2.msra.mxu0 0.0
    %5649 = vmatprep.subr.mxu0 0.0
    %5650 = vmatpush2.msra.mxu0 0.0
    %5651 = vmatprep.mubr.f32.mxu0 0.0
    %5652 = vmatmul.mubr.f32.gmra.mxu0 %v5562
    %v5653 = vpop.f32.mrf.mxu0
    %v5654 = vadd.f32 %v5585, %v5653
    %v5655 = vpop.f32.mrf.mxu0
    %5656 = vmatprep.mubr.f32.mxu0 0.0
    %5657 = vmatmul.mubr.f32.gmra.mxu0 %v5563
    %v5658 = vpop.f32.mrf.mxu0
    %v5659 = vadd.f32 %v5585, %v5658
    %v5660 = vpop.f32.mrf.mxu0
    %5661 = vdwg.mxu0
    %5662 = vst [vmem:[%s18] sm:$0xff] %v5654
    %5663 = vst [vmem:[%s18 + $0x8] sm:$0xff] %v5659
    // Predicated region
    $region122: #{sentence_classifier_forward.1} parent=1 // pred_check
      _
    $region123: #{sentence_classifier_forward.1} parent=1 // pred_check_branch
      %5665 = sbr.rel (0) target = $region125
    $region124: #{sentence_classifier_forward.1} parent=1 // pred_region
      _
    $region125: #{sentence_classifier_forward.1} parent=1 // pred_fallthru
      _
    // Predicated region
    $region126: #{sentence_classifier_forward.1} parent=1 // pred_check
      _
    $region127: #{sentence_classifier_forward.1} parent=1 // pred_check_branch
      %5667 = sbr.rel (0) target = $region129
    $region128: #{sentence_classifier_forward.1} parent=1 // pred_region
      _
    $region129: #{sentence_classifier_forward.1} parent=1 // pred_fallthru
      _
    %5668 = vsyncpa [#allocation3], 1
    %5669 = vsyncpa [#allocation5], 1
    %5670 = vsyncpa [#allocation8], 1
    %5671 = vsyncpa [#allocation11], 1
    %5672 = vsyncpa [#allocation14], 1
    %5673 = vsyncpa [#allocation17], 1
    %5674 = vsyncpa [#allocation20], 1

</llo_original>
